<compile_context>
chip_gen: v5e
topology: v5e:2x2
jax: 0.10.0
libtpu: 0.0.40
codegen_flags: <defaults>
</compile_context>

<pallas_src>
import functools
import numpy as np

import jax
import jax.numpy as jnp
from jax import lax
from jax.experimental import pallas as pl
from jax.experimental.pallas import tpu as pltpu


# ----------------------------- wrapper glue (data movement only) -------------

def unfold_patches(x, k, stride, padding):
    """torch.nn.Unfold + reshape to (b*num_q, c, k, k)."""
    b, c, h, w = x.shape
    xp = jnp.pad(x, ((0, 0), (0, 0), (padding, padding), (padding, padding)))
    oh = (h - k + 2 * padding) // stride + 1
    ow = (w - k + 2 * padding) // stride + 1
    wins = []
    for ki in range(k):
        for kj in range(k):
            wins.append(xp[:, :, ki::stride, kj::stride][:, :, :oh, :ow])
    sp = jnp.stack(wins, axis=2).reshape(b, c, k, k, oh, ow)
    sp = sp.transpose(0, 4, 5, 1, 2, 3).reshape(b * oh * ow, c, k, k)
    return sp, oh, ow


def im2col_3x3(sp):
    """(B, c, k, k) -> (B, K2, 9*c); column order (dy*3+dx)*c + ci."""
    B, c, k, _ = sp.shape
    pp = jnp.pad(sp, ((0, 0), (0, 0), (1, 1), (1, 1)))
    cols = [pp[:, :, dy:dy + k, dx:dx + k] for dy in range(3) for dx in range(3)]
    col = jnp.stack(cols, axis=1)           # (B, 9, c, k, k)
    col = col.transpose(0, 3, 4, 1, 2)      # (B, k, k, 9, c)
    return col.reshape(B, k * k, 9 * c)


# ----------------------------- weight preparation -----------------------------

def _prepare_operands(params, *, c, k, Nh, dk, dv, tb, dtype=jnp.bfloat16):
    """Fold the torch weights into a few structured, feature-major operands."""
    K2 = k * k
    dkh, dvh = dk // Nh, dv // Nh
    f32 = jnp.float32

    # Fused input projection (3dk, 9c): rows [rel3 | q*scale | k].
    # The 1x1 convs act on the centre pixel -> im2col columns [4c, 5c).
    w3_mat = params["W3"].transpose(0, 2, 3, 1).reshape(dk, 9 * c)
    ctr = 4 * c
    w_in = jnp.zeros((3 * dk, 9 * c), f32)
    w_in = w_in.at[:dk, :].set(w3_mat)
    w_in = w_in.at[dk:2 * dk, ctr:ctr + c].set(params["Wq"] * (dkh ** -0.5))
    w_in = w_in.at[2 * dk:, ctr:ctr + c].set(params["Wk"])

    # Block-diagonal [[Wd_fold, 0], [0, E]] (2*dk*K2, 2*dk):
    #   rel3 rows -> R[(co,key), r];  q rows -> qexp[(co,key), r] = q[co, r].
    wd_fold = params["Wd"].transpose(1, 2, 3, 0).reshape(dk * K2, dk)
    expand = np.zeros((dk * K2, dk), np.float32)
    for co in range(dk):
        expand[co * K2:(co + 1) * K2, co] = 1.0
    w_rel = jnp.zeros((2 * dk * K2, 2 * dk), f32)
    w_rel = w_rel.at[:dk * K2, :dk].set(wd_fold)
    w_rel = w_rel.at[dk * K2:, dk:].set(jnp.asarray(expand))

    # Selector summing q*R over the channels of each head (keeps the key).
    sel = np.zeros((Nh * K2, dk * K2), np.float32)
    for co in range(dk):
        n = co // dkh
        for key in range(K2):
            sel[n * K2 + key, co * K2 + key] = 1.0

    # Head-block-diagonal attention-score MLP weights (feature-major).
    W1, W2 = params["W1"], params["W2"]          # (dvh, 2*dkh), (K2, dvh)
    w_mlp1 = jnp.zeros((Nh * dvh, 2 * dk), f32)
    w_mlp2 = jnp.zeros((Nh * K2, Nh * dvh), f32)
    for n in range(Nh):
        w_mlp1 = w_mlp1.at[n * dvh:(n + 1) * dvh,
                           n * dkh:(n + 1) * dkh].set(W1[:, :dkh])
        w_mlp1 = w_mlp1.at[n * dvh:(n + 1) * dvh,
                           dk + n * dkh:dk + (n + 1) * dkh].set(W1[:, dkh:])
        w_mlp2 = w_mlp2.at[n * K2:(n + 1) * K2,
                           n * dvh:(n + 1) * dvh].set(W2)

    # Per-position value projection, patch-major output layout:
    #   vP[nd*K2 + key, t] = sum_ci Wv[nd, ci] * xC[key*c + ci, t].
    wv_bd = jnp.einsum('oc,kK->okKc', params["Wv"],
                       jnp.eye(K2, dtype=f32)).reshape(dv * K2, K2 * c)

    # Mod-Nh query-position reduction selector (tb*K2, Nh*tb):
    #   rw[:, jm*tb + t] = sum_{p : p % Nh == jm} wgt[:, t*K2 + p].
    msel = np.zeros((tb * K2, Nh * tb), np.float32)
    pos = np.arange(K2)
    for t in range(tb):
        msel[t * K2 + pos, (pos % Nh) * tb + t] = 1.0

    w_out = params["Wp"]                          # (dv, dv): outT = Wp @ colsumT

    biases = jnp.concatenate([jnp.tile(params["b1"], Nh),
                              jnp.tile(params["b2"], Nh),
                              params["bp"]]).reshape(-1, 1).astype(f32)

    to = lambda a: jnp.asarray(a, dtype)
    return (to(w_in), to(w_rel), to(sel), to(w_mlp1), to(w_mlp2), to(wv_bd),
            to(msel), to(w_out), biases)


# ----------------------------- Pallas kernel ---------------------------------

def _selfattn_kernel(x_ref, xc_ref, w_in_ref, w_rel_ref, w_sel_ref,
                     w_mlp1_ref, w_mlp2_ref, wv_bd_ref, msel_ref, w_out_ref,
                     bias_ref, out_ref, *, tb, k2, nh, dk, dv, dvh):
    f32 = jnp.float32
    bf16 = jnp.bfloat16
    ndvh = nh * dvh
    nk2 = nh * k2
    dkk2 = dk * k2

    x = x_ref[...]                                   # (9c, R) bf16, lanes=(patch,pos)
    b1 = bias_ref[0:ndvh, :]                         # (ndvh, 1) f32
    b2 = bias_ref[ndvh:ndvh + nk2, :]                # (nk2, 1)
    bp = bias_ref[ndvh + nk2:, :]                    # (dv, 1)

    # Fused 3x3 rel conv + 1x1 q/k convs: one MXU matmul, feature-major output.
    proj = jnp.dot(w_in_ref[...], x, preferred_element_type=f32)     # (3dk, R)
    relq = proj[:2 * dk, :].astype(bf16)             # [rel3 ; q*scale]
    qk = proj[dk:, :].astype(bf16)                   # [q*scale ; k]

    # Transposed-conv fold (R matrix) + q sublane-expansion in one matmul.
    re = jnp.dot(w_rel_ref[...], relq, preferred_element_type=f32)   # (2*dk*k2, R)
    rel_prod = (re[dkk2:, :] * re[:dkk2, :]).astype(bf16)            # qexp * R
    rel_logits = jnp.dot(w_sel_ref[...], rel_prod,
                         preferred_element_type=f32)                 # (nk2, R)

    # Learned attention-score MLP, all heads at once (block-diag weights).
    h1 = jnp.tanh(jnp.dot(w_mlp1_ref[...], qk, preferred_element_type=f32) + b1)
    logits = (jnp.dot(w_mlp2_ref[...], h1.astype(bf16),
                      preferred_element_type=f32) + b2) + rel_logits  # (nk2, R)

    # Per-position values in patch-major layout: vp[(nd, key), t].
    vp = jnp.dot(wv_bd_ref[...], xc_ref[...], preferred_element_type=f32)
    vp3 = vp.reshape(dv, k2, tb)                     # batch=channel, sublanes=key

    msel = msel_ref[...]                             # (R, nh*tb) bf16

    pieces = [jnp.zeros((dvh, tb), f32) for _ in range(nh)]
    for n in range(nh):
        # Numerically safe per-head softmax over the key sublanes
        # (per-head max -> denominator >= 1, approx reciprocal is safe).
        blk = logits[n * k2:(n + 1) * k2, :]                     # (k2, R)
        m = jnp.max(blk, axis=0, keepdims=True)
        e = jnp.exp(blk - m)
        den = jnp.sum(e, axis=0, keepdims=True)                  # f32, >= 1
        wgt = (e * pl.reciprocal(den, approx=True)).astype(bf16)

        # Mod-Nh query-position reduction as one wide-K MXU matmul
        # (combine_heads raw-reshape + attn_proj + spatial-sum semantics).
        rw = jnp.dot(wgt, msel, preferred_element_type=f32)      # (k2, nh*tb)

        vph = vp3[n * dvh:(n + 1) * dvh]                         # (dvh, k2, tb)
        for jm in range(nh):
            rwj = rw[:, jm * tb:(jm + 1) * tb]                   # (k2, tb)
            pieces[jm] = pieces[jm] + jnp.sum(vph * rwj[None, :, :], axis=1)

    colsum = jnp.concatenate(pieces, axis=0)                     # (dv, tb)
    out = jnp.dot(w_out_ref[...], colsum.astype(bf16),
                  preferred_element_type=f32) + k2 * bp
    out_ref[...] = out                                           # (dv, tb) lane-dense


def self_attn_2d_pallas(x, params, *, kernel_size, stride, padding, Nh, dk, dv,
                        patch_tile=128):
    b, c, h, w = x.shape
    k = kernel_size
    K2 = k * k
    dvh = dv // Nh
    assert dk % Nh == 0 and dv % Nh == 0
    assert K2 % Nh == 0, "combine-heads reduction requires kernel_size**2 % Nh == 0"
    assert patch_tile >= 128 and patch_tile % 128 == 0, \
        "patch_tile must be a positive multiple of 128 (lane-dense output blocks)"

    sp, oh, ow = unfold_patches(x, k, stride, padding)
    B = sp.shape[0]

    TB = patch_tile
    n_tiles = max(2, pl.cdiv(B, TB))     # >= 2 grid steps so v7x can use both TCs
    Bpad = n_tiles * TB

    # Feature-major im2col input: (9c, Bpad*K2); lanes = (patch, position).
    xcol = im2col_3x3(sp)                                        # (B, K2, 9c)
    xT = xcol.transpose(2, 0, 1).reshape(9 * c, B * K2)
    xT = jnp.pad(xT, ((0, 0), (0, (Bpad - B) * K2))).astype(jnp.bfloat16)

    # Patch-major centre-pixel input for the value path: (K2*c, Bpad).
    xC = sp.reshape(B, c, K2).transpose(2, 1, 0).reshape(K2 * c, B)
    xC = jnp.pad(xC, ((0, 0), (0, Bpad - B))).astype(jnp.bfloat16)

    weights = _prepare_operands(params, c=c, k=k, Nh=Nh, dk=dk, dv=dv, tb=TB)

    kernel = functools.partial(_selfattn_kernel, tb=TB, k2=K2, nh=Nh, dk=dk,
                               dv=dv, dvh=dvh)

    def wspec(arr):
        zeros = (0,) * arr.ndim
        return pl.BlockSpec(arr.shape, lambda i, _z=zeros: _z)

    out = pl.pallas_call(
        kernel,
        out_shape=jax.ShapeDtypeStruct((dv, Bpad), jnp.float32),
        grid=(n_tiles,),
        in_specs=[pl.BlockSpec((9 * c, TB * K2), lambda i: (0, i)),
                  pl.BlockSpec((K2 * c, TB), lambda i: (0, i))]
                 + [wspec(a) for a in weights],
        out_specs=pl.BlockSpec((dv, TB), lambda i: (0, i)),
        compiler_params=pltpu.CompilerParams(
            dimension_semantics=("parallel",),
            vmem_limit_bytes=40 * 1024 * 1024),
    )(xT, xC, *weights)

    out = out[:, :B]                                             # (dv, b*oh*ow)
    return out.reshape(dv, b, oh, ow).transpose(1, 0, 2, 3)


# ----------------------------- pure-JAX reference ----------------------------

def self_attn_2d_reference(x, params, *, kernel_size, stride, padding, Nh, dk, dv):
    b, c, h, w = x.shape
    k = kernel_size
    K2 = k * k
    dkh, dvh = dk // Nh, dv // Nh
    sp, oh, ow = unfold_patches(x, k, stride, padding)
    B = sp.shape[0]

    q = jnp.einsum("oc,bcij->boij", params["Wq"], sp)
    kk = jnp.einsum("oc,bcij->boij", params["Wk"], sp)
    v = jnp.einsum("oc,bcij->boij", params["Wv"], sp)
    rel3 = lax.conv_general_dilated(sp, params["W3"], (1, 1), ((1, 1), (1, 1)),
                                    dimension_numbers=("NCHW", "OIHW", "NCHW"))
    relD = jnp.einsum("bcij,copq->boipjq", rel3, params["Wd"]).reshape(B, dk, K2, K2)

    q = q * (dkh ** -0.5)
    qh = q.reshape(B, Nh, dkh, k, k)
    kh = kk.reshape(B, Nh, dkh, k, k)
    vh = v.reshape(B, Nh, dvh, k, k)
    relh = relD.reshape(B, Nh, dkh, K2, K2)

    flat_q = qh.reshape(B, Nh, dkh, K2)
    flat_k = kh.reshape(B, Nh, dkh, K2)
    flat_v = vh.reshape(B, Nh, dvh, K2)

    xcat = jnp.concatenate([flat_q, flat_k], axis=2).transpose(0, 1, 3, 2)
    h1 = jnp.tanh(xcat @ params["W1"].T + params["b1"])
    logits = h1 @ params["W2"].T + params["b2"]

    rel_r = relh.reshape(B, Nh, dkh, k, k, k, k).transpose(0, 1, 2, 3, 5, 4, 6)
    qr = qh.reshape(B, Nh, dkh, k, k, 1, 1)
    rel_logits = jnp.sum(rel_r * qr, axis=2).reshape(B, Nh, K2, K2)
    logits = logits + rel_logits

    weights = jax.nn.softmax(logits, axis=3)
    attn = weights @ flat_v.transpose(0, 1, 3, 2)                # (B, Nh, K2, dvh)
    combined = attn.reshape(B, K2, Nh * dvh)                     # raw reshape, as torch
    proj = combined @ params["Wp"].T + params["bp"]              # (B, K2, dv)
    attn_out = jnp.sum(proj.transpose(0, 2, 1), axis=2)          # (B, dv)
    return attn_out.reshape(b, oh * ow, dv).transpose(0, 2, 1).reshape(b, dv, oh, ow)


# ----------------------------- params ----------------------------------------

def make_params(key, c, k, Nh, dk, dv):
    dkh, dvh = dk // Nh, dv // Nh
    K2 = k * k
    keys = jax.random.split(key, 11)

    def u(kk, shape, fan_in):
        bound = 1.0 / np.sqrt(fan_in)
        return jax.random.uniform(kk, shape, jnp.float32, -bound, bound)

    return dict(
        Wq=u(keys[0], (dk, c), c),
        Wk=u(keys[1], (dk, c), c),
        Wv=u(keys[2], (dv, c), c),
        W3=u(keys[3], (dk, c, 3, 3), c * 9),
        Wd=u(keys[4], (dk, dk, k, k), dk * K2),
        W1=u(keys[5], (dvh, 2 * dkh), 2 * dkh),
        b1=u(keys[6], (dvh,), 2 * dkh),
        W2=u(keys[7], (K2, dvh), dvh),
        b2=u(keys[8], (K2,), dvh),
        Wp=u(keys[9], (dv, dv), dv),
        bp=u(keys[10], (dv,), dv),
    )


# ----------------------------- main -------------------------------------------

if __name__ == "__main__":
    cfg = dict(kernel_size=4, stride=4, padding=0, Nh=2, dk=8, dv=8)
    b, c, h, w = 2, 4, 16, 16

    key = jax.random.PRNGKey(0)
    kx, kp = jax.random.split(key)
    x = jax.random.normal(kx, (b, c, h, w), jnp.float32)
    params = make_params(kp, c, cfg["kernel_size"], cfg["Nh"], cfg["dk"], cfg["dv"])

    fwd = jax.jit(functools.partial(self_attn_2d_pallas, **cfg))
    out = jax.block_until_ready(fwd(x, params))

    with jax.default_matmul_precision("highest"):
        ref = jax.block_until_ready(self_attn_2d_reference(x, params, **cfg))

    oh = (h - cfg["kernel_size"] + 2 * cfg["padding"]) // cfg["stride"] + 1
    assert out.shape == (b, cfg["dv"], oh, oh), out.shape
    # Kernel runs with bf16 MXU inputs / f32 accumulation and an approximate
    # EUP reciprocal in the softmax, hence the slightly relaxed tolerance.
    np.testing.assert_allclose(np.asarray(out), np.asarray(ref),
                               rtol=2e-2, atol=5e-2)

    print("KERNEL_OK")
</pallas_src>

<mosaic_0001>
module attributes {stable_mosaic.version = 11 : i64} {
  func.func @_selfattn_kernel(%arg0: i32, %arg1: memref<36x2048xbf16, #tpu.memory_space<vmem>>, %arg2: memref<64x128xbf16, #tpu.memory_space<vmem>>, %arg3: memref<24x36xbf16, #tpu.memory_space<vmem>>, %arg4: memref<256x16xbf16, #tpu.memory_space<vmem>>, %arg5: memref<32x128xbf16, #tpu.memory_space<vmem>>, %arg6: memref<8x16xbf16, #tpu.memory_space<vmem>>, %arg7: memref<32x8xbf16, #tpu.memory_space<vmem>>, %arg8: memref<128x64xbf16, #tpu.memory_space<vmem>>, %arg9: memref<2048x256xbf16, #tpu.memory_space<vmem>>, %arg10: memref<8x8xbf16, #tpu.memory_space<vmem>>, %arg11: memref<48x1xf32, #tpu.memory_space<vmem>>, %arg12: memref<8x128xf32, #tpu.memory_space<vmem>>) attributes {dimension_semantics = [#tpu.dimension_semantics<parallel>], iteration_bounds = array<i64: 2>, scalar_prefetch = 0 : i64, scratch_operands = 0 : i64, tpu.core_type = #tpu.core_type<tc>, window_params = [{transform_indices = @transform_0, window_bounds = array<i64: 36, 2048>}, {transform_indices = @transform_1, window_bounds = array<i64: 64, 128>}, {pipeline_mode = #tpu.pipeline_mode<synchronous>, transform_indices = @transform_2, window_bounds = array<i64: 24, 36>}, {pipeline_mode = #tpu.pipeline_mode<synchronous>, transform_indices = @transform_3, window_bounds = array<i64: 256, 16>}, {pipeline_mode = #tpu.pipeline_mode<synchronous>, transform_indices = @transform_4, window_bounds = array<i64: 32, 128>}, {pipeline_mode = #tpu.pipeline_mode<synchronous>, transform_indices = @transform_5, window_bounds = array<i64: 8, 16>}, {pipeline_mode = #tpu.pipeline_mode<synchronous>, transform_indices = @transform_6, window_bounds = array<i64: 32, 8>}, {pipeline_mode = #tpu.pipeline_mode<synchronous>, transform_indices = @transform_7, window_bounds = array<i64: 128, 64>}, {pipeline_mode = #tpu.pipeline_mode<synchronous>, transform_indices = @transform_8, window_bounds = array<i64: 2048, 256>}, {pipeline_mode = #tpu.pipeline_mode<synchronous>, transform_indices = @transform_9, window_bounds = array<i64: 8, 8>}, {pipeline_mode = #tpu.pipeline_mode<synchronous>, transform_indices = @transform_10, window_bounds = array<i64: 48, 1>}, {transform_indices = @transform_11, window_bounds = array<i64: 8, 128>}]} {
    %c0 = arith.constant 0 : index
    %c0_0 = arith.constant 0 : index
    %0 = vector.load %arg1[%c0, %c0_0] : memref<36x2048xbf16, #tpu.memory_space<vmem>>, vector<36x2048xbf16>
    %c0_1 = arith.constant 0 : index
    %c0_2 = arith.constant 0 : index
    %1 = vector.load %arg11[%c0_1, %c0_2] : memref<48x1xf32, #tpu.memory_space<vmem>>, vector<8x1xf32>
    %c8 = arith.constant 8 : index
    %c0_3 = arith.constant 0 : index
    %2 = vector.load %arg11[%c8, %c0_3] : memref<48x1xf32, #tpu.memory_space<vmem>>, vector<32x1xf32>
    %c40 = arith.constant 40 : index
    %c0_4 = arith.constant 0 : index
    %3 = vector.load %arg11[%c40, %c0_4] : memref<48x1xf32, #tpu.memory_space<vmem>>, vector<8x1xf32>
    %c0_5 = arith.constant 0 : index
    %c0_6 = arith.constant 0 : index
    %4 = vector.load %arg3[%c0_5, %c0_6] : memref<24x36xbf16, #tpu.memory_space<vmem>>, vector<24x36xbf16>
    %cst = arith.constant dense<0.000000e+00> : vector<24x2048xf32>
    %5 = tpu.matmul %4, %0, %cst {dimension_numbers = #tpu.dot_dimension_numbers<[1], [0], [0], [1], [0, 0, 1, 1], [], []>} : vector<24x36xbf16>, vector<36x2048xbf16>, vector<24x2048xf32> -> vector<24x2048xf32>
    %6 = vector.extract_strided_slice %5 {offsets = [0, 0], sizes = [16, 2048], strides = [1, 1]} : vector<24x2048xf32> to vector<16x2048xf32>
    %7 = arith.truncf %6 : vector<16x2048xf32> to vector<16x2048xbf16>
    %8 = vector.extract_strided_slice %5 {offsets = [8, 0], sizes = [16, 2048], strides = [1, 1]} : vector<24x2048xf32> to vector<16x2048xf32>
    %9 = arith.truncf %8 : vector<16x2048xf32> to vector<16x2048xbf16>
    %c0_7 = arith.constant 0 : index
    %c0_8 = arith.constant 0 : index
    %10 = vector.load %arg4[%c0_7, %c0_8] : memref<256x16xbf16, #tpu.memory_space<vmem>>, vector<256x16xbf16>
    %cst_9 = arith.constant dense<0.000000e+00> : vector<256x2048xf32>
    %11 = tpu.matmul %10, %7, %cst_9 {dimension_numbers = #tpu.dot_dimension_numbers<[1], [0], [0], [1], [0, 0, 1, 1], [], []>} : vector<256x16xbf16>, vector<16x2048xbf16>, vector<256x2048xf32> -> vector<256x2048xf32>
    %12 = vector.extract_strided_slice %11 {offsets = [128, 0], sizes = [128, 2048], strides = [1, 1]} : vector<256x2048xf32> to vector<128x2048xf32>
    %13 = vector.extract_strided_slice %11 {offsets = [0, 0], sizes = [128, 2048], strides = [1, 1]} : vector<256x2048xf32> to vector<128x2048xf32>
    %14 = arith.mulf %12, %13 : vector<128x2048xf32>
    %15 = arith.truncf %14 : vector<128x2048xf32> to vector<128x2048xbf16>
    %c0_10 = arith.constant 0 : index
    %c0_11 = arith.constant 0 : index
    %16 = vector.load %arg5[%c0_10, %c0_11] : memref<32x128xbf16, #tpu.memory_space<vmem>>, vector<32x128xbf16>
    %cst_12 = arith.constant dense<0.000000e+00> : vector<32x2048xf32>
    %17 = tpu.matmul %16, %15, %cst_12 {dimension_numbers = #tpu.dot_dimension_numbers<[1], [0], [0], [1], [0, 0, 1, 1], [], []>} : vector<32x128xbf16>, vector<128x2048xbf16>, vector<32x2048xf32> -> vector<32x2048xf32>
    %c0_13 = arith.constant 0 : index
    %c0_14 = arith.constant 0 : index
    %18 = vector.load %arg6[%c0_13, %c0_14] : memref<8x16xbf16, #tpu.memory_space<vmem>>, vector<8x16xbf16>
    %cst_15 = arith.constant dense<0.000000e+00> : vector<8x2048xf32>
    %19 = tpu.matmul %18, %9, %cst_15 {dimension_numbers = #tpu.dot_dimension_numbers<[1], [0], [0], [1], [0, 0, 1, 1], [], []>} : vector<8x16xbf16>, vector<16x2048xbf16>, vector<8x2048xf32> -> vector<8x2048xf32>
    %20 = vector.broadcast %1 : vector<8x1xf32> to vector<8x2048xf32>
    %21 = arith.addf %19, %20 : vector<8x2048xf32>
    %22 = math.tanh %21 : vector<8x2048xf32>
    %c0_16 = arith.constant 0 : index
    %c0_17 = arith.constant 0 : index
    %23 = vector.load %arg7[%c0_16, %c0_17] : memref<32x8xbf16, #tpu.memory_space<vmem>>, vector<32x8xbf16>
    %24 = arith.truncf %22 : vector<8x2048xf32> to vector<8x2048xbf16>
    %cst_18 = arith.constant dense<0.000000e+00> : vector<32x2048xf32>
    %25 = tpu.matmul %23, %24, %cst_18 {dimension_numbers = #tpu.dot_dimension_numbers<[1], [0], [0], [1], [0, 0, 1, 1], [], []>} : vector<32x8xbf16>, vector<8x2048xbf16>, vector<32x2048xf32> -> vector<32x2048xf32>
    %26 = vector.broadcast %2 : vector<32x1xf32> to vector<32x2048xf32>
    %27 = arith.addf %25, %26 : vector<32x2048xf32>
    %28 = arith.addf %27, %17 : vector<32x2048xf32>
    %c0_19 = arith.constant 0 : index
    %c0_20 = arith.constant 0 : index
    %29 = vector.load %arg8[%c0_19, %c0_20] : memref<128x64xbf16, #tpu.memory_space<vmem>>, vector<128x64xbf16>
    %c0_21 = arith.constant 0 : index
    %c0_22 = arith.constant 0 : index
    %30 = vector.load %arg2[%c0_21, %c0_22] : memref<64x128xbf16, #tpu.memory_space<vmem>>, vector<64x128xbf16>
    %cst_23 = arith.constant dense<0.000000e+00> : vector<128x128xf32>
    %31 = tpu.matmul %29, %30, %cst_23 {dimension_numbers = #tpu.dot_dimension_numbers<[1], [0], [0], [1], [0, 0, 1, 1], [], []>} : vector<128x64xbf16>, vector<64x128xbf16>, vector<128x128xf32> -> vector<128x128xf32>
    %32 = vector.shape_cast %31 : vector<128x128xf32> to vector<8x16x128xf32>
    %c0_24 = arith.constant 0 : index
    %c0_25 = arith.constant 0 : index
    %33 = vector.load %arg9[%c0_24, %c0_25] : memref<2048x256xbf16, #tpu.memory_space<vmem>>, vector<2048x256xbf16>
    %cst_26 = arith.constant 0.000000e+00 : f32
    %34 = vector.broadcast %cst_26 : f32 to vector<4x128xf32>
    %cst_27 = arith.constant 0.000000e+00 : f32
    %35 = vector.broadcast %cst_27 : f32 to vector<4x128xf32>
    %36 = vector.extract_strided_slice %28 {offsets = [0, 0], sizes = [16, 2048], strides = [1, 1]} : vector<32x2048xf32> to vector<16x2048xf32>
    %cst_28 = arith.constant dense<0xFF800000> : vector<2048xf32>
    %37 = vector.multi_reduction <maximumf>, %36, %cst_28 [0] : vector<16x2048xf32> to vector<2048xf32>
    %38 = vector.shape_cast %37 : vector<2048xf32> to vector<1x2048xf32>
    %39 = vector.broadcast %38 : vector<1x2048xf32> to vector<16x2048xf32>
    %40 = arith.subf %36, %39 : vector<16x2048xf32>
    %41 = math.exp %40 : vector<16x2048xf32>
    %cst_29 = arith.constant dense<0.000000e+00> : vector<2048xf32>
    %42 = vector.multi_reduction <add>, %41, %cst_29 [0] : vector<16x2048xf32> to vector<2048xf32>
    %43 = vector.shape_cast %42 : vector<2048xf32> to vector<1x2048xf32>
    %44 = tpu.reciprocal %43 {approx = true} : vector<1x2048xf32> -> vector<1x2048xf32>
    %45 = vector.broadcast %44 : vector<1x2048xf32> to vector<16x2048xf32>
    %46 = arith.mulf %41, %45 : vector<16x2048xf32>
    %47 = arith.truncf %46 : vector<16x2048xf32> to vector<16x2048xbf16>
    %cst_30 = arith.constant dense<0.000000e+00> : vector<16x256xf32>
    %48 = tpu.matmul %47, %33, %cst_30 {dimension_numbers = #tpu.dot_dimension_numbers<[1], [0], [0], [1], [0, 0, 1, 1], [], []>} : vector<16x2048xbf16>, vector<2048x256xbf16>, vector<16x256xf32> -> vector<16x256xf32>
    %49 = vector.extract_strided_slice %32 {offsets = [0, 0, 0], sizes = [4, 16, 128], strides = [1, 1, 1]} : vector<8x16x128xf32> to vector<4x16x128xf32>
    %50 = vector.extract_strided_slice %48 {offsets = [0, 0], sizes = [16, 128], strides = [1, 1]} : vector<16x256xf32> to vector<16x128xf32>
    %51 = vector.shape_cast %50 : vector<16x128xf32> to vector<1x16x128xf32>
    %52 = vector.broadcast %51 : vector<1x16x128xf32> to vector<4x16x128xf32>
    %53 = arith.mulf %49, %52 : vector<4x16x128xf32>
    %cst_31 = arith.constant dense<0.000000e+00> : vector<4x128xf32>
    %54 = vector.multi_reduction <add>, %53, %cst_31 [1] : vector<4x16x128xf32> to vector<4x128xf32>
    %55 = arith.addf %34, %54 : vector<4x128xf32>
    %56 = vector.extract_strided_slice %48 {offsets = [0, 128], sizes = [16, 128], strides = [1, 1]} : vector<16x256xf32> to vector<16x128xf32>
    %57 = vector.shape_cast %56 : vector<16x128xf32> to vector<1x16x128xf32>
    %58 = vector.broadcast %57 : vector<1x16x128xf32> to vector<4x16x128xf32>
    %59 = arith.mulf %49, %58 : vector<4x16x128xf32>
    %cst_32 = arith.constant dense<0.000000e+00> : vector<4x128xf32>
    %60 = vector.multi_reduction <add>, %59, %cst_32 [1] : vector<4x16x128xf32> to vector<4x128xf32>
    %61 = arith.addf %35, %60 : vector<4x128xf32>
    %62 = vector.extract_strided_slice %28 {offsets = [16, 0], sizes = [16, 2048], strides = [1, 1]} : vector<32x2048xf32> to vector<16x2048xf32>
    %cst_33 = arith.constant dense<0xFF800000> : vector<2048xf32>
    %63 = vector.multi_reduction <maximumf>, %62, %cst_33 [0] : vector<16x2048xf32> to vector<2048xf32>
    %64 = vector.shape_cast %63 : vector<2048xf32> to vector<1x2048xf32>
    %65 = vector.broadcast %64 : vector<1x2048xf32> to vector<16x2048xf32>
    %66 = arith.subf %62, %65 : vector<16x2048xf32>
    %67 = math.exp %66 : vector<16x2048xf32>
    %cst_34 = arith.constant dense<0.000000e+00> : vector<2048xf32>
    %68 = vector.multi_reduction <add>, %67, %cst_34 [0] : vector<16x2048xf32> to vector<2048xf32>
    %69 = vector.shape_cast %68 : vector<2048xf32> to vector<1x2048xf32>
    %70 = tpu.reciprocal %69 {approx = true} : vector<1x2048xf32> -> vector<1x2048xf32>
    %71 = vector.broadcast %70 : vector<1x2048xf32> to vector<16x2048xf32>
    %72 = arith.mulf %67, %71 : vector<16x2048xf32>
    %73 = arith.truncf %72 : vector<16x2048xf32> to vector<16x2048xbf16>
    %cst_35 = arith.constant dense<0.000000e+00> : vector<16x256xf32>
    %74 = tpu.matmul %73, %33, %cst_35 {dimension_numbers = #tpu.dot_dimension_numbers<[1], [0], [0], [1], [0, 0, 1, 1], [], []>} : vector<16x2048xbf16>, vector<2048x256xbf16>, vector<16x256xf32> -> vector<16x256xf32>
    %75 = vector.extract_strided_slice %32 {offsets = [4, 0, 0], sizes = [4, 16, 128], strides = [1, 1, 1]} : vector<8x16x128xf32> to vector<4x16x128xf32>
    %76 = vector.extract_strided_slice %74 {offsets = [0, 0], sizes = [16, 128], strides = [1, 1]} : vector<16x256xf32> to vector<16x128xf32>
    %77 = vector.shape_cast %76 : vector<16x128xf32> to vector<1x16x128xf32>
    %78 = vector.broadcast %77 : vector<1x16x128xf32> to vector<4x16x128xf32>
    %79 = arith.mulf %75, %78 : vector<4x16x128xf32>
    %cst_36 = arith.constant dense<0.000000e+00> : vector<4x128xf32>
    %80 = vector.multi_reduction <add>, %79, %cst_36 [1] : vector<4x16x128xf32> to vector<4x128xf32>
    %81 = arith.addf %55, %80 : vector<4x128xf32>
    %82 = vector.extract_strided_slice %74 {offsets = [0, 128], sizes = [16, 128], strides = [1, 1]} : vector<16x256xf32> to vector<16x128xf32>
    %83 = vector.shape_cast %82 : vector<16x128xf32> to vector<1x16x128xf32>
    %84 = vector.broadcast %83 : vector<1x16x128xf32> to vector<4x16x128xf32>
    %85 = arith.mulf %75, %84 : vector<4x16x128xf32>
    %cst_37 = arith.constant dense<0.000000e+00> : vector<4x128xf32>
    %86 = vector.multi_reduction <add>, %85, %cst_37 [1] : vector<4x16x128xf32> to vector<4x128xf32>
    %87 = arith.addf %61, %86 : vector<4x128xf32>
    %88 = tpu.concatenate %81, %87 in 0 : vector<4x128xf32>, vector<4x128xf32> -> vector<8x128xf32>
    %c0_38 = arith.constant 0 : index
    %c0_39 = arith.constant 0 : index
    %89 = vector.load %arg10[%c0_38, %c0_39] : memref<8x8xbf16, #tpu.memory_space<vmem>>, vector<8x8xbf16>
    %90 = arith.truncf %88 : vector<8x128xf32> to vector<8x128xbf16>
    %cst_40 = arith.constant dense<0.000000e+00> : vector<8x128xf32>
    %91 = tpu.matmul %89, %90, %cst_40 {dimension_numbers = #tpu.dot_dimension_numbers<[1], [0], [0], [1], [0, 0, 1, 1], [], []>} : vector<8x8xbf16>, vector<8x128xbf16>, vector<8x128xf32> -> vector<8x128xf32>
    %cst_41 = arith.constant 1.600000e+01 : f32
    %92 = vector.broadcast %cst_41 : f32 to vector<8x1xf32>
    %93 = arith.mulf %92, %3 : vector<8x1xf32>
    %94 = vector.broadcast %93 : vector<8x1xf32> to vector<8x128xf32>
    %95 = arith.addf %91, %94 : vector<8x128xf32>
    %c0_42 = arith.constant 0 : index
    %c0_43 = arith.constant 0 : index
    %96 = vector.load %arg12[%c0_42, %c0_43] : memref<8x128xf32, #tpu.memory_space<vmem>>, vector<8x128xf32>
    tpu.vector_store %arg12[%c0_42, %c0_43], %95 {strides = array<i32>} : memref<8x128xf32, #tpu.memory_space<vmem>>, vector<8x128xf32>,
    return
  }
  func.func @transform_0(%arg0: i32) -> (i32, i32) {
    %c0_i32 = arith.constant 0 : i32
    %c0_i32_0 = arith.constant 0 : i32
    return %c0_i32, %arg0 : i32, i32
  }
  func.func @transform_1(%arg0: i32) -> (i32, i32) {
    %c0_i32 = arith.constant 0 : i32
    %c0_i32_0 = arith.constant 0 : i32
    return %c0_i32, %arg0 : i32, i32
  }
  func.func @transform_2(%arg0: i32) -> (i32, i32) {
    %c0_i32 = arith.constant 0 : i32
    %c0_i32_0 = arith.constant 0 : i32
    %c0_i32_1 = arith.constant 0 : i32
    return %c0_i32, %c0_i32_0 : i32, i32
  }
  func.func @transform_3(%arg0: i32) -> (i32, i32) {
    %c0_i32 = arith.constant 0 : i32
    %c0_i32_0 = arith.constant 0 : i32
    %c0_i32_1 = arith.constant 0 : i32
    return %c0_i32, %c0_i32_0 : i32, i32
  }
  func.func @transform_4(%arg0: i32) -> (i32, i32) {
    %c0_i32 = arith.constant 0 : i32
    %c0_i32_0 = arith.constant 0 : i32
    %c0_i32_1 = arith.constant 0 : i32
    return %c0_i32, %c0_i32_0 : i32, i32
  }
  func.func @transform_5(%arg0: i32) -> (i32, i32) {
    %c0_i32 = arith.constant 0 : i32
    %c0_i32_0 = arith.constant 0 : i32
    %c0_i32_1 = arith.constant 0 : i32
    return %c0_i32, %c0_i32_0 : i32, i32
  }
  func.func @transform_6(%arg0: i32) -> (i32, i32) {
    %c0_i32 = arith.constant 0 : i32
    %c0_i32_0 = arith.constant 0 : i32
    %c0_i32_1 = arith.constant 0 : i32
    return %c0_i32, %c0_i32_0 : i32, i32
  }
  func.func @transform_7(%arg0: i32) -> (i32, i32) {
    %c0_i32 = arith.constant 0 : i32
    %c0_i32_0 = arith.constant 0 : i32
    %c0_i32_1 = arith.constant 0 : i32
    return %c0_i32, %c0_i32_0 : i32, i32
  }
  func.func @transform_8(%arg0: i32) -> (i32, i32) {
    %c0_i32 = arith.constant 0 : i32
    %c0_i32_0 = arith.constant 0 : i32
    %c0_i32_1 = arith.constant 0 : i32
    return %c0_i32, %c0_i32_0 : i32, i32
  }
  func.func @transform_9(%arg0: i32) -> (i32, i32) {
    %c0_i32 = arith.constant 0 : i32
    %c0_i32_0 = arith.constant 0 : i32
    %c0_i32_1 = arith.constant 0 : i32
    return %c0_i32, %c0_i32_0 : i32, i32
  }
  func.func @transform_10(%arg0: i32) -> (i32, i32) {
    %c0_i32 = arith.constant 0 : i32
    %c0_i32_0 = arith.constant 0 : i32
    %c0_i32_1 = arith.constant 0 : i32
    return %c0_i32, %c0_i32_0 : i32, i32
  }
  func.func @transform_11(%arg0: i32) -> (i32, i32) {
    %c0_i32 = arith.constant 0 : i32
    %c0_i32_0 = arith.constant 0 : i32
    return %c0_i32, %arg0 : i32, i32
  }
}

</mosaic_0001>

<llo_original>
// kernel: tile.13
$region0: #{tile.13}
  #allocation0 [shape = 's32[1]{0}', space=sflag, size = 0x4, scoped, tag = 'scoped memory for tile.13']
  %s0 = inlined_call_operand.vmem [shape: f32[4], index: 0, kind: input, shape index: {}]
  %s1 = inlined_call_operand.vmem [shape: f32[2,4], index: 1, kind: output, shape index: {}]
  // Predicated region
  $region2: #{tile.13} parent=0 // pred_check
    _
  $region3: #{tile.13} parent=0 // pred_check_branch
    %3 = sbr.rel (0) target = $region5
  $region4: #{tile.13} parent=0 // pred_region
    _
  $region5: #{tile.13} parent=0 // pred_fallthru
    _
  %v4 = vld [vmem:[%s0] ss:$0 sm:$0xff]
  %5 = vst [vmem:[%s1] sm:$0x3] %v4

// kernel: tile.14
$region0: #{tile.14}
  %s0 = inlined_call_operand.vmem [shape: f32[2,4], index: 0, kind: input, shape index: {}]
  %s1 = inlined_call_operand.vmem [shape: f32[8], index: 1, kind: output, shape index: {}]
  $region1: #{tile.14} parent=0
    #allocation0 [shape = 'u8[4096]{0}', space=vmem, size = 0x1000, scoped, tag = 'scoped mem for output reshape']
    #allocation1 [shape = 'u8[4096]{0}', space=vmem, size = 0x1000, scoped, tag = 'scoped mem for input reshape']
    %s3 = ssub.s32 4, 1
    %v4 = vld [vmem:[%s0] sm:%s3]
    %5 = vst [vmem:[#allocation1] sm:%s3] %v4
    %v6 = vld [vmem:[#allocation1] sm:$0x1]
    %vm7 = vcmask 31744
    %8 = vst.msk [vmem:[#allocation0] sm:$0x1] %vm7, %v6
    %s9 = scalar_lea.vmem [#allocation1], 1
    %v10 = vld [vmem:[%s9] sm:$0x1]
    %11 = vrot.lane.b32.xlu0 %v10, 4
    %v12 = vpop.permute.xlu0 %11
    %vm13 = vcmask 64544
    %14 = vst.msk [vmem:[#allocation0] sm:$0x1] %vm13, %v12
    %s16 = ssub.s32 2, 1
    %v17 = vld [vmem:[#allocation0] sm:%s16]
    %s19 = ssub.s32 2, 1
    %20 = vst [vmem:[%s1] sm:%s19] %v17

// kernel: tile.18
$region0: #{tile.18}
  #allocation0 [shape = 's32[1]{0}', space=sflag, size = 0x4, scoped, tag = 'scoped memory for tile.18']
  %s0 = inlined_call_operand.vmem [shape: f32[16], index: 0, kind: input, shape index: {}]
  %s1 = inlined_call_operand.vmem [shape: f32[2,16], index: 1, kind: output, shape index: {}]
  // Predicated region
  $region2: #{tile.18} parent=0 // pred_check
    _
  $region3: #{tile.18} parent=0 // pred_check_branch
    %3 = sbr.rel (0) target = $region5
  $region4: #{tile.18} parent=0 // pred_region
    _
  $region5: #{tile.18} parent=0 // pred_fallthru
    _
  %v4 = vld [vmem:[%s0] ss:$0 sm:$0xff]
  %5 = vst [vmem:[%s1] sm:$0x3] %v4

// kernel: tile.19
$region0: #{tile.19}
  %s0 = inlined_call_operand.vmem [shape: f32[2,16], index: 0, kind: input, shape index: {}]
  %s1 = inlined_call_operand.vmem [shape: f32[32], index: 1, kind: output, shape index: {}]
  $region1: #{tile.19} parent=0
    #allocation0 [shape = 'u8[4096]{0}', space=vmem, size = 0x1000, scoped, tag = 'scoped mem for output reshape']
    #allocation1 [shape = 'u8[4096]{0}', space=vmem, size = 0x1000, scoped, tag = 'scoped mem for input reshape']
    %s3 = ssub.s32 4, 1
    %v4 = vld [vmem:[%s0] sm:%s3]
    %5 = vst [vmem:[#allocation1] sm:%s3] %v4
    %v6 = vld [vmem:[#allocation1] sm:$0x1]
    %vm7 = vcmask 130048
    %8 = vst.msk [vmem:[#allocation0] sm:$0x1] %vm7, %v6
    %s9 = scalar_lea.vmem [#allocation1], 1
    %v10 = vld [vmem:[%s9] sm:$0x1]
    %11 = vrot.lane.b32.xlu0 %v10, 16
    %v12 = vpop.permute.xlu0 %11
    %vm13 = vcmask 261248
    %14 = vst.msk [vmem:[#allocation0] sm:$0x1] %vm13, %v12
    %s16 = ssub.s32 2, 1
    %v17 = vld [vmem:[#allocation0] sm:%s16]
    %s19 = ssub.s32 2, 1
    %20 = vst [vmem:[%s1] sm:%s19] %v17

// kernel: self_attn_2d_pallas.1
$region0: #{self_attn_2d_pallas.1}
  #allocation0 [shape = 'u32[]', space=smem, size = 0x4, offset = 0x4, fixed_abs, tag = 'smem constant byte address 0x4 - core index']
  #allocation1 [shape = 'u32[72,128]{1,0:T(1,128)}', space=vmem, size = 0x9000, scoped, tag = 'internal scratch']
  %s0 = inlined_call_operand.vmem [shape: bf16[36,4096], index: 0, kind: input, shape index: {}]
  %s1 = inlined_call_operand.vmem [shape: bf16[64,256], index: 1, kind: input, shape index: {}]
  %s2 = inlined_call_operand.vmem [shape: bf16[24,36], index: 2, kind: input, shape index: {}]
  %s3 = inlined_call_operand.vmem [shape: bf16[256,16], index: 3, kind: input, shape index: {}]
  %s4 = inlined_call_operand.vmem [shape: bf16[32,128], index: 4, kind: input, shape index: {}]
  %s5 = inlined_call_operand.vmem [shape: bf16[8,16], index: 5, kind: input, shape index: {}]
  %s6 = inlined_call_operand.vmem [shape: bf16[32,8], index: 6, kind: input, shape index: {}]
  %s7 = inlined_call_operand.vmem [shape: bf16[128,64], index: 7, kind: input, shape index: {}]
  %s8 = inlined_call_operand.vmem [shape: bf16[2048,256], index: 8, kind: input, shape index: {}]
  %s9 = inlined_call_operand.vmem [shape: bf16[8,8], index: 9, kind: input, shape index: {}]
  %s10 = inlined_call_operand.vmem [shape: f32[48,1], index: 10, kind: input, shape index: {}]
  %s11 = inlined_call_operand.vmem [shape: f32[8,256], index: 11, kind: output, shape index: {}]
  %s12 = sld [smem:[#allocation0]]
  $region141: #{self_attn_2d_pallas.1} parent=0
    _
  %s14 = ssub.s32 1, %s12
  %s15 = scalar_select 0, %s14, %s12
  $region1: #{self_attn_2d_pallas.1} parent=0
    #allocation2 [shape = 'u8[327680]{0}', space=vmem, size = 0x50000, scoped, tag = 'input window, operand 0']
    #allocation3 [shape = 'u8[32768]{0}', space=vmem, size = 0x8000, scoped, tag = 'input window, operand 1']
    loop: start=0, step=1, limit=4
    $region2: #{self_attn_2d_pallas.1} parent=1 // loop_pre_header
      _
    $region3: #{self_attn_2d_pallas.1} parent=1 // loop_header
      %s17 = sphi 0, %s21
      %p18 = scmp.ge.s32.totalorder %s17, 4
      %s27 = sphi 0, %s29
      %s30 = sphi 0, %s27
      %s31 = sphi 0, %s30
      %s47 = sphi 0, %s31
      %s53 = sphi 0, %s55
      %s56 = sphi 0, %s53
      %s57 = sphi 0, %s56
      %s73 = sphi 0, %s57
      %s77 = sphi 0, %s77
      %s79 = sphi 0, %s77
      %s80 = sphi 0, %s79
      %s94 = sphi 0, %s80
      %s98 = sphi 0, %s98
      %s100 = sphi 0, %s98
      %s101 = sphi 0, %s100
      %s115 = sphi 0, %s101
      %s119 = sphi 0, %s119
      %s121 = sphi 0, %s119
      %s122 = sphi 0, %s121
      %s136 = sphi 0, %s122
      %s140 = sphi 0, %s140
      %s142 = sphi 0, %s140
      %s143 = sphi 0, %s142
      %s157 = sphi 0, %s143
      %s161 = sphi 0, %s161
      %s163 = sphi 0, %s161
      %s164 = sphi 0, %s163
      %s178 = sphi 0, %s164
      %s182 = sphi 0, %s182
      %s184 = sphi 0, %s182
      %s185 = sphi 0, %s184
      %s199 = sphi 0, %s185
      %s203 = sphi 0, %s203
      %s205 = sphi 0, %s203
      %s206 = sphi 0, %s205
      %s220 = sphi 0, %s206
      %s224 = sphi 0, %s224
      %s226 = sphi 0, %s224
      %s227 = sphi 0, %s226
      %s241 = sphi 0, %s227
      %s245 = sphi 0, %s245
      %s247 = sphi 0, %s245
      %s248 = sphi 0, %s247
      %s262 = sphi 0, %s248
      %s268 = sphi 0, %s270
      %s271 = sphi 0, %s268
      %s272 = sphi 0, %s271
      %s288 = sphi 0, %s272
    $region4: #{self_attn_2d_pallas.1} parent=1 // loop_header_branch
      %20 = sbr.rel (%p18) target = $region8
    $region5: #{self_attn_2d_pallas.1} parent=1 // loop_body
      %s22 = ssub.s32 %s17, 1
      %s23 = ssub.s32 %s17, 2
      %s24 = sadd.s32 %s17, 1
      %s25 = ssub.s32 %s17, %s24
      %p26 = scmp.eq.s32.totalorder %s25, 0
      %s28 = sadd.s32 %s27, 1
      %s29 = scalar_select %p26, %s27, %s28
      %p32 = pneg %p26
      %p33 = scmp.eq.s32.totalorder %s17, 1
      %p34 = por %p32, %p33
      %p35 = scmp.ne.s32.totalorder %s27, %s30
      %p36 = scmp.eq.s32.totalorder %s17, 0
      %p37 = por %p35, %p36
      %p38 = scmp.ne.s32.totalorder %s27, %s30
      %p39 = scmp.eq.s32.totalorder %s22, 1
      %p40 = por %p38, %p39
      %p41 = scmp.ne.s32.totalorder %s30, %s31
      %p42 = scmp.eq.s32.totalorder %s22, 0
      %p43 = por %p41, %p42
      %p44 = scmp.ne.s32.totalorder %s30, %s31
      %p45 = scmp.eq.s32.totalorder %s23, 1
      %p46 = por %p44, %p45
      %p48 = scmp.ne.s32.totalorder %s31, %s47
      %p49 = scmp.eq.s32.totalorder %s23, 0
      %p50 = por %p48, %p49
      %s51 = ssub.s32 %s17, %s24
      %p52 = scmp.eq.s32.totalorder %s51, 0
      %s54 = sadd.s32 %s53, 1
      %s55 = scalar_select %p52, %s53, %s54
      %p58 = pneg %p52
      %p59 = scmp.eq.s32.totalorder %s17, 1
      %p60 = por %p58, %p59
      %p61 = scmp.ne.s32.totalorder %s53, %s56
      %p62 = scmp.eq.s32.totalorder %s17, 0
      %p63 = por %p61, %p62
      %p64 = scmp.ne.s32.totalorder %s53, %s56
      %p65 = scmp.eq.s32.totalorder %s22, 1
      %p66 = por %p64, %p65
      %p67 = scmp.ne.s32.totalorder %s56, %s57
      %p68 = scmp.eq.s32.totalorder %s22, 0
      %p69 = por %p67, %p68
      %p70 = scmp.ne.s32.totalorder %s56, %s57
      %p71 = scmp.eq.s32.totalorder %s23, 1
      %p72 = por %p70, %p71
      %p74 = scmp.ne.s32.totalorder %s57, %s73
      %p75 = scmp.eq.s32.totalorder %s23, 0
      %p76 = por %p74, %p75
      %s78 = sadd.s32 %s77, 1
      %p81 = scmp.eq.s32.totalorder %s17, 1
      %p82 = scmp.ne.s32.totalorder %s77, %s79
      %p83 = scmp.eq.s32.totalorder %s17, 0
      %p84 = por %p82, %p83
      %p85 = scmp.ne.s32.totalorder %s77, %s79
      %p86 = scmp.eq.s32.totalorder %s22, 1
      %p87 = por %p85, %p86
      %p88 = scmp.ne.s32.totalorder %s79, %s80
      %p89 = scmp.eq.s32.totalorder %s22, 0
      %p90 = por %p88, %p89
      %p91 = scmp.ne.s32.totalorder %s79, %s80
      %p92 = scmp.eq.s32.totalorder %s23, 1
      %p93 = por %p91, %p92
      %p95 = scmp.ne.s32.totalorder %s80, %s94
      %p96 = scmp.eq.s32.totalorder %s23, 0
      %p97 = por %p95, %p96
      %s99 = sadd.s32 %s98, 1
      %p102 = scmp.eq.s32.totalorder %s17, 1
      %p103 = scmp.ne.s32.totalorder %s98, %s100
      %p104 = scmp.eq.s32.totalorder %s17, 0
      %p105 = por %p103, %p104
      %p106 = scmp.ne.s32.totalorder %s98, %s100
      %p107 = scmp.eq.s32.totalorder %s22, 1
      %p108 = por %p106, %p107
      %p109 = scmp.ne.s32.totalorder %s100, %s101
      %p110 = scmp.eq.s32.totalorder %s22, 0
      %p111 = por %p109, %p110
      %p112 = scmp.ne.s32.totalorder %s100, %s101
      %p113 = scmp.eq.s32.totalorder %s23, 1
      %p114 = por %p112, %p113
      %p116 = scmp.ne.s32.totalorder %s101, %s115
      %p117 = scmp.eq.s32.totalorder %s23, 0
      %p118 = por %p116, %p117
      %s120 = sadd.s32 %s119, 1
      %p123 = scmp.eq.s32.totalorder %s17, 1
      %p124 = scmp.ne.s32.totalorder %s119, %s121
      %p125 = scmp.eq.s32.totalorder %s17, 0
      %p126 = por %p124, %p125
      %p127 = scmp.ne.s32.totalorder %s119, %s121
      %p128 = scmp.eq.s32.totalorder %s22, 1
      %p129 = por %p127, %p128
      %p130 = scmp.ne.s32.totalorder %s121, %s122
      %p131 = scmp.eq.s32.totalorder %s22, 0
      %p132 = por %p130, %p131
      %p133 = scmp.ne.s32.totalorder %s121, %s122
      %p134 = scmp.eq.s32.totalorder %s23, 1
      %p135 = por %p133, %p134
      %p137 = scmp.ne.s32.totalorder %s122, %s136
      %p138 = scmp.eq.s32.totalorder %s23, 0
      %p139 = por %p137, %p138
      %s141 = sadd.s32 %s140, 1
      %p144 = scmp.eq.s32.totalorder %s17, 1
      %p145 = scmp.ne.s32.totalorder %s140, %s142
      %p146 = scmp.eq.s32.totalorder %s17, 0
      %p147 = por %p145, %p146
      %p148 = scmp.ne.s32.totalorder %s140, %s142
      %p149 = scmp.eq.s32.totalorder %s22, 1
      %p150 = por %p148, %p149
      %p151 = scmp.ne.s32.totalorder %s142, %s143
      %p152 = scmp.eq.s32.totalorder %s22, 0
      %p153 = por %p151, %p152
      %p154 = scmp.ne.s32.totalorder %s142, %s143
      %p155 = scmp.eq.s32.totalorder %s23, 1
      %p156 = por %p154, %p155
      %p158 = scmp.ne.s32.totalorder %s143, %s157
      %p159 = scmp.eq.s32.totalorder %s23, 0
      %p160 = por %p158, %p159
      %s162 = sadd.s32 %s161, 1
      %p165 = scmp.eq.s32.totalorder %s17, 1
      %p166 = scmp.ne.s32.totalorder %s161, %s163
      %p167 = scmp.eq.s32.totalorder %s17, 0
      %p168 = por %p166, %p167
      %p169 = scmp.ne.s32.totalorder %s161, %s163
      %p170 = scmp.eq.s32.totalorder %s22, 1
      %p171 = por %p169, %p170
      %p172 = scmp.ne.s32.totalorder %s163, %s164
      %p173 = scmp.eq.s32.totalorder %s22, 0
      %p174 = por %p172, %p173
      %p175 = scmp.ne.s32.totalorder %s163, %s164
      %p176 = scmp.eq.s32.totalorder %s23, 1
      %p177 = por %p175, %p176
      %p179 = scmp.ne.s32.totalorder %s164, %s178
      %p180 = scmp.eq.s32.totalorder %s23, 0
      %p181 = por %p179, %p180
      %s183 = sadd.s32 %s182, 1
      %p186 = scmp.eq.s32.totalorder %s17, 1
      %p187 = scmp.ne.s32.totalorder %s182, %s184
      %p188 = scmp.eq.s32.totalorder %s17, 0
      %p189 = por %p187, %p188
      %p190 = scmp.ne.s32.totalorder %s182, %s184
      %p191 = scmp.eq.s32.totalorder %s22, 1
      %p192 = por %p190, %p191
      %p193 = scmp.ne.s32.totalorder %s184, %s185
      %p194 = scmp.eq.s32.totalorder %s22, 0
      %p195 = por %p193, %p194
      %p196 = scmp.ne.s32.totalorder %s184, %s185
      %p197 = scmp.eq.s32.totalorder %s23, 1
      %p198 = por %p196, %p197
      %p200 = scmp.ne.s32.totalorder %s185, %s199
      %p201 = scmp.eq.s32.totalorder %s23, 0
      %p202 = por %p200, %p201
      %s204 = sadd.s32 %s203, 1
      %p207 = scmp.eq.s32.totalorder %s17, 1
      %p208 = scmp.ne.s32.totalorder %s203, %s205
      %p209 = scmp.eq.s32.totalorder %s17, 0
      %p210 = por %p208, %p209
      %p211 = scmp.ne.s32.totalorder %s203, %s205
      %p212 = scmp.eq.s32.totalorder %s22, 1
      %p213 = por %p211, %p212
      %p214 = scmp.ne.s32.totalorder %s205, %s206
      %p215 = scmp.eq.s32.totalorder %s22, 0
      %p216 = por %p214, %p215
      %p217 = scmp.ne.s32.totalorder %s205, %s206
      %p218 = scmp.eq.s32.totalorder %s23, 1
      %p219 = por %p217, %p218
      %p221 = scmp.ne.s32.totalorder %s206, %s220
      %p222 = scmp.eq.s32.totalorder %s23, 0
      %p223 = por %p221, %p222
      %s225 = sadd.s32 %s224, 1
      %p228 = scmp.eq.s32.totalorder %s17, 1
      %p229 = scmp.ne.s32.totalorder %s224, %s226
      %p230 = scmp.eq.s32.totalorder %s17, 0
      %p231 = por %p229, %p230
      %p232 = scmp.ne.s32.totalorder %s224, %s226
      %p233 = scmp.eq.s32.totalorder %s22, 1
      %p234 = por %p232, %p233
      %p235 = scmp.ne.s32.totalorder %s226, %s227
      %p236 = scmp.eq.s32.totalorder %s22, 0
      %p237 = por %p235, %p236
      %p238 = scmp.ne.s32.totalorder %s226, %s227
      %p239 = scmp.eq.s32.totalorder %s23, 1
      %p240 = por %p238, %p239
      %p242 = scmp.ne.s32.totalorder %s227, %s241
      %p243 = scmp.eq.s32.totalorder %s23, 0
      %p244 = por %p242, %p243
      %s246 = sadd.s32 %s245, 1
      %p249 = scmp.eq.s32.totalorder %s17, 1
      %p250 = scmp.ne.s32.totalorder %s245, %s247
      %p251 = scmp.eq.s32.totalorder %s17, 0
      %p252 = por %p250, %p251
      %p253 = scmp.ne.s32.totalorder %s245, %s247
      %p254 = scmp.eq.s32.totalorder %s22, 1
      %p255 = por %p253, %p254
      %p256 = scmp.ne.s32.totalorder %s247, %s248
      %p257 = scmp.eq.s32.totalorder %s22, 0
      %p258 = por %p256, %p257
      %p259 = scmp.ne.s32.totalorder %s247, %s248
      %p260 = scmp.eq.s32.totalorder %s23, 1
      %p261 = por %p259, %p260
      %p263 = scmp.ne.s32.totalorder %s248, %s262
      %p264 = scmp.eq.s32.totalorder %s23, 0
      %p265 = por %p263, %p264
      %s266 = ssub.s32 %s17, %s24
      %p267 = scmp.eq.s32.totalorder %s266, 0
      %s269 = sadd.s32 %s268, 1
      %s270 = scalar_select %p267, %s268, %s269
      %p273 = pneg %p267
      %p274 = scmp.eq.s32.totalorder %s17, 1
      %p275 = por %p273, %p274
      %p276 = scmp.ne.s32.totalorder %s268, %s271
      %p277 = scmp.eq.s32.totalorder %s17, 0
      %p278 = por %p276, %p277
      %p279 = scmp.ne.s32.totalorder %s268, %s271
      %p280 = scmp.eq.s32.totalorder %s22, 1
      %p281 = por %p279, %p280
      %p282 = scmp.ne.s32.totalorder %s271, %s272
      %p283 = scmp.eq.s32.totalorder %s22, 0
      %p284 = por %p282, %p283
      %p285 = scmp.ne.s32.totalorder %s271, %s272
      %p286 = scmp.eq.s32.totalorder %s23, 1
      %p287 = por %p285, %p286
      %p289 = scmp.ne.s32.totalorder %s272, %s288
      %p290 = scmp.eq.s32.totalorder %s23, 0
      %p291 = por %p289, %p290
      %p292 = scmp.le.s32.totalorder 1, %s17
      %p293 = scmp.lt.s32.totalorder %s17, 3
      %p294 = pnand %p292, %p293
      %p295 = pneg %p294
      // Predicated region
      $region9: #{self_attn_2d_pallas.1} parent=5 // pred_check
        _
      $region10: #{self_attn_2d_pallas.1} parent=5 // pred_check_branch
        %297 = sbr.rel (%p294) target = $region12
      $region11: #{self_attn_2d_pallas.1} parent=5 // pred_region
        %s298 = ssub.s32 %s17, 1
        // Predicated region
        $region13: #{self_attn_2d_pallas.1} parent=11 // pred_check
          %p299 = pneg %p90
        $region14: #{self_attn_2d_pallas.1} parent=11 // pred_check_branch
          %301 = sbr.rel (%p299) target = $region16
        $region15: #{self_attn_2d_pallas.1} parent=11 // pred_region
          _
        $region16: #{self_attn_2d_pallas.1} parent=11 // pred_fallthru
          _
        // Predicated region
        $region17: #{self_attn_2d_pallas.1} parent=11 // pred_check
          %p302 = pneg %p111
        $region18: #{self_attn_2d_pallas.1} parent=11 // pred_check_branch
          %304 = sbr.rel (%p302) target = $region20
        $region19: #{self_attn_2d_pallas.1} parent=11 // pred_region
          _
        $region20: #{self_attn_2d_pallas.1} parent=11 // pred_fallthru
          _
        // Predicated region
        $region21: #{self_attn_2d_pallas.1} parent=11 // pred_check
          %p305 = pneg %p132
        $region22: #{self_attn_2d_pallas.1} parent=11 // pred_check_branch
          %307 = sbr.rel (%p305) target = $region24
        $region23: #{self_attn_2d_pallas.1} parent=11 // pred_region
          _
        $region24: #{self_attn_2d_pallas.1} parent=11 // pred_fallthru
          _
        // Predicated region
        $region25: #{self_attn_2d_pallas.1} parent=11 // pred_check
          %p308 = pneg %p153
        $region26: #{self_attn_2d_pallas.1} parent=11 // pred_check_branch
          %310 = sbr.rel (%p308) target = $region28
        $region27: #{self_attn_2d_pallas.1} parent=11 // pred_region
          _
        $region28: #{self_attn_2d_pallas.1} parent=11 // pred_fallthru
          _
        // Predicated region
        $region29: #{self_attn_2d_pallas.1} parent=11 // pred_check
          %p311 = pneg %p174
        $region30: #{self_attn_2d_pallas.1} parent=11 // pred_check_branch
          %313 = sbr.rel (%p311) target = $region32
        $region31: #{self_attn_2d_pallas.1} parent=11 // pred_region
          _
        $region32: #{self_attn_2d_pallas.1} parent=11 // pred_fallthru
          _
        // Predicated region
        $region33: #{self_attn_2d_pallas.1} parent=11 // pred_check
          %p314 = pneg %p195
        $region34: #{self_attn_2d_pallas.1} parent=11 // pred_check_branch
          %316 = sbr.rel (%p314) target = $region36
        $region35: #{self_attn_2d_pallas.1} parent=11 // pred_region
          _
        $region36: #{self_attn_2d_pallas.1} parent=11 // pred_fallthru
          _
        // Predicated region
        $region37: #{self_attn_2d_pallas.1} parent=11 // pred_check
          %p317 = pneg %p216
        $region38: #{self_attn_2d_pallas.1} parent=11 // pred_check_branch
          %319 = sbr.rel (%p317) target = $region40
        $region39: #{self_attn_2d_pallas.1} parent=11 // pred_region
          _
        $region40: #{self_attn_2d_pallas.1} parent=11 // pred_fallthru
          _
        // Predicated region
        $region41: #{self_attn_2d_pallas.1} parent=11 // pred_check
          %p320 = pneg %p237
        $region42: #{self_attn_2d_pallas.1} parent=11 // pred_check_branch
          %322 = sbr.rel (%p320) target = $region44
        $region43: #{self_attn_2d_pallas.1} parent=11 // pred_region
          _
        $region44: #{self_attn_2d_pallas.1} parent=11 // pred_fallthru
          _
        // Predicated region
        $region45: #{self_attn_2d_pallas.1} parent=11 // pred_check
          %p323 = pneg %p258
        $region46: #{self_attn_2d_pallas.1} parent=11 // pred_check_branch
          %325 = sbr.rel (%p323) target = $region48
        $region47: #{self_attn_2d_pallas.1} parent=11 // pred_region
          _
        $region48: #{self_attn_2d_pallas.1} parent=11 // pred_fallthru
          _
      $region12: #{self_attn_2d_pallas.1} parent=5 // pred_fallthru
        _
      %p326 = scmp.lt.s32.totalorder %s17, 2
      // Predicated region
      $region49: #{self_attn_2d_pallas.1} parent=5 // pred_check
        %p327 = pneg %p326
      $region50: #{self_attn_2d_pallas.1} parent=5 // pred_check_branch
        %329 = sbr.rel (%p327) target = $region52
      $region51: #{self_attn_2d_pallas.1} parent=5 // pred_region
        // Predicated region
        $region53: #{self_attn_2d_pallas.1} parent=51 // pred_check
          %p330 = pneg %p37
        $region54: #{self_attn_2d_pallas.1} parent=51 // pred_check_branch
          %332 = sbr.rel (%p330) target = $region56
        $region55: #{self_attn_2d_pallas.1} parent=51 // pred_region
          %s333 = sand.u32 %s27, 1
          %s334 = sand.u32 %s27, 1
          %s335 = smul.addr %s334, 320
          %s336 = scalar_lea.vmem [#allocation2], %s335
          %s337 = smul.u32 16, %s17
          %s338 = smul.addr %s337, 4
          %s339 = scalar_lea.vmem %s0, %s338
          // Predicated region
          $region57: #{self_attn_2d_pallas.1} parent=55 // pred_check
            _
          $region58: #{self_attn_2d_pallas.1} parent=55 // pred_check_branch
            %341 = sbr.rel (0) target = $region60
          $region59: #{self_attn_2d_pallas.1} parent=55 // pred_region
            // Predicated region
            $region61: #{self_attn_2d_pallas.1} parent=59 // pred_check
              _
            $region62: #{self_attn_2d_pallas.1} parent=59 // pred_check_branch
              %343 = sbr.rel (0) target = $region64
            $region63: #{self_attn_2d_pallas.1} parent=59 // pred_region
              loop: start=0, step=1, limit=1
              $region65: #{self_attn_2d_pallas.1} parent=63 // loop_pre_header
                _
              $region66: #{self_attn_2d_pallas.1} parent=63 // loop_header
                %s345 = sphi 0, %s349
                %p346 = scmp.ge.s32.totalorder %s345, 1
                %s350 = sphi %s339, %s339
                %s351 = sphi %s336, %s336
              $region67: #{self_attn_2d_pallas.1} parent=63 // loop_header_branch
                %348 = sbr.rel (%p346) target = $region71
              $region68: #{self_attn_2d_pallas.1} parent=63 // loop_body
                %v352 = vld [vmem:[%s350] sm:$0xff]
                %353 = vst [vmem:[%s351] sm:$0xff] %v352
                %v354 = vld [vmem:[%s350 + $0x8] sm:$0xff]
                %355 = vst [vmem:[%s351 + $0x8] sm:$0xff] %v354
                %v356 = vld [vmem:[%s350 + $0x10] sm:$0xff]
                %357 = vst [vmem:[%s351 + $0x10] sm:$0xff] %v356
                %v358 = vld [vmem:[%s350 + $0x18] sm:$0xff]
                %359 = vst [vmem:[%s351 + $0x18] sm:$0xff] %v358
                %v360 = vld [vmem:[%s350 + $0x20] sm:$0xff]
                %361 = vst [vmem:[%s351 + $0x20] sm:$0xff] %v360
                %v362 = vld [vmem:[%s350 + $0x28] sm:$0xff]
                %363 = vst [vmem:[%s351 + $0x28] sm:$0xff] %v362
                %v364 = vld [vmem:[%s350 + $0x30] sm:$0xff]
                %365 = vst [vmem:[%s351 + $0x30] sm:$0xff] %v364
                %v366 = vld [vmem:[%s350 + $0x38] sm:$0xff]
                %367 = vst [vmem:[%s351 + $0x38] sm:$0xff] %v366
                %v368 = vld [vmem:[%s350 + $0x80] sm:$0xff]
                %369 = vst [vmem:[%s351 + $0x40] sm:$0xff] %v368
                %v370 = vld [vmem:[%s350 + $0x88] sm:$0xff]
                %371 = vst [vmem:[%s351 + $0x48] sm:$0xff] %v370
                %v372 = vld [vmem:[%s350 + $0x90] sm:$0xff]
                %373 = vst [vmem:[%s351 + $0x50] sm:$0xff] %v372
                %v374 = vld [vmem:[%s350 + $0x98] sm:$0xff]
                %375 = vst [vmem:[%s351 + $0x58] sm:$0xff] %v374
                %v376 = vld [vmem:[%s350 + $0xa0] sm:$0xff]
                %377 = vst [vmem:[%s351 + $0x60] sm:$0xff] %v376
                %v378 = vld [vmem:[%s350 + $0xa8] sm:$0xff]
                %379 = vst [vmem:[%s351 + $0x68] sm:$0xff] %v378
                %v380 = vld [vmem:[%s350 + $0xb0] sm:$0xff]
                %381 = vst [vmem:[%s351 + $0x70] sm:$0xff] %v380
                %v382 = vld [vmem:[%s350 + $0xb8] sm:$0xff]
                %383 = vst [vmem:[%s351 + $0x78] sm:$0xff] %v382
                %v384 = vld [vmem:[%s350 + $0x100] sm:$0xff]
                %385 = vst [vmem:[%s351 + $0x80] sm:$0xff] %v384
                %v386 = vld [vmem:[%s350 + $0x108] sm:$0xff]
                %387 = vst [vmem:[%s351 + $0x88] sm:$0xff] %v386
                %v388 = vld [vmem:[%s350 + $0x110] sm:$0xff]
                %389 = vst [vmem:[%s351 + $0x90] sm:$0xff] %v388
                %v390 = vld [vmem:[%s350 + $0x118] sm:$0xff]
                %391 = vst [vmem:[%s351 + $0x98] sm:$0xff] %v390
                %v392 = vld [vmem:[%s350 + $0x120] sm:$0xff]
                %393 = vst [vmem:[%s351 + $0xa0] sm:$0xff] %v392
                %v394 = vld [vmem:[%s350 + $0x128] sm:$0xff]
                %395 = vst [vmem:[%s351 + $0xa8] sm:$0xff] %v394
                %v396 = vld [vmem:[%s350 + $0x130] sm:$0xff]
                %397 = vst [vmem:[%s351 + $0xb0] sm:$0xff] %v396
                %v398 = vld [vmem:[%s350 + $0x138] sm:$0xff]
                %399 = vst [vmem:[%s351 + $0xb8] sm:$0xff] %v398
                %v400 = vld [vmem:[%s350 + $0x180] sm:$0xff]
                %401 = vst [vmem:[%s351 + $0xc0] sm:$0xff] %v400
                %v402 = vld [vmem:[%s350 + $0x188] sm:$0xff]
                %403 = vst [vmem:[%s351 + $0xc8] sm:$0xff] %v402
                %v404 = vld [vmem:[%s350 + $0x190] sm:$0xff]
                %405 = vst [vmem:[%s351 + $0xd0] sm:$0xff] %v404
                %v406 = vld [vmem:[%s350 + $0x198] sm:$0xff]
                %407 = vst [vmem:[%s351 + $0xd8] sm:$0xff] %v406
                %v408 = vld [vmem:[%s350 + $0x1a0] sm:$0xff]
                %409 = vst [vmem:[%s351 + $0xe0] sm:$0xff] %v408
                %v410 = vld [vmem:[%s350 + $0x1a8] sm:$0xff]
                %411 = vst [vmem:[%s351 + $0xe8] sm:$0xff] %v410
                %v412 = vld [vmem:[%s350 + $0x1b0] sm:$0xff]
                %413 = vst [vmem:[%s351 + $0xf0] sm:$0xff] %v412
                %v414 = vld [vmem:[%s350 + $0x1b8] sm:$0xff]
                %415 = vst [vmem:[%s351 + $0xf8] sm:$0xff] %v414
                %v416 = vld [vmem:[%s350 + $0x200] sm:$0xff]
                %417 = vst [vmem:[%s351 + $0x100] sm:$0xff] %v416
                %v418 = vld [vmem:[%s350 + $0x208] sm:$0xff]
                %419 = vst [vmem:[%s351 + $0x108] sm:$0xff] %v418
                %v420 = vld [vmem:[%s350 + $0x210] sm:$0xff]
                %421 = vst [vmem:[%s351 + $0x110] sm:$0xff] %v420
                %v422 = vld [vmem:[%s350 + $0x218] sm:$0xff]
                %423 = vst [vmem:[%s351 + $0x118] sm:$0xff] %v422
                %v424 = vld [vmem:[%s350 + $0x220] sm:$0xff]
                %425 = vst [vmem:[%s351 + $0x120] sm:$0xff] %v424
                %v426 = vld [vmem:[%s350 + $0x228] sm:$0xff]
                %427 = vst [vmem:[%s351 + $0x128] sm:$0xff] %v426
                %v428 = vld [vmem:[%s350 + $0x230] sm:$0xff]
                %429 = vst [vmem:[%s351 + $0x130] sm:$0xff] %v428
                %v430 = vld [vmem:[%s350 + $0x238] sm:$0xff]
                %431 = vst [vmem:[%s351 + $0x138] sm:$0xff] %v430
              $region69: #{self_attn_2d_pallas.1} parent=63 // loop_footer
                %s349 = sadd.s32 1, %s345
              $region70: #{self_attn_2d_pallas.1} parent=63 // loop_footer_branch
                %344 = sbr.rel target = $region66
              $region71: #{self_attn_2d_pallas.1} parent=63 // loop_exit
                _
            $region64: #{self_attn_2d_pallas.1} parent=59 // pred_fallthru
              _
            // Predicated region
            $region72: #{self_attn_2d_pallas.1} parent=59 // pred_check
              _
            $region73: #{self_attn_2d_pallas.1} parent=59 // pred_check_branch
              %433 = sbr.rel target = $region75
            $region74: #{self_attn_2d_pallas.1} parent=59 // pred_region
              _
            $region75: #{self_attn_2d_pallas.1} parent=59 // pred_fallthru
              _
          $region60: #{self_attn_2d_pallas.1} parent=55 // pred_fallthru
            _
          %434 = vnop
        $region56: #{self_attn_2d_pallas.1} parent=51 // pred_fallthru
          _
        // Predicated region
        $region76: #{self_attn_2d_pallas.1} parent=51 // pred_check
          %p435 = pneg %p63
        $region77: #{self_attn_2d_pallas.1} parent=51 // pred_check_branch
          %437 = sbr.rel (%p435) target = $region79
        $region78: #{self_attn_2d_pallas.1} parent=51 // pred_region
          %s438 = sand.u32 %s53, 1
          %s439 = sand.u32 %s53, 1
          %s440 = smul.addr %s439, 32
          %s441 = scalar_lea.vmem [#allocation3], %s440
          %s442 = smul.addr %s17, 4
          %s443 = scalar_lea.vmem %s1, %s442
          // Predicated region
          $region80: #{self_attn_2d_pallas.1} parent=78 // pred_check
            _
          $region81: #{self_attn_2d_pallas.1} parent=78 // pred_check_branch
            %445 = sbr.rel (0) target = $region83
          $region82: #{self_attn_2d_pallas.1} parent=78 // pred_region
            // Predicated region
            $region84: #{self_attn_2d_pallas.1} parent=82 // pred_check
              _
            $region85: #{self_attn_2d_pallas.1} parent=82 // pred_check_branch
              %447 = sbr.rel target = $region87
            $region86: #{self_attn_2d_pallas.1} parent=82 // pred_region
              // Predicated region
              $region99: #{self_attn_2d_pallas.1} parent=86 // pred_check
                _
              $region100: #{self_attn_2d_pallas.1} parent=86 // pred_check_branch
                %477 = sbr.rel (0) target = $region102
              $region101: #{self_attn_2d_pallas.1} parent=86 // pred_region
                loop: start=0, step=1, limit=1
                $region103: #{self_attn_2d_pallas.1} parent=101 // loop_pre_header
                  _
                $region104: #{self_attn_2d_pallas.1} parent=101 // loop_header
                  %s479 = sphi 0, %s483
                  %p480 = scmp.ge.s32.totalorder %s479, 1
                  %s484 = sphi %s443, %s443
                  %s485 = sphi %s441, %s441
                $region105: #{self_attn_2d_pallas.1} parent=101 // loop_header_branch
                  %482 = sbr.rel (%p480) target = $region109
                $region106: #{self_attn_2d_pallas.1} parent=101 // loop_body
                  _
                $region107: #{self_attn_2d_pallas.1} parent=101 // loop_footer
                  %s483 = sadd.s32 1, %s479
                $region108: #{self_attn_2d_pallas.1} parent=101 // loop_footer_branch
                  %478 = sbr.rel target = $region104
                $region109: #{self_attn_2d_pallas.1} parent=101 // loop_exit
                  _
                %s487 = ssub.s32 16, 1
                loop: start=0, step=1, limit=1
                $region110: #{self_attn_2d_pallas.1} parent=101 // loop_pre_header
                  _
                $region111: #{self_attn_2d_pallas.1} parent=101 // loop_header
                  %s489 = sphi 0, %s493
                  %p490 = scmp.ge.s32.totalorder %s489, 1
                  %s494 = sphi %s443, %s443
                  %s495 = sphi %s441, %s441
                $region112: #{self_attn_2d_pallas.1} parent=101 // loop_header_branch
                  %492 = sbr.rel (%p490) target = $region116
                $region113: #{self_attn_2d_pallas.1} parent=101 // loop_body
                  %v496 = vld [vmem:[%s494] sm:%s487]
                  %497 = vst [vmem:[%s495] sm:%s487] %v496
                  %v498 = vld [vmem:[%s494 + $0x8] sm:%s487]
                  %499 = vst [vmem:[%s495 + $0x4] sm:%s487] %v498
                  %v500 = vld [vmem:[%s494 + $0x10] sm:%s487]
                  %501 = vst [vmem:[%s495 + $0x8] sm:%s487] %v500
                  %v502 = vld [vmem:[%s494 + $0x18] sm:%s487]
                  %503 = vst [vmem:[%s495 + $0xc] sm:%s487] %v502
                  %v504 = vld [vmem:[%s494 + $0x20] sm:%s487]
                  %505 = vst [vmem:[%s495 + $0x10] sm:%s487] %v504
                  %v506 = vld [vmem:[%s494 + $0x28] sm:%s487]
                  %507 = vst [vmem:[%s495 + $0x14] sm:%s487] %v506
                  %v508 = vld [vmem:[%s494 + $0x30] sm:%s487]
                  %509 = vst [vmem:[%s495 + $0x18] sm:%s487] %v508
                  %v510 = vld [vmem:[%s494 + $0x38] sm:%s487]
                  %511 = vst [vmem:[%s495 + $0x1c] sm:%s487] %v510
                $region114: #{self_attn_2d_pallas.1} parent=101 // loop_footer
                  %s493 = sadd.s32 1, %s489
                $region115: #{self_attn_2d_pallas.1} parent=101 // loop_footer_branch
                  %488 = sbr.rel target = $region111
                $region116: #{self_attn_2d_pallas.1} parent=101 // loop_exit
                  _
              $region102: #{self_attn_2d_pallas.1} parent=86 // pred_fallthru
                _
            $region87: #{self_attn_2d_pallas.1} parent=82 // pred_fallthru
              _
            // Predicated region
            $region88: #{self_attn_2d_pallas.1} parent=82 // pred_check
              _
            $region89: #{self_attn_2d_pallas.1} parent=82 // pred_check_branch
              %449 = sbr.rel (0) target = $region91
            $region90: #{self_attn_2d_pallas.1} parent=82 // pred_region
              %s451 = ssub.s32 16, 1
              loop: start=0, step=1, limit=1
              $region92: #{self_attn_2d_pallas.1} parent=90 // loop_pre_header
                _
              $region93: #{self_attn_2d_pallas.1} parent=90 // loop_header
                %s453 = sphi 0, %s457
                %p454 = scmp.ge.s32.totalorder %s453, 1
                %s458 = sphi %s443, %s443
                %s459 = sphi %s441, %s441
              $region94: #{self_attn_2d_pallas.1} parent=90 // loop_header_branch
                %456 = sbr.rel (%p454) target = $region98
              $region95: #{self_attn_2d_pallas.1} parent=90 // loop_body
                %v460 = vld [vmem:[%s458] sm:%s451]
                %461 = vst [vmem:[%s459] sm:%s451] %v460
                %v462 = vld [vmem:[%s458 + $0x8] sm:%s451]
                %463 = vst [vmem:[%s459 + $0x4] sm:%s451] %v462
                %v464 = vld [vmem:[%s458 + $0x10] sm:%s451]
                %465 = vst [vmem:[%s459 + $0x8] sm:%s451] %v464
                %v466 = vld [vmem:[%s458 + $0x18] sm:%s451]
                %467 = vst [vmem:[%s459 + $0xc] sm:%s451] %v466
                %v468 = vld [vmem:[%s458 + $0x20] sm:%s451]
                %469 = vst [vmem:[%s459 + $0x10] sm:%s451] %v468
                %v470 = vld [vmem:[%s458 + $0x28] sm:%s451]
                %471 = vst [vmem:[%s459 + $0x14] sm:%s451] %v470
                %v472 = vld [vmem:[%s458 + $0x30] sm:%s451]
                %473 = vst [vmem:[%s459 + $0x18] sm:%s451] %v472
                %v474 = vld [vmem:[%s458 + $0x38] sm:%s451]
                %475 = vst [vmem:[%s459 + $0x1c] sm:%s451] %v474
              $region96: #{self_attn_2d_pallas.1} parent=90 // loop_footer
                %s457 = sadd.s32 1, %s453
              $region97: #{self_attn_2d_pallas.1} parent=90 // loop_footer_branch
                %452 = sbr.rel target = $region93
              $region98: #{self_attn_2d_pallas.1} parent=90 // loop_exit
                _
            $region91: #{self_attn_2d_pallas.1} parent=82 // pred_fallthru
              _
          $region83: #{self_attn_2d_pallas.1} parent=78 // pred_fallthru
            _
          %512 = vnop
        $region79: #{self_attn_2d_pallas.1} parent=51 // pred_fallthru
          _
      $region52: #{self_attn_2d_pallas.1} parent=5 // pred_fallthru
        _
      %p513 = scmp.le.s32.totalorder 1, %s17
      %p514 = scmp.lt.s32.totalorder %s17, 3
      %p515 = pnand %p513, %p514
      %p516 = pneg %p515
      // Predicated region
      $region117: #{self_attn_2d_pallas.1} parent=5 // pred_check
        _
      $region118: #{self_attn_2d_pallas.1} parent=5 // pred_check_branch
        %518 = sbr.rel (%p515) target = $region120
      $region119: #{self_attn_2d_pallas.1} parent=5 // pred_region
        %s519 = ssub.s32 %s17, 1
        %s520 = sand.u32 %s30, 1
        %s521 = sand.u32 %s30, 1
        %s522 = smul.addr %s521, 320
        %s523 = scalar_lea.vmem [#allocation2], %s522
        // Predicated region
        $region121: #{self_attn_2d_pallas.1} parent=119 // pred_check
          %p524 = pneg %p43
        $region122: #{self_attn_2d_pallas.1} parent=119 // pred_check_branch
          %526 = sbr.rel (%p524) target = $region124
        $region123: #{self_attn_2d_pallas.1} parent=119 // pred_region
          _
        $region124: #{self_attn_2d_pallas.1} parent=119 // pred_fallthru
          _
        %s527 = sand.u32 %s56, 1
        %s528 = sand.u32 %s56, 1
        %s529 = smul.addr %s528, 32
        %s530 = scalar_lea.vmem [#allocation3], %s529
        // Predicated region
        $region125: #{self_attn_2d_pallas.1} parent=119 // pred_check
          %p531 = pneg %p69
        $region126: #{self_attn_2d_pallas.1} parent=119 // pred_check_branch
          %533 = sbr.rel (%p531) target = $region128
        $region127: #{self_attn_2d_pallas.1} parent=119 // pred_region
          _
        $region128: #{self_attn_2d_pallas.1} parent=119 // pred_fallthru
          _
        %s534 = sand.u32 %s30, 1
        %s535 = sand.u32 %s30, 1
        %s536 = smul.addr %s535, 320
        %s537 = scalar_lea.vmem [#allocation2], %s536
        %p538 = pneg %p43
        %p539 = pneg %p40
        %s540 = sand.u32 %s56, 1
        %s541 = sand.u32 %s56, 1
        %s542 = smul.addr %s541, 32
        %s543 = scalar_lea.vmem [#allocation3], %s542
        %p544 = pneg %p69
        %p545 = pneg %p66
        %p546 = pneg %p90
        %p547 = pneg %p87
        %p548 = pneg %p111
        %p549 = pneg %p108
        %p550 = pneg %p132
        %p551 = pneg %p129
        %p552 = pneg %p153
        %p553 = pneg %p150
        %p554 = pneg %p174
        %p555 = pneg %p171
        %p556 = pneg %p195
        %p557 = pneg %p192
        %p558 = pneg %p216
        %p559 = pneg %p213
        %p560 = pneg %p237
        %p561 = pneg %p234
        %p562 = pneg %p258
        %p563 = pneg %p255
        %p564 = pneg %p284
        %p565 = pneg %p281
        %p566 = scmp.lt.s32.totalorder %s22, 1
        %s567 = scalar_select %p566, %s22, 1
        %s568 = smul.addr %s567, 8
        %s569 = scalar_lea.vmem %s11, %s568
        %s570 = smul.u32 16, %s22
        %p571 = scmp.lt.s32.totalorder %s22, 1
        %s572 = scalar_select %p571, %s22, 1
        %s573 = smul.addr %s572, 8
        %s574 = scalar_lea.vmem %s11, %s573
        %v576 = vld [vmem:[%s523] sm:$0xff]
        %v577 = vld [vmem:[%s523 + $0x8] sm:$0xff]
        %v578 = vld [vmem:[%s523 + $0x10] sm:$0xff]
        %v579 = vld [vmem:[%s523 + $0x18] sm:$0xff]
        %v580 = vld [vmem:[%s523 + $0x20] sm:$0xff]
        %v581 = vld [vmem:[%s523 + $0x28] sm:$0xff]
        %v582 = vld [vmem:[%s523 + $0x30] sm:$0xff]
        %v583 = vld [vmem:[%s523 + $0x38] sm:$0xff]
        %v584 = vld [vmem:[%s523 + $0x40] sm:$0xff]
        %v585 = vld [vmem:[%s523 + $0x48] sm:$0xff]
        %v586 = vld [vmem:[%s523 + $0x50] sm:$0xff]
        %v587 = vld [vmem:[%s523 + $0x58] sm:$0xff]
        %v588 = vld [vmem:[%s523 + $0x60] sm:$0xff]
        %v589 = vld [vmem:[%s523 + $0x68] sm:$0xff]
        %v590 = vld [vmem:[%s523 + $0x70] sm:$0xff]
        %v591 = vld [vmem:[%s523 + $0x78] sm:$0xff]
        %v592 = vld [vmem:[%s523 + $0x80] sm:$0xff]
        %v593 = vld [vmem:[%s523 + $0x88] sm:$0xff]
        %v594 = vld [vmem:[%s523 + $0x90] sm:$0xff]
        %v595 = vld [vmem:[%s523 + $0x98] sm:$0xff]
        %v596 = vld [vmem:[%s523 + $0xa0] sm:$0xff]
        %v597 = vld [vmem:[%s523 + $0xa8] sm:$0xff]
        %v598 = vld [vmem:[%s523 + $0xb0] sm:$0xff]
        %v599 = vld [vmem:[%s523 + $0xb8] sm:$0xff]
        %v600 = vld [vmem:[%s523 + $0xc0] sm:$0xff]
        %v601 = vld [vmem:[%s523 + $0xc8] sm:$0xff]
        %v602 = vld [vmem:[%s523 + $0xd0] sm:$0xff]
        %v603 = vld [vmem:[%s523 + $0xd8] sm:$0xff]
        %v604 = vld [vmem:[%s523 + $0xe0] sm:$0xff]
        %v605 = vld [vmem:[%s523 + $0xe8] sm:$0xff]
        %v606 = vld [vmem:[%s523 + $0xf0] sm:$0xff]
        %v607 = vld [vmem:[%s523 + $0xf8] sm:$0xff]
        %v608 = vld [vmem:[%s523 + $0x100] sm:$0x33]
        %v609 = vld [vmem:[%s523 + $0x108] sm:$0x33]
        %v610 = vld [vmem:[%s523 + $0x110] sm:$0x33]
        %v611 = vld [vmem:[%s523 + $0x118] sm:$0x33]
        %v612 = vld [vmem:[%s523 + $0x120] sm:$0x33]
        %v613 = vld [vmem:[%s523 + $0x128] sm:$0x33]
        %v614 = vld [vmem:[%s523 + $0x130] sm:$0x33]
        %v615 = vld [vmem:[%s523 + $0x138] sm:$0x33]
        %v616 = vld [vmem:[%s10] sm:$0xff]
        %v617 = vld [vmem:[%s10 + $0x8] sm:$0xff]
        %v618 = vld [vmem:[%s10 + $0x10] sm:$0xff]
        %v619 = vld [vmem:[%s10 + $0x18] sm:$0xff]
        %v620 = vld [vmem:[%s10 + $0x20] sm:$0xff]
        %v621 = vld [vmem:[%s10 + $0x28] sm:$0xff]
        %v622 = vld [vmem:[%s2] sm:$0xf]
        %v623 = vld [vmem:[%s2 + $0x4] sm:$0xf]
        %v624 = vld [vmem:[%s2 + $0x8] sm:$0xf]
        %v628 = vunpack.c.l.b16 %v622
        %v629 = vunpack.c.l.b16 %v623
        %v630 = vunpack.c.l.b16 %v624
        %v631 = vpack.c.b16 %v629, %v628
        %v632 = vpack.c.b16 %v630, %v630
        %v673 = vunpack.c.l.b16 %v576
        %v674 = vunpack.c.h.b16 %v576
        %v675 = vunpack.c.l.b16 %v577
        %v676 = vunpack.c.h.b16 %v577
        %v677 = vunpack.c.l.b16 %v578
        %v678 = vunpack.c.h.b16 %v578
        %v679 = vunpack.c.l.b16 %v579
        %v680 = vunpack.c.h.b16 %v579
        %v681 = vunpack.c.l.b16 %v580
        %v682 = vunpack.c.h.b16 %v580
        %v683 = vunpack.c.l.b16 %v581
        %v684 = vunpack.c.h.b16 %v581
        %v685 = vunpack.c.l.b16 %v582
        %v686 = vunpack.c.h.b16 %v582
        %v687 = vunpack.c.l.b16 %v583
        %v688 = vunpack.c.h.b16 %v583
        %v689 = vunpack.c.l.b16 %v584
        %v690 = vunpack.c.h.b16 %v584
        %v691 = vunpack.c.l.b16 %v585
        %v692 = vunpack.c.h.b16 %v585
        %v693 = vunpack.c.l.b16 %v586
        %v694 = vunpack.c.h.b16 %v586
        %v695 = vunpack.c.l.b16 %v587
        %v696 = vunpack.c.h.b16 %v587
        %v697 = vunpack.c.l.b16 %v588
        %v698 = vunpack.c.h.b16 %v588
        %v699 = vunpack.c.l.b16 %v589
        %v700 = vunpack.c.h.b16 %v589
        %v701 = vunpack.c.l.b16 %v590
        %v702 = vunpack.c.h.b16 %v590
        %v703 = vunpack.c.l.b16 %v591
        %v704 = vunpack.c.h.b16 %v591
        %v705 = vunpack.c.l.b16 %v592
        %v706 = vunpack.c.h.b16 %v592
        %v707 = vunpack.c.l.b16 %v593
        %v708 = vunpack.c.h.b16 %v593
        %v709 = vunpack.c.l.b16 %v594
        %v710 = vunpack.c.h.b16 %v594
        %v711 = vunpack.c.l.b16 %v595
        %v712 = vunpack.c.h.b16 %v595
        %v713 = vunpack.c.l.b16 %v596
        %v714 = vunpack.c.h.b16 %v596
        %v715 = vunpack.c.l.b16 %v597
        %v716 = vunpack.c.h.b16 %v597
        %v717 = vunpack.c.l.b16 %v598
        %v718 = vunpack.c.h.b16 %v598
        %v719 = vunpack.c.l.b16 %v599
        %v720 = vunpack.c.h.b16 %v599
        %v721 = vunpack.c.l.b16 %v600
        %v722 = vunpack.c.h.b16 %v600
        %v723 = vunpack.c.l.b16 %v601
        %v724 = vunpack.c.h.b16 %v601
        %v725 = vunpack.c.l.b16 %v602
        %v726 = vunpack.c.h.b16 %v602
        %v727 = vunpack.c.l.b16 %v603
        %v728 = vunpack.c.h.b16 %v603
        %v729 = vunpack.c.l.b16 %v604
        %v730 = vunpack.c.h.b16 %v604
        %v731 = vunpack.c.l.b16 %v605
        %v732 = vunpack.c.h.b16 %v605
        %v733 = vunpack.c.l.b16 %v606
        %v734 = vunpack.c.h.b16 %v606
        %v735 = vunpack.c.l.b16 %v607
        %v736 = vunpack.c.h.b16 %v607
        %v737 = vunpack.c.l.b16 %v608
        %v738 = vunpack.c.h.b16 %v608
        %v739 = vunpack.c.l.b16 %v609
        %v740 = vunpack.c.h.b16 %v609
        %v741 = vunpack.c.l.b16 %v610
        %v742 = vunpack.c.h.b16 %v610
        %v743 = vunpack.c.l.b16 %v611
        %v744 = vunpack.c.h.b16 %v611
        %v745 = vunpack.c.l.b16 %v612
        %v746 = vunpack.c.h.b16 %v612
        %v747 = vunpack.c.l.b16 %v613
        %v748 = vunpack.c.h.b16 %v613
        %v749 = vunpack.c.l.b16 %v614
        %v750 = vunpack.c.h.b16 %v614
        %v751 = vunpack.c.l.b16 %v615
        %v752 = vunpack.c.h.b16 %v615
        %v753 = vpack.c.b16 %v689, %v673
        %v754 = vpack.c.b16 %v690, %v674
        %v755 = vpack.c.b16 %v691, %v675
        %v756 = vpack.c.b16 %v692, %v676
        %v757 = vpack.c.b16 %v693, %v677
        %v758 = vpack.c.b16 %v694, %v678
        %v759 = vpack.c.b16 %v695, %v679
        %v760 = vpack.c.b16 %v696, %v680
        %v761 = vpack.c.b16 %v697, %v681
        %v762 = vpack.c.b16 %v698, %v682
        %v763 = vpack.c.b16 %v699, %v683
        %v764 = vpack.c.b16 %v700, %v684
        %v765 = vpack.c.b16 %v701, %v685
        %v766 = vpack.c.b16 %v702, %v686
        %v767 = vpack.c.b16 %v703, %v687
        %v768 = vpack.c.b16 %v704, %v688
        %v769 = vpack.c.b16 %v721, %v705
        %v770 = vpack.c.b16 %v722, %v706
        %v771 = vpack.c.b16 %v723, %v707
        %v772 = vpack.c.b16 %v724, %v708
        %v773 = vpack.c.b16 %v725, %v709
        %v774 = vpack.c.b16 %v726, %v710
        %v775 = vpack.c.b16 %v727, %v711
        %v776 = vpack.c.b16 %v728, %v712
        %v777 = vpack.c.b16 %v729, %v713
        %v778 = vpack.c.b16 %v730, %v714
        %v779 = vpack.c.b16 %v731, %v715
        %v780 = vpack.c.b16 %v732, %v716
        %v781 = vpack.c.b16 %v733, %v717
        %v782 = vpack.c.b16 %v734, %v718
        %v783 = vpack.c.b16 %v735, %v719
        %v784 = vpack.c.b16 %v736, %v720
        %v785 = vpack.c.b16 %v737, %v737
        %v786 = vpack.c.b16 %v738, %v738
        %v787 = vpack.c.b16 %v739, %v739
        %v788 = vpack.c.b16 %v740, %v740
        %v789 = vpack.c.b16 %v741, %v741
        %v790 = vpack.c.b16 %v742, %v742
        %v791 = vpack.c.b16 %v743, %v743
        %v792 = vpack.c.b16 %v744, %v744
        %v793 = vpack.c.b16 %v745, %v745
        %v794 = vpack.c.b16 %v746, %v746
        %v795 = vpack.c.b16 %v747, %v747
        %v796 = vpack.c.b16 %v748, %v748
        %v797 = vpack.c.b16 %v749, %v749
        %v798 = vpack.c.b16 %v750, %v750
        %v799 = vpack.c.b16 %v751, %v751
        %v800 = vpack.c.b16 %v752, %v752
        %vm833 = vcmask 293888
        %v835 = vsel %vm833, %v631, 0
        %v838 = vsel %vm833, %v632, 0
        %vm840 = vcmask 1041408
        %v842 = vsel %vm840, %v785, 0
        %v845 = vsel %vm840, %v786, 0
        %v848 = vsel %vm840, %v787, 0
        %v851 = vsel %vm840, %v788, 0
        %v854 = vsel %vm840, %v789, 0
        %v857 = vsel %vm840, %v790, 0
        %v860 = vsel %vm840, %v791, 0
        %v863 = vsel %vm840, %v792, 0
        %v866 = vsel %vm840, %v793, 0
        %v869 = vsel %vm840, %v794, 0
        %v872 = vsel %vm840, %v795, 0
        %v875 = vsel %vm840, %v796, 0
        %v878 = vsel %vm840, %v797, 0
        %v881 = vsel %vm840, %v798, 0
        %v884 = vsel %vm840, %v799, 0
        %v887 = vsel %vm840, %v800, 0
        %889 = vmatpush.bf16.msra.mxu0 0
        %890 = vmatpush.bf16.msra.mxu0 0
        %891 = vmatpush.bf16.msra.mxu0 0
        %892 = vmatpush.bf16.msra.mxu0 0
        %893 = vmatpush.bf16.msra.mxu0 0
        %894 = vmatpush.bf16.msra.mxu0 %v842
        %895 = vmatpush.bf16.msra.mxu0 %v769
        %896 = vmatpush.bf16.msra.mxu0 %v753
        %897 = vmatmul.bf16.gmra.mxu0 %v835
        %v898 = vpop.f32.mrf.mxu0
        %v899 = vadd.f32 0.0, %v898
        %v900 = vpop.f32.mrf.mxu0
        %v901 = vadd.f32 0.0, %v900
        %902 = vmatmul.bf16.gmra.mxu0 %v838
        %v903 = vpop.f32.mrf.mxu0
        %v904 = vadd.f32 0.0, %v903
        %v905 = vpop.f32.mrf.mxu0
        %906 = vdwg.mxu0
        %907 = vmatpush.bf16.msra.mxu0 0
        %908 = vmatpush.bf16.msra.mxu0 0
        %909 = vmatpush.bf16.msra.mxu0 0
        %910 = vmatpush.bf16.msra.mxu0 0
        %911 = vmatpush.bf16.msra.mxu0 0
        %912 = vmatpush.bf16.msra.mxu0 %v845
        %913 = vmatpush.bf16.msra.mxu0 %v770
        %914 = vmatpush.bf16.msra.mxu0 %v754
        %915 = vmatmul.bf16.gmra.mxu0 %v835
        %v916 = vpop.f32.mrf.mxu0
        %v917 = vadd.f32 0.0, %v916
        %v918 = vpop.f32.mrf.mxu0
        %v919 = vadd.f32 0.0, %v918
        %920 = vmatmul.bf16.gmra.mxu0 %v838
        %v921 = vpop.f32.mrf.mxu0
        %v922 = vadd.f32 0.0, %v921
        %v923 = vpop.f32.mrf.mxu0
        %924 = vdwg.mxu0
        %925 = vmatpush.bf16.msra.mxu0 0
        %926 = vmatpush.bf16.msra.mxu0 0
        %927 = vmatpush.bf16.msra.mxu0 0
        %928 = vmatpush.bf16.msra.mxu0 0
        %929 = vmatpush.bf16.msra.mxu0 0
        %930 = vmatpush.bf16.msra.mxu0 %v848
        %931 = vmatpush.bf16.msra.mxu0 %v771
        %932 = vmatpush.bf16.msra.mxu0 %v755
        %933 = vmatmul.bf16.gmra.mxu0 %v835
        %v934 = vpop.f32.mrf.mxu0
        %v935 = vadd.f32 0.0, %v934
        %v936 = vpop.f32.mrf.mxu0
        %v937 = vadd.f32 0.0, %v936
        %938 = vmatmul.bf16.gmra.mxu0 %v838
        %v939 = vpop.f32.mrf.mxu0
        %v940 = vadd.f32 0.0, %v939
        %v941 = vpop.f32.mrf.mxu0
        %942 = vdwg.mxu0
        %943 = vmatpush.bf16.msra.mxu0 0
        %944 = vmatpush.bf16.msra.mxu0 0
        %945 = vmatpush.bf16.msra.mxu0 0
        %946 = vmatpush.bf16.msra.mxu0 0
        %947 = vmatpush.bf16.msra.mxu0 0
        %948 = vmatpush.bf16.msra.mxu0 %v851
        %949 = vmatpush.bf16.msra.mxu0 %v772
        %950 = vmatpush.bf16.msra.mxu0 %v756
        %951 = vmatmul.bf16.gmra.mxu0 %v835
        %v952 = vpop.f32.mrf.mxu0
        %v953 = vadd.f32 0.0, %v952
        %v954 = vpop.f32.mrf.mxu0
        %v955 = vadd.f32 0.0, %v954
        %956 = vmatmul.bf16.gmra.mxu0 %v838
        %v957 = vpop.f32.mrf.mxu0
        %v958 = vadd.f32 0.0, %v957
        %v959 = vpop.f32.mrf.mxu0
        %960 = vdwg.mxu0
        %961 = vmatpush.bf16.msra.mxu0 0
        %962 = vmatpush.bf16.msra.mxu0 0
        %963 = vmatpush.bf16.msra.mxu0 0
        %964 = vmatpush.bf16.msra.mxu0 0
        %965 = vmatpush.bf16.msra.mxu0 0
        %966 = vmatpush.bf16.msra.mxu0 %v854
        %967 = vmatpush.bf16.msra.mxu0 %v773
        %968 = vmatpush.bf16.msra.mxu0 %v757
        %969 = vmatmul.bf16.gmra.mxu0 %v835
        %v970 = vpop.f32.mrf.mxu0
        %v971 = vadd.f32 0.0, %v970
        %v972 = vpop.f32.mrf.mxu0
        %v973 = vadd.f32 0.0, %v972
        %974 = vmatmul.bf16.gmra.mxu0 %v838
        %v975 = vpop.f32.mrf.mxu0
        %v976 = vadd.f32 0.0, %v975
        %v977 = vpop.f32.mrf.mxu0
        %978 = vdwg.mxu0
        %979 = vmatpush.bf16.msra.mxu0 0
        %980 = vmatpush.bf16.msra.mxu0 0
        %981 = vmatpush.bf16.msra.mxu0 0
        %982 = vmatpush.bf16.msra.mxu0 0
        %983 = vmatpush.bf16.msra.mxu0 0
        %984 = vmatpush.bf16.msra.mxu0 %v857
        %985 = vmatpush.bf16.msra.mxu0 %v774
        %986 = vmatpush.bf16.msra.mxu0 %v758
        %987 = vmatmul.bf16.gmra.mxu0 %v835
        %v988 = vpop.f32.mrf.mxu0
        %v989 = vadd.f32 0.0, %v988
        %v990 = vpop.f32.mrf.mxu0
        %v991 = vadd.f32 0.0, %v990
        %992 = vmatmul.bf16.gmra.mxu0 %v838
        %v993 = vpop.f32.mrf.mxu0
        %v994 = vadd.f32 0.0, %v993
        %v995 = vpop.f32.mrf.mxu0
        %996 = vdwg.mxu0
        %997 = vmatpush.bf16.msra.mxu0 0
        %998 = vmatpush.bf16.msra.mxu0 0
        %999 = vmatpush.bf16.msra.mxu0 0
        %1000 = vmatpush.bf16.msra.mxu0 0
        %1001 = vmatpush.bf16.msra.mxu0 0
        %1002 = vmatpush.bf16.msra.mxu0 %v860
        %1003 = vmatpush.bf16.msra.mxu0 %v775
        %1004 = vmatpush.bf16.msra.mxu0 %v759
        %1005 = vmatmul.bf16.gmra.mxu0 %v835
        %v1006 = vpop.f32.mrf.mxu0
        %v1007 = vadd.f32 0.0, %v1006
        %v1008 = vpop.f32.mrf.mxu0
        %v1009 = vadd.f32 0.0, %v1008
        %1010 = vmatmul.bf16.gmra.mxu0 %v838
        %v1011 = vpop.f32.mrf.mxu0
        %v1012 = vadd.f32 0.0, %v1011
        %v1013 = vpop.f32.mrf.mxu0
        %1014 = vdwg.mxu0
        %1015 = vmatpush.bf16.msra.mxu0 0
        %1016 = vmatpush.bf16.msra.mxu0 0
        %1017 = vmatpush.bf16.msra.mxu0 0
        %1018 = vmatpush.bf16.msra.mxu0 0
        %1019 = vmatpush.bf16.msra.mxu0 0
        %1020 = vmatpush.bf16.msra.mxu0 %v863
        %1021 = vmatpush.bf16.msra.mxu0 %v776
        %1022 = vmatpush.bf16.msra.mxu0 %v760
        %1023 = vmatmul.bf16.gmra.mxu0 %v835
        %v1024 = vpop.f32.mrf.mxu0
        %v1025 = vadd.f32 0.0, %v1024
        %v1026 = vpop.f32.mrf.mxu0
        %v1027 = vadd.f32 0.0, %v1026
        %1028 = vmatmul.bf16.gmra.mxu0 %v838
        %v1029 = vpop.f32.mrf.mxu0
        %v1030 = vadd.f32 0.0, %v1029
        %v1031 = vpop.f32.mrf.mxu0
        %1032 = vdwg.mxu0
        %1033 = vmatpush.bf16.msra.mxu0 0
        %1034 = vmatpush.bf16.msra.mxu0 0
        %1035 = vmatpush.bf16.msra.mxu0 0
        %1036 = vmatpush.bf16.msra.mxu0 0
        %1037 = vmatpush.bf16.msra.mxu0 0
        %1038 = vmatpush.bf16.msra.mxu0 %v866
        %1039 = vmatpush.bf16.msra.mxu0 %v777
        %1040 = vmatpush.bf16.msra.mxu0 %v761
        %1041 = vmatmul.bf16.gmra.mxu0 %v835
        %v1042 = vpop.f32.mrf.mxu0
        %v1043 = vadd.f32 0.0, %v1042
        %v1044 = vpop.f32.mrf.mxu0
        %v1045 = vadd.f32 0.0, %v1044
        %1046 = vmatmul.bf16.gmra.mxu0 %v838
        %v1047 = vpop.f32.mrf.mxu0
        %v1048 = vadd.f32 0.0, %v1047
        %v1049 = vpop.f32.mrf.mxu0
        %1050 = vdwg.mxu0
        %1051 = vmatpush.bf16.msra.mxu0 0
        %1052 = vmatpush.bf16.msra.mxu0 0
        %1053 = vmatpush.bf16.msra.mxu0 0
        %1054 = vmatpush.bf16.msra.mxu0 0
        %1055 = vmatpush.bf16.msra.mxu0 0
        %1056 = vmatpush.bf16.msra.mxu0 %v869
        %1057 = vmatpush.bf16.msra.mxu0 %v778
        %1058 = vmatpush.bf16.msra.mxu0 %v762
        %1059 = vmatmul.bf16.gmra.mxu0 %v835
        %v1060 = vpop.f32.mrf.mxu0
        %v1061 = vadd.f32 0.0, %v1060
        %v1062 = vpop.f32.mrf.mxu0
        %v1063 = vadd.f32 0.0, %v1062
        %1064 = vmatmul.bf16.gmra.mxu0 %v838
        %v1065 = vpop.f32.mrf.mxu0
        %v1066 = vadd.f32 0.0, %v1065
        %v1067 = vpop.f32.mrf.mxu0
        %1068 = vdwg.mxu0
        %1069 = vmatpush.bf16.msra.mxu0 0
        %1070 = vmatpush.bf16.msra.mxu0 0
        %1071 = vmatpush.bf16.msra.mxu0 0
        %1072 = vmatpush.bf16.msra.mxu0 0
        %1073 = vmatpush.bf16.msra.mxu0 0
        %1074 = vmatpush.bf16.msra.mxu0 %v872
        %1075 = vmatpush.bf16.msra.mxu0 %v779
        %1076 = vmatpush.bf16.msra.mxu0 %v763
        %1077 = vmatmul.bf16.gmra.mxu0 %v835
        %v1078 = vpop.f32.mrf.mxu0
        %v1079 = vadd.f32 0.0, %v1078
        %v1080 = vpop.f32.mrf.mxu0
        %v1081 = vadd.f32 0.0, %v1080
        %1082 = vmatmul.bf16.gmra.mxu0 %v838
        %v1083 = vpop.f32.mrf.mxu0
        %v1084 = vadd.f32 0.0, %v1083
        %v1085 = vpop.f32.mrf.mxu0
        %1086 = vdwg.mxu0
        %1087 = vmatpush.bf16.msra.mxu0 0
        %1088 = vmatpush.bf16.msra.mxu0 0
        %1089 = vmatpush.bf16.msra.mxu0 0
        %1090 = vmatpush.bf16.msra.mxu0 0
        %1091 = vmatpush.bf16.msra.mxu0 0
        %1092 = vmatpush.bf16.msra.mxu0 %v875
        %1093 = vmatpush.bf16.msra.mxu0 %v780
        %1094 = vmatpush.bf16.msra.mxu0 %v764
        %1095 = vmatmul.bf16.gmra.mxu0 %v835
        %v1096 = vpop.f32.mrf.mxu0
        %v1097 = vadd.f32 0.0, %v1096
        %v1098 = vpop.f32.mrf.mxu0
        %v1099 = vadd.f32 0.0, %v1098
        %1100 = vmatmul.bf16.gmra.mxu0 %v838
        %v1101 = vpop.f32.mrf.mxu0
        %v1102 = vadd.f32 0.0, %v1101
        %v1103 = vpop.f32.mrf.mxu0
        %1104 = vdwg.mxu0
        %1105 = vmatpush.bf16.msra.mxu0 0
        %1106 = vmatpush.bf16.msra.mxu0 0
        %1107 = vmatpush.bf16.msra.mxu0 0
        %1108 = vmatpush.bf16.msra.mxu0 0
        %1109 = vmatpush.bf16.msra.mxu0 0
        %1110 = vmatpush.bf16.msra.mxu0 %v878
        %1111 = vmatpush.bf16.msra.mxu0 %v781
        %1112 = vmatpush.bf16.msra.mxu0 %v765
        %1113 = vmatmul.bf16.gmra.mxu0 %v835
        %v1114 = vpop.f32.mrf.mxu0
        %v1115 = vadd.f32 0.0, %v1114
        %v1116 = vpop.f32.mrf.mxu0
        %v1117 = vadd.f32 0.0, %v1116
        %1118 = vmatmul.bf16.gmra.mxu0 %v838
        %v1119 = vpop.f32.mrf.mxu0
        %v1120 = vadd.f32 0.0, %v1119
        %v1121 = vpop.f32.mrf.mxu0
        %1122 = vdwg.mxu0
        %1123 = vmatpush.bf16.msra.mxu0 0
        %1124 = vmatpush.bf16.msra.mxu0 0
        %1125 = vmatpush.bf16.msra.mxu0 0
        %1126 = vmatpush.bf16.msra.mxu0 0
        %1127 = vmatpush.bf16.msra.mxu0 0
        %1128 = vmatpush.bf16.msra.mxu0 %v881
        %1129 = vmatpush.bf16.msra.mxu0 %v782
        %1130 = vmatpush.bf16.msra.mxu0 %v766
        %1131 = vmatmul.bf16.gmra.mxu0 %v835
        %v1132 = vpop.f32.mrf.mxu0
        %v1133 = vadd.f32 0.0, %v1132
        %v1134 = vpop.f32.mrf.mxu0
        %v1135 = vadd.f32 0.0, %v1134
        %1136 = vmatmul.bf16.gmra.mxu0 %v838
        %v1137 = vpop.f32.mrf.mxu0
        %v1138 = vadd.f32 0.0, %v1137
        %v1139 = vpop.f32.mrf.mxu0
        %1140 = vdwg.mxu0
        %1141 = vmatpush.bf16.msra.mxu0 0
        %1142 = vmatpush.bf16.msra.mxu0 0
        %1143 = vmatpush.bf16.msra.mxu0 0
        %1144 = vmatpush.bf16.msra.mxu0 0
        %1145 = vmatpush.bf16.msra.mxu0 0
        %1146 = vmatpush.bf16.msra.mxu0 %v884
        %1147 = vmatpush.bf16.msra.mxu0 %v783
        %1148 = vmatpush.bf16.msra.mxu0 %v767
        %1149 = vmatmul.bf16.gmra.mxu0 %v835
        %v1150 = vpop.f32.mrf.mxu0
        %v1151 = vadd.f32 0.0, %v1150
        %v1152 = vpop.f32.mrf.mxu0
        %v1153 = vadd.f32 0.0, %v1152
        %1154 = vmatmul.bf16.gmra.mxu0 %v838
        %v1155 = vpop.f32.mrf.mxu0
        %v1156 = vadd.f32 0.0, %v1155
        %v1157 = vpop.f32.mrf.mxu0
        %1158 = vdwg.mxu0
        %1159 = vmatpush.bf16.msra.mxu0 0
        %1160 = vmatpush.bf16.msra.mxu0 0
        %1161 = vmatpush.bf16.msra.mxu0 0
        %1162 = vmatpush.bf16.msra.mxu0 0
        %1163 = vmatpush.bf16.msra.mxu0 0
        %1164 = vmatpush.bf16.msra.mxu0 %v887
        %1165 = vmatpush.bf16.msra.mxu0 %v784
        %1166 = vmatpush.bf16.msra.mxu0 %v768
        %1167 = vmatmul.bf16.gmra.mxu0 %v835
        %v1168 = vpop.f32.mrf.mxu0
        %v1169 = vadd.f32 0.0, %v1168
        %v1170 = vpop.f32.mrf.mxu0
        %v1171 = vadd.f32 0.0, %v1170
        %1172 = vmatmul.bf16.gmra.mxu0 %v838
        %v1173 = vpop.f32.mrf.mxu0
        %v1174 = vadd.f32 0.0, %v1173
        %v1175 = vpop.f32.mrf.mxu0
        %1176 = vdwg.mxu0
        %v1177 = vpack.c.bf16 %v901, %v899
        %v1178 = vpack.c.bf16 %v919, %v917
        %v1179 = vpack.c.bf16 %v937, %v935
        %v1180 = vpack.c.bf16 %v955, %v953
        %v1181 = vpack.c.bf16 %v973, %v971
        %v1182 = vpack.c.bf16 %v991, %v989
        %v1183 = vpack.c.bf16 %v1009, %v1007
        %v1184 = vpack.c.bf16 %v1027, %v1025
        %v1185 = vpack.c.bf16 %v1045, %v1043
        %v1186 = vpack.c.bf16 %v1063, %v1061
        %v1187 = vpack.c.bf16 %v1081, %v1079
        %v1188 = vpack.c.bf16 %v1099, %v1097
        %v1189 = vpack.c.bf16 %v1117, %v1115
        %v1190 = vpack.c.bf16 %v1135, %v1133
        %v1191 = vpack.c.bf16 %v1153, %v1151
        %v1192 = vpack.c.bf16 %v1171, %v1169
        %v1193 = vpack.c.bf16 %v904, %v901
        %v1194 = vpack.c.bf16 %v922, %v919
        %v1195 = vpack.c.bf16 %v940, %v937
        %v1196 = vpack.c.bf16 %v958, %v955
        %v1197 = vpack.c.bf16 %v976, %v973
        %v1198 = vpack.c.bf16 %v994, %v991
        %v1199 = vpack.c.bf16 %v1012, %v1009
        %v1200 = vpack.c.bf16 %v1030, %v1027
        %v1201 = vpack.c.bf16 %v1048, %v1045
        %v1202 = vpack.c.bf16 %v1066, %v1063
        %v1203 = vpack.c.bf16 %v1084, %v1081
        %v1204 = vpack.c.bf16 %v1102, %v1099
        %v1205 = vpack.c.bf16 %v1120, %v1117
        %v1206 = vpack.c.bf16 %v1138, %v1135
        %v1207 = vpack.c.bf16 %v1156, %v1153
        %v1208 = vpack.c.bf16 %v1174, %v1171
        %v1209 = vld [vmem:[%s3] sm:$0xf]
        %v1210 = vld [vmem:[%s3 + $0x4] sm:$0xf]
        %v1211 = vld [vmem:[%s3 + $0x8] sm:$0xf]
        %v1212 = vld [vmem:[%s3 + $0xc] sm:$0xf]
        %v1213 = vld [vmem:[%s3 + $0x10] sm:$0xf]
        %v1214 = vld [vmem:[%s3 + $0x14] sm:$0xf]
        %v1215 = vld [vmem:[%s3 + $0x18] sm:$0xf]
        %v1216 = vld [vmem:[%s3 + $0x1c] sm:$0xf]
        %v1217 = vld [vmem:[%s3 + $0x20] sm:$0xf]
        %v1218 = vld [vmem:[%s3 + $0x24] sm:$0xf]
        %v1219 = vld [vmem:[%s3 + $0x28] sm:$0xf]
        %v1220 = vld [vmem:[%s3 + $0x2c] sm:$0xf]
        %v1221 = vld [vmem:[%s3 + $0x30] sm:$0xf]
        %v1222 = vld [vmem:[%s3 + $0x34] sm:$0xf]
        %v1223 = vld [vmem:[%s3 + $0x38] sm:$0xf]
        %v1224 = vld [vmem:[%s3 + $0x3c] sm:$0xf]
        %v1225 = vld [vmem:[%s3 + $0x40] sm:$0xf]
        %v1226 = vld [vmem:[%s3 + $0x44] sm:$0xf]
        %v1227 = vld [vmem:[%s3 + $0x48] sm:$0xf]
        %v1228 = vld [vmem:[%s3 + $0x4c] sm:$0xf]
        %v1229 = vld [vmem:[%s3 + $0x50] sm:$0xf]
        %v1230 = vld [vmem:[%s3 + $0x54] sm:$0xf]
        %v1231 = vld [vmem:[%s3 + $0x58] sm:$0xf]
        %v1232 = vld [vmem:[%s3 + $0x5c] sm:$0xf]
        %v1233 = vld [vmem:[%s3 + $0x60] sm:$0xf]
        %v1234 = vld [vmem:[%s3 + $0x64] sm:$0xf]
        %v1235 = vld [vmem:[%s3 + $0x68] sm:$0xf]
        %v1236 = vld [vmem:[%s3 + $0x6c] sm:$0xf]
        %v1237 = vld [vmem:[%s3 + $0x70] sm:$0xf]
        %v1238 = vld [vmem:[%s3 + $0x74] sm:$0xf]
        %v1239 = vld [vmem:[%s3 + $0x78] sm:$0xf]
        %v1240 = vld [vmem:[%s3 + $0x7c] sm:$0xf]
        %v1273 = vunpack.c.l.b16 %v1209
        %v1274 = vunpack.c.l.b16 %v1210
        %v1275 = vunpack.c.l.b16 %v1211
        %v1276 = vunpack.c.l.b16 %v1212
        %v1277 = vunpack.c.l.b16 %v1213
        %v1278 = vunpack.c.l.b16 %v1214
        %v1279 = vunpack.c.l.b16 %v1215
        %v1280 = vunpack.c.l.b16 %v1216
        %v1281 = vunpack.c.l.b16 %v1217
        %v1282 = vunpack.c.l.b16 %v1218
        %v1283 = vunpack.c.l.b16 %v1219
        %v1284 = vunpack.c.l.b16 %v1220
        %v1285 = vunpack.c.l.b16 %v1221
        %v1286 = vunpack.c.l.b16 %v1222
        %v1287 = vunpack.c.l.b16 %v1223
        %v1288 = vunpack.c.l.b16 %v1224
        %v1289 = vunpack.c.l.b16 %v1225
        %v1290 = vunpack.c.l.b16 %v1226
        %v1291 = vunpack.c.l.b16 %v1227
        %v1292 = vunpack.c.l.b16 %v1228
        %v1293 = vunpack.c.l.b16 %v1229
        %v1294 = vunpack.c.l.b16 %v1230
        %v1295 = vunpack.c.l.b16 %v1231
        %v1296 = vunpack.c.l.b16 %v1232
        %v1297 = vunpack.c.l.b16 %v1233
        %v1298 = vunpack.c.l.b16 %v1234
        %v1299 = vunpack.c.l.b16 %v1235
        %v1300 = vunpack.c.l.b16 %v1236
        %v1301 = vunpack.c.l.b16 %v1237
        %v1302 = vunpack.c.l.b16 %v1238
        %v1303 = vunpack.c.l.b16 %v1239
        %v1304 = vunpack.c.l.b16 %v1240
        %v1305 = vpack.c.b16 %v1274, %v1273
        %v1306 = vpack.c.b16 %v1276, %v1275
        %v1307 = vpack.c.b16 %v1278, %v1277
        %v1308 = vpack.c.b16 %v1280, %v1279
        %v1309 = vpack.c.b16 %v1282, %v1281
        %v1310 = vpack.c.b16 %v1284, %v1283
        %v1311 = vpack.c.b16 %v1286, %v1285
        %v1312 = vpack.c.b16 %v1288, %v1287
        %v1313 = vpack.c.b16 %v1290, %v1289
        %v1314 = vpack.c.b16 %v1292, %v1291
        %v1315 = vpack.c.b16 %v1294, %v1293
        %v1316 = vpack.c.b16 %v1296, %v1295
        %v1317 = vpack.c.b16 %v1298, %v1297
        %v1318 = vpack.c.b16 %v1300, %v1299
        %v1319 = vpack.c.b16 %v1302, %v1301
        %v1320 = vpack.c.b16 %v1304, %v1303
        %vm1321 = vcmask 130048
        %v1323 = vsel %vm1321, %v1305, 0
        %v1326 = vsel %vm1321, %v1306, 0
        %v1329 = vsel %vm1321, %v1307, 0
        %v1332 = vsel %vm1321, %v1308, 0
        %v1335 = vsel %vm1321, %v1309, 0
        %v1338 = vsel %vm1321, %v1310, 0
        %v1341 = vsel %vm1321, %v1311, 0
        %v1344 = vsel %vm1321, %v1312, 0
        %v1347 = vsel %vm1321, %v1313, 0
        %v1350 = vsel %vm1321, %v1314, 0
        %v1353 = vsel %vm1321, %v1315, 0
        %v1356 = vsel %vm1321, %v1316, 0
        %v1359 = vsel %vm1321, %v1317, 0
        %v1362 = vsel %vm1321, %v1318, 0
        %v1365 = vsel %vm1321, %v1319, 0
        %v1368 = vsel %vm1321, %v1320, 0
        %1370 = vmatpush.bf16.msra.mxu0 0
        %1371 = vmatpush.bf16.msra.mxu0 0
        %1372 = vmatpush.bf16.msra.mxu0 0
        %1373 = vmatpush.bf16.msra.mxu0 0
        %1374 = vmatpush.bf16.msra.mxu0 0
        %1375 = vmatpush.bf16.msra.mxu0 0
        %1376 = vmatpush.bf16.msra.mxu0 0
        %1377 = vmatpush.bf16.msra.mxu0 %v1177
        %1378 = vmatmul.bf16.gmra.mxu0 %v1323
        %v1379 = vpop.f32.mrf.mxu0
        %v1380 = vadd.f32 0.0, %v1379
        %v1381 = vpop.f32.mrf.mxu0
        %v1382 = vadd.f32 0.0, %v1381
        %1383 = vmatmul.bf16.gmra.mxu0 %v1326
        %v1384 = vpop.f32.mrf.mxu0
        %v1385 = vadd.f32 0.0, %v1384
        %v1386 = vpop.f32.mrf.mxu0
        %v1387 = vadd.f32 0.0, %v1386
        %1388 = vmatmul.bf16.gmra.mxu0 %v1329
        %v1389 = vpop.f32.mrf.mxu0
        %v1390 = vadd.f32 0.0, %v1389
        %v1391 = vpop.f32.mrf.mxu0
        %v1392 = vadd.f32 0.0, %v1391
        %1393 = vmatmul.bf16.gmra.mxu0 %v1332
        %v1394 = vpop.f32.mrf.mxu0
        %v1395 = vadd.f32 0.0, %v1394
        %v1396 = vpop.f32.mrf.mxu0
        %v1397 = vadd.f32 0.0, %v1396
        %1398 = vmatmul.bf16.gmra.mxu0 %v1335
        %v1399 = vpop.f32.mrf.mxu0
        %v1400 = vadd.f32 0.0, %v1399
        %v1401 = vpop.f32.mrf.mxu0
        %v1402 = vadd.f32 0.0, %v1401
        %1403 = vmatmul.bf16.gmra.mxu0 %v1338
        %v1404 = vpop.f32.mrf.mxu0
        %v1405 = vadd.f32 0.0, %v1404
        %v1406 = vpop.f32.mrf.mxu0
        %v1407 = vadd.f32 0.0, %v1406
        %1408 = vmatmul.bf16.gmra.mxu0 %v1341
        %v1409 = vpop.f32.mrf.mxu0
        %v1410 = vadd.f32 0.0, %v1409
        %v1411 = vpop.f32.mrf.mxu0
        %v1412 = vadd.f32 0.0, %v1411
        %1413 = vmatmul.bf16.gmra.mxu0 %v1344
        %v1414 = vpop.f32.mrf.mxu0
        %v1415 = vadd.f32 0.0, %v1414
        %v1416 = vpop.f32.mrf.mxu0
        %v1417 = vadd.f32 0.0, %v1416
        %1418 = vmatmul.bf16.gmra.mxu0 %v1347
        %v1419 = vpop.f32.mrf.mxu0
        %v1420 = vadd.f32 0.0, %v1419
        %v1421 = vpop.f32.mrf.mxu0
        %v1422 = vadd.f32 0.0, %v1421
        %1423 = vmatmul.bf16.gmra.mxu0 %v1350
        %v1424 = vpop.f32.mrf.mxu0
        %v1425 = vadd.f32 0.0, %v1424
        %v1426 = vpop.f32.mrf.mxu0
        %v1427 = vadd.f32 0.0, %v1426
        %1428 = vmatmul.bf16.gmra.mxu0 %v1353
        %v1429 = vpop.f32.mrf.mxu0
        %v1430 = vadd.f32 0.0, %v1429
        %v1431 = vpop.f32.mrf.mxu0
        %v1432 = vadd.f32 0.0, %v1431
        %1433 = vmatmul.bf16.gmra.mxu0 %v1356
        %v1434 = vpop.f32.mrf.mxu0
        %v1435 = vadd.f32 0.0, %v1434
        %v1436 = vpop.f32.mrf.mxu0
        %v1437 = vadd.f32 0.0, %v1436
        %1438 = vmatmul.bf16.gmra.mxu0 %v1359
        %v1439 = vpop.f32.mrf.mxu0
        %v1440 = vadd.f32 0.0, %v1439
        %v1441 = vpop.f32.mrf.mxu0
        %v1442 = vadd.f32 0.0, %v1441
        %1443 = vmatmul.bf16.gmra.mxu0 %v1362
        %v1444 = vpop.f32.mrf.mxu0
        %v1445 = vadd.f32 0.0, %v1444
        %v1446 = vpop.f32.mrf.mxu0
        %v1447 = vadd.f32 0.0, %v1446
        %1448 = vmatmul.bf16.gmra.mxu0 %v1365
        %v1449 = vpop.f32.mrf.mxu0
        %v1450 = vadd.f32 0.0, %v1449
        %v1451 = vpop.f32.mrf.mxu0
        %v1452 = vadd.f32 0.0, %v1451
        %1453 = vmatmul.bf16.gmra.mxu0 %v1368
        %v1454 = vpop.f32.mrf.mxu0
        %v1455 = vadd.f32 0.0, %v1454
        %v1456 = vpop.f32.mrf.mxu0
        %v1457 = vadd.f32 0.0, %v1456
        %1458 = vdwg.mxu0
        %1459 = vmatpush.bf16.msra.mxu0 0
        %1460 = vmatpush.bf16.msra.mxu0 0
        %1461 = vmatpush.bf16.msra.mxu0 0
        %1462 = vmatpush.bf16.msra.mxu0 0
        %1463 = vmatpush.bf16.msra.mxu0 0
        %1464 = vmatpush.bf16.msra.mxu0 0
        %1465 = vmatpush.bf16.msra.mxu0 0
        %1466 = vmatpush.bf16.msra.mxu0 %v1178
        %1467 = vmatmul.bf16.gmra.mxu0 %v1323
        %v1468 = vpop.f32.mrf.mxu0
        %v1469 = vadd.f32 0.0, %v1468
        %v1470 = vpop.f32.mrf.mxu0
        %v1471 = vadd.f32 0.0, %v1470
        %1472 = vmatmul.bf16.gmra.mxu0 %v1326
        %v1473 = vpop.f32.mrf.mxu0
        %v1474 = vadd.f32 0.0, %v1473
        %v1475 = vpop.f32.mrf.mxu0
        %v1476 = vadd.f32 0.0, %v1475
        %1477 = vmatmul.bf16.gmra.mxu0 %v1329
        %v1478 = vpop.f32.mrf.mxu0
        %v1479 = vadd.f32 0.0, %v1478
        %v1480 = vpop.f32.mrf.mxu0
        %v1481 = vadd.f32 0.0, %v1480
        %1482 = vmatmul.bf16.gmra.mxu0 %v1332
        %v1483 = vpop.f32.mrf.mxu0
        %v1484 = vadd.f32 0.0, %v1483
        %v1485 = vpop.f32.mrf.mxu0
        %v1486 = vadd.f32 0.0, %v1485
        %1487 = vmatmul.bf16.gmra.mxu0 %v1335
        %v1488 = vpop.f32.mrf.mxu0
        %v1489 = vadd.f32 0.0, %v1488
        %v1490 = vpop.f32.mrf.mxu0
        %v1491 = vadd.f32 0.0, %v1490
        %1492 = vmatmul.bf16.gmra.mxu0 %v1338
        %v1493 = vpop.f32.mrf.mxu0
        %v1494 = vadd.f32 0.0, %v1493
        %v1495 = vpop.f32.mrf.mxu0
        %v1496 = vadd.f32 0.0, %v1495
        %1497 = vmatmul.bf16.gmra.mxu0 %v1341
        %v1498 = vpop.f32.mrf.mxu0
        %v1499 = vadd.f32 0.0, %v1498
        %v1500 = vpop.f32.mrf.mxu0
        %v1501 = vadd.f32 0.0, %v1500
        %1502 = vmatmul.bf16.gmra.mxu0 %v1344
        %v1503 = vpop.f32.mrf.mxu0
        %v1504 = vadd.f32 0.0, %v1503
        %v1505 = vpop.f32.mrf.mxu0
        %v1506 = vadd.f32 0.0, %v1505
        %1507 = vmatmul.bf16.gmra.mxu0 %v1347
        %v1508 = vpop.f32.mrf.mxu0
        %v1509 = vadd.f32 0.0, %v1508
        %v1510 = vpop.f32.mrf.mxu0
        %v1511 = vadd.f32 0.0, %v1510
        %1512 = vmatmul.bf16.gmra.mxu0 %v1350
        %v1513 = vpop.f32.mrf.mxu0
        %v1514 = vadd.f32 0.0, %v1513
        %v1515 = vpop.f32.mrf.mxu0
        %v1516 = vadd.f32 0.0, %v1515
        %1517 = vmatmul.bf16.gmra.mxu0 %v1353
        %v1518 = vpop.f32.mrf.mxu0
        %v1519 = vadd.f32 0.0, %v1518
        %v1520 = vpop.f32.mrf.mxu0
        %v1521 = vadd.f32 0.0, %v1520
        %1522 = vmatmul.bf16.gmra.mxu0 %v1356
        %v1523 = vpop.f32.mrf.mxu0
        %v1524 = vadd.f32 0.0, %v1523
        %v1525 = vpop.f32.mrf.mxu0
        %v1526 = vadd.f32 0.0, %v1525
        %1527 = vmatmul.bf16.gmra.mxu0 %v1359
        %v1528 = vpop.f32.mrf.mxu0
        %v1529 = vadd.f32 0.0, %v1528
        %v1530 = vpop.f32.mrf.mxu0
        %v1531 = vadd.f32 0.0, %v1530
        %1532 = vmatmul.bf16.gmra.mxu0 %v1362
        %v1533 = vpop.f32.mrf.mxu0
        %v1534 = vadd.f32 0.0, %v1533
        %v1535 = vpop.f32.mrf.mxu0
        %v1536 = vadd.f32 0.0, %v1535
        %1537 = vmatmul.bf16.gmra.mxu0 %v1365
        %v1538 = vpop.f32.mrf.mxu0
        %v1539 = vadd.f32 0.0, %v1538
        %v1540 = vpop.f32.mrf.mxu0
        %v1541 = vadd.f32 0.0, %v1540
        %1542 = vmatmul.bf16.gmra.mxu0 %v1368
        %v1543 = vpop.f32.mrf.mxu0
        %v1544 = vadd.f32 0.0, %v1543
        %v1545 = vpop.f32.mrf.mxu0
        %v1546 = vadd.f32 0.0, %v1545
        %1547 = vdwg.mxu0
        %1548 = vmatpush.bf16.msra.mxu0 0
        %1549 = vmatpush.bf16.msra.mxu0 0
        %1550 = vmatpush.bf16.msra.mxu0 0
        %1551 = vmatpush.bf16.msra.mxu0 0
        %1552 = vmatpush.bf16.msra.mxu0 0
        %1553 = vmatpush.bf16.msra.mxu0 0
        %1554 = vmatpush.bf16.msra.mxu0 0
        %1555 = vmatpush.bf16.msra.mxu0 %v1179
        %1556 = vmatmul.bf16.gmra.mxu0 %v1323
        %v1557 = vpop.f32.mrf.mxu0
        %v1558 = vadd.f32 0.0, %v1557
        %v1559 = vpop.f32.mrf.mxu0
        %v1560 = vadd.f32 0.0, %v1559
        %1561 = vmatmul.bf16.gmra.mxu0 %v1326
        %v1562 = vpop.f32.mrf.mxu0
        %v1563 = vadd.f32 0.0, %v1562
        %v1564 = vpop.f32.mrf.mxu0
        %v1565 = vadd.f32 0.0, %v1564
        %1566 = vmatmul.bf16.gmra.mxu0 %v1329
        %v1567 = vpop.f32.mrf.mxu0
        %v1568 = vadd.f32 0.0, %v1567
        %v1569 = vpop.f32.mrf.mxu0
        %v1570 = vadd.f32 0.0, %v1569
        %1571 = vmatmul.bf16.gmra.mxu0 %v1332
        %v1572 = vpop.f32.mrf.mxu0
        %v1573 = vadd.f32 0.0, %v1572
        %v1574 = vpop.f32.mrf.mxu0
        %v1575 = vadd.f32 0.0, %v1574
        %1576 = vmatmul.bf16.gmra.mxu0 %v1335
        %v1577 = vpop.f32.mrf.mxu0
        %v1578 = vadd.f32 0.0, %v1577
        %v1579 = vpop.f32.mrf.mxu0
        %v1580 = vadd.f32 0.0, %v1579
        %1581 = vmatmul.bf16.gmra.mxu0 %v1338
        %v1582 = vpop.f32.mrf.mxu0
        %v1583 = vadd.f32 0.0, %v1582
        %v1584 = vpop.f32.mrf.mxu0
        %v1585 = vadd.f32 0.0, %v1584
        %1586 = vmatmul.bf16.gmra.mxu0 %v1341
        %v1587 = vpop.f32.mrf.mxu0
        %v1588 = vadd.f32 0.0, %v1587
        %v1589 = vpop.f32.mrf.mxu0
        %v1590 = vadd.f32 0.0, %v1589
        %1591 = vmatmul.bf16.gmra.mxu0 %v1344
        %v1592 = vpop.f32.mrf.mxu0
        %v1593 = vadd.f32 0.0, %v1592
        %v1594 = vpop.f32.mrf.mxu0
        %v1595 = vadd.f32 0.0, %v1594
        %1596 = vmatmul.bf16.gmra.mxu0 %v1347
        %v1597 = vpop.f32.mrf.mxu0
        %v1598 = vadd.f32 0.0, %v1597
        %v1599 = vpop.f32.mrf.mxu0
        %v1600 = vadd.f32 0.0, %v1599
        %1601 = vmatmul.bf16.gmra.mxu0 %v1350
        %v1602 = vpop.f32.mrf.mxu0
        %v1603 = vadd.f32 0.0, %v1602
        %v1604 = vpop.f32.mrf.mxu0
        %v1605 = vadd.f32 0.0, %v1604
        %1606 = vmatmul.bf16.gmra.mxu0 %v1353
        %v1607 = vpop.f32.mrf.mxu0
        %v1608 = vadd.f32 0.0, %v1607
        %v1609 = vpop.f32.mrf.mxu0
        %v1610 = vadd.f32 0.0, %v1609
        %1611 = vmatmul.bf16.gmra.mxu0 %v1356
        %v1612 = vpop.f32.mrf.mxu0
        %v1613 = vadd.f32 0.0, %v1612
        %v1614 = vpop.f32.mrf.mxu0
        %v1615 = vadd.f32 0.0, %v1614
        %1616 = vmatmul.bf16.gmra.mxu0 %v1359
        %v1617 = vpop.f32.mrf.mxu0
        %v1618 = vadd.f32 0.0, %v1617
        %v1619 = vpop.f32.mrf.mxu0
        %v1620 = vadd.f32 0.0, %v1619
        %1621 = vmatmul.bf16.gmra.mxu0 %v1362
        %v1622 = vpop.f32.mrf.mxu0
        %v1623 = vadd.f32 0.0, %v1622
        %v1624 = vpop.f32.mrf.mxu0
        %v1625 = vadd.f32 0.0, %v1624
        %1626 = vmatmul.bf16.gmra.mxu0 %v1365
        %v1627 = vpop.f32.mrf.mxu0
        %v1628 = vadd.f32 0.0, %v1627
        %v1629 = vpop.f32.mrf.mxu0
        %v1630 = vadd.f32 0.0, %v1629
        %1631 = vmatmul.bf16.gmra.mxu0 %v1368
        %v1632 = vpop.f32.mrf.mxu0
        %v1633 = vadd.f32 0.0, %v1632
        %v1634 = vpop.f32.mrf.mxu0
        %v1635 = vadd.f32 0.0, %v1634
        %1636 = vdwg.mxu0
        %1637 = vmatpush.bf16.msra.mxu0 0
        %1638 = vmatpush.bf16.msra.mxu0 0
        %1639 = vmatpush.bf16.msra.mxu0 0
        %1640 = vmatpush.bf16.msra.mxu0 0
        %1641 = vmatpush.bf16.msra.mxu0 0
        %1642 = vmatpush.bf16.msra.mxu0 0
        %1643 = vmatpush.bf16.msra.mxu0 0
        %1644 = vmatpush.bf16.msra.mxu0 %v1180
        %1645 = vmatmul.bf16.gmra.mxu0 %v1323
        %v1646 = vpop.f32.mrf.mxu0
        %v1647 = vadd.f32 0.0, %v1646
        %v1648 = vpop.f32.mrf.mxu0
        %v1649 = vadd.f32 0.0, %v1648
        %1650 = vmatmul.bf16.gmra.mxu0 %v1326
        %v1651 = vpop.f32.mrf.mxu0
        %v1652 = vadd.f32 0.0, %v1651
        %v1653 = vpop.f32.mrf.mxu0
        %v1654 = vadd.f32 0.0, %v1653
        %1655 = vmatmul.bf16.gmra.mxu0 %v1329
        %v1656 = vpop.f32.mrf.mxu0
        %v1657 = vadd.f32 0.0, %v1656
        %v1658 = vpop.f32.mrf.mxu0
        %v1659 = vadd.f32 0.0, %v1658
        %1660 = vmatmul.bf16.gmra.mxu0 %v1332
        %v1661 = vpop.f32.mrf.mxu0
        %v1662 = vadd.f32 0.0, %v1661
        %v1663 = vpop.f32.mrf.mxu0
        %v1664 = vadd.f32 0.0, %v1663
        %1665 = vmatmul.bf16.gmra.mxu0 %v1335
        %v1666 = vpop.f32.mrf.mxu0
        %v1667 = vadd.f32 0.0, %v1666
        %v1668 = vpop.f32.mrf.mxu0
        %v1669 = vadd.f32 0.0, %v1668
        %1670 = vmatmul.bf16.gmra.mxu0 %v1338
        %v1671 = vpop.f32.mrf.mxu0
        %v1672 = vadd.f32 0.0, %v1671
        %v1673 = vpop.f32.mrf.mxu0
        %v1674 = vadd.f32 0.0, %v1673
        %1675 = vmatmul.bf16.gmra.mxu0 %v1341
        %v1676 = vpop.f32.mrf.mxu0
        %v1677 = vadd.f32 0.0, %v1676
        %v1678 = vpop.f32.mrf.mxu0
        %v1679 = vadd.f32 0.0, %v1678
        %1680 = vmatmul.bf16.gmra.mxu0 %v1344
        %v1681 = vpop.f32.mrf.mxu0
        %v1682 = vadd.f32 0.0, %v1681
        %v1683 = vpop.f32.mrf.mxu0
        %v1684 = vadd.f32 0.0, %v1683
        %1685 = vmatmul.bf16.gmra.mxu0 %v1347
        %v1686 = vpop.f32.mrf.mxu0
        %v1687 = vadd.f32 0.0, %v1686
        %v1688 = vpop.f32.mrf.mxu0
        %v1689 = vadd.f32 0.0, %v1688
        %1690 = vmatmul.bf16.gmra.mxu0 %v1350
        %v1691 = vpop.f32.mrf.mxu0
        %v1692 = vadd.f32 0.0, %v1691
        %v1693 = vpop.f32.mrf.mxu0
        %v1694 = vadd.f32 0.0, %v1693
        %1695 = vmatmul.bf16.gmra.mxu0 %v1353
        %v1696 = vpop.f32.mrf.mxu0
        %v1697 = vadd.f32 0.0, %v1696
        %v1698 = vpop.f32.mrf.mxu0
        %v1699 = vadd.f32 0.0, %v1698
        %1700 = vmatmul.bf16.gmra.mxu0 %v1356
        %v1701 = vpop.f32.mrf.mxu0
        %v1702 = vadd.f32 0.0, %v1701
        %v1703 = vpop.f32.mrf.mxu0
        %v1704 = vadd.f32 0.0, %v1703
        %1705 = vmatmul.bf16.gmra.mxu0 %v1359
        %v1706 = vpop.f32.mrf.mxu0
        %v1707 = vadd.f32 0.0, %v1706
        %v1708 = vpop.f32.mrf.mxu0
        %v1709 = vadd.f32 0.0, %v1708
        %1710 = vmatmul.bf16.gmra.mxu0 %v1362
        %v1711 = vpop.f32.mrf.mxu0
        %v1712 = vadd.f32 0.0, %v1711
        %v1713 = vpop.f32.mrf.mxu0
        %v1714 = vadd.f32 0.0, %v1713
        %1715 = vmatmul.bf16.gmra.mxu0 %v1365
        %v1716 = vpop.f32.mrf.mxu0
        %v1717 = vadd.f32 0.0, %v1716
        %v1718 = vpop.f32.mrf.mxu0
        %v1719 = vadd.f32 0.0, %v1718
        %1720 = vmatmul.bf16.gmra.mxu0 %v1368
        %v1721 = vpop.f32.mrf.mxu0
        %v1722 = vadd.f32 0.0, %v1721
        %v1723 = vpop.f32.mrf.mxu0
        %v1724 = vadd.f32 0.0, %v1723
        %1725 = vdwg.mxu0
        %1726 = vmatpush.bf16.msra.mxu0 0
        %1727 = vmatpush.bf16.msra.mxu0 0
        %1728 = vmatpush.bf16.msra.mxu0 0
        %1729 = vmatpush.bf16.msra.mxu0 0
        %1730 = vmatpush.bf16.msra.mxu0 0
        %1731 = vmatpush.bf16.msra.mxu0 0
        %1732 = vmatpush.bf16.msra.mxu0 0
        %1733 = vmatpush.bf16.msra.mxu0 %v1181
        %1734 = vmatmul.bf16.gmra.mxu0 %v1323
        %v1735 = vpop.f32.mrf.mxu0
        %v1736 = vadd.f32 0.0, %v1735
        %v1737 = vpop.f32.mrf.mxu0
        %v1738 = vadd.f32 0.0, %v1737
        %1739 = vmatmul.bf16.gmra.mxu0 %v1326
        %v1740 = vpop.f32.mrf.mxu0
        %v1741 = vadd.f32 0.0, %v1740
        %v1742 = vpop.f32.mrf.mxu0
        %v1743 = vadd.f32 0.0, %v1742
        %1744 = vmatmul.bf16.gmra.mxu0 %v1329
        %v1745 = vpop.f32.mrf.mxu0
        %v1746 = vadd.f32 0.0, %v1745
        %v1747 = vpop.f32.mrf.mxu0
        %v1748 = vadd.f32 0.0, %v1747
        %1749 = vmatmul.bf16.gmra.mxu0 %v1332
        %v1750 = vpop.f32.mrf.mxu0
        %v1751 = vadd.f32 0.0, %v1750
        %v1752 = vpop.f32.mrf.mxu0
        %v1753 = vadd.f32 0.0, %v1752
        %1754 = vmatmul.bf16.gmra.mxu0 %v1335
        %v1755 = vpop.f32.mrf.mxu0
        %v1756 = vadd.f32 0.0, %v1755
        %v1757 = vpop.f32.mrf.mxu0
        %v1758 = vadd.f32 0.0, %v1757
        %1759 = vmatmul.bf16.gmra.mxu0 %v1338
        %v1760 = vpop.f32.mrf.mxu0
        %v1761 = vadd.f32 0.0, %v1760
        %v1762 = vpop.f32.mrf.mxu0
        %v1763 = vadd.f32 0.0, %v1762
        %1764 = vmatmul.bf16.gmra.mxu0 %v1341
        %v1765 = vpop.f32.mrf.mxu0
        %v1766 = vadd.f32 0.0, %v1765
        %v1767 = vpop.f32.mrf.mxu0
        %v1768 = vadd.f32 0.0, %v1767
        %1769 = vmatmul.bf16.gmra.mxu0 %v1344
        %v1770 = vpop.f32.mrf.mxu0
        %v1771 = vadd.f32 0.0, %v1770
        %v1772 = vpop.f32.mrf.mxu0
        %v1773 = vadd.f32 0.0, %v1772
        %1774 = vmatmul.bf16.gmra.mxu0 %v1347
        %v1775 = vpop.f32.mrf.mxu0
        %v1776 = vadd.f32 0.0, %v1775
        %v1777 = vpop.f32.mrf.mxu0
        %v1778 = vadd.f32 0.0, %v1777
        %1779 = vmatmul.bf16.gmra.mxu0 %v1350
        %v1780 = vpop.f32.mrf.mxu0
        %v1781 = vadd.f32 0.0, %v1780
        %v1782 = vpop.f32.mrf.mxu0
        %v1783 = vadd.f32 0.0, %v1782
        %1784 = vmatmul.bf16.gmra.mxu0 %v1353
        %v1785 = vpop.f32.mrf.mxu0
        %v1786 = vadd.f32 0.0, %v1785
        %v1787 = vpop.f32.mrf.mxu0
        %v1788 = vadd.f32 0.0, %v1787
        %1789 = vmatmul.bf16.gmra.mxu0 %v1356
        %v1790 = vpop.f32.mrf.mxu0
        %v1791 = vadd.f32 0.0, %v1790
        %v1792 = vpop.f32.mrf.mxu0
        %v1793 = vadd.f32 0.0, %v1792
        %1794 = vmatmul.bf16.gmra.mxu0 %v1359
        %v1795 = vpop.f32.mrf.mxu0
        %v1796 = vadd.f32 0.0, %v1795
        %v1797 = vpop.f32.mrf.mxu0
        %v1798 = vadd.f32 0.0, %v1797
        %1799 = vmatmul.bf16.gmra.mxu0 %v1362
        %v1800 = vpop.f32.mrf.mxu0
        %v1801 = vadd.f32 0.0, %v1800
        %v1802 = vpop.f32.mrf.mxu0
        %v1803 = vadd.f32 0.0, %v1802
        %1804 = vmatmul.bf16.gmra.mxu0 %v1365
        %v1805 = vpop.f32.mrf.mxu0
        %v1806 = vadd.f32 0.0, %v1805
        %v1807 = vpop.f32.mrf.mxu0
        %v1808 = vadd.f32 0.0, %v1807
        %1809 = vmatmul.bf16.gmra.mxu0 %v1368
        %v1810 = vpop.f32.mrf.mxu0
        %v1811 = vadd.f32 0.0, %v1810
        %v1812 = vpop.f32.mrf.mxu0
        %v1813 = vadd.f32 0.0, %v1812
        %1814 = vdwg.mxu0
        %1815 = vmatpush.bf16.msra.mxu0 0
        %1816 = vmatpush.bf16.msra.mxu0 0
        %1817 = vmatpush.bf16.msra.mxu0 0
        %1818 = vmatpush.bf16.msra.mxu0 0
        %1819 = vmatpush.bf16.msra.mxu0 0
        %1820 = vmatpush.bf16.msra.mxu0 0
        %1821 = vmatpush.bf16.msra.mxu0 0
        %1822 = vmatpush.bf16.msra.mxu0 %v1182
        %1823 = vmatmul.bf16.gmra.mxu0 %v1323
        %v1824 = vpop.f32.mrf.mxu0
        %v1825 = vadd.f32 0.0, %v1824
        %v1826 = vpop.f32.mrf.mxu0
        %v1827 = vadd.f32 0.0, %v1826
        %1828 = vmatmul.bf16.gmra.mxu0 %v1326
        %v1829 = vpop.f32.mrf.mxu0
        %v1830 = vadd.f32 0.0, %v1829
        %v1831 = vpop.f32.mrf.mxu0
        %v1832 = vadd.f32 0.0, %v1831
        %1833 = vmatmul.bf16.gmra.mxu0 %v1329
        %v1834 = vpop.f32.mrf.mxu0
        %v1835 = vadd.f32 0.0, %v1834
        %v1836 = vpop.f32.mrf.mxu0
        %v1837 = vadd.f32 0.0, %v1836
        %1838 = vmatmul.bf16.gmra.mxu0 %v1332
        %v1839 = vpop.f32.mrf.mxu0
        %v1840 = vadd.f32 0.0, %v1839
        %v1841 = vpop.f32.mrf.mxu0
        %v1842 = vadd.f32 0.0, %v1841
        %1843 = vmatmul.bf16.gmra.mxu0 %v1335
        %v1844 = vpop.f32.mrf.mxu0
        %v1845 = vadd.f32 0.0, %v1844
        %v1846 = vpop.f32.mrf.mxu0
        %v1847 = vadd.f32 0.0, %v1846
        %1848 = vmatmul.bf16.gmra.mxu0 %v1338
        %v1849 = vpop.f32.mrf.mxu0
        %v1850 = vadd.f32 0.0, %v1849
        %v1851 = vpop.f32.mrf.mxu0
        %v1852 = vadd.f32 0.0, %v1851
        %1853 = vmatmul.bf16.gmra.mxu0 %v1341
        %v1854 = vpop.f32.mrf.mxu0
        %v1855 = vadd.f32 0.0, %v1854
        %v1856 = vpop.f32.mrf.mxu0
        %v1857 = vadd.f32 0.0, %v1856
        %1858 = vmatmul.bf16.gmra.mxu0 %v1344
        %v1859 = vpop.f32.mrf.mxu0
        %v1860 = vadd.f32 0.0, %v1859
        %v1861 = vpop.f32.mrf.mxu0
        %v1862 = vadd.f32 0.0, %v1861
        %1863 = vmatmul.bf16.gmra.mxu0 %v1347
        %v1864 = vpop.f32.mrf.mxu0
        %v1865 = vadd.f32 0.0, %v1864
        %v1866 = vpop.f32.mrf.mxu0
        %v1867 = vadd.f32 0.0, %v1866
        %1868 = vmatmul.bf16.gmra.mxu0 %v1350
        %v1869 = vpop.f32.mrf.mxu0
        %v1870 = vadd.f32 0.0, %v1869
        %v1871 = vpop.f32.mrf.mxu0
        %v1872 = vadd.f32 0.0, %v1871
        %1873 = vmatmul.bf16.gmra.mxu0 %v1353
        %v1874 = vpop.f32.mrf.mxu0
        %v1875 = vadd.f32 0.0, %v1874
        %v1876 = vpop.f32.mrf.mxu0
        %v1877 = vadd.f32 0.0, %v1876
        %1878 = vmatmul.bf16.gmra.mxu0 %v1356
        %v1879 = vpop.f32.mrf.mxu0
        %v1880 = vadd.f32 0.0, %v1879
        %v1881 = vpop.f32.mrf.mxu0
        %v1882 = vadd.f32 0.0, %v1881
        %1883 = vmatmul.bf16.gmra.mxu0 %v1359
        %v1884 = vpop.f32.mrf.mxu0
        %v1885 = vadd.f32 0.0, %v1884
        %v1886 = vpop.f32.mrf.mxu0
        %v1887 = vadd.f32 0.0, %v1886
        %1888 = vmatmul.bf16.gmra.mxu0 %v1362
        %v1889 = vpop.f32.mrf.mxu0
        %v1890 = vadd.f32 0.0, %v1889
        %v1891 = vpop.f32.mrf.mxu0
        %v1892 = vadd.f32 0.0, %v1891
        %1893 = vmatmul.bf16.gmra.mxu0 %v1365
        %v1894 = vpop.f32.mrf.mxu0
        %v1895 = vadd.f32 0.0, %v1894
        %v1896 = vpop.f32.mrf.mxu0
        %v1897 = vadd.f32 0.0, %v1896
        %1898 = vmatmul.bf16.gmra.mxu0 %v1368
        %v1899 = vpop.f32.mrf.mxu0
        %v1900 = vadd.f32 0.0, %v1899
        %v1901 = vpop.f32.mrf.mxu0
        %v1902 = vadd.f32 0.0, %v1901
        %1903 = vdwg.mxu0
        %1904 = vmatpush.bf16.msra.mxu0 0
        %1905 = vmatpush.bf16.msra.mxu0 0
        %1906 = vmatpush.bf16.msra.mxu0 0
        %1907 = vmatpush.bf16.msra.mxu0 0
        %1908 = vmatpush.bf16.msra.mxu0 0
        %1909 = vmatpush.bf16.msra.mxu0 0
        %1910 = vmatpush.bf16.msra.mxu0 0
        %1911 = vmatpush.bf16.msra.mxu0 %v1183
        %1912 = vmatmul.bf16.gmra.mxu0 %v1323
        %v1913 = vpop.f32.mrf.mxu0
        %v1914 = vadd.f32 0.0, %v1913
        %v1915 = vpop.f32.mrf.mxu0
        %v1916 = vadd.f32 0.0, %v1915
        %1917 = vmatmul.bf16.gmra.mxu0 %v1326
        %v1918 = vpop.f32.mrf.mxu0
        %v1919 = vadd.f32 0.0, %v1918
        %v1920 = vpop.f32.mrf.mxu0
        %v1921 = vadd.f32 0.0, %v1920
        %1922 = vmatmul.bf16.gmra.mxu0 %v1329
        %v1923 = vpop.f32.mrf.mxu0
        %v1924 = vadd.f32 0.0, %v1923
        %v1925 = vpop.f32.mrf.mxu0
        %v1926 = vadd.f32 0.0, %v1925
        %1927 = vmatmul.bf16.gmra.mxu0 %v1332
        %v1928 = vpop.f32.mrf.mxu0
        %v1929 = vadd.f32 0.0, %v1928
        %v1930 = vpop.f32.mrf.mxu0
        %v1931 = vadd.f32 0.0, %v1930
        %1932 = vmatmul.bf16.gmra.mxu0 %v1335
        %v1933 = vpop.f32.mrf.mxu0
        %v1934 = vadd.f32 0.0, %v1933
        %v1935 = vpop.f32.mrf.mxu0
        %v1936 = vadd.f32 0.0, %v1935
        %1937 = vmatmul.bf16.gmra.mxu0 %v1338
        %v1938 = vpop.f32.mrf.mxu0
        %v1939 = vadd.f32 0.0, %v1938
        %v1940 = vpop.f32.mrf.mxu0
        %v1941 = vadd.f32 0.0, %v1940
        %1942 = vmatmul.bf16.gmra.mxu0 %v1341
        %v1943 = vpop.f32.mrf.mxu0
        %v1944 = vadd.f32 0.0, %v1943
        %v1945 = vpop.f32.mrf.mxu0
        %v1946 = vadd.f32 0.0, %v1945
        %1947 = vmatmul.bf16.gmra.mxu0 %v1344
        %v1948 = vpop.f32.mrf.mxu0
        %v1949 = vadd.f32 0.0, %v1948
        %v1950 = vpop.f32.mrf.mxu0
        %v1951 = vadd.f32 0.0, %v1950
        %1952 = vmatmul.bf16.gmra.mxu0 %v1347
        %v1953 = vpop.f32.mrf.mxu0
        %v1954 = vadd.f32 0.0, %v1953
        %v1955 = vpop.f32.mrf.mxu0
        %v1956 = vadd.f32 0.0, %v1955
        %1957 = vmatmul.bf16.gmra.mxu0 %v1350
        %v1958 = vpop.f32.mrf.mxu0
        %v1959 = vadd.f32 0.0, %v1958
        %v1960 = vpop.f32.mrf.mxu0
        %v1961 = vadd.f32 0.0, %v1960
        %1962 = vmatmul.bf16.gmra.mxu0 %v1353
        %v1963 = vpop.f32.mrf.mxu0
        %v1964 = vadd.f32 0.0, %v1963
        %v1965 = vpop.f32.mrf.mxu0
        %v1966 = vadd.f32 0.0, %v1965
        %1967 = vmatmul.bf16.gmra.mxu0 %v1356
        %v1968 = vpop.f32.mrf.mxu0
        %v1969 = vadd.f32 0.0, %v1968
        %v1970 = vpop.f32.mrf.mxu0
        %v1971 = vadd.f32 0.0, %v1970
        %1972 = vmatmul.bf16.gmra.mxu0 %v1359
        %v1973 = vpop.f32.mrf.mxu0
        %v1974 = vadd.f32 0.0, %v1973
        %v1975 = vpop.f32.mrf.mxu0
        %v1976 = vadd.f32 0.0, %v1975
        %1977 = vmatmul.bf16.gmra.mxu0 %v1362
        %v1978 = vpop.f32.mrf.mxu0
        %v1979 = vadd.f32 0.0, %v1978
        %v1980 = vpop.f32.mrf.mxu0
        %v1981 = vadd.f32 0.0, %v1980
        %1982 = vmatmul.bf16.gmra.mxu0 %v1365
        %v1983 = vpop.f32.mrf.mxu0
        %v1984 = vadd.f32 0.0, %v1983
        %v1985 = vpop.f32.mrf.mxu0
        %v1986 = vadd.f32 0.0, %v1985
        %1987 = vmatmul.bf16.gmra.mxu0 %v1368
        %v1988 = vpop.f32.mrf.mxu0
        %v1989 = vadd.f32 0.0, %v1988
        %v1990 = vpop.f32.mrf.mxu0
        %v1991 = vadd.f32 0.0, %v1990
        %1992 = vdwg.mxu0
        %1993 = vmatpush.bf16.msra.mxu0 0
        %1994 = vmatpush.bf16.msra.mxu0 0
        %1995 = vmatpush.bf16.msra.mxu0 0
        %1996 = vmatpush.bf16.msra.mxu0 0
        %1997 = vmatpush.bf16.msra.mxu0 0
        %1998 = vmatpush.bf16.msra.mxu0 0
        %1999 = vmatpush.bf16.msra.mxu0 0
        %2000 = vmatpush.bf16.msra.mxu0 %v1184
        %2001 = vmatmul.bf16.gmra.mxu0 %v1323
        %v2002 = vpop.f32.mrf.mxu0
        %v2003 = vadd.f32 0.0, %v2002
        %v2004 = vpop.f32.mrf.mxu0
        %v2005 = vadd.f32 0.0, %v2004
        %2006 = vmatmul.bf16.gmra.mxu0 %v1326
        %v2007 = vpop.f32.mrf.mxu0
        %v2008 = vadd.f32 0.0, %v2007
        %v2009 = vpop.f32.mrf.mxu0
        %v2010 = vadd.f32 0.0, %v2009
        %2011 = vmatmul.bf16.gmra.mxu0 %v1329
        %v2012 = vpop.f32.mrf.mxu0
        %v2013 = vadd.f32 0.0, %v2012
        %v2014 = vpop.f32.mrf.mxu0
        %v2015 = vadd.f32 0.0, %v2014
        %2016 = vmatmul.bf16.gmra.mxu0 %v1332
        %v2017 = vpop.f32.mrf.mxu0
        %v2018 = vadd.f32 0.0, %v2017
        %v2019 = vpop.f32.mrf.mxu0
        %v2020 = vadd.f32 0.0, %v2019
        %2021 = vmatmul.bf16.gmra.mxu0 %v1335
        %v2022 = vpop.f32.mrf.mxu0
        %v2023 = vadd.f32 0.0, %v2022
        %v2024 = vpop.f32.mrf.mxu0
        %v2025 = vadd.f32 0.0, %v2024
        %2026 = vmatmul.bf16.gmra.mxu0 %v1338
        %v2027 = vpop.f32.mrf.mxu0
        %v2028 = vadd.f32 0.0, %v2027
        %v2029 = vpop.f32.mrf.mxu0
        %v2030 = vadd.f32 0.0, %v2029
        %2031 = vmatmul.bf16.gmra.mxu0 %v1341
        %v2032 = vpop.f32.mrf.mxu0
        %v2033 = vadd.f32 0.0, %v2032
        %v2034 = vpop.f32.mrf.mxu0
        %v2035 = vadd.f32 0.0, %v2034
        %2036 = vmatmul.bf16.gmra.mxu0 %v1344
        %v2037 = vpop.f32.mrf.mxu0
        %v2038 = vadd.f32 0.0, %v2037
        %v2039 = vpop.f32.mrf.mxu0
        %v2040 = vadd.f32 0.0, %v2039
        %2041 = vmatmul.bf16.gmra.mxu0 %v1347
        %v2042 = vpop.f32.mrf.mxu0
        %v2043 = vadd.f32 0.0, %v2042
        %v2044 = vpop.f32.mrf.mxu0
        %v2045 = vadd.f32 0.0, %v2044
        %2046 = vmatmul.bf16.gmra.mxu0 %v1350
        %v2047 = vpop.f32.mrf.mxu0
        %v2048 = vadd.f32 0.0, %v2047
        %v2049 = vpop.f32.mrf.mxu0
        %v2050 = vadd.f32 0.0, %v2049
        %2051 = vmatmul.bf16.gmra.mxu0 %v1353
        %v2052 = vpop.f32.mrf.mxu0
        %v2053 = vadd.f32 0.0, %v2052
        %v2054 = vpop.f32.mrf.mxu0
        %v2055 = vadd.f32 0.0, %v2054
        %2056 = vmatmul.bf16.gmra.mxu0 %v1356
        %v2057 = vpop.f32.mrf.mxu0
        %v2058 = vadd.f32 0.0, %v2057
        %v2059 = vpop.f32.mrf.mxu0
        %v2060 = vadd.f32 0.0, %v2059
        %2061 = vmatmul.bf16.gmra.mxu0 %v1359
        %v2062 = vpop.f32.mrf.mxu0
        %v2063 = vadd.f32 0.0, %v2062
        %v2064 = vpop.f32.mrf.mxu0
        %v2065 = vadd.f32 0.0, %v2064
        %2066 = vmatmul.bf16.gmra.mxu0 %v1362
        %v2067 = vpop.f32.mrf.mxu0
        %v2068 = vadd.f32 0.0, %v2067
        %v2069 = vpop.f32.mrf.mxu0
        %v2070 = vadd.f32 0.0, %v2069
        %2071 = vmatmul.bf16.gmra.mxu0 %v1365
        %v2072 = vpop.f32.mrf.mxu0
        %v2073 = vadd.f32 0.0, %v2072
        %v2074 = vpop.f32.mrf.mxu0
        %v2075 = vadd.f32 0.0, %v2074
        %2076 = vmatmul.bf16.gmra.mxu0 %v1368
        %v2077 = vpop.f32.mrf.mxu0
        %v2078 = vadd.f32 0.0, %v2077
        %v2079 = vpop.f32.mrf.mxu0
        %v2080 = vadd.f32 0.0, %v2079
        %2081 = vdwg.mxu0
        %2082 = vmatpush.bf16.msra.mxu0 0
        %2083 = vmatpush.bf16.msra.mxu0 0
        %2084 = vmatpush.bf16.msra.mxu0 0
        %2085 = vmatpush.bf16.msra.mxu0 0
        %2086 = vmatpush.bf16.msra.mxu0 0
        %2087 = vmatpush.bf16.msra.mxu0 0
        %2088 = vmatpush.bf16.msra.mxu0 0
        %2089 = vmatpush.bf16.msra.mxu0 %v1185
        %2090 = vmatmul.bf16.gmra.mxu0 %v1323
        %v2091 = vpop.f32.mrf.mxu0
        %v2092 = vadd.f32 0.0, %v2091
        %v2093 = vpop.f32.mrf.mxu0
        %v2094 = vadd.f32 0.0, %v2093
        %2095 = vmatmul.bf16.gmra.mxu0 %v1326
        %v2096 = vpop.f32.mrf.mxu0
        %v2097 = vadd.f32 0.0, %v2096
        %v2098 = vpop.f32.mrf.mxu0
        %v2099 = vadd.f32 0.0, %v2098
        %2100 = vmatmul.bf16.gmra.mxu0 %v1329
        %v2101 = vpop.f32.mrf.mxu0
        %v2102 = vadd.f32 0.0, %v2101
        %v2103 = vpop.f32.mrf.mxu0
        %v2104 = vadd.f32 0.0, %v2103
        %2105 = vmatmul.bf16.gmra.mxu0 %v1332
        %v2106 = vpop.f32.mrf.mxu0
        %v2107 = vadd.f32 0.0, %v2106
        %v2108 = vpop.f32.mrf.mxu0
        %v2109 = vadd.f32 0.0, %v2108
        %2110 = vmatmul.bf16.gmra.mxu0 %v1335
        %v2111 = vpop.f32.mrf.mxu0
        %v2112 = vadd.f32 0.0, %v2111
        %v2113 = vpop.f32.mrf.mxu0
        %v2114 = vadd.f32 0.0, %v2113
        %2115 = vmatmul.bf16.gmra.mxu0 %v1338
        %v2116 = vpop.f32.mrf.mxu0
        %v2117 = vadd.f32 0.0, %v2116
        %v2118 = vpop.f32.mrf.mxu0
        %v2119 = vadd.f32 0.0, %v2118
        %2120 = vmatmul.bf16.gmra.mxu0 %v1341
        %v2121 = vpop.f32.mrf.mxu0
        %v2122 = vadd.f32 0.0, %v2121
        %v2123 = vpop.f32.mrf.mxu0
        %v2124 = vadd.f32 0.0, %v2123
        %2125 = vmatmul.bf16.gmra.mxu0 %v1344
        %v2126 = vpop.f32.mrf.mxu0
        %v2127 = vadd.f32 0.0, %v2126
        %v2128 = vpop.f32.mrf.mxu0
        %v2129 = vadd.f32 0.0, %v2128
        %2130 = vmatmul.bf16.gmra.mxu0 %v1347
        %v2131 = vpop.f32.mrf.mxu0
        %v2132 = vadd.f32 0.0, %v2131
        %v2133 = vpop.f32.mrf.mxu0
        %v2134 = vadd.f32 0.0, %v2133
        %2135 = vmatmul.bf16.gmra.mxu0 %v1350
        %v2136 = vpop.f32.mrf.mxu0
        %v2137 = vadd.f32 0.0, %v2136
        %v2138 = vpop.f32.mrf.mxu0
        %v2139 = vadd.f32 0.0, %v2138
        %2140 = vmatmul.bf16.gmra.mxu0 %v1353
        %v2141 = vpop.f32.mrf.mxu0
        %v2142 = vadd.f32 0.0, %v2141
        %v2143 = vpop.f32.mrf.mxu0
        %v2144 = vadd.f32 0.0, %v2143
        %2145 = vmatmul.bf16.gmra.mxu0 %v1356
        %v2146 = vpop.f32.mrf.mxu0
        %v2147 = vadd.f32 0.0, %v2146
        %v2148 = vpop.f32.mrf.mxu0
        %v2149 = vadd.f32 0.0, %v2148
        %2150 = vmatmul.bf16.gmra.mxu0 %v1359
        %v2151 = vpop.f32.mrf.mxu0
        %v2152 = vadd.f32 0.0, %v2151
        %v2153 = vpop.f32.mrf.mxu0
        %v2154 = vadd.f32 0.0, %v2153
        %2155 = vmatmul.bf16.gmra.mxu0 %v1362
        %v2156 = vpop.f32.mrf.mxu0
        %v2157 = vadd.f32 0.0, %v2156
        %v2158 = vpop.f32.mrf.mxu0
        %v2159 = vadd.f32 0.0, %v2158
        %2160 = vmatmul.bf16.gmra.mxu0 %v1365
        %v2161 = vpop.f32.mrf.mxu0
        %v2162 = vadd.f32 0.0, %v2161
        %v2163 = vpop.f32.mrf.mxu0
        %v2164 = vadd.f32 0.0, %v2163
        %2165 = vmatmul.bf16.gmra.mxu0 %v1368
        %v2166 = vpop.f32.mrf.mxu0
        %v2167 = vadd.f32 0.0, %v2166
        %v2168 = vpop.f32.mrf.mxu0
        %v2169 = vadd.f32 0.0, %v2168
        %2170 = vdwg.mxu0
        %2171 = vmatpush.bf16.msra.mxu0 0
        %2172 = vmatpush.bf16.msra.mxu0 0
        %2173 = vmatpush.bf16.msra.mxu0 0
        %2174 = vmatpush.bf16.msra.mxu0 0
        %2175 = vmatpush.bf16.msra.mxu0 0
        %2176 = vmatpush.bf16.msra.mxu0 0
        %2177 = vmatpush.bf16.msra.mxu0 0
        %2178 = vmatpush.bf16.msra.mxu0 %v1186
        %2179 = vmatmul.bf16.gmra.mxu0 %v1323
        %v2180 = vpop.f32.mrf.mxu0
        %v2181 = vadd.f32 0.0, %v2180
        %v2182 = vpop.f32.mrf.mxu0
        %v2183 = vadd.f32 0.0, %v2182
        %2184 = vmatmul.bf16.gmra.mxu0 %v1326
        %v2185 = vpop.f32.mrf.mxu0
        %v2186 = vadd.f32 0.0, %v2185
        %v2187 = vpop.f32.mrf.mxu0
        %v2188 = vadd.f32 0.0, %v2187
        %2189 = vmatmul.bf16.gmra.mxu0 %v1329
        %v2190 = vpop.f32.mrf.mxu0
        %v2191 = vadd.f32 0.0, %v2190
        %v2192 = vpop.f32.mrf.mxu0
        %v2193 = vadd.f32 0.0, %v2192
        %2194 = vmatmul.bf16.gmra.mxu0 %v1332
        %v2195 = vpop.f32.mrf.mxu0
        %v2196 = vadd.f32 0.0, %v2195
        %v2197 = vpop.f32.mrf.mxu0
        %v2198 = vadd.f32 0.0, %v2197
        %2199 = vmatmul.bf16.gmra.mxu0 %v1335
        %v2200 = vpop.f32.mrf.mxu0
        %v2201 = vadd.f32 0.0, %v2200
        %v2202 = vpop.f32.mrf.mxu0
        %v2203 = vadd.f32 0.0, %v2202
        %2204 = vmatmul.bf16.gmra.mxu0 %v1338
        %v2205 = vpop.f32.mrf.mxu0
        %v2206 = vadd.f32 0.0, %v2205
        %v2207 = vpop.f32.mrf.mxu0
        %v2208 = vadd.f32 0.0, %v2207
        %2209 = vmatmul.bf16.gmra.mxu0 %v1341
        %v2210 = vpop.f32.mrf.mxu0
        %v2211 = vadd.f32 0.0, %v2210
        %v2212 = vpop.f32.mrf.mxu0
        %v2213 = vadd.f32 0.0, %v2212
        %2214 = vmatmul.bf16.gmra.mxu0 %v1344
        %v2215 = vpop.f32.mrf.mxu0
        %v2216 = vadd.f32 0.0, %v2215
        %v2217 = vpop.f32.mrf.mxu0
        %v2218 = vadd.f32 0.0, %v2217
        %2219 = vmatmul.bf16.gmra.mxu0 %v1347
        %v2220 = vpop.f32.mrf.mxu0
        %v2221 = vadd.f32 0.0, %v2220
        %v2222 = vpop.f32.mrf.mxu0
        %v2223 = vadd.f32 0.0, %v2222
        %2224 = vmatmul.bf16.gmra.mxu0 %v1350
        %v2225 = vpop.f32.mrf.mxu0
        %v2226 = vadd.f32 0.0, %v2225
        %v2227 = vpop.f32.mrf.mxu0
        %v2228 = vadd.f32 0.0, %v2227
        %2229 = vmatmul.bf16.gmra.mxu0 %v1353
        %v2230 = vpop.f32.mrf.mxu0
        %v2231 = vadd.f32 0.0, %v2230
        %v2232 = vpop.f32.mrf.mxu0
        %v2233 = vadd.f32 0.0, %v2232
        %2234 = vmatmul.bf16.gmra.mxu0 %v1356
        %v2235 = vpop.f32.mrf.mxu0
        %v2236 = vadd.f32 0.0, %v2235
        %v2237 = vpop.f32.mrf.mxu0
        %v2238 = vadd.f32 0.0, %v2237
        %2239 = vmatmul.bf16.gmra.mxu0 %v1359
        %v2240 = vpop.f32.mrf.mxu0
        %v2241 = vadd.f32 0.0, %v2240
        %v2242 = vpop.f32.mrf.mxu0
        %v2243 = vadd.f32 0.0, %v2242
        %2244 = vmatmul.bf16.gmra.mxu0 %v1362
        %v2245 = vpop.f32.mrf.mxu0
        %v2246 = vadd.f32 0.0, %v2245
        %v2247 = vpop.f32.mrf.mxu0
        %v2248 = vadd.f32 0.0, %v2247
        %2249 = vmatmul.bf16.gmra.mxu0 %v1365
        %v2250 = vpop.f32.mrf.mxu0
        %v2251 = vadd.f32 0.0, %v2250
        %v2252 = vpop.f32.mrf.mxu0
        %v2253 = vadd.f32 0.0, %v2252
        %2254 = vmatmul.bf16.gmra.mxu0 %v1368
        %v2255 = vpop.f32.mrf.mxu0
        %v2256 = vadd.f32 0.0, %v2255
        %v2257 = vpop.f32.mrf.mxu0
        %v2258 = vadd.f32 0.0, %v2257
        %2259 = vdwg.mxu0
        %2260 = vmatpush.bf16.msra.mxu0 0
        %2261 = vmatpush.bf16.msra.mxu0 0
        %2262 = vmatpush.bf16.msra.mxu0 0
        %2263 = vmatpush.bf16.msra.mxu0 0
        %2264 = vmatpush.bf16.msra.mxu0 0
        %2265 = vmatpush.bf16.msra.mxu0 0
        %2266 = vmatpush.bf16.msra.mxu0 0
        %2267 = vmatpush.bf16.msra.mxu0 %v1187
        %2268 = vmatmul.bf16.gmra.mxu0 %v1323
        %v2269 = vpop.f32.mrf.mxu0
        %v2270 = vadd.f32 0.0, %v2269
        %v2271 = vpop.f32.mrf.mxu0
        %v2272 = vadd.f32 0.0, %v2271
        %2273 = vmatmul.bf16.gmra.mxu0 %v1326
        %v2274 = vpop.f32.mrf.mxu0
        %v2275 = vadd.f32 0.0, %v2274
        %v2276 = vpop.f32.mrf.mxu0
        %v2277 = vadd.f32 0.0, %v2276
        %2278 = vmatmul.bf16.gmra.mxu0 %v1329
        %v2279 = vpop.f32.mrf.mxu0
        %v2280 = vadd.f32 0.0, %v2279
        %v2281 = vpop.f32.mrf.mxu0
        %v2282 = vadd.f32 0.0, %v2281
        %2283 = vmatmul.bf16.gmra.mxu0 %v1332
        %v2284 = vpop.f32.mrf.mxu0
        %v2285 = vadd.f32 0.0, %v2284
        %v2286 = vpop.f32.mrf.mxu0
        %v2287 = vadd.f32 0.0, %v2286
        %2288 = vmatmul.bf16.gmra.mxu0 %v1335
        %v2289 = vpop.f32.mrf.mxu0
        %v2290 = vadd.f32 0.0, %v2289
        %v2291 = vpop.f32.mrf.mxu0
        %v2292 = vadd.f32 0.0, %v2291
        %2293 = vmatmul.bf16.gmra.mxu0 %v1338
        %v2294 = vpop.f32.mrf.mxu0
        %v2295 = vadd.f32 0.0, %v2294
        %v2296 = vpop.f32.mrf.mxu0
        %v2297 = vadd.f32 0.0, %v2296
        %2298 = vmatmul.bf16.gmra.mxu0 %v1341
        %v2299 = vpop.f32.mrf.mxu0
        %v2300 = vadd.f32 0.0, %v2299
        %v2301 = vpop.f32.mrf.mxu0
        %v2302 = vadd.f32 0.0, %v2301
        %2303 = vmatmul.bf16.gmra.mxu0 %v1344
        %v2304 = vpop.f32.mrf.mxu0
        %v2305 = vadd.f32 0.0, %v2304
        %v2306 = vpop.f32.mrf.mxu0
        %v2307 = vadd.f32 0.0, %v2306
        %2308 = vmatmul.bf16.gmra.mxu0 %v1347
        %v2309 = vpop.f32.mrf.mxu0
        %v2310 = vadd.f32 0.0, %v2309
        %v2311 = vpop.f32.mrf.mxu0
        %v2312 = vadd.f32 0.0, %v2311
        %2313 = vmatmul.bf16.gmra.mxu0 %v1350
        %v2314 = vpop.f32.mrf.mxu0
        %v2315 = vadd.f32 0.0, %v2314
        %v2316 = vpop.f32.mrf.mxu0
        %v2317 = vadd.f32 0.0, %v2316
        %2318 = vmatmul.bf16.gmra.mxu0 %v1353
        %v2319 = vpop.f32.mrf.mxu0
        %v2320 = vadd.f32 0.0, %v2319
        %v2321 = vpop.f32.mrf.mxu0
        %v2322 = vadd.f32 0.0, %v2321
        %2323 = vmatmul.bf16.gmra.mxu0 %v1356
        %v2324 = vpop.f32.mrf.mxu0
        %v2325 = vadd.f32 0.0, %v2324
        %v2326 = vpop.f32.mrf.mxu0
        %v2327 = vadd.f32 0.0, %v2326
        %2328 = vmatmul.bf16.gmra.mxu0 %v1359
        %v2329 = vpop.f32.mrf.mxu0
        %v2330 = vadd.f32 0.0, %v2329
        %v2331 = vpop.f32.mrf.mxu0
        %v2332 = vadd.f32 0.0, %v2331
        %2333 = vmatmul.bf16.gmra.mxu0 %v1362
        %v2334 = vpop.f32.mrf.mxu0
        %v2335 = vadd.f32 0.0, %v2334
        %v2336 = vpop.f32.mrf.mxu0
        %v2337 = vadd.f32 0.0, %v2336
        %2338 = vmatmul.bf16.gmra.mxu0 %v1365
        %v2339 = vpop.f32.mrf.mxu0
        %v2340 = vadd.f32 0.0, %v2339
        %v2341 = vpop.f32.mrf.mxu0
        %v2342 = vadd.f32 0.0, %v2341
        %2343 = vmatmul.bf16.gmra.mxu0 %v1368
        %v2344 = vpop.f32.mrf.mxu0
        %v2345 = vadd.f32 0.0, %v2344
        %v2346 = vpop.f32.mrf.mxu0
        %v2347 = vadd.f32 0.0, %v2346
        %2348 = vdwg.mxu0
        %2349 = vmatpush.bf16.msra.mxu0 0
        %2350 = vmatpush.bf16.msra.mxu0 0
        %2351 = vmatpush.bf16.msra.mxu0 0
        %2352 = vmatpush.bf16.msra.mxu0 0
        %2353 = vmatpush.bf16.msra.mxu0 0
        %2354 = vmatpush.bf16.msra.mxu0 0
        %2355 = vmatpush.bf16.msra.mxu0 0
        %2356 = vmatpush.bf16.msra.mxu0 %v1188
        %2357 = vmatmul.bf16.gmra.mxu0 %v1323
        %v2358 = vpop.f32.mrf.mxu0
        %v2359 = vadd.f32 0.0, %v2358
        %v2360 = vpop.f32.mrf.mxu0
        %v2361 = vadd.f32 0.0, %v2360
        %2362 = vmatmul.bf16.gmra.mxu0 %v1326
        %v2363 = vpop.f32.mrf.mxu0
        %v2364 = vadd.f32 0.0, %v2363
        %v2365 = vpop.f32.mrf.mxu0
        %v2366 = vadd.f32 0.0, %v2365
        %2367 = vmatmul.bf16.gmra.mxu0 %v1329
        %v2368 = vpop.f32.mrf.mxu0
        %v2369 = vadd.f32 0.0, %v2368
        %v2370 = vpop.f32.mrf.mxu0
        %v2371 = vadd.f32 0.0, %v2370
        %2372 = vmatmul.bf16.gmra.mxu0 %v1332
        %v2373 = vpop.f32.mrf.mxu0
        %v2374 = vadd.f32 0.0, %v2373
        %v2375 = vpop.f32.mrf.mxu0
        %v2376 = vadd.f32 0.0, %v2375
        %2377 = vmatmul.bf16.gmra.mxu0 %v1335
        %v2378 = vpop.f32.mrf.mxu0
        %v2379 = vadd.f32 0.0, %v2378
        %v2380 = vpop.f32.mrf.mxu0
        %v2381 = vadd.f32 0.0, %v2380
        %2382 = vmatmul.bf16.gmra.mxu0 %v1338
        %v2383 = vpop.f32.mrf.mxu0
        %v2384 = vadd.f32 0.0, %v2383
        %v2385 = vpop.f32.mrf.mxu0
        %v2386 = vadd.f32 0.0, %v2385
        %2387 = vmatmul.bf16.gmra.mxu0 %v1341
        %v2388 = vpop.f32.mrf.mxu0
        %v2389 = vadd.f32 0.0, %v2388
        %v2390 = vpop.f32.mrf.mxu0
        %v2391 = vadd.f32 0.0, %v2390
        %2392 = vmatmul.bf16.gmra.mxu0 %v1344
        %v2393 = vpop.f32.mrf.mxu0
        %v2394 = vadd.f32 0.0, %v2393
        %v2395 = vpop.f32.mrf.mxu0
        %v2396 = vadd.f32 0.0, %v2395
        %2397 = vmatmul.bf16.gmra.mxu0 %v1347
        %v2398 = vpop.f32.mrf.mxu0
        %v2399 = vadd.f32 0.0, %v2398
        %v2400 = vpop.f32.mrf.mxu0
        %v2401 = vadd.f32 0.0, %v2400
        %2402 = vmatmul.bf16.gmra.mxu0 %v1350
        %v2403 = vpop.f32.mrf.mxu0
        %v2404 = vadd.f32 0.0, %v2403
        %v2405 = vpop.f32.mrf.mxu0
        %v2406 = vadd.f32 0.0, %v2405
        %2407 = vmatmul.bf16.gmra.mxu0 %v1353
        %v2408 = vpop.f32.mrf.mxu0
        %v2409 = vadd.f32 0.0, %v2408
        %v2410 = vpop.f32.mrf.mxu0
        %v2411 = vadd.f32 0.0, %v2410
        %2412 = vmatmul.bf16.gmra.mxu0 %v1356
        %v2413 = vpop.f32.mrf.mxu0
        %v2414 = vadd.f32 0.0, %v2413
        %v2415 = vpop.f32.mrf.mxu0
        %v2416 = vadd.f32 0.0, %v2415
        %2417 = vmatmul.bf16.gmra.mxu0 %v1359
        %v2418 = vpop.f32.mrf.mxu0
        %v2419 = vadd.f32 0.0, %v2418
        %v2420 = vpop.f32.mrf.mxu0
        %v2421 = vadd.f32 0.0, %v2420
        %2422 = vmatmul.bf16.gmra.mxu0 %v1362
        %v2423 = vpop.f32.mrf.mxu0
        %v2424 = vadd.f32 0.0, %v2423
        %v2425 = vpop.f32.mrf.mxu0
        %v2426 = vadd.f32 0.0, %v2425
        %2427 = vmatmul.bf16.gmra.mxu0 %v1365
        %v2428 = vpop.f32.mrf.mxu0
        %v2429 = vadd.f32 0.0, %v2428
        %v2430 = vpop.f32.mrf.mxu0
        %v2431 = vadd.f32 0.0, %v2430
        %2432 = vmatmul.bf16.gmra.mxu0 %v1368
        %v2433 = vpop.f32.mrf.mxu0
        %v2434 = vadd.f32 0.0, %v2433
        %v2435 = vpop.f32.mrf.mxu0
        %v2436 = vadd.f32 0.0, %v2435
        %2437 = vdwg.mxu0
        %2438 = vmatpush.bf16.msra.mxu0 0
        %2439 = vmatpush.bf16.msra.mxu0 0
        %2440 = vmatpush.bf16.msra.mxu0 0
        %2441 = vmatpush.bf16.msra.mxu0 0
        %2442 = vmatpush.bf16.msra.mxu0 0
        %2443 = vmatpush.bf16.msra.mxu0 0
        %2444 = vmatpush.bf16.msra.mxu0 0
        %2445 = vmatpush.bf16.msra.mxu0 %v1189
        %2446 = vmatmul.bf16.gmra.mxu0 %v1323
        %v2447 = vpop.f32.mrf.mxu0
        %v2448 = vadd.f32 0.0, %v2447
        %v2449 = vpop.f32.mrf.mxu0
        %v2450 = vadd.f32 0.0, %v2449
        %2451 = vmatmul.bf16.gmra.mxu0 %v1326
        %v2452 = vpop.f32.mrf.mxu0
        %v2453 = vadd.f32 0.0, %v2452
        %v2454 = vpop.f32.mrf.mxu0
        %v2455 = vadd.f32 0.0, %v2454
        %2456 = vmatmul.bf16.gmra.mxu0 %v1329
        %v2457 = vpop.f32.mrf.mxu0
        %v2458 = vadd.f32 0.0, %v2457
        %v2459 = vpop.f32.mrf.mxu0
        %v2460 = vadd.f32 0.0, %v2459
        %2461 = vmatmul.bf16.gmra.mxu0 %v1332
        %v2462 = vpop.f32.mrf.mxu0
        %v2463 = vadd.f32 0.0, %v2462
        %v2464 = vpop.f32.mrf.mxu0
        %v2465 = vadd.f32 0.0, %v2464
        %2466 = vmatmul.bf16.gmra.mxu0 %v1335
        %v2467 = vpop.f32.mrf.mxu0
        %v2468 = vadd.f32 0.0, %v2467
        %v2469 = vpop.f32.mrf.mxu0
        %v2470 = vadd.f32 0.0, %v2469
        %2471 = vmatmul.bf16.gmra.mxu0 %v1338
        %v2472 = vpop.f32.mrf.mxu0
        %v2473 = vadd.f32 0.0, %v2472
        %v2474 = vpop.f32.mrf.mxu0
        %v2475 = vadd.f32 0.0, %v2474
        %2476 = vmatmul.bf16.gmra.mxu0 %v1341
        %v2477 = vpop.f32.mrf.mxu0
        %v2478 = vadd.f32 0.0, %v2477
        %v2479 = vpop.f32.mrf.mxu0
        %v2480 = vadd.f32 0.0, %v2479
        %2481 = vmatmul.bf16.gmra.mxu0 %v1344
        %v2482 = vpop.f32.mrf.mxu0
        %v2483 = vadd.f32 0.0, %v2482
        %v2484 = vpop.f32.mrf.mxu0
        %v2485 = vadd.f32 0.0, %v2484
        %2486 = vmatmul.bf16.gmra.mxu0 %v1347
        %v2487 = vpop.f32.mrf.mxu0
        %v2488 = vadd.f32 0.0, %v2487
        %v2489 = vpop.f32.mrf.mxu0
        %v2490 = vadd.f32 0.0, %v2489
        %2491 = vmatmul.bf16.gmra.mxu0 %v1350
        %v2492 = vpop.f32.mrf.mxu0
        %v2493 = vadd.f32 0.0, %v2492
        %v2494 = vpop.f32.mrf.mxu0
        %v2495 = vadd.f32 0.0, %v2494
        %2496 = vmatmul.bf16.gmra.mxu0 %v1353
        %v2497 = vpop.f32.mrf.mxu0
        %v2498 = vadd.f32 0.0, %v2497
        %v2499 = vpop.f32.mrf.mxu0
        %v2500 = vadd.f32 0.0, %v2499
        %2501 = vmatmul.bf16.gmra.mxu0 %v1356
        %v2502 = vpop.f32.mrf.mxu0
        %v2503 = vadd.f32 0.0, %v2502
        %v2504 = vpop.f32.mrf.mxu0
        %v2505 = vadd.f32 0.0, %v2504
        %2506 = vmatmul.bf16.gmra.mxu0 %v1359
        %v2507 = vpop.f32.mrf.mxu0
        %v2508 = vadd.f32 0.0, %v2507
        %v2509 = vpop.f32.mrf.mxu0
        %v2510 = vadd.f32 0.0, %v2509
        %2511 = vmatmul.bf16.gmra.mxu0 %v1362
        %v2512 = vpop.f32.mrf.mxu0
        %v2513 = vadd.f32 0.0, %v2512
        %v2514 = vpop.f32.mrf.mxu0
        %v2515 = vadd.f32 0.0, %v2514
        %2516 = vmatmul.bf16.gmra.mxu0 %v1365
        %v2517 = vpop.f32.mrf.mxu0
        %v2518 = vadd.f32 0.0, %v2517
        %v2519 = vpop.f32.mrf.mxu0
        %v2520 = vadd.f32 0.0, %v2519
        %2521 = vmatmul.bf16.gmra.mxu0 %v1368
        %v2522 = vpop.f32.mrf.mxu0
        %v2523 = vadd.f32 0.0, %v2522
        %v2524 = vpop.f32.mrf.mxu0
        %v2525 = vadd.f32 0.0, %v2524
        %2526 = vdwg.mxu0
        %2527 = vmatpush.bf16.msra.mxu0 0
        %2528 = vmatpush.bf16.msra.mxu0 0
        %2529 = vmatpush.bf16.msra.mxu0 0
        %2530 = vmatpush.bf16.msra.mxu0 0
        %2531 = vmatpush.bf16.msra.mxu0 0
        %2532 = vmatpush.bf16.msra.mxu0 0
        %2533 = vmatpush.bf16.msra.mxu0 0
        %2534 = vmatpush.bf16.msra.mxu0 %v1190
        %2535 = vmatmul.bf16.gmra.mxu0 %v1323
        %v2536 = vpop.f32.mrf.mxu0
        %v2537 = vadd.f32 0.0, %v2536
        %v2538 = vpop.f32.mrf.mxu0
        %v2539 = vadd.f32 0.0, %v2538
        %2540 = vmatmul.bf16.gmra.mxu0 %v1326
        %v2541 = vpop.f32.mrf.mxu0
        %v2542 = vadd.f32 0.0, %v2541
        %v2543 = vpop.f32.mrf.mxu0
        %v2544 = vadd.f32 0.0, %v2543
        %2545 = vmatmul.bf16.gmra.mxu0 %v1329
        %v2546 = vpop.f32.mrf.mxu0
        %v2547 = vadd.f32 0.0, %v2546
        %v2548 = vpop.f32.mrf.mxu0
        %v2549 = vadd.f32 0.0, %v2548
        %2550 = vmatmul.bf16.gmra.mxu0 %v1332
        %v2551 = vpop.f32.mrf.mxu0
        %v2552 = vadd.f32 0.0, %v2551
        %v2553 = vpop.f32.mrf.mxu0
        %v2554 = vadd.f32 0.0, %v2553
        %2555 = vmatmul.bf16.gmra.mxu0 %v1335
        %v2556 = vpop.f32.mrf.mxu0
        %v2557 = vadd.f32 0.0, %v2556
        %v2558 = vpop.f32.mrf.mxu0
        %v2559 = vadd.f32 0.0, %v2558
        %2560 = vmatmul.bf16.gmra.mxu0 %v1338
        %v2561 = vpop.f32.mrf.mxu0
        %v2562 = vadd.f32 0.0, %v2561
        %v2563 = vpop.f32.mrf.mxu0
        %v2564 = vadd.f32 0.0, %v2563
        %2565 = vmatmul.bf16.gmra.mxu0 %v1341
        %v2566 = vpop.f32.mrf.mxu0
        %v2567 = vadd.f32 0.0, %v2566
        %v2568 = vpop.f32.mrf.mxu0
        %v2569 = vadd.f32 0.0, %v2568
        %2570 = vmatmul.bf16.gmra.mxu0 %v1344
        %v2571 = vpop.f32.mrf.mxu0
        %v2572 = vadd.f32 0.0, %v2571
        %v2573 = vpop.f32.mrf.mxu0
        %v2574 = vadd.f32 0.0, %v2573
        %2575 = vmatmul.bf16.gmra.mxu0 %v1347
        %v2576 = vpop.f32.mrf.mxu0
        %v2577 = vadd.f32 0.0, %v2576
        %v2578 = vpop.f32.mrf.mxu0
        %v2579 = vadd.f32 0.0, %v2578
        %2580 = vmatmul.bf16.gmra.mxu0 %v1350
        %v2581 = vpop.f32.mrf.mxu0
        %v2582 = vadd.f32 0.0, %v2581
        %v2583 = vpop.f32.mrf.mxu0
        %v2584 = vadd.f32 0.0, %v2583
        %2585 = vmatmul.bf16.gmra.mxu0 %v1353
        %v2586 = vpop.f32.mrf.mxu0
        %v2587 = vadd.f32 0.0, %v2586
        %v2588 = vpop.f32.mrf.mxu0
        %v2589 = vadd.f32 0.0, %v2588
        %2590 = vmatmul.bf16.gmra.mxu0 %v1356
        %v2591 = vpop.f32.mrf.mxu0
        %v2592 = vadd.f32 0.0, %v2591
        %v2593 = vpop.f32.mrf.mxu0
        %v2594 = vadd.f32 0.0, %v2593
        %2595 = vmatmul.bf16.gmra.mxu0 %v1359
        %v2596 = vpop.f32.mrf.mxu0
        %v2597 = vadd.f32 0.0, %v2596
        %v2598 = vpop.f32.mrf.mxu0
        %v2599 = vadd.f32 0.0, %v2598
        %2600 = vmatmul.bf16.gmra.mxu0 %v1362
        %v2601 = vpop.f32.mrf.mxu0
        %v2602 = vadd.f32 0.0, %v2601
        %v2603 = vpop.f32.mrf.mxu0
        %v2604 = vadd.f32 0.0, %v2603
        %2605 = vmatmul.bf16.gmra.mxu0 %v1365
        %v2606 = vpop.f32.mrf.mxu0
        %v2607 = vadd.f32 0.0, %v2606
        %v2608 = vpop.f32.mrf.mxu0
        %v2609 = vadd.f32 0.0, %v2608
        %2610 = vmatmul.bf16.gmra.mxu0 %v1368
        %v2611 = vpop.f32.mrf.mxu0
        %v2612 = vadd.f32 0.0, %v2611
        %v2613 = vpop.f32.mrf.mxu0
        %v2614 = vadd.f32 0.0, %v2613
        %2615 = vdwg.mxu0
        %2616 = vmatpush.bf16.msra.mxu0 0
        %2617 = vmatpush.bf16.msra.mxu0 0
        %2618 = vmatpush.bf16.msra.mxu0 0
        %2619 = vmatpush.bf16.msra.mxu0 0
        %2620 = vmatpush.bf16.msra.mxu0 0
        %2621 = vmatpush.bf16.msra.mxu0 0
        %2622 = vmatpush.bf16.msra.mxu0 0
        %2623 = vmatpush.bf16.msra.mxu0 %v1191
        %2624 = vmatmul.bf16.gmra.mxu0 %v1323
        %v2625 = vpop.f32.mrf.mxu0
        %v2626 = vadd.f32 0.0, %v2625
        %v2627 = vpop.f32.mrf.mxu0
        %v2628 = vadd.f32 0.0, %v2627
        %2629 = vmatmul.bf16.gmra.mxu0 %v1326
        %v2630 = vpop.f32.mrf.mxu0
        %v2631 = vadd.f32 0.0, %v2630
        %v2632 = vpop.f32.mrf.mxu0
        %v2633 = vadd.f32 0.0, %v2632
        %2634 = vmatmul.bf16.gmra.mxu0 %v1329
        %v2635 = vpop.f32.mrf.mxu0
        %v2636 = vadd.f32 0.0, %v2635
        %v2637 = vpop.f32.mrf.mxu0
        %v2638 = vadd.f32 0.0, %v2637
        %2639 = vmatmul.bf16.gmra.mxu0 %v1332
        %v2640 = vpop.f32.mrf.mxu0
        %v2641 = vadd.f32 0.0, %v2640
        %v2642 = vpop.f32.mrf.mxu0
        %v2643 = vadd.f32 0.0, %v2642
        %2644 = vmatmul.bf16.gmra.mxu0 %v1335
        %v2645 = vpop.f32.mrf.mxu0
        %v2646 = vadd.f32 0.0, %v2645
        %v2647 = vpop.f32.mrf.mxu0
        %v2648 = vadd.f32 0.0, %v2647
        %2649 = vmatmul.bf16.gmra.mxu0 %v1338
        %v2650 = vpop.f32.mrf.mxu0
        %v2651 = vadd.f32 0.0, %v2650
        %v2652 = vpop.f32.mrf.mxu0
        %v2653 = vadd.f32 0.0, %v2652
        %2654 = vmatmul.bf16.gmra.mxu0 %v1341
        %v2655 = vpop.f32.mrf.mxu0
        %v2656 = vadd.f32 0.0, %v2655
        %v2657 = vpop.f32.mrf.mxu0
        %v2658 = vadd.f32 0.0, %v2657
        %2659 = vmatmul.bf16.gmra.mxu0 %v1344
        %v2660 = vpop.f32.mrf.mxu0
        %v2661 = vadd.f32 0.0, %v2660
        %v2662 = vpop.f32.mrf.mxu0
        %v2663 = vadd.f32 0.0, %v2662
        %2664 = vmatmul.bf16.gmra.mxu0 %v1347
        %v2665 = vpop.f32.mrf.mxu0
        %v2666 = vadd.f32 0.0, %v2665
        %v2667 = vpop.f32.mrf.mxu0
        %v2668 = vadd.f32 0.0, %v2667
        %2669 = vmatmul.bf16.gmra.mxu0 %v1350
        %v2670 = vpop.f32.mrf.mxu0
        %v2671 = vadd.f32 0.0, %v2670
        %v2672 = vpop.f32.mrf.mxu0
        %v2673 = vadd.f32 0.0, %v2672
        %2674 = vmatmul.bf16.gmra.mxu0 %v1353
        %v2675 = vpop.f32.mrf.mxu0
        %v2676 = vadd.f32 0.0, %v2675
        %v2677 = vpop.f32.mrf.mxu0
        %v2678 = vadd.f32 0.0, %v2677
        %2679 = vmatmul.bf16.gmra.mxu0 %v1356
        %v2680 = vpop.f32.mrf.mxu0
        %v2681 = vadd.f32 0.0, %v2680
        %v2682 = vpop.f32.mrf.mxu0
        %v2683 = vadd.f32 0.0, %v2682
        %2684 = vmatmul.bf16.gmra.mxu0 %v1359
        %v2685 = vpop.f32.mrf.mxu0
        %v2686 = vadd.f32 0.0, %v2685
        %v2687 = vpop.f32.mrf.mxu0
        %v2688 = vadd.f32 0.0, %v2687
        %2689 = vmatmul.bf16.gmra.mxu0 %v1362
        %v2690 = vpop.f32.mrf.mxu0
        %v2691 = vadd.f32 0.0, %v2690
        %v2692 = vpop.f32.mrf.mxu0
        %v2693 = vadd.f32 0.0, %v2692
        %2694 = vmatmul.bf16.gmra.mxu0 %v1365
        %v2695 = vpop.f32.mrf.mxu0
        %v2696 = vadd.f32 0.0, %v2695
        %v2697 = vpop.f32.mrf.mxu0
        %v2698 = vadd.f32 0.0, %v2697
        %2699 = vmatmul.bf16.gmra.mxu0 %v1368
        %v2700 = vpop.f32.mrf.mxu0
        %v2701 = vadd.f32 0.0, %v2700
        %v2702 = vpop.f32.mrf.mxu0
        %v2703 = vadd.f32 0.0, %v2702
        %2704 = vdwg.mxu0
        %2705 = vmatpush.bf16.msra.mxu0 0
        %2706 = vmatpush.bf16.msra.mxu0 0
        %2707 = vmatpush.bf16.msra.mxu0 0
        %2708 = vmatpush.bf16.msra.mxu0 0
        %2709 = vmatpush.bf16.msra.mxu0 0
        %2710 = vmatpush.bf16.msra.mxu0 0
        %2711 = vmatpush.bf16.msra.mxu0 0
        %2712 = vmatpush.bf16.msra.mxu0 %v1192
        %2713 = vmatmul.bf16.gmra.mxu0 %v1323
        %v2714 = vpop.f32.mrf.mxu0
        %v2715 = vadd.f32 0.0, %v2714
        %v2716 = vpop.f32.mrf.mxu0
        %v2717 = vadd.f32 0.0, %v2716
        %2718 = vmatmul.bf16.gmra.mxu0 %v1326
        %v2719 = vpop.f32.mrf.mxu0
        %v2720 = vadd.f32 0.0, %v2719
        %v2721 = vpop.f32.mrf.mxu0
        %v2722 = vadd.f32 0.0, %v2721
        %2723 = vmatmul.bf16.gmra.mxu0 %v1329
        %v2724 = vpop.f32.mrf.mxu0
        %v2725 = vadd.f32 0.0, %v2724
        %v2726 = vpop.f32.mrf.mxu0
        %v2727 = vadd.f32 0.0, %v2726
        %2728 = vmatmul.bf16.gmra.mxu0 %v1332
        %v2729 = vpop.f32.mrf.mxu0
        %v2730 = vadd.f32 0.0, %v2729
        %v2731 = vpop.f32.mrf.mxu0
        %v2732 = vadd.f32 0.0, %v2731
        %2733 = vmatmul.bf16.gmra.mxu0 %v1335
        %v2734 = vpop.f32.mrf.mxu0
        %v2735 = vadd.f32 0.0, %v2734
        %v2736 = vpop.f32.mrf.mxu0
        %v2737 = vadd.f32 0.0, %v2736
        %2738 = vmatmul.bf16.gmra.mxu0 %v1338
        %v2739 = vpop.f32.mrf.mxu0
        %v2740 = vadd.f32 0.0, %v2739
        %v2741 = vpop.f32.mrf.mxu0
        %v2742 = vadd.f32 0.0, %v2741
        %2743 = vmatmul.bf16.gmra.mxu0 %v1341
        %v2744 = vpop.f32.mrf.mxu0
        %v2745 = vadd.f32 0.0, %v2744
        %v2746 = vpop.f32.mrf.mxu0
        %v2747 = vadd.f32 0.0, %v2746
        %2748 = vmatmul.bf16.gmra.mxu0 %v1344
        %v2749 = vpop.f32.mrf.mxu0
        %v2750 = vadd.f32 0.0, %v2749
        %v2751 = vpop.f32.mrf.mxu0
        %v2752 = vadd.f32 0.0, %v2751
        %2753 = vmatmul.bf16.gmra.mxu0 %v1347
        %v2754 = vpop.f32.mrf.mxu0
        %v2755 = vadd.f32 0.0, %v2754
        %v2756 = vpop.f32.mrf.mxu0
        %v2757 = vadd.f32 0.0, %v2756
        %2758 = vmatmul.bf16.gmra.mxu0 %v1350
        %v2759 = vpop.f32.mrf.mxu0
        %v2760 = vadd.f32 0.0, %v2759
        %v2761 = vpop.f32.mrf.mxu0
        %v2762 = vadd.f32 0.0, %v2761
        %2763 = vmatmul.bf16.gmra.mxu0 %v1353
        %v2764 = vpop.f32.mrf.mxu0
        %v2765 = vadd.f32 0.0, %v2764
        %v2766 = vpop.f32.mrf.mxu0
        %v2767 = vadd.f32 0.0, %v2766
        %2768 = vmatmul.bf16.gmra.mxu0 %v1356
        %v2769 = vpop.f32.mrf.mxu0
        %v2770 = vadd.f32 0.0, %v2769
        %v2771 = vpop.f32.mrf.mxu0
        %v2772 = vadd.f32 0.0, %v2771
        %2773 = vmatmul.bf16.gmra.mxu0 %v1359
        %v2774 = vpop.f32.mrf.mxu0
        %v2775 = vadd.f32 0.0, %v2774
        %v2776 = vpop.f32.mrf.mxu0
        %v2777 = vadd.f32 0.0, %v2776
        %2778 = vmatmul.bf16.gmra.mxu0 %v1362
        %v2779 = vpop.f32.mrf.mxu0
        %v2780 = vadd.f32 0.0, %v2779
        %v2781 = vpop.f32.mrf.mxu0
        %v2782 = vadd.f32 0.0, %v2781
        %2783 = vmatmul.bf16.gmra.mxu0 %v1365
        %v2784 = vpop.f32.mrf.mxu0
        %v2785 = vadd.f32 0.0, %v2784
        %v2786 = vpop.f32.mrf.mxu0
        %v2787 = vadd.f32 0.0, %v2786
        %2788 = vmatmul.bf16.gmra.mxu0 %v1368
        %v2789 = vpop.f32.mrf.mxu0
        %v2790 = vadd.f32 0.0, %v2789
        %v2791 = vpop.f32.mrf.mxu0
        %v2792 = vadd.f32 0.0, %v2791
        %2793 = vdwg.mxu0
        %v2794 = vmul.f32 %v1420, %v1380
        %v2795 = vmul.f32 %v1509, %v1469
        %v2796 = vmul.f32 %v1598, %v1558
        %v2797 = vmul.f32 %v1687, %v1647
        %v2798 = vmul.f32 %v1776, %v1736
        %v2799 = vmul.f32 %v1865, %v1825
        %v2800 = vmul.f32 %v1954, %v1914
        %v2801 = vmul.f32 %v2043, %v2003
        %v2802 = vmul.f32 %v2132, %v2092
        %v2803 = vmul.f32 %v2221, %v2181
        %v2804 = vmul.f32 %v2310, %v2270
        %v2805 = vmul.f32 %v2399, %v2359
        %v2806 = vmul.f32 %v2488, %v2448
        %v2807 = vmul.f32 %v2577, %v2537
        %v2808 = vmul.f32 %v2666, %v2626
        %v2809 = vmul.f32 %v2755, %v2715
        %v2810 = vmul.f32 %v1422, %v1382
        %v2811 = vmul.f32 %v1511, %v1471
        %v2812 = vmul.f32 %v1600, %v1560
        %v2813 = vmul.f32 %v1689, %v1649
        %v2814 = vmul.f32 %v1778, %v1738
        %v2815 = vmul.f32 %v1867, %v1827
        %v2816 = vmul.f32 %v1956, %v1916
        %v2817 = vmul.f32 %v2045, %v2005
        %v2818 = vmul.f32 %v2134, %v2094
        %v2819 = vmul.f32 %v2223, %v2183
        %v2820 = vmul.f32 %v2312, %v2272
        %v2821 = vmul.f32 %v2401, %v2361
        %v2822 = vmul.f32 %v2490, %v2450
        %v2823 = vmul.f32 %v2579, %v2539
        %v2824 = vmul.f32 %v2668, %v2628
        %v2825 = vmul.f32 %v2757, %v2717
        %v2826 = vmul.f32 %v1425, %v1385
        %v2827 = vmul.f32 %v1514, %v1474
        %v2828 = vmul.f32 %v1603, %v1563
        %v2829 = vmul.f32 %v1692, %v1652
        %v2830 = vmul.f32 %v1781, %v1741
        %v2831 = vmul.f32 %v1870, %v1830
        %v2832 = vmul.f32 %v1959, %v1919
        %v2833 = vmul.f32 %v2048, %v2008
        %v2834 = vmul.f32 %v2137, %v2097
        %v2835 = vmul.f32 %v2226, %v2186
        %v2836 = vmul.f32 %v2315, %v2275
        %v2837 = vmul.f32 %v2404, %v2364
        %v2838 = vmul.f32 %v2493, %v2453
        %v2839 = vmul.f32 %v2582, %v2542
        %v2840 = vmul.f32 %v2671, %v2631
        %v2841 = vmul.f32 %v2760, %v2720
        %v2842 = vmul.f32 %v1427, %v1387
        %v2843 = vmul.f32 %v1516, %v1476
        %v2844 = vmul.f32 %v1605, %v1565
        %v2845 = vmul.f32 %v1694, %v1654
        %v2846 = vmul.f32 %v1783, %v1743
        %v2847 = vmul.f32 %v1872, %v1832
        %v2848 = vmul.f32 %v1961, %v1921
        %v2849 = vmul.f32 %v2050, %v2010
        %v2850 = vmul.f32 %v2139, %v2099
        %v2851 = vmul.f32 %v2228, %v2188
        %v2852 = vmul.f32 %v2317, %v2277
        %v2853 = vmul.f32 %v2406, %v2366
        %v2854 = vmul.f32 %v2495, %v2455
        %v2855 = vmul.f32 %v2584, %v2544
        %v2856 = vmul.f32 %v2673, %v2633
        %v2857 = vmul.f32 %v2762, %v2722
        %v2858 = vmul.f32 %v1430, %v1390
        %v2859 = vmul.f32 %v1519, %v1479
        %v2860 = vmul.f32 %v1608, %v1568
        %v2861 = vmul.f32 %v1697, %v1657
        %v2862 = vmul.f32 %v1786, %v1746
        %v2863 = vmul.f32 %v1875, %v1835
        %v2864 = vmul.f32 %v1964, %v1924
        %v2865 = vmul.f32 %v2053, %v2013
        %v2866 = vmul.f32 %v2142, %v2102
        %v2867 = vmul.f32 %v2231, %v2191
        %v2868 = vmul.f32 %v2320, %v2280
        %v2869 = vmul.f32 %v2409, %v2369
        %v2870 = vmul.f32 %v2498, %v2458
        %v2871 = vmul.f32 %v2587, %v2547
        %v2872 = vmul.f32 %v2676, %v2636
        %v2873 = vmul.f32 %v2765, %v2725
        %v2874 = vmul.f32 %v1432, %v1392
        %v2875 = vmul.f32 %v1521, %v1481
        %v2876 = vmul.f32 %v1610, %v1570
        %v2877 = vmul.f32 %v1699, %v1659
        %v2878 = vmul.f32 %v1788, %v1748
        %v2879 = vmul.f32 %v1877, %v1837
        %v2880 = vmul.f32 %v1966, %v1926
        %v2881 = vmul.f32 %v2055, %v2015
        %v2882 = vmul.f32 %v2144, %v2104
        %v2883 = vmul.f32 %v2233, %v2193
        %v2884 = vmul.f32 %v2322, %v2282
        %v2885 = vmul.f32 %v2411, %v2371
        %v2886 = vmul.f32 %v2500, %v2460
        %v2887 = vmul.f32 %v2589, %v2549
        %v2888 = vmul.f32 %v2678, %v2638
        %v2889 = vmul.f32 %v2767, %v2727
        %v2890 = vmul.f32 %v1435, %v1395
        %v2891 = vmul.f32 %v1524, %v1484
        %v2892 = vmul.f32 %v1613, %v1573
        %v2893 = vmul.f32 %v1702, %v1662
        %v2894 = vmul.f32 %v1791, %v1751
        %v2895 = vmul.f32 %v1880, %v1840
        %v2896 = vmul.f32 %v1969, %v1929
        %v2897 = vmul.f32 %v2058, %v2018
        %v2898 = vmul.f32 %v2147, %v2107
        %v2899 = vmul.f32 %v2236, %v2196
        %v2900 = vmul.f32 %v2325, %v2285
        %v2901 = vmul.f32 %v2414, %v2374
        %v2902 = vmul.f32 %v2503, %v2463
        %v2903 = vmul.f32 %v2592, %v2552
        %v2904 = vmul.f32 %v2681, %v2641
        %v2905 = vmul.f32 %v2770, %v2730
        %v2906 = vmul.f32 %v1437, %v1397
        %v2907 = vmul.f32 %v1526, %v1486
        %v2908 = vmul.f32 %v1615, %v1575
        %v2909 = vmul.f32 %v1704, %v1664
        %v2910 = vmul.f32 %v1793, %v1753
        %v2911 = vmul.f32 %v1882, %v1842
        %v2912 = vmul.f32 %v1971, %v1931
        %v2913 = vmul.f32 %v2060, %v2020
        %v2914 = vmul.f32 %v2149, %v2109
        %v2915 = vmul.f32 %v2238, %v2198
        %v2916 = vmul.f32 %v2327, %v2287
        %v2917 = vmul.f32 %v2416, %v2376
        %v2918 = vmul.f32 %v2505, %v2465
        %v2919 = vmul.f32 %v2594, %v2554
        %v2920 = vmul.f32 %v2683, %v2643
        %v2921 = vmul.f32 %v2772, %v2732
        %v2922 = vmul.f32 %v1440, %v1400
        %v2923 = vmul.f32 %v1529, %v1489
        %v2924 = vmul.f32 %v1618, %v1578
        %v2925 = vmul.f32 %v1707, %v1667
        %v2926 = vmul.f32 %v1796, %v1756
        %v2927 = vmul.f32 %v1885, %v1845
        %v2928 = vmul.f32 %v1974, %v1934
        %v2929 = vmul.f32 %v2063, %v2023
        %v2930 = vmul.f32 %v2152, %v2112
        %v2931 = vmul.f32 %v2241, %v2201
        %v2932 = vmul.f32 %v2330, %v2290
        %v2933 = vmul.f32 %v2419, %v2379
        %v2934 = vmul.f32 %v2508, %v2468
        %v2935 = vmul.f32 %v2597, %v2557
        %v2936 = vmul.f32 %v2686, %v2646
        %v2937 = vmul.f32 %v2775, %v2735
        %v2938 = vmul.f32 %v1442, %v1402
        %v2939 = vmul.f32 %v1531, %v1491
        %v2940 = vmul.f32 %v1620, %v1580
        %v2941 = vmul.f32 %v1709, %v1669
        %v2942 = vmul.f32 %v1798, %v1758
        %v2943 = vmul.f32 %v1887, %v1847
        %v2944 = vmul.f32 %v1976, %v1936
        %v2945 = vmul.f32 %v2065, %v2025
        %v2946 = vmul.f32 %v2154, %v2114
        %v2947 = vmul.f32 %v2243, %v2203
        %v2948 = vmul.f32 %v2332, %v2292
        %v2949 = vmul.f32 %v2421, %v2381
        %v2950 = vmul.f32 %v2510, %v2470
        %v2951 = vmul.f32 %v2599, %v2559
        %v2952 = vmul.f32 %v2688, %v2648
        %v2953 = vmul.f32 %v2777, %v2737
        %v2954 = vmul.f32 %v1445, %v1405
        %v2955 = vmul.f32 %v1534, %v1494
        %v2956 = vmul.f32 %v1623, %v1583
        %v2957 = vmul.f32 %v1712, %v1672
        %v2958 = vmul.f32 %v1801, %v1761
        %v2959 = vmul.f32 %v1890, %v1850
        %v2960 = vmul.f32 %v1979, %v1939
        %v2961 = vmul.f32 %v2068, %v2028
        %v2962 = vmul.f32 %v2157, %v2117
        %v2963 = vmul.f32 %v2246, %v2206
        %v2964 = vmul.f32 %v2335, %v2295
        %v2965 = vmul.f32 %v2424, %v2384
        %v2966 = vmul.f32 %v2513, %v2473
        %v2967 = vmul.f32 %v2602, %v2562
        %v2968 = vmul.f32 %v2691, %v2651
        %v2969 = vmul.f32 %v2780, %v2740
        %v2970 = vmul.f32 %v1447, %v1407
        %v2971 = vmul.f32 %v1536, %v1496
        %v2972 = vmul.f32 %v1625, %v1585
        %v2973 = vmul.f32 %v1714, %v1674
        %v2974 = vmul.f32 %v1803, %v1763
        %v2975 = vmul.f32 %v1892, %v1852
        %v2976 = vmul.f32 %v1981, %v1941
        %v2977 = vmul.f32 %v2070, %v2030
        %v2978 = vmul.f32 %v2159, %v2119
        %v2979 = vmul.f32 %v2248, %v2208
        %v2980 = vmul.f32 %v2337, %v2297
        %v2981 = vmul.f32 %v2426, %v2386
        %v2982 = vmul.f32 %v2515, %v2475
        %v2983 = vmul.f32 %v2604, %v2564
        %v2984 = vmul.f32 %v2693, %v2653
        %v2985 = vmul.f32 %v2782, %v2742
        %v2986 = vmul.f32 %v1450, %v1410
        %v2987 = vmul.f32 %v1539, %v1499
        %v2988 = vmul.f32 %v1628, %v1588
        %v2989 = vmul.f32 %v1717, %v1677
        %v2990 = vmul.f32 %v1806, %v1766
        %v2991 = vmul.f32 %v1895, %v1855
        %v2992 = vmul.f32 %v1984, %v1944
        %v2993 = vmul.f32 %v2073, %v2033
        %v2994 = vmul.f32 %v2162, %v2122
        %v2995 = vmul.f32 %v2251, %v2211
        %v2996 = vmul.f32 %v2340, %v2300
        %v2997 = vmul.f32 %v2429, %v2389
        %v2998 = vmul.f32 %v2518, %v2478
        %v2999 = vmul.f32 %v2607, %v2567
        %v3000 = vmul.f32 %v2696, %v2656
        %v3001 = vmul.f32 %v2785, %v2745
        %v3002 = vmul.f32 %v1452, %v1412
        %v3003 = vmul.f32 %v1541, %v1501
        %v3004 = vmul.f32 %v1630, %v1590
        %v3005 = vmul.f32 %v1719, %v1679
        %v3006 = vmul.f32 %v1808, %v1768
        %v3007 = vmul.f32 %v1897, %v1857
        %v3008 = vmul.f32 %v1986, %v1946
        %v3009 = vmul.f32 %v2075, %v2035
        %v3010 = vmul.f32 %v2164, %v2124
        %v3011 = vmul.f32 %v2253, %v2213
        %v3012 = vmul.f32 %v2342, %v2302
        %v3013 = vmul.f32 %v2431, %v2391
        %v3014 = vmul.f32 %v2520, %v2480
        %v3015 = vmul.f32 %v2609, %v2569
        %v3016 = vmul.f32 %v2698, %v2658
        %v3017 = vmul.f32 %v2787, %v2747
        %v3018 = vmul.f32 %v1455, %v1415
        %v3019 = vmul.f32 %v1544, %v1504
        %v3020 = vmul.f32 %v1633, %v1593
        %v3021 = vmul.f32 %v1722, %v1682
        %v3022 = vmul.f32 %v1811, %v1771
        %v3023 = vmul.f32 %v1900, %v1860
        %v3024 = vmul.f32 %v1989, %v1949
        %v3025 = vmul.f32 %v2078, %v2038
        %v3026 = vmul.f32 %v2167, %v2127
        %v3027 = vmul.f32 %v2256, %v2216
        %v3028 = vmul.f32 %v2345, %v2305
        %v3029 = vmul.f32 %v2434, %v2394
        %v3030 = vmul.f32 %v2523, %v2483
        %v3031 = vmul.f32 %v2612, %v2572
        %v3032 = vmul.f32 %v2701, %v2661
        %v3033 = vmul.f32 %v2790, %v2750
        %v3034 = vmul.f32 %v1457, %v1417
        %v3035 = vmul.f32 %v1546, %v1506
        %v3036 = vmul.f32 %v1635, %v1595
        %v3037 = vmul.f32 %v1724, %v1684
        %v3038 = vmul.f32 %v1813, %v1773
        %v3039 = vmul.f32 %v1902, %v1862
        %v3040 = vmul.f32 %v1991, %v1951
        %v3041 = vmul.f32 %v2080, %v2040
        %v3042 = vmul.f32 %v2169, %v2129
        %v3043 = vmul.f32 %v2258, %v2218
        %v3044 = vmul.f32 %v2347, %v2307
        %v3045 = vmul.f32 %v2436, %v2396
        %v3046 = vmul.f32 %v2525, %v2485
        %v3047 = vmul.f32 %v2614, %v2574
        %v3048 = vmul.f32 %v2703, %v2663
        %v3049 = vmul.f32 %v2792, %v2752
        %v3050 = vpack.c.bf16 %v2810, %v2794
        %v3051 = vpack.c.bf16 %v2811, %v2795
        %v3052 = vpack.c.bf16 %v2812, %v2796
        %v3053 = vpack.c.bf16 %v2813, %v2797
        %v3054 = vpack.c.bf16 %v2814, %v2798
        %v3055 = vpack.c.bf16 %v2815, %v2799
        %v3056 = vpack.c.bf16 %v2816, %v2800
        %v3057 = vpack.c.bf16 %v2817, %v2801
        %v3058 = vpack.c.bf16 %v2818, %v2802
        %v3059 = vpack.c.bf16 %v2819, %v2803
        %v3060 = vpack.c.bf16 %v2820, %v2804
        %v3061 = vpack.c.bf16 %v2821, %v2805
        %v3062 = vpack.c.bf16 %v2822, %v2806
        %v3063 = vpack.c.bf16 %v2823, %v2807
        %v3064 = vpack.c.bf16 %v2824, %v2808
        %v3065 = vpack.c.bf16 %v2825, %v2809
        %v3066 = vpack.c.bf16 %v2842, %v2826
        %v3067 = vpack.c.bf16 %v2843, %v2827
        %v3068 = vpack.c.bf16 %v2844, %v2828
        %v3069 = vpack.c.bf16 %v2845, %v2829
        %v3070 = vpack.c.bf16 %v2846, %v2830
        %v3071 = vpack.c.bf16 %v2847, %v2831
        %v3072 = vpack.c.bf16 %v2848, %v2832
        %v3073 = vpack.c.bf16 %v2849, %v2833
        %v3074 = vpack.c.bf16 %v2850, %v2834
        %v3075 = vpack.c.bf16 %v2851, %v2835
        %v3076 = vpack.c.bf16 %v2852, %v2836
        %v3077 = vpack.c.bf16 %v2853, %v2837
        %v3078 = vpack.c.bf16 %v2854, %v2838
        %v3079 = vpack.c.bf16 %v2855, %v2839
        %v3080 = vpack.c.bf16 %v2856, %v2840
        %v3081 = vpack.c.bf16 %v2857, %v2841
        %v3082 = vpack.c.bf16 %v2874, %v2858
        %v3083 = vpack.c.bf16 %v2875, %v2859
        %v3084 = vpack.c.bf16 %v2876, %v2860
        %v3085 = vpack.c.bf16 %v2877, %v2861
        %v3086 = vpack.c.bf16 %v2878, %v2862
        %v3087 = vpack.c.bf16 %v2879, %v2863
        %v3088 = vpack.c.bf16 %v2880, %v2864
        %v3089 = vpack.c.bf16 %v2881, %v2865
        %v3090 = vpack.c.bf16 %v2882, %v2866
        %v3091 = vpack.c.bf16 %v2883, %v2867
        %v3092 = vpack.c.bf16 %v2884, %v2868
        %v3093 = vpack.c.bf16 %v2885, %v2869
        %v3094 = vpack.c.bf16 %v2886, %v2870
        %v3095 = vpack.c.bf16 %v2887, %v2871
        %v3096 = vpack.c.bf16 %v2888, %v2872
        %v3097 = vpack.c.bf16 %v2889, %v2873
        %v3098 = vpack.c.bf16 %v2906, %v2890
        %v3099 = vpack.c.bf16 %v2907, %v2891
        %v3100 = vpack.c.bf16 %v2908, %v2892
        %v3101 = vpack.c.bf16 %v2909, %v2893
        %v3102 = vpack.c.bf16 %v2910, %v2894
        %v3103 = vpack.c.bf16 %v2911, %v2895
        %v3104 = vpack.c.bf16 %v2912, %v2896
        %v3105 = vpack.c.bf16 %v2913, %v2897
        %v3106 = vpack.c.bf16 %v2914, %v2898
        %v3107 = vpack.c.bf16 %v2915, %v2899
        %v3108 = vpack.c.bf16 %v2916, %v2900
        %v3109 = vpack.c.bf16 %v2917, %v2901
        %v3110 = vpack.c.bf16 %v2918, %v2902
        %v3111 = vpack.c.bf16 %v2919, %v2903
        %v3112 = vpack.c.bf16 %v2920, %v2904
        %v3113 = vpack.c.bf16 %v2921, %v2905
        %v3114 = vpack.c.bf16 %v2938, %v2922
        %v3115 = vpack.c.bf16 %v2939, %v2923
        %v3116 = vpack.c.bf16 %v2940, %v2924
        %v3117 = vpack.c.bf16 %v2941, %v2925
        %v3118 = vpack.c.bf16 %v2942, %v2926
        %v3119 = vpack.c.bf16 %v2943, %v2927
        %v3120 = vpack.c.bf16 %v2944, %v2928
        %v3121 = vpack.c.bf16 %v2945, %v2929
        %v3122 = vpack.c.bf16 %v2946, %v2930
        %v3123 = vpack.c.bf16 %v2947, %v2931
        %v3124 = vpack.c.bf16 %v2948, %v2932
        %v3125 = vpack.c.bf16 %v2949, %v2933
        %v3126 = vpack.c.bf16 %v2950, %v2934
        %v3127 = vpack.c.bf16 %v2951, %v2935
        %v3128 = vpack.c.bf16 %v2952, %v2936
        %v3129 = vpack.c.bf16 %v2953, %v2937
        %v3130 = vpack.c.bf16 %v2970, %v2954
        %v3131 = vpack.c.bf16 %v2971, %v2955
        %v3132 = vpack.c.bf16 %v2972, %v2956
        %v3133 = vpack.c.bf16 %v2973, %v2957
        %v3134 = vpack.c.bf16 %v2974, %v2958
        %v3135 = vpack.c.bf16 %v2975, %v2959
        %v3136 = vpack.c.bf16 %v2976, %v2960
        %v3137 = vpack.c.bf16 %v2977, %v2961
        %v3138 = vpack.c.bf16 %v2978, %v2962
        %v3139 = vpack.c.bf16 %v2979, %v2963
        %v3140 = vpack.c.bf16 %v2980, %v2964
        %v3141 = vpack.c.bf16 %v2981, %v2965
        %v3142 = vpack.c.bf16 %v2982, %v2966
        %v3143 = vpack.c.bf16 %v2983, %v2967
        %v3144 = vpack.c.bf16 %v2984, %v2968
        %v3145 = vpack.c.bf16 %v2985, %v2969
        %v3146 = vpack.c.bf16 %v3002, %v2986
        %v3147 = vpack.c.bf16 %v3003, %v2987
        %v3148 = vpack.c.bf16 %v3004, %v2988
        %v3149 = vpack.c.bf16 %v3005, %v2989
        %v3150 = vpack.c.bf16 %v3006, %v2990
        %v3151 = vpack.c.bf16 %v3007, %v2991
        %v3152 = vpack.c.bf16 %v3008, %v2992
        %v3153 = vpack.c.bf16 %v3009, %v2993
        %v3154 = vpack.c.bf16 %v3010, %v2994
        %v3155 = vpack.c.bf16 %v3011, %v2995
        %v3156 = vpack.c.bf16 %v3012, %v2996
        %v3157 = vpack.c.bf16 %v3013, %v2997
        %v3158 = vpack.c.bf16 %v3014, %v2998
        %v3159 = vpack.c.bf16 %v3015, %v2999
        %v3160 = vpack.c.bf16 %v3016, %v3000
        %v3161 = vpack.c.bf16 %v3017, %v3001
        %v3162 = vpack.c.bf16 %v3034, %v3018
        %v3163 = vpack.c.bf16 %v3035, %v3019
        %v3164 = vpack.c.bf16 %v3036, %v3020
        %v3165 = vpack.c.bf16 %v3037, %v3021
        %v3166 = vpack.c.bf16 %v3038, %v3022
        %v3167 = vpack.c.bf16 %v3039, %v3023
        %v3168 = vpack.c.bf16 %v3040, %v3024
        %v3169 = vpack.c.bf16 %v3041, %v3025
        %v3170 = vpack.c.bf16 %v3042, %v3026
        %v3171 = vpack.c.bf16 %v3043, %v3027
        %v3172 = vpack.c.bf16 %v3044, %v3028
        %v3173 = vpack.c.bf16 %v3045, %v3029
        %v3174 = vpack.c.bf16 %v3046, %v3030
        %v3175 = vpack.c.bf16 %v3047, %v3031
        %v3176 = vpack.c.bf16 %v3048, %v3032
        %v3177 = vpack.c.bf16 %v3049, %v3033
        %v3178 = vld [vmem:[%s4] sm:$0xf]
        %v3179 = vld [vmem:[%s4 + $0x4] sm:$0xf]
        %v3180 = vld [vmem:[%s4 + $0x8] sm:$0xf]
        %v3181 = vld [vmem:[%s4 + $0xc] sm:$0xf]
        %v3186 = vunpack.c.l.b16 %v3178
        %v3187 = vunpack.c.l.b16 %v3179
        %v3188 = vunpack.c.l.b16 %v3180
        %v3189 = vunpack.c.l.b16 %v3181
        %v3190 = vpack.c.b16 %v3187, %v3186
        %v3191 = vpack.c.b16 %v3189, %v3188
        %3194 = vmatpush.bf16.msra.mxu0 %v3162
        %3195 = vmatpush.bf16.msra.mxu0 %v3146
        %3196 = vmatpush.bf16.msra.mxu0 %v3130
        %3197 = vmatpush.bf16.msra.mxu0 %v3114
        %3198 = vmatpush.bf16.msra.mxu0 %v3098
        %3199 = vmatpush.bf16.msra.mxu0 %v3082
        %3200 = vmatpush.bf16.msra.mxu0 %v3066
        %3201 = vmatpush.bf16.msra.mxu0 %v3050
        %3202 = vmatmul.bf16.gmra.mxu0 %v3190
        %v3203 = vpop.f32.mrf.mxu0
        %v3204 = vadd.f32 0.0, %v3203
        %v3205 = vpop.f32.mrf.mxu0
        %v3206 = vadd.f32 0.0, %v3205
        %3207 = vmatmul.bf16.gmra.mxu0 %v3191
        %v3208 = vpop.f32.mrf.mxu0
        %v3209 = vadd.f32 0.0, %v3208
        %v3210 = vpop.f32.mrf.mxu0
        %v3211 = vadd.f32 0.0, %v3210
        %3212 = vdwg.mxu0
        %3213 = vmatpush.bf16.msra.mxu0 %v3163
        %3214 = vmatpush.bf16.msra.mxu0 %v3147
        %3215 = vmatpush.bf16.msra.mxu0 %v3131
        %3216 = vmatpush.bf16.msra.mxu0 %v3115
        %3217 = vmatpush.bf16.msra.mxu0 %v3099
        %3218 = vmatpush.bf16.msra.mxu0 %v3083
        %3219 = vmatpush.bf16.msra.mxu0 %v3067
        %3220 = vmatpush.bf16.msra.mxu0 %v3051
        %3221 = vmatmul.bf16.gmra.mxu0 %v3190
        %v3222 = vpop.f32.mrf.mxu0
        %v3223 = vadd.f32 0.0, %v3222
        %v3224 = vpop.f32.mrf.mxu0
        %v3225 = vadd.f32 0.0, %v3224
        %3226 = vmatmul.bf16.gmra.mxu0 %v3191
        %v3227 = vpop.f32.mrf.mxu0
        %v3228 = vadd.f32 0.0, %v3227
        %v3229 = vpop.f32.mrf.mxu0
        %v3230 = vadd.f32 0.0, %v3229
        %3231 = vdwg.mxu0
        %3232 = vmatpush.bf16.msra.mxu0 %v3164
        %3233 = vmatpush.bf16.msra.mxu0 %v3148
        %3234 = vmatpush.bf16.msra.mxu0 %v3132
        %3235 = vmatpush.bf16.msra.mxu0 %v3116
        %3236 = vmatpush.bf16.msra.mxu0 %v3100
        %3237 = vmatpush.bf16.msra.mxu0 %v3084
        %3238 = vmatpush.bf16.msra.mxu0 %v3068
        %3239 = vmatpush.bf16.msra.mxu0 %v3052
        %3240 = vmatmul.bf16.gmra.mxu0 %v3190
        %v3241 = vpop.f32.mrf.mxu0
        %v3242 = vadd.f32 0.0, %v3241
        %v3243 = vpop.f32.mrf.mxu0
        %v3244 = vadd.f32 0.0, %v3243
        %3245 = vmatmul.bf16.gmra.mxu0 %v3191
        %v3246 = vpop.f32.mrf.mxu0
        %v3247 = vadd.f32 0.0, %v3246
        %v3248 = vpop.f32.mrf.mxu0
        %v3249 = vadd.f32 0.0, %v3248
        %3250 = vdwg.mxu0
        %3251 = vmatpush.bf16.msra.mxu0 %v3165
        %3252 = vmatpush.bf16.msra.mxu0 %v3149
        %3253 = vmatpush.bf16.msra.mxu0 %v3133
        %3254 = vmatpush.bf16.msra.mxu0 %v3117
        %3255 = vmatpush.bf16.msra.mxu0 %v3101
        %3256 = vmatpush.bf16.msra.mxu0 %v3085
        %3257 = vmatpush.bf16.msra.mxu0 %v3069
        %3258 = vmatpush.bf16.msra.mxu0 %v3053
        %3259 = vmatmul.bf16.gmra.mxu0 %v3190
        %v3260 = vpop.f32.mrf.mxu0
        %v3261 = vadd.f32 0.0, %v3260
        %v3262 = vpop.f32.mrf.mxu0
        %v3263 = vadd.f32 0.0, %v3262
        %3264 = vmatmul.bf16.gmra.mxu0 %v3191
        %v3265 = vpop.f32.mrf.mxu0
        %v3266 = vadd.f32 0.0, %v3265
        %v3267 = vpop.f32.mrf.mxu0
        %v3268 = vadd.f32 0.0, %v3267
        %3269 = vdwg.mxu0
        %3270 = vmatpush.bf16.msra.mxu0 %v3166
        %3271 = vmatpush.bf16.msra.mxu0 %v3150
        %3272 = vmatpush.bf16.msra.mxu0 %v3134
        %3273 = vmatpush.bf16.msra.mxu0 %v3118
        %3274 = vmatpush.bf16.msra.mxu0 %v3102
        %3275 = vmatpush.bf16.msra.mxu0 %v3086
        %3276 = vmatpush.bf16.msra.mxu0 %v3070
        %3277 = vmatpush.bf16.msra.mxu0 %v3054
        %3278 = vmatmul.bf16.gmra.mxu0 %v3190
        %v3279 = vpop.f32.mrf.mxu0
        %v3280 = vadd.f32 0.0, %v3279
        %v3281 = vpop.f32.mrf.mxu0
        %v3282 = vadd.f32 0.0, %v3281
        %3283 = vmatmul.bf16.gmra.mxu0 %v3191
        %v3284 = vpop.f32.mrf.mxu0
        %v3285 = vadd.f32 0.0, %v3284
        %v3286 = vpop.f32.mrf.mxu0
        %v3287 = vadd.f32 0.0, %v3286
        %3288 = vdwg.mxu0
        %3289 = vmatpush.bf16.msra.mxu0 %v3167
        %3290 = vmatpush.bf16.msra.mxu0 %v3151
        %3291 = vmatpush.bf16.msra.mxu0 %v3135
        %3292 = vmatpush.bf16.msra.mxu0 %v3119
        %3293 = vmatpush.bf16.msra.mxu0 %v3103
        %3294 = vmatpush.bf16.msra.mxu0 %v3087
        %3295 = vmatpush.bf16.msra.mxu0 %v3071
        %3296 = vmatpush.bf16.msra.mxu0 %v3055
        %3297 = vmatmul.bf16.gmra.mxu0 %v3190
        %v3298 = vpop.f32.mrf.mxu0
        %v3299 = vadd.f32 0.0, %v3298
        %v3300 = vpop.f32.mrf.mxu0
        %v3301 = vadd.f32 0.0, %v3300
        %3302 = vmatmul.bf16.gmra.mxu0 %v3191
        %v3303 = vpop.f32.mrf.mxu0
        %v3304 = vadd.f32 0.0, %v3303
        %v3305 = vpop.f32.mrf.mxu0
        %v3306 = vadd.f32 0.0, %v3305
        %3307 = vdwg.mxu0
        %3308 = vmatpush.bf16.msra.mxu0 %v3168
        %3309 = vmatpush.bf16.msra.mxu0 %v3152
        %3310 = vmatpush.bf16.msra.mxu0 %v3136
        %3311 = vmatpush.bf16.msra.mxu0 %v3120
        %3312 = vmatpush.bf16.msra.mxu0 %v3104
        %3313 = vmatpush.bf16.msra.mxu0 %v3088
        %3314 = vmatpush.bf16.msra.mxu0 %v3072
        %3315 = vmatpush.bf16.msra.mxu0 %v3056
        %3316 = vmatmul.bf16.gmra.mxu0 %v3190
        %v3317 = vpop.f32.mrf.mxu0
        %v3318 = vadd.f32 0.0, %v3317
        %v3319 = vpop.f32.mrf.mxu0
        %v3320 = vadd.f32 0.0, %v3319
        %3321 = vmatmul.bf16.gmra.mxu0 %v3191
        %v3322 = vpop.f32.mrf.mxu0
        %v3323 = vadd.f32 0.0, %v3322
        %v3324 = vpop.f32.mrf.mxu0
        %v3325 = vadd.f32 0.0, %v3324
        %3326 = vdwg.mxu0
        %3327 = vmatpush.bf16.msra.mxu0 %v3169
        %3328 = vmatpush.bf16.msra.mxu0 %v3153
        %3329 = vmatpush.bf16.msra.mxu0 %v3137
        %3330 = vmatpush.bf16.msra.mxu0 %v3121
        %3331 = vmatpush.bf16.msra.mxu0 %v3105
        %3332 = vmatpush.bf16.msra.mxu0 %v3089
        %3333 = vmatpush.bf16.msra.mxu0 %v3073
        %3334 = vmatpush.bf16.msra.mxu0 %v3057
        %3335 = vmatmul.bf16.gmra.mxu0 %v3190
        %v3336 = vpop.f32.mrf.mxu0
        %v3337 = vadd.f32 0.0, %v3336
        %v3338 = vpop.f32.mrf.mxu0
        %v3339 = vadd.f32 0.0, %v3338
        %3340 = vmatmul.bf16.gmra.mxu0 %v3191
        %v3341 = vpop.f32.mrf.mxu0
        %v3342 = vadd.f32 0.0, %v3341
        %v3343 = vpop.f32.mrf.mxu0
        %v3344 = vadd.f32 0.0, %v3343
        %3345 = vdwg.mxu0
        %3346 = vmatpush.bf16.msra.mxu0 %v3170
        %3347 = vmatpush.bf16.msra.mxu0 %v3154
        %3348 = vmatpush.bf16.msra.mxu0 %v3138
        %3349 = vmatpush.bf16.msra.mxu0 %v3122
        %3350 = vmatpush.bf16.msra.mxu0 %v3106
        %3351 = vmatpush.bf16.msra.mxu0 %v3090
        %3352 = vmatpush.bf16.msra.mxu0 %v3074
        %3353 = vmatpush.bf16.msra.mxu0 %v3058
        %3354 = vmatmul.bf16.gmra.mxu0 %v3190
        %v3355 = vpop.f32.mrf.mxu0
        %v3356 = vadd.f32 0.0, %v3355
        %v3357 = vpop.f32.mrf.mxu0
        %v3358 = vadd.f32 0.0, %v3357
        %3359 = vmatmul.bf16.gmra.mxu0 %v3191
        %v3360 = vpop.f32.mrf.mxu0
        %v3361 = vadd.f32 0.0, %v3360
        %v3362 = vpop.f32.mrf.mxu0
        %v3363 = vadd.f32 0.0, %v3362
        %3364 = vdwg.mxu0
        %3365 = vmatpush.bf16.msra.mxu0 %v3171
        %3366 = vmatpush.bf16.msra.mxu0 %v3155
        %3367 = vmatpush.bf16.msra.mxu0 %v3139
        %3368 = vmatpush.bf16.msra.mxu0 %v3123
        %3369 = vmatpush.bf16.msra.mxu0 %v3107
        %3370 = vmatpush.bf16.msra.mxu0 %v3091
        %3371 = vmatpush.bf16.msra.mxu0 %v3075
        %3372 = vmatpush.bf16.msra.mxu0 %v3059
        %3373 = vmatmul.bf16.gmra.mxu0 %v3190
        %v3374 = vpop.f32.mrf.mxu0
        %v3375 = vadd.f32 0.0, %v3374
        %v3376 = vpop.f32.mrf.mxu0
        %v3377 = vadd.f32 0.0, %v3376
        %3378 = vmatmul.bf16.gmra.mxu0 %v3191
        %v3379 = vpop.f32.mrf.mxu0
        %v3380 = vadd.f32 0.0, %v3379
        %v3381 = vpop.f32.mrf.mxu0
        %v3382 = vadd.f32 0.0, %v3381
        %3383 = vdwg.mxu0
        %3384 = vmatpush.bf16.msra.mxu0 %v3172
        %3385 = vmatpush.bf16.msra.mxu0 %v3156
        %3386 = vmatpush.bf16.msra.mxu0 %v3140
        %3387 = vmatpush.bf16.msra.mxu0 %v3124
        %3388 = vmatpush.bf16.msra.mxu0 %v3108
        %3389 = vmatpush.bf16.msra.mxu0 %v3092
        %3390 = vmatpush.bf16.msra.mxu0 %v3076
        %3391 = vmatpush.bf16.msra.mxu0 %v3060
        %3392 = vmatmul.bf16.gmra.mxu0 %v3190
        %v3393 = vpop.f32.mrf.mxu0
        %v3394 = vadd.f32 0.0, %v3393
        %v3395 = vpop.f32.mrf.mxu0
        %v3396 = vadd.f32 0.0, %v3395
        %3397 = vmatmul.bf16.gmra.mxu0 %v3191
        %v3398 = vpop.f32.mrf.mxu0
        %v3399 = vadd.f32 0.0, %v3398
        %v3400 = vpop.f32.mrf.mxu0
        %v3401 = vadd.f32 0.0, %v3400
        %3402 = vdwg.mxu0
        %3403 = vmatpush.bf16.msra.mxu0 %v3173
        %3404 = vmatpush.bf16.msra.mxu0 %v3157
        %3405 = vmatpush.bf16.msra.mxu0 %v3141
        %3406 = vmatpush.bf16.msra.mxu0 %v3125
        %3407 = vmatpush.bf16.msra.mxu0 %v3109
        %3408 = vmatpush.bf16.msra.mxu0 %v3093
        %3409 = vmatpush.bf16.msra.mxu0 %v3077
        %3410 = vmatpush.bf16.msra.mxu0 %v3061
        %3411 = vmatmul.bf16.gmra.mxu0 %v3190
        %v3412 = vpop.f32.mrf.mxu0
        %v3413 = vadd.f32 0.0, %v3412
        %v3414 = vpop.f32.mrf.mxu0
        %v3415 = vadd.f32 0.0, %v3414
        %3416 = vmatmul.bf16.gmra.mxu0 %v3191
        %v3417 = vpop.f32.mrf.mxu0
        %v3418 = vadd.f32 0.0, %v3417
        %v3419 = vpop.f32.mrf.mxu0
        %v3420 = vadd.f32 0.0, %v3419
        %3421 = vdwg.mxu0
        %3422 = vmatpush.bf16.msra.mxu0 %v3174
        %3423 = vmatpush.bf16.msra.mxu0 %v3158
        %3424 = vmatpush.bf16.msra.mxu0 %v3142
        %3425 = vmatpush.bf16.msra.mxu0 %v3126
        %3426 = vmatpush.bf16.msra.mxu0 %v3110
        %3427 = vmatpush.bf16.msra.mxu0 %v3094
        %3428 = vmatpush.bf16.msra.mxu0 %v3078
        %3429 = vmatpush.bf16.msra.mxu0 %v3062
        %3430 = vmatmul.bf16.gmra.mxu0 %v3190
        %v3431 = vpop.f32.mrf.mxu0
        %v3432 = vadd.f32 0.0, %v3431
        %v3433 = vpop.f32.mrf.mxu0
        %v3434 = vadd.f32 0.0, %v3433
        %3435 = vmatmul.bf16.gmra.mxu0 %v3191
        %v3436 = vpop.f32.mrf.mxu0
        %v3437 = vadd.f32 0.0, %v3436
        %v3438 = vpop.f32.mrf.mxu0
        %v3439 = vadd.f32 0.0, %v3438
        %3440 = vdwg.mxu0
        %3441 = vmatpush.bf16.msra.mxu0 %v3175
        %3442 = vmatpush.bf16.msra.mxu0 %v3159
        %3443 = vmatpush.bf16.msra.mxu0 %v3143
        %3444 = vmatpush.bf16.msra.mxu0 %v3127
        %3445 = vmatpush.bf16.msra.mxu0 %v3111
        %3446 = vmatpush.bf16.msra.mxu0 %v3095
        %3447 = vmatpush.bf16.msra.mxu0 %v3079
        %3448 = vmatpush.bf16.msra.mxu0 %v3063
        %3449 = vmatmul.bf16.gmra.mxu0 %v3190
        %v3450 = vpop.f32.mrf.mxu0
        %v3451 = vadd.f32 0.0, %v3450
        %v3452 = vpop.f32.mrf.mxu0
        %v3453 = vadd.f32 0.0, %v3452
        %3454 = vmatmul.bf16.gmra.mxu0 %v3191
        %v3455 = vpop.f32.mrf.mxu0
        %v3456 = vadd.f32 0.0, %v3455
        %v3457 = vpop.f32.mrf.mxu0
        %v3458 = vadd.f32 0.0, %v3457
        %3459 = vdwg.mxu0
        %3460 = vmatpush.bf16.msra.mxu0 %v3176
        %3461 = vmatpush.bf16.msra.mxu0 %v3160
        %3462 = vmatpush.bf16.msra.mxu0 %v3144
        %3463 = vmatpush.bf16.msra.mxu0 %v3128
        %3464 = vmatpush.bf16.msra.mxu0 %v3112
        %3465 = vmatpush.bf16.msra.mxu0 %v3096
        %3466 = vmatpush.bf16.msra.mxu0 %v3080
        %3467 = vmatpush.bf16.msra.mxu0 %v3064
        %3468 = vmatmul.bf16.gmra.mxu0 %v3190
        %v3469 = vpop.f32.mrf.mxu0
        %v3470 = vadd.f32 0.0, %v3469
        %v3471 = vpop.f32.mrf.mxu0
        %v3472 = vadd.f32 0.0, %v3471
        %3473 = vmatmul.bf16.gmra.mxu0 %v3191
        %v3474 = vpop.f32.mrf.mxu0
        %v3475 = vadd.f32 0.0, %v3474
        %v3476 = vpop.f32.mrf.mxu0
        %v3477 = vadd.f32 0.0, %v3476
        %3478 = vdwg.mxu0
        %3479 = vmatpush.bf16.msra.mxu0 %v3177
        %3480 = vmatpush.bf16.msra.mxu0 %v3161
        %3481 = vmatpush.bf16.msra.mxu0 %v3145
        %3482 = vmatpush.bf16.msra.mxu0 %v3129
        %3483 = vmatpush.bf16.msra.mxu0 %v3113
        %3484 = vmatpush.bf16.msra.mxu0 %v3097
        %3485 = vmatpush.bf16.msra.mxu0 %v3081
        %3486 = vmatpush.bf16.msra.mxu0 %v3065
        %3487 = vmatmul.bf16.gmra.mxu0 %v3190
        %v3488 = vpop.f32.mrf.mxu0
        %v3489 = vadd.f32 0.0, %v3488
        %v3490 = vpop.f32.mrf.mxu0
        %v3491 = vadd.f32 0.0, %v3490
        %3492 = vmatmul.bf16.gmra.mxu0 %v3191
        %v3493 = vpop.f32.mrf.mxu0
        %v3494 = vadd.f32 0.0, %v3493
        %v3495 = vpop.f32.mrf.mxu0
        %v3496 = vadd.f32 0.0, %v3495
        %3497 = vdwg.mxu0
        %v3498 = vld [vmem:[%s5] sm:$0xf]
        %3500 = vset.pattern.permute.xlu0 0
        %3501 = vperm.xlu0 %3500, %v616
        %v3502 = vpop.permute.xlu0 %3501
        %v3505 = vsel %vm1321, %v3498, 0
        %3507 = vmatpush.bf16.msra.mxu0 0
        %3508 = vmatpush.bf16.msra.mxu0 0
        %3509 = vmatpush.bf16.msra.mxu0 0
        %3510 = vmatpush.bf16.msra.mxu0 0
        %3511 = vmatpush.bf16.msra.mxu0 0
        %3512 = vmatpush.bf16.msra.mxu0 0
        %3513 = vmatpush.bf16.msra.mxu0 0
        %3514 = vmatpush.bf16.msra.mxu0 %v1193
        %3515 = vmatmul.bf16.gmra.mxu0 %v3505
        %v3516 = vpop.f32.mrf.mxu0
        %v3517 = vadd.f32 %v3502, %v3516
        %v3518 = vpop.f32.mrf.mxu0
        %3519 = vdwg.mxu0
        %3520 = vmatpush.bf16.msra.mxu0 0
        %3521 = vmatpush.bf16.msra.mxu0 0
        %3522 = vmatpush.bf16.msra.mxu0 0
        %3523 = vmatpush.bf16.msra.mxu0 0
        %3524 = vmatpush.bf16.msra.mxu0 0
        %3525 = vmatpush.bf16.msra.mxu0 0
        %3526 = vmatpush.bf16.msra.mxu0 0
        %3527 = vmatpush.bf16.msra.mxu0 %v1194
        %3528 = vmatmul.bf16.gmra.mxu0 %v3505
        %v3529 = vpop.f32.mrf.mxu0
        %v3530 = vadd.f32 %v3502, %v3529
        %v3531 = vpop.f32.mrf.mxu0
        %3532 = vdwg.mxu0
        %3533 = vmatpush.bf16.msra.mxu0 0
        %3534 = vmatpush.bf16.msra.mxu0 0
        %3535 = vmatpush.bf16.msra.mxu0 0
        %3536 = vmatpush.bf16.msra.mxu0 0
        %3537 = vmatpush.bf16.msra.mxu0 0
        %3538 = vmatpush.bf16.msra.mxu0 0
        %3539 = vmatpush.bf16.msra.mxu0 0
        %3540 = vmatpush.bf16.msra.mxu0 %v1195
        %3541 = vmatmul.bf16.gmra.mxu0 %v3505
        %v3542 = vpop.f32.mrf.mxu0
        %v3543 = vadd.f32 %v3502, %v3542
        %v3544 = vpop.f32.mrf.mxu0
        %3545 = vdwg.mxu0
        %3546 = vmatpush.bf16.msra.mxu0 0
        %3547 = vmatpush.bf16.msra.mxu0 0
        %3548 = vmatpush.bf16.msra.mxu0 0
        %3549 = vmatpush.bf16.msra.mxu0 0
        %3550 = vmatpush.bf16.msra.mxu0 0
        %3551 = vmatpush.bf16.msra.mxu0 0
        %3552 = vmatpush.bf16.msra.mxu0 0
        %3553 = vmatpush.bf16.msra.mxu0 %v1196
        %3554 = vmatmul.bf16.gmra.mxu0 %v3505
        %v3555 = vpop.f32.mrf.mxu0
        %v3556 = vadd.f32 %v3502, %v3555
        %v3557 = vpop.f32.mrf.mxu0
        %3558 = vdwg.mxu0
        %3559 = vmatpush.bf16.msra.mxu0 0
        %3560 = vmatpush.bf16.msra.mxu0 0
        %3561 = vmatpush.bf16.msra.mxu0 0
        %3562 = vmatpush.bf16.msra.mxu0 0
        %3563 = vmatpush.bf16.msra.mxu0 0
        %3564 = vmatpush.bf16.msra.mxu0 0
        %3565 = vmatpush.bf16.msra.mxu0 0
        %3566 = vmatpush.bf16.msra.mxu0 %v1197
        %3567 = vmatmul.bf16.gmra.mxu0 %v3505
        %v3568 = vpop.f32.mrf.mxu0
        %v3569 = vadd.f32 %v3502, %v3568
        %v3570 = vpop.f32.mrf.mxu0
        %3571 = vdwg.mxu0
        %3572 = vmatpush.bf16.msra.mxu0 0
        %3573 = vmatpush.bf16.msra.mxu0 0
        %3574 = vmatpush.bf16.msra.mxu0 0
        %3575 = vmatpush.bf16.msra.mxu0 0
        %3576 = vmatpush.bf16.msra.mxu0 0
        %3577 = vmatpush.bf16.msra.mxu0 0
        %3578 = vmatpush.bf16.msra.mxu0 0
        %3579 = vmatpush.bf16.msra.mxu0 %v1198
        %3580 = vmatmul.bf16.gmra.mxu0 %v3505
        %v3581 = vpop.f32.mrf.mxu0
        %v3582 = vadd.f32 %v3502, %v3581
        %v3583 = vpop.f32.mrf.mxu0
        %3584 = vdwg.mxu0
        %3585 = vmatpush.bf16.msra.mxu0 0
        %3586 = vmatpush.bf16.msra.mxu0 0
        %3587 = vmatpush.bf16.msra.mxu0 0
        %3588 = vmatpush.bf16.msra.mxu0 0
        %3589 = vmatpush.bf16.msra.mxu0 0
        %3590 = vmatpush.bf16.msra.mxu0 0
        %3591 = vmatpush.bf16.msra.mxu0 0
        %3592 = vmatpush.bf16.msra.mxu0 %v1199
        %3593 = vmatmul.bf16.gmra.mxu0 %v3505
        %v3594 = vpop.f32.mrf.mxu0
        %v3595 = vadd.f32 %v3502, %v3594
        %v3596 = vpop.f32.mrf.mxu0
        %3597 = vdwg.mxu0
        %3598 = vmatpush.bf16.msra.mxu0 0
        %3599 = vmatpush.bf16.msra.mxu0 0
        %3600 = vmatpush.bf16.msra.mxu0 0
        %3601 = vmatpush.bf16.msra.mxu0 0
        %3602 = vmatpush.bf16.msra.mxu0 0
        %3603 = vmatpush.bf16.msra.mxu0 0
        %3604 = vmatpush.bf16.msra.mxu0 0
        %3605 = vmatpush.bf16.msra.mxu0 %v1200
        %3606 = vmatmul.bf16.gmra.mxu0 %v3505
        %v3607 = vpop.f32.mrf.mxu0
        %v3608 = vadd.f32 %v3502, %v3607
        %v3609 = vpop.f32.mrf.mxu0
        %3610 = vdwg.mxu0
        %3611 = vmatpush.bf16.msra.mxu0 0
        %3612 = vmatpush.bf16.msra.mxu0 0
        %3613 = vmatpush.bf16.msra.mxu0 0
        %3614 = vmatpush.bf16.msra.mxu0 0
        %3615 = vmatpush.bf16.msra.mxu0 0
        %3616 = vmatpush.bf16.msra.mxu0 0
        %3617 = vmatpush.bf16.msra.mxu0 0
        %3618 = vmatpush.bf16.msra.mxu0 %v1201
        %3619 = vmatmul.bf16.gmra.mxu0 %v3505
        %v3620 = vpop.f32.mrf.mxu0
        %v3621 = vadd.f32 %v3502, %v3620
        %v3622 = vpop.f32.mrf.mxu0
        %3623 = vdwg.mxu0
        %3624 = vmatpush.bf16.msra.mxu0 0
        %3625 = vmatpush.bf16.msra.mxu0 0
        %3626 = vmatpush.bf16.msra.mxu0 0
        %3627 = vmatpush.bf16.msra.mxu0 0
        %3628 = vmatpush.bf16.msra.mxu0 0
        %3629 = vmatpush.bf16.msra.mxu0 0
        %3630 = vmatpush.bf16.msra.mxu0 0
        %3631 = vmatpush.bf16.msra.mxu0 %v1202
        %3632 = vmatmul.bf16.gmra.mxu0 %v3505
        %v3633 = vpop.f32.mrf.mxu0
        %v3634 = vadd.f32 %v3502, %v3633
        %v3635 = vpop.f32.mrf.mxu0
        %3636 = vdwg.mxu0
        %3637 = vmatpush.bf16.msra.mxu0 0
        %3638 = vmatpush.bf16.msra.mxu0 0
        %3639 = vmatpush.bf16.msra.mxu0 0
        %3640 = vmatpush.bf16.msra.mxu0 0
        %3641 = vmatpush.bf16.msra.mxu0 0
        %3642 = vmatpush.bf16.msra.mxu0 0
        %3643 = vmatpush.bf16.msra.mxu0 0
        %3644 = vmatpush.bf16.msra.mxu0 %v1203
        %3645 = vmatmul.bf16.gmra.mxu0 %v3505
        %v3646 = vpop.f32.mrf.mxu0
        %v3647 = vadd.f32 %v3502, %v3646
        %v3648 = vpop.f32.mrf.mxu0
        %3649 = vdwg.mxu0
        %3650 = vmatpush.bf16.msra.mxu0 0
        %3651 = vmatpush.bf16.msra.mxu0 0
        %3652 = vmatpush.bf16.msra.mxu0 0
        %3653 = vmatpush.bf16.msra.mxu0 0
        %3654 = vmatpush.bf16.msra.mxu0 0
        %3655 = vmatpush.bf16.msra.mxu0 0
        %3656 = vmatpush.bf16.msra.mxu0 0
        %3657 = vmatpush.bf16.msra.mxu0 %v1204
        %3658 = vmatmul.bf16.gmra.mxu0 %v3505
        %v3659 = vpop.f32.mrf.mxu0
        %v3660 = vadd.f32 %v3502, %v3659
        %v3661 = vpop.f32.mrf.mxu0
        %3662 = vdwg.mxu0
        %3663 = vmatpush.bf16.msra.mxu0 0
        %3664 = vmatpush.bf16.msra.mxu0 0
        %3665 = vmatpush.bf16.msra.mxu0 0
        %3666 = vmatpush.bf16.msra.mxu0 0
        %3667 = vmatpush.bf16.msra.mxu0 0
        %3668 = vmatpush.bf16.msra.mxu0 0
        %3669 = vmatpush.bf16.msra.mxu0 0
        %3670 = vmatpush.bf16.msra.mxu0 %v1205
        %3671 = vmatmul.bf16.gmra.mxu0 %v3505
        %v3672 = vpop.f32.mrf.mxu0
        %v3673 = vadd.f32 %v3502, %v3672
        %v3674 = vpop.f32.mrf.mxu0
        %3675 = vdwg.mxu0
        %3676 = vmatpush.bf16.msra.mxu0 0
        %3677 = vmatpush.bf16.msra.mxu0 0
        %3678 = vmatpush.bf16.msra.mxu0 0
        %3679 = vmatpush.bf16.msra.mxu0 0
        %3680 = vmatpush.bf16.msra.mxu0 0
        %3681 = vmatpush.bf16.msra.mxu0 0
        %3682 = vmatpush.bf16.msra.mxu0 0
        %3683 = vmatpush.bf16.msra.mxu0 %v1206
        %3684 = vmatmul.bf16.gmra.mxu0 %v3505
        %v3685 = vpop.f32.mrf.mxu0
        %v3686 = vadd.f32 %v3502, %v3685
        %v3687 = vpop.f32.mrf.mxu0
        %3688 = vdwg.mxu0
        %3689 = vmatpush.bf16.msra.mxu0 0
        %3690 = vmatpush.bf16.msra.mxu0 0
        %3691 = vmatpush.bf16.msra.mxu0 0
        %3692 = vmatpush.bf16.msra.mxu0 0
        %3693 = vmatpush.bf16.msra.mxu0 0
        %3694 = vmatpush.bf16.msra.mxu0 0
        %3695 = vmatpush.bf16.msra.mxu0 0
        %3696 = vmatpush.bf16.msra.mxu0 %v1207
        %3697 = vmatmul.bf16.gmra.mxu0 %v3505
        %v3698 = vpop.f32.mrf.mxu0
        %v3699 = vadd.f32 %v3502, %v3698
        %v3700 = vpop.f32.mrf.mxu0
        %3701 = vdwg.mxu0
        %3702 = vmatpush.bf16.msra.mxu0 0
        %3703 = vmatpush.bf16.msra.mxu0 0
        %3704 = vmatpush.bf16.msra.mxu0 0
        %3705 = vmatpush.bf16.msra.mxu0 0
        %3706 = vmatpush.bf16.msra.mxu0 0
        %3707 = vmatpush.bf16.msra.mxu0 0
        %3708 = vmatpush.bf16.msra.mxu0 0
        %3709 = vmatpush.bf16.msra.mxu0 %v1208
        %3710 = vmatmul.bf16.gmra.mxu0 %v3505
        %v3711 = vpop.f32.mrf.mxu0
        %v3712 = vadd.f32 %v3502, %v3711
        %v3713 = vpop.f32.mrf.mxu0
        %3714 = vdwg.mxu0
        %v3715 = vtanh.pop %v3517
        %v3716 = vtanh.pop %v3530
        %v3717 = vtanh.pop %v3543
        %v3718 = vtanh.pop %v3556
        %v3719 = vtanh.pop %v3569
        %v3720 = vtanh.pop %v3582
        %v3721 = vtanh.pop %v3595
        %v3722 = vtanh.pop %v3608
        %v3723 = vtanh.pop %v3621
        %v3724 = vtanh.pop %v3634
        %v3725 = vtanh.pop %v3647
        %v3726 = vtanh.pop %v3660
        %v3727 = vtanh.pop %v3673
        %v3728 = vtanh.pop %v3686
        %v3729 = vtanh.pop %v3699
        %v3730 = vtanh.pop %v3712
        %v3731 = vld [vmem:[%s6] sm:$0xf]
        %v3732 = vld [vmem:[%s6 + $0x4] sm:$0xf]
        %v3733 = vld [vmem:[%s6 + $0x8] sm:$0xf]
        %v3734 = vld [vmem:[%s6 + $0xc] sm:$0xf]
        %v3735 = vpack.c.bf16 %v3715, %v3715
        %v3736 = vpack.c.bf16 %v3716, %v3716
        %v3737 = vpack.c.bf16 %v3717, %v3717
        %v3738 = vpack.c.bf16 %v3718, %v3718
        %v3739 = vpack.c.bf16 %v3719, %v3719
        %v3740 = vpack.c.bf16 %v3720, %v3720
        %v3741 = vpack.c.bf16 %v3721, %v3721
        %v3742 = vpack.c.bf16 %v3722, %v3722
        %v3743 = vpack.c.bf16 %v3723, %v3723
        %v3744 = vpack.c.bf16 %v3724, %v3724
        %v3745 = vpack.c.bf16 %v3725, %v3725
        %v3746 = vpack.c.bf16 %v3726, %v3726
        %v3747 = vpack.c.bf16 %v3727, %v3727
        %v3748 = vpack.c.bf16 %v3728, %v3728
        %v3749 = vpack.c.bf16 %v3729, %v3729
        %v3750 = vpack.c.bf16 %v3730, %v3730
        %3752 = vset.pattern.permute.xlu0 0
        %3753 = vperm.xlu0 %3752, %v617
        %v3754 = vpop.permute.xlu0 %3753
        %3757 = vset.pattern.permute.xlu0 0
        %3758 = vperm.xlu0 %3757, %v618
        %v3759 = vpop.permute.xlu0 %3758
        %3762 = vset.pattern.permute.xlu0 0
        %3763 = vperm.xlu0 %3762, %v619
        %v3764 = vpop.permute.xlu0 %3763
        %3767 = vset.pattern.permute.xlu0 0
        %3768 = vperm.xlu0 %3767, %v620
        %v3769 = vpop.permute.xlu0 %3768
        %v3775 = vunpack.c.l.b16 %v3731
        %v3776 = vunpack.c.l.b16 %v3732
        %v3777 = vunpack.c.l.b16 %v3733
        %v3778 = vunpack.c.l.b16 %v3734
        %v3779 = vpack.c.b16 %v3776, %v3775
        %v3780 = vpack.c.b16 %v3778, %v3777
        %vm3781 = vcmask 64512
        %v3783 = vsel %vm3781, %v3779, 0
        %v3786 = vsel %vm3781, %v3780, 0
        %vm3788 = vcmask 1043456
        %v3790 = vsel %vm3788, %v3735, 0
        %v3793 = vsel %vm3788, %v3736, 0
        %v3796 = vsel %vm3788, %v3737, 0
        %v3799 = vsel %vm3788, %v3738, 0
        %v3802 = vsel %vm3788, %v3739, 0
        %v3805 = vsel %vm3788, %v3740, 0
        %v3808 = vsel %vm3788, %v3741, 0
        %v3811 = vsel %vm3788, %v3742, 0
        %v3814 = vsel %vm3788, %v3743, 0
        %v3817 = vsel %vm3788, %v3744, 0
        %v3820 = vsel %vm3788, %v3745, 0
        %v3823 = vsel %vm3788, %v3746, 0
        %v3826 = vsel %vm3788, %v3747, 0
        %v3829 = vsel %vm3788, %v3748, 0
        %v3832 = vsel %vm3788, %v3749, 0
        %v3835 = vsel %vm3788, %v3750, 0
        %3837 = vmatpush.bf16.msra.mxu0 0
        %3838 = vmatpush.bf16.msra.mxu0 0
        %3839 = vmatpush.bf16.msra.mxu0 0
        %3840 = vmatpush.bf16.msra.mxu0 0
        %3841 = vmatpush.bf16.msra.mxu0 0
        %3842 = vmatpush.bf16.msra.mxu0 0
        %3843 = vmatpush.bf16.msra.mxu0 0
        %3844 = vmatpush.bf16.msra.mxu0 %v3790
        %3845 = vmatmul.bf16.gmra.mxu0 %v3783
        %v3846 = vpop.f32.mrf.mxu0
        %v3847 = vadd.f32 %v3754, %v3846
        %v3848 = vpop.f32.mrf.mxu0
        %v3849 = vadd.f32 %v3759, %v3848
        %3850 = vmatmul.bf16.gmra.mxu0 %v3786
        %v3851 = vpop.f32.mrf.mxu0
        %v3852 = vadd.f32 %v3764, %v3851
        %v3853 = vpop.f32.mrf.mxu0
        %v3854 = vadd.f32 %v3769, %v3853
        %3855 = vdwg.mxu0
        %3856 = vmatpush.bf16.msra.mxu0 0
        %3857 = vmatpush.bf16.msra.mxu0 0
        %3858 = vmatpush.bf16.msra.mxu0 0
        %3859 = vmatpush.bf16.msra.mxu0 0
        %3860 = vmatpush.bf16.msra.mxu0 0
        %3861 = vmatpush.bf16.msra.mxu0 0
        %3862 = vmatpush.bf16.msra.mxu0 0
        %3863 = vmatpush.bf16.msra.mxu0 %v3793
        %3864 = vmatmul.bf16.gmra.mxu0 %v3783
        %v3865 = vpop.f32.mrf.mxu0
        %v3866 = vadd.f32 %v3754, %v3865
        %v3867 = vpop.f32.mrf.mxu0
        %v3868 = vadd.f32 %v3759, %v3867
        %3869 = vmatmul.bf16.gmra.mxu0 %v3786
        %v3870 = vpop.f32.mrf.mxu0
        %v3871 = vadd.f32 %v3764, %v3870
        %v3872 = vpop.f32.mrf.mxu0
        %v3873 = vadd.f32 %v3769, %v3872
        %3874 = vdwg.mxu0
        %3875 = vmatpush.bf16.msra.mxu0 0
        %3876 = vmatpush.bf16.msra.mxu0 0
        %3877 = vmatpush.bf16.msra.mxu0 0
        %3878 = vmatpush.bf16.msra.mxu0 0
        %3879 = vmatpush.bf16.msra.mxu0 0
        %3880 = vmatpush.bf16.msra.mxu0 0
        %3881 = vmatpush.bf16.msra.mxu0 0
        %3882 = vmatpush.bf16.msra.mxu0 %v3796
        %3883 = vmatmul.bf16.gmra.mxu0 %v3783
        %v3884 = vpop.f32.mrf.mxu0
        %v3885 = vadd.f32 %v3754, %v3884
        %v3886 = vpop.f32.mrf.mxu0
        %v3887 = vadd.f32 %v3759, %v3886
        %3888 = vmatmul.bf16.gmra.mxu0 %v3786
        %v3889 = vpop.f32.mrf.mxu0
        %v3890 = vadd.f32 %v3764, %v3889
        %v3891 = vpop.f32.mrf.mxu0
        %v3892 = vadd.f32 %v3769, %v3891
        %3893 = vdwg.mxu0
        %3894 = vmatpush.bf16.msra.mxu0 0
        %3895 = vmatpush.bf16.msra.mxu0 0
        %3896 = vmatpush.bf16.msra.mxu0 0
        %3897 = vmatpush.bf16.msra.mxu0 0
        %3898 = vmatpush.bf16.msra.mxu0 0
        %3899 = vmatpush.bf16.msra.mxu0 0
        %3900 = vmatpush.bf16.msra.mxu0 0
        %3901 = vmatpush.bf16.msra.mxu0 %v3799
        %3902 = vmatmul.bf16.gmra.mxu0 %v3783
        %v3903 = vpop.f32.mrf.mxu0
        %v3904 = vadd.f32 %v3754, %v3903
        %v3905 = vpop.f32.mrf.mxu0
        %v3906 = vadd.f32 %v3759, %v3905
        %3907 = vmatmul.bf16.gmra.mxu0 %v3786
        %v3908 = vpop.f32.mrf.mxu0
        %v3909 = vadd.f32 %v3764, %v3908
        %v3910 = vpop.f32.mrf.mxu0
        %v3911 = vadd.f32 %v3769, %v3910
        %3912 = vdwg.mxu0
        %3913 = vmatpush.bf16.msra.mxu0 0
        %3914 = vmatpush.bf16.msra.mxu0 0
        %3915 = vmatpush.bf16.msra.mxu0 0
        %3916 = vmatpush.bf16.msra.mxu0 0
        %3917 = vmatpush.bf16.msra.mxu0 0
        %3918 = vmatpush.bf16.msra.mxu0 0
        %3919 = vmatpush.bf16.msra.mxu0 0
        %3920 = vmatpush.bf16.msra.mxu0 %v3802
        %3921 = vmatmul.bf16.gmra.mxu0 %v3783
        %v3922 = vpop.f32.mrf.mxu0
        %v3923 = vadd.f32 %v3754, %v3922
        %v3924 = vpop.f32.mrf.mxu0
        %v3925 = vadd.f32 %v3759, %v3924
        %3926 = vmatmul.bf16.gmra.mxu0 %v3786
        %v3927 = vpop.f32.mrf.mxu0
        %v3928 = vadd.f32 %v3764, %v3927
        %v3929 = vpop.f32.mrf.mxu0
        %v3930 = vadd.f32 %v3769, %v3929
        %3931 = vdwg.mxu0
        %3932 = vmatpush.bf16.msra.mxu0 0
        %3933 = vmatpush.bf16.msra.mxu0 0
        %3934 = vmatpush.bf16.msra.mxu0 0
        %3935 = vmatpush.bf16.msra.mxu0 0
        %3936 = vmatpush.bf16.msra.mxu0 0
        %3937 = vmatpush.bf16.msra.mxu0 0
        %3938 = vmatpush.bf16.msra.mxu0 0
        %3939 = vmatpush.bf16.msra.mxu0 %v3805
        %3940 = vmatmul.bf16.gmra.mxu0 %v3783
        %v3941 = vpop.f32.mrf.mxu0
        %v3942 = vadd.f32 %v3754, %v3941
        %v3943 = vpop.f32.mrf.mxu0
        %v3944 = vadd.f32 %v3759, %v3943
        %3945 = vmatmul.bf16.gmra.mxu0 %v3786
        %v3946 = vpop.f32.mrf.mxu0
        %v3947 = vadd.f32 %v3764, %v3946
        %v3948 = vpop.f32.mrf.mxu0
        %v3949 = vadd.f32 %v3769, %v3948
        %3950 = vdwg.mxu0
        %3951 = vmatpush.bf16.msra.mxu0 0
        %3952 = vmatpush.bf16.msra.mxu0 0
        %3953 = vmatpush.bf16.msra.mxu0 0
        %3954 = vmatpush.bf16.msra.mxu0 0
        %3955 = vmatpush.bf16.msra.mxu0 0
        %3956 = vmatpush.bf16.msra.mxu0 0
        %3957 = vmatpush.bf16.msra.mxu0 0
        %3958 = vmatpush.bf16.msra.mxu0 %v3808
        %3959 = vmatmul.bf16.gmra.mxu0 %v3783
        %v3960 = vpop.f32.mrf.mxu0
        %v3961 = vadd.f32 %v3754, %v3960
        %v3962 = vpop.f32.mrf.mxu0
        %v3963 = vadd.f32 %v3759, %v3962
        %3964 = vmatmul.bf16.gmra.mxu0 %v3786
        %v3965 = vpop.f32.mrf.mxu0
        %v3966 = vadd.f32 %v3764, %v3965
        %v3967 = vpop.f32.mrf.mxu0
        %v3968 = vadd.f32 %v3769, %v3967
        %3969 = vdwg.mxu0
        %3970 = vmatpush.bf16.msra.mxu0 0
        %3971 = vmatpush.bf16.msra.mxu0 0
        %3972 = vmatpush.bf16.msra.mxu0 0
        %3973 = vmatpush.bf16.msra.mxu0 0
        %3974 = vmatpush.bf16.msra.mxu0 0
        %3975 = vmatpush.bf16.msra.mxu0 0
        %3976 = vmatpush.bf16.msra.mxu0 0
        %3977 = vmatpush.bf16.msra.mxu0 %v3811
        %3978 = vmatmul.bf16.gmra.mxu0 %v3783
        %v3979 = vpop.f32.mrf.mxu0
        %v3980 = vadd.f32 %v3754, %v3979
        %v3981 = vpop.f32.mrf.mxu0
        %v3982 = vadd.f32 %v3759, %v3981
        %3983 = vmatmul.bf16.gmra.mxu0 %v3786
        %v3984 = vpop.f32.mrf.mxu0
        %v3985 = vadd.f32 %v3764, %v3984
        %v3986 = vpop.f32.mrf.mxu0
        %v3987 = vadd.f32 %v3769, %v3986
        %3988 = vdwg.mxu0
        %3989 = vmatpush.bf16.msra.mxu0 0
        %3990 = vmatpush.bf16.msra.mxu0 0
        %3991 = vmatpush.bf16.msra.mxu0 0
        %3992 = vmatpush.bf16.msra.mxu0 0
        %3993 = vmatpush.bf16.msra.mxu0 0
        %3994 = vmatpush.bf16.msra.mxu0 0
        %3995 = vmatpush.bf16.msra.mxu0 0
        %3996 = vmatpush.bf16.msra.mxu0 %v3814
        %3997 = vmatmul.bf16.gmra.mxu0 %v3783
        %v3998 = vpop.f32.mrf.mxu0
        %v3999 = vadd.f32 %v3754, %v3998
        %v4000 = vpop.f32.mrf.mxu0
        %v4001 = vadd.f32 %v3759, %v4000
        %4002 = vmatmul.bf16.gmra.mxu0 %v3786
        %v4003 = vpop.f32.mrf.mxu0
        %v4004 = vadd.f32 %v3764, %v4003
        %v4005 = vpop.f32.mrf.mxu0
        %v4006 = vadd.f32 %v3769, %v4005
        %4007 = vdwg.mxu0
        %4008 = vmatpush.bf16.msra.mxu0 0
        %4009 = vmatpush.bf16.msra.mxu0 0
        %4010 = vmatpush.bf16.msra.mxu0 0
        %4011 = vmatpush.bf16.msra.mxu0 0
        %4012 = vmatpush.bf16.msra.mxu0 0
        %4013 = vmatpush.bf16.msra.mxu0 0
        %4014 = vmatpush.bf16.msra.mxu0 0
        %4015 = vmatpush.bf16.msra.mxu0 %v3817
        %4016 = vmatmul.bf16.gmra.mxu0 %v3783
        %v4017 = vpop.f32.mrf.mxu0
        %v4018 = vadd.f32 %v3754, %v4017
        %v4019 = vpop.f32.mrf.mxu0
        %v4020 = vadd.f32 %v3759, %v4019
        %4021 = vmatmul.bf16.gmra.mxu0 %v3786
        %v4022 = vpop.f32.mrf.mxu0
        %v4023 = vadd.f32 %v3764, %v4022
        %v4024 = vpop.f32.mrf.mxu0
        %v4025 = vadd.f32 %v3769, %v4024
        %4026 = vdwg.mxu0
        %4027 = vmatpush.bf16.msra.mxu0 0
        %4028 = vmatpush.bf16.msra.mxu0 0
        %4029 = vmatpush.bf16.msra.mxu0 0
        %4030 = vmatpush.bf16.msra.mxu0 0
        %4031 = vmatpush.bf16.msra.mxu0 0
        %4032 = vmatpush.bf16.msra.mxu0 0
        %4033 = vmatpush.bf16.msra.mxu0 0
        %4034 = vmatpush.bf16.msra.mxu0 %v3820
        %4035 = vmatmul.bf16.gmra.mxu0 %v3783
        %v4036 = vpop.f32.mrf.mxu0
        %v4037 = vadd.f32 %v3754, %v4036
        %v4038 = vpop.f32.mrf.mxu0
        %v4039 = vadd.f32 %v3759, %v4038
        %4040 = vmatmul.bf16.gmra.mxu0 %v3786
        %v4041 = vpop.f32.mrf.mxu0
        %v4042 = vadd.f32 %v3764, %v4041
        %v4043 = vpop.f32.mrf.mxu0
        %v4044 = vadd.f32 %v3769, %v4043
        %4045 = vdwg.mxu0
        %4046 = vmatpush.bf16.msra.mxu0 0
        %4047 = vmatpush.bf16.msra.mxu0 0
        %4048 = vmatpush.bf16.msra.mxu0 0
        %4049 = vmatpush.bf16.msra.mxu0 0
        %4050 = vmatpush.bf16.msra.mxu0 0
        %4051 = vmatpush.bf16.msra.mxu0 0
        %4052 = vmatpush.bf16.msra.mxu0 0
        %4053 = vmatpush.bf16.msra.mxu0 %v3823
        %4054 = vmatmul.bf16.gmra.mxu0 %v3783
        %v4055 = vpop.f32.mrf.mxu0
        %v4056 = vadd.f32 %v3754, %v4055
        %v4057 = vpop.f32.mrf.mxu0
        %v4058 = vadd.f32 %v3759, %v4057
        %4059 = vmatmul.bf16.gmra.mxu0 %v3786
        %v4060 = vpop.f32.mrf.mxu0
        %v4061 = vadd.f32 %v3764, %v4060
        %v4062 = vpop.f32.mrf.mxu0
        %v4063 = vadd.f32 %v3769, %v4062
        %4064 = vdwg.mxu0
        %4065 = vmatpush.bf16.msra.mxu0 0
        %4066 = vmatpush.bf16.msra.mxu0 0
        %4067 = vmatpush.bf16.msra.mxu0 0
        %4068 = vmatpush.bf16.msra.mxu0 0
        %4069 = vmatpush.bf16.msra.mxu0 0
        %4070 = vmatpush.bf16.msra.mxu0 0
        %4071 = vmatpush.bf16.msra.mxu0 0
        %4072 = vmatpush.bf16.msra.mxu0 %v3826
        %4073 = vmatmul.bf16.gmra.mxu0 %v3783
        %v4074 = vpop.f32.mrf.mxu0
        %v4075 = vadd.f32 %v3754, %v4074
        %v4076 = vpop.f32.mrf.mxu0
        %v4077 = vadd.f32 %v3759, %v4076
        %4078 = vmatmul.bf16.gmra.mxu0 %v3786
        %v4079 = vpop.f32.mrf.mxu0
        %v4080 = vadd.f32 %v3764, %v4079
        %v4081 = vpop.f32.mrf.mxu0
        %v4082 = vadd.f32 %v3769, %v4081
        %4083 = vdwg.mxu0
        %4084 = vmatpush.bf16.msra.mxu0 0
        %4085 = vmatpush.bf16.msra.mxu0 0
        %4086 = vmatpush.bf16.msra.mxu0 0
        %4087 = vmatpush.bf16.msra.mxu0 0
        %4088 = vmatpush.bf16.msra.mxu0 0
        %4089 = vmatpush.bf16.msra.mxu0 0
        %4090 = vmatpush.bf16.msra.mxu0 0
        %4091 = vmatpush.bf16.msra.mxu0 %v3829
        %4092 = vmatmul.bf16.gmra.mxu0 %v3783
        %v4093 = vpop.f32.mrf.mxu0
        %v4094 = vadd.f32 %v3754, %v4093
        %v4095 = vpop.f32.mrf.mxu0
        %v4096 = vadd.f32 %v3759, %v4095
        %4097 = vmatmul.bf16.gmra.mxu0 %v3786
        %v4098 = vpop.f32.mrf.mxu0
        %v4099 = vadd.f32 %v3764, %v4098
        %v4100 = vpop.f32.mrf.mxu0
        %v4101 = vadd.f32 %v3769, %v4100
        %4102 = vdwg.mxu0
        %4103 = vmatpush.bf16.msra.mxu0 0
        %4104 = vmatpush.bf16.msra.mxu0 0
        %4105 = vmatpush.bf16.msra.mxu0 0
        %4106 = vmatpush.bf16.msra.mxu0 0
        %4107 = vmatpush.bf16.msra.mxu0 0
        %4108 = vmatpush.bf16.msra.mxu0 0
        %4109 = vmatpush.bf16.msra.mxu0 0
        %4110 = vmatpush.bf16.msra.mxu0 %v3832
        %4111 = vmatmul.bf16.gmra.mxu0 %v3783
        %v4112 = vpop.f32.mrf.mxu0
        %v4113 = vadd.f32 %v3754, %v4112
        %v4114 = vpop.f32.mrf.mxu0
        %v4115 = vadd.f32 %v3759, %v4114
        %4116 = vmatmul.bf16.gmra.mxu0 %v3786
        %v4117 = vpop.f32.mrf.mxu0
        %v4118 = vadd.f32 %v3764, %v4117
        %v4119 = vpop.f32.mrf.mxu0
        %v4120 = vadd.f32 %v3769, %v4119
        %4121 = vdwg.mxu0
        %4122 = vmatpush.bf16.msra.mxu0 0
        %4123 = vmatpush.bf16.msra.mxu0 0
        %4124 = vmatpush.bf16.msra.mxu0 0
        %4125 = vmatpush.bf16.msra.mxu0 0
        %4126 = vmatpush.bf16.msra.mxu0 0
        %4127 = vmatpush.bf16.msra.mxu0 0
        %4128 = vmatpush.bf16.msra.mxu0 0
        %4129 = vmatpush.bf16.msra.mxu0 %v3835
        %4130 = vmatmul.bf16.gmra.mxu0 %v3783
        %v4131 = vpop.f32.mrf.mxu0
        %v4132 = vadd.f32 %v3754, %v4131
        %v4133 = vpop.f32.mrf.mxu0
        %v4134 = vadd.f32 %v3759, %v4133
        %4135 = vmatmul.bf16.gmra.mxu0 %v3786
        %v4136 = vpop.f32.mrf.mxu0
        %v4137 = vadd.f32 %v3764, %v4136
        %v4138 = vpop.f32.mrf.mxu0
        %v4139 = vadd.f32 %v3769, %v4138
        %4140 = vdwg.mxu0
        %v4141 = vadd.f32 %v3847, %v3204
        %v4142 = vadd.f32 %v3866, %v3223
        %v4143 = vadd.f32 %v3885, %v3242
        %v4144 = vadd.f32 %v3904, %v3261
        %v4145 = vadd.f32 %v3923, %v3280
        %v4146 = vadd.f32 %v3942, %v3299
        %v4147 = vadd.f32 %v3961, %v3318
        %v4148 = vadd.f32 %v3980, %v3337
        %v4149 = vadd.f32 %v3999, %v3356
        %v4150 = vadd.f32 %v4018, %v3375
        %v4151 = vadd.f32 %v4037, %v3394
        %v4152 = vadd.f32 %v4056, %v3413
        %v4153 = vadd.f32 %v4075, %v3432
        %v4154 = vadd.f32 %v4094, %v3451
        %v4155 = vadd.f32 %v4113, %v3470
        %v4156 = vadd.f32 %v4132, %v3489
        %v4157 = vadd.f32 %v3849, %v3206
        %v4158 = vadd.f32 %v3868, %v3225
        %v4159 = vadd.f32 %v3887, %v3244
        %v4160 = vadd.f32 %v3906, %v3263
        %v4161 = vadd.f32 %v3925, %v3282
        %v4162 = vadd.f32 %v3944, %v3301
        %v4163 = vadd.f32 %v3963, %v3320
        %v4164 = vadd.f32 %v3982, %v3339
        %v4165 = vadd.f32 %v4001, %v3358
        %v4166 = vadd.f32 %v4020, %v3377
        %v4167 = vadd.f32 %v4039, %v3396
        %v4168 = vadd.f32 %v4058, %v3415
        %v4169 = vadd.f32 %v4077, %v3434
        %v4170 = vadd.f32 %v4096, %v3453
        %v4171 = vadd.f32 %v4115, %v3472
        %v4172 = vadd.f32 %v4134, %v3491
        %v4173 = vadd.f32 %v3852, %v3209
        %v4174 = vadd.f32 %v3871, %v3228
        %v4175 = vadd.f32 %v3890, %v3247
        %v4176 = vadd.f32 %v3909, %v3266
        %v4177 = vadd.f32 %v3928, %v3285
        %v4178 = vadd.f32 %v3947, %v3304
        %v4179 = vadd.f32 %v3966, %v3323
        %v4180 = vadd.f32 %v3985, %v3342
        %v4181 = vadd.f32 %v4004, %v3361
        %v4182 = vadd.f32 %v4023, %v3380
        %v4183 = vadd.f32 %v4042, %v3399
        %v4184 = vadd.f32 %v4061, %v3418
        %v4185 = vadd.f32 %v4080, %v3437
        %v4186 = vadd.f32 %v4099, %v3456
        %v4187 = vadd.f32 %v4118, %v3475
        %v4188 = vadd.f32 %v4137, %v3494
        %v4189 = vadd.f32 %v3854, %v3211
        %v4190 = vadd.f32 %v3873, %v3230
        %v4191 = vadd.f32 %v3892, %v3249
        %v4192 = vadd.f32 %v3911, %v3268
        %v4193 = vadd.f32 %v3930, %v3287
        %v4194 = vadd.f32 %v3949, %v3306
        %v4195 = vadd.f32 %v3968, %v3325
        %v4196 = vadd.f32 %v3987, %v3344
        %v4197 = vadd.f32 %v4006, %v3363
        %v4198 = vadd.f32 %v4025, %v3382
        %v4199 = vadd.f32 %v4044, %v3401
        %v4200 = vadd.f32 %v4063, %v3420
        %v4201 = vadd.f32 %v4082, %v3439
        %v4202 = vadd.f32 %v4101, %v3458
        %v4203 = vadd.f32 %v4120, %v3477
        %v4204 = vadd.f32 %v4139, %v3496
        %v4205 = vld [vmem:[%s7] sm:$0xf]
        %v4206 = vld [vmem:[%s7 + $0x4] sm:$0xf]
        %v4207 = vld [vmem:[%s7 + $0x8] sm:$0xf]
        %v4208 = vld [vmem:[%s7 + $0xc] sm:$0xf]
        %v4209 = vld [vmem:[%s7 + $0x10] sm:$0xf]
        %v4210 = vld [vmem:[%s7 + $0x14] sm:$0xf]
        %v4211 = vld [vmem:[%s7 + $0x18] sm:$0xf]
        %v4212 = vld [vmem:[%s7 + $0x1c] sm:$0xf]
        %v4213 = vld [vmem:[%s7 + $0x20] sm:$0xf]
        %v4214 = vld [vmem:[%s7 + $0x24] sm:$0xf]
        %v4215 = vld [vmem:[%s7 + $0x28] sm:$0xf]
        %v4216 = vld [vmem:[%s7 + $0x2c] sm:$0xf]
        %v4217 = vld [vmem:[%s7 + $0x30] sm:$0xf]
        %v4218 = vld [vmem:[%s7 + $0x34] sm:$0xf]
        %v4219 = vld [vmem:[%s7 + $0x38] sm:$0xf]
        %v4220 = vld [vmem:[%s7 + $0x3c] sm:$0xf]
        %v4221 = vld [vmem:[%s530] sm:$0xf]
        %v4222 = vld [vmem:[%s530 + $0x4] sm:$0xf]
        %v4223 = vld [vmem:[%s530 + $0x8] sm:$0xf]
        %v4224 = vld [vmem:[%s530 + $0xc] sm:$0xf]
        %v4225 = vld [vmem:[%s530 + $0x10] sm:$0xf]
        %v4226 = vld [vmem:[%s530 + $0x14] sm:$0xf]
        %v4227 = vld [vmem:[%s530 + $0x18] sm:$0xf]
        %v4228 = vld [vmem:[%s530 + $0x1c] sm:$0xf]
        %v4245 = vunpack.c.l.b16 %v4205
        %v4246 = vunpack.c.l.b16 %v4206
        %v4247 = vunpack.c.l.b16 %v4207
        %v4248 = vunpack.c.l.b16 %v4208
        %v4249 = vunpack.c.l.b16 %v4209
        %v4250 = vunpack.c.l.b16 %v4210
        %v4251 = vunpack.c.l.b16 %v4211
        %v4252 = vunpack.c.l.b16 %v4212
        %v4253 = vunpack.c.l.b16 %v4213
        %v4254 = vunpack.c.l.b16 %v4214
        %v4255 = vunpack.c.l.b16 %v4215
        %v4256 = vunpack.c.l.b16 %v4216
        %v4257 = vunpack.c.l.b16 %v4217
        %v4258 = vunpack.c.l.b16 %v4218
        %v4259 = vunpack.c.l.b16 %v4219
        %v4260 = vunpack.c.l.b16 %v4220
        %v4261 = vpack.c.b16 %v4246, %v4245
        %v4262 = vpack.c.b16 %v4248, %v4247
        %v4263 = vpack.c.b16 %v4250, %v4249
        %v4264 = vpack.c.b16 %v4252, %v4251
        %v4265 = vpack.c.b16 %v4254, %v4253
        %v4266 = vpack.c.b16 %v4256, %v4255
        %v4267 = vpack.c.b16 %v4258, %v4257
        %v4268 = vpack.c.b16 %v4260, %v4259
        %v4277 = vunpack.c.l.b16 %v4221
        %v4278 = vunpack.c.l.b16 %v4222
        %v4279 = vunpack.c.l.b16 %v4223
        %v4280 = vunpack.c.l.b16 %v4224
        %v4281 = vunpack.c.l.b16 %v4225
        %v4282 = vunpack.c.l.b16 %v4226
        %v4283 = vunpack.c.l.b16 %v4227
        %v4284 = vunpack.c.l.b16 %v4228
        %v4285 = vpack.c.b16 %v4278, %v4277
        %v4286 = vpack.c.b16 %v4280, %v4279
        %v4287 = vpack.c.b16 %v4282, %v4281
        %v4288 = vpack.c.b16 %v4284, %v4283
        %vm4293 = vcmask 523264
        %v4295 = vsel %vm4293, %v4261, 0
        %v4298 = vsel %vm4293, %v4262, 0
        %v4301 = vsel %vm4293, %v4263, 0
        %v4304 = vsel %vm4293, %v4264, 0
        %v4307 = vsel %vm4293, %v4265, 0
        %v4310 = vsel %vm4293, %v4266, 0
        %v4313 = vsel %vm4293, %v4267, 0
        %v4316 = vsel %vm4293, %v4268, 0
        %4318 = vmatpush.bf16.msra.mxu0 0
        %4319 = vmatpush.bf16.msra.mxu0 0
        %4320 = vmatpush.bf16.msra.mxu0 0
        %4321 = vmatpush.bf16.msra.mxu0 0
        %4322 = vmatpush.bf16.msra.mxu0 %v4288
        %4323 = vmatpush.bf16.msra.mxu0 %v4287
        %4324 = vmatpush.bf16.msra.mxu0 %v4286
        %4325 = vmatpush.bf16.msra.mxu0 %v4285
        %4326 = vmatmul.bf16.gmra.mxu0 %v4295
        %v4327 = vpop.f32.mrf.mxu0
        %v4328 = vadd.f32 0.0, %v4327
        %v4329 = vpop.f32.mrf.mxu0
        %v4330 = vadd.f32 0.0, %v4329
        %4331 = vmatmul.bf16.gmra.mxu0 %v4298
        %v4332 = vpop.f32.mrf.mxu0
        %v4333 = vadd.f32 0.0, %v4332
        %v4334 = vpop.f32.mrf.mxu0
        %v4335 = vadd.f32 0.0, %v4334
        %4336 = vmatmul.bf16.gmra.mxu0 %v4301
        %v4337 = vpop.f32.mrf.mxu0
        %v4338 = vadd.f32 0.0, %v4337
        %v4339 = vpop.f32.mrf.mxu0
        %v4340 = vadd.f32 0.0, %v4339
        %4341 = vmatmul.bf16.gmra.mxu0 %v4304
        %v4342 = vpop.f32.mrf.mxu0
        %v4343 = vadd.f32 0.0, %v4342
        %v4344 = vpop.f32.mrf.mxu0
        %v4345 = vadd.f32 0.0, %v4344
        %4346 = vmatmul.bf16.gmra.mxu0 %v4307
        %v4347 = vpop.f32.mrf.mxu0
        %v4348 = vadd.f32 0.0, %v4347
        %v4349 = vpop.f32.mrf.mxu0
        %v4350 = vadd.f32 0.0, %v4349
        %4351 = vmatmul.bf16.gmra.mxu0 %v4310
        %v4352 = vpop.f32.mrf.mxu0
        %v4353 = vadd.f32 0.0, %v4352
        %v4354 = vpop.f32.mrf.mxu0
        %v4355 = vadd.f32 0.0, %v4354
        %4356 = vmatmul.bf16.gmra.mxu0 %v4313
        %v4357 = vpop.f32.mrf.mxu0
        %v4358 = vadd.f32 0.0, %v4357
        %v4359 = vpop.f32.mrf.mxu0
        %v4360 = vadd.f32 0.0, %v4359
        %4361 = vmatmul.bf16.gmra.mxu0 %v4316
        %v4362 = vpop.f32.mrf.mxu0
        %v4363 = vadd.f32 0.0, %v4362
        %v4364 = vpop.f32.mrf.mxu0
        %v4365 = vadd.f32 0.0, %v4364
        %4366 = vdwg.mxu0
        %v4367 = vld [vmem:[%s8] sm:$0xff]
        %v4368 = vld [vmem:[%s8 + $0x8] sm:$0xff]
        %v4369 = vld [vmem:[%s8 + $0x10] sm:$0xff]
        %v4370 = vld [vmem:[%s8 + $0x18] sm:$0xff]
        %v4371 = vld [vmem:[%s8 + $0x20] sm:$0xff]
        %v4372 = vld [vmem:[%s8 + $0x28] sm:$0xff]
        %v4373 = vld [vmem:[%s8 + $0x30] sm:$0xff]
        %v4374 = vld [vmem:[%s8 + $0x38] sm:$0xff]
        %v4375 = vld [vmem:[%s8 + $0x40] sm:$0xff]
        %v4376 = vld [vmem:[%s8 + $0x48] sm:$0xff]
        %v4377 = vld [vmem:[%s8 + $0x50] sm:$0xff]
        %v4378 = vld [vmem:[%s8 + $0x58] sm:$0xff]
        %v4379 = vld [vmem:[%s8 + $0x60] sm:$0xff]
        %v4380 = vld [vmem:[%s8 + $0x68] sm:$0xff]
        %v4381 = vld [vmem:[%s8 + $0x70] sm:$0xff]
        %v4382 = vld [vmem:[%s8 + $0x78] sm:$0xff]
        %v4383 = vld [vmem:[%s8 + $0x80] sm:$0xff]
        %v4384 = vld [vmem:[%s8 + $0x88] sm:$0xff]
        %v4385 = vld [vmem:[%s8 + $0x90] sm:$0xff]
        %v4386 = vld [vmem:[%s8 + $0x98] sm:$0xff]
        %v4387 = vld [vmem:[%s8 + $0xa0] sm:$0xff]
        %v4388 = vld [vmem:[%s8 + $0xa8] sm:$0xff]
        %v4389 = vld [vmem:[%s8 + $0xb0] sm:$0xff]
        %v4390 = vld [vmem:[%s8 + $0xb8] sm:$0xff]
        %v4391 = vld [vmem:[%s8 + $0xc0] sm:$0xff]
        %v4392 = vld [vmem:[%s8 + $0xc8] sm:$0xff]
        %v4393 = vld [vmem:[%s8 + $0xd0] sm:$0xff]
        %v4394 = vld [vmem:[%s8 + $0xd8] sm:$0xff]
        %v4395 = vld [vmem:[%s8 + $0xe0] sm:$0xff]
        %v4396 = vld [vmem:[%s8 + $0xe8] sm:$0xff]
        %v4397 = vld [vmem:[%s8 + $0xf0] sm:$0xff]
        %v4398 = vld [vmem:[%s8 + $0xf8] sm:$0xff]
        %v4399 = vld [vmem:[%s8 + $0x100] sm:$0xff]
        %v4400 = vld [vmem:[%s8 + $0x108] sm:$0xff]
        %v4401 = vld [vmem:[%s8 + $0x110] sm:$0xff]
        %v4402 = vld [vmem:[%s8 + $0x118] sm:$0xff]
        %v4403 = vld [vmem:[%s8 + $0x120] sm:$0xff]
        %v4404 = vld [vmem:[%s8 + $0x128] sm:$0xff]
        %v4405 = vld [vmem:[%s8 + $0x130] sm:$0xff]
        %v4406 = vld [vmem:[%s8 + $0x138] sm:$0xff]
        %v4407 = vld [vmem:[%s8 + $0x140] sm:$0xff]
        %v4408 = vld [vmem:[%s8 + $0x148] sm:$0xff]
        %v4409 = vld [vmem:[%s8 + $0x150] sm:$0xff]
        %v4410 = vld [vmem:[%s8 + $0x158] sm:$0xff]
        %v4411 = vld [vmem:[%s8 + $0x160] sm:$0xff]
        %v4412 = vld [vmem:[%s8 + $0x168] sm:$0xff]
        %v4413 = vld [vmem:[%s8 + $0x170] sm:$0xff]
        %v4414 = vld [vmem:[%s8 + $0x178] sm:$0xff]
        %v4415 = vld [vmem:[%s8 + $0x180] sm:$0xff]
        %v4416 = vld [vmem:[%s8 + $0x188] sm:$0xff]
        %v4417 = vld [vmem:[%s8 + $0x190] sm:$0xff]
        %v4418 = vld [vmem:[%s8 + $0x198] sm:$0xff]
        %v4419 = vld [vmem:[%s8 + $0x1a0] sm:$0xff]
        %v4420 = vld [vmem:[%s8 + $0x1a8] sm:$0xff]
        %v4421 = vld [vmem:[%s8 + $0x1b0] sm:$0xff]
        %v4422 = vld [vmem:[%s8 + $0x1b8] sm:$0xff]
        %v4423 = vld [vmem:[%s8 + $0x1c0] sm:$0xff]
        %v4424 = vld [vmem:[%s8 + $0x1c8] sm:$0xff]
        %v4425 = vld [vmem:[%s8 + $0x1d0] sm:$0xff]
        %v4426 = vld [vmem:[%s8 + $0x1d8] sm:$0xff]
        %v4427 = vld [vmem:[%s8 + $0x1e0] sm:$0xff]
        %v4428 = vld [vmem:[%s8 + $0x1e8] sm:$0xff]
        %v4429 = vld [vmem:[%s8 + $0x1f0] sm:$0xff]
        %v4430 = vld [vmem:[%s8 + $0x1f8] sm:$0xff]
        %v4431 = vld [vmem:[%s8 + $0x200] sm:$0xff]
        %v4432 = vld [vmem:[%s8 + $0x208] sm:$0xff]
        %v4433 = vld [vmem:[%s8 + $0x210] sm:$0xff]
        %v4434 = vld [vmem:[%s8 + $0x218] sm:$0xff]
        %v4435 = vld [vmem:[%s8 + $0x220] sm:$0xff]
        %v4436 = vld [vmem:[%s8 + $0x228] sm:$0xff]
        %v4437 = vld [vmem:[%s8 + $0x230] sm:$0xff]
        %v4438 = vld [vmem:[%s8 + $0x238] sm:$0xff]
        %v4439 = vld [vmem:[%s8 + $0x240] sm:$0xff]
        %v4440 = vld [vmem:[%s8 + $0x248] sm:$0xff]
        %v4441 = vld [vmem:[%s8 + $0x250] sm:$0xff]
        %v4442 = vld [vmem:[%s8 + $0x258] sm:$0xff]
        %v4443 = vld [vmem:[%s8 + $0x260] sm:$0xff]
        %v4444 = vld [vmem:[%s8 + $0x268] sm:$0xff]
        %v4445 = vld [vmem:[%s8 + $0x270] sm:$0xff]
        %v4446 = vld [vmem:[%s8 + $0x278] sm:$0xff]
        %v4447 = vld [vmem:[%s8 + $0x280] sm:$0xff]
        %v4448 = vld [vmem:[%s8 + $0x288] sm:$0xff]
        %v4449 = vld [vmem:[%s8 + $0x290] sm:$0xff]
        %v4450 = vld [vmem:[%s8 + $0x298] sm:$0xff]
        %v4451 = vld [vmem:[%s8 + $0x2a0] sm:$0xff]
        %v4452 = vld [vmem:[%s8 + $0x2a8] sm:$0xff]
        %v4453 = vld [vmem:[%s8 + $0x2b0] sm:$0xff]
        %v4454 = vld [vmem:[%s8 + $0x2b8] sm:$0xff]
        %v4455 = vld [vmem:[%s8 + $0x2c0] sm:$0xff]
        %v4456 = vld [vmem:[%s8 + $0x2c8] sm:$0xff]
        %v4457 = vld [vmem:[%s8 + $0x2d0] sm:$0xff]
        %v4458 = vld [vmem:[%s8 + $0x2d8] sm:$0xff]
        %v4459 = vld [vmem:[%s8 + $0x2e0] sm:$0xff]
        %v4460 = vld [vmem:[%s8 + $0x2e8] sm:$0xff]
        %v4461 = vld [vmem:[%s8 + $0x2f0] sm:$0xff]
        %v4462 = vld [vmem:[%s8 + $0x2f8] sm:$0xff]
        %v4463 = vld [vmem:[%s8 + $0x300] sm:$0xff]
        %v4464 = vld [vmem:[%s8 + $0x308] sm:$0xff]
        %v4465 = vld [vmem:[%s8 + $0x310] sm:$0xff]
        %v4466 = vld [vmem:[%s8 + $0x318] sm:$0xff]
        %v4467 = vld [vmem:[%s8 + $0x320] sm:$0xff]
        %v4468 = vld [vmem:[%s8 + $0x328] sm:$0xff]
        %v4469 = vld [vmem:[%s8 + $0x330] sm:$0xff]
        %v4470 = vld [vmem:[%s8 + $0x338] sm:$0xff]
        %v4471 = vld [vmem:[%s8 + $0x340] sm:$0xff]
        %v4472 = vld [vmem:[%s8 + $0x348] sm:$0xff]
        %v4473 = vld [vmem:[%s8 + $0x350] sm:$0xff]
        %v4474 = vld [vmem:[%s8 + $0x358] sm:$0xff]
        %v4475 = vld [vmem:[%s8 + $0x360] sm:$0xff]
        %v4476 = vld [vmem:[%s8 + $0x368] sm:$0xff]
        %v4477 = vld [vmem:[%s8 + $0x370] sm:$0xff]
        %v4478 = vld [vmem:[%s8 + $0x378] sm:$0xff]
        %v4479 = vld [vmem:[%s8 + $0x380] sm:$0xff]
        %v4480 = vld [vmem:[%s8 + $0x388] sm:$0xff]
        %v4481 = vld [vmem:[%s8 + $0x390] sm:$0xff]
        %v4482 = vld [vmem:[%s8 + $0x398] sm:$0xff]
        %v4483 = vld [vmem:[%s8 + $0x3a0] sm:$0xff]
        %v4484 = vld [vmem:[%s8 + $0x3a8] sm:$0xff]
        %v4485 = vld [vmem:[%s8 + $0x3b0] sm:$0xff]
        %v4486 = vld [vmem:[%s8 + $0x3b8] sm:$0xff]
        %v4487 = vld [vmem:[%s8 + $0x3c0] sm:$0xff]
        %v4488 = vld [vmem:[%s8 + $0x3c8] sm:$0xff]
        %v4489 = vld [vmem:[%s8 + $0x3d0] sm:$0xff]
        %v4490 = vld [vmem:[%s8 + $0x3d8] sm:$0xff]
        %v4491 = vld [vmem:[%s8 + $0x3e0] sm:$0xff]
        %v4492 = vld [vmem:[%s8 + $0x3e8] sm:$0xff]
        %v4493 = vld [vmem:[%s8 + $0x3f0] sm:$0xff]
        %v4494 = vld [vmem:[%s8 + $0x3f8] sm:$0xff]
        %v4495 = vld [vmem:[%s8 + $0x400] sm:$0xff]
        %v4496 = vld [vmem:[%s8 + $0x408] sm:$0xff]
        %v4497 = vld [vmem:[%s8 + $0x410] sm:$0xff]
        %v4498 = vld [vmem:[%s8 + $0x418] sm:$0xff]
        %v4499 = vld [vmem:[%s8 + $0x420] sm:$0xff]
        %v4500 = vld [vmem:[%s8 + $0x428] sm:$0xff]
        %v4501 = vld [vmem:[%s8 + $0x430] sm:$0xff]
        %v4502 = vld [vmem:[%s8 + $0x438] sm:$0xff]
        %v4503 = vld [vmem:[%s8 + $0x440] sm:$0xff]
        %v4504 = vld [vmem:[%s8 + $0x448] sm:$0xff]
        %v4505 = vld [vmem:[%s8 + $0x450] sm:$0xff]
        %v4506 = vld [vmem:[%s8 + $0x458] sm:$0xff]
        %v4507 = vld [vmem:[%s8 + $0x460] sm:$0xff]
        %v4508 = vld [vmem:[%s8 + $0x468] sm:$0xff]
        %v4509 = vld [vmem:[%s8 + $0x470] sm:$0xff]
        %v4510 = vld [vmem:[%s8 + $0x478] sm:$0xff]
        %v4511 = vld [vmem:[%s8 + $0x480] sm:$0xff]
        %v4512 = vld [vmem:[%s8 + $0x488] sm:$0xff]
        %v4513 = vld [vmem:[%s8 + $0x490] sm:$0xff]
        %v4514 = vld [vmem:[%s8 + $0x498] sm:$0xff]
        %v4515 = vld [vmem:[%s8 + $0x4a0] sm:$0xff]
        %v4516 = vld [vmem:[%s8 + $0x4a8] sm:$0xff]
        %v4517 = vld [vmem:[%s8 + $0x4b0] sm:$0xff]
        %v4518 = vld [vmem:[%s8 + $0x4b8] sm:$0xff]
        %v4519 = vld [vmem:[%s8 + $0x4c0] sm:$0xff]
        %v4520 = vld [vmem:[%s8 + $0x4c8] sm:$0xff]
        %v4521 = vld [vmem:[%s8 + $0x4d0] sm:$0xff]
        %v4522 = vld [vmem:[%s8 + $0x4d8] sm:$0xff]
        %v4523 = vld [vmem:[%s8 + $0x4e0] sm:$0xff]
        %v4524 = vld [vmem:[%s8 + $0x4e8] sm:$0xff]
        %v4525 = vld [vmem:[%s8 + $0x4f0] sm:$0xff]
        %v4526 = vld [vmem:[%s8 + $0x4f8] sm:$0xff]
        %v4527 = vld [vmem:[%s8 + $0x500] sm:$0xff]
        %v4528 = vld [vmem:[%s8 + $0x508] sm:$0xff]
        %v4529 = vld [vmem:[%s8 + $0x510] sm:$0xff]
        %v4530 = vld [vmem:[%s8 + $0x518] sm:$0xff]
        %v4531 = vld [vmem:[%s8 + $0x520] sm:$0xff]
        %v4532 = vld [vmem:[%s8 + $0x528] sm:$0xff]
        %v4533 = vld [vmem:[%s8 + $0x530] sm:$0xff]
        %v4534 = vld [vmem:[%s8 + $0x538] sm:$0xff]
        %v4535 = vld [vmem:[%s8 + $0x540] sm:$0xff]
        %v4536 = vld [vmem:[%s8 + $0x548] sm:$0xff]
        %v4537 = vld [vmem:[%s8 + $0x550] sm:$0xff]
        %v4538 = vld [vmem:[%s8 + $0x558] sm:$0xff]
        %v4539 = vld [vmem:[%s8 + $0x560] sm:$0xff]
        %v4540 = vld [vmem:[%s8 + $0x568] sm:$0xff]
        %v4541 = vld [vmem:[%s8 + $0x570] sm:$0xff]
        %v4542 = vld [vmem:[%s8 + $0x578] sm:$0xff]
        %v4543 = vld [vmem:[%s8 + $0x580] sm:$0xff]
        %v4544 = vld [vmem:[%s8 + $0x588] sm:$0xff]
        %v4545 = vld [vmem:[%s8 + $0x590] sm:$0xff]
        %v4546 = vld [vmem:[%s8 + $0x598] sm:$0xff]
        %v4547 = vld [vmem:[%s8 + $0x5a0] sm:$0xff]
        %v4548 = vld [vmem:[%s8 + $0x5a8] sm:$0xff]
        %v4549 = vld [vmem:[%s8 + $0x5b0] sm:$0xff]
        %v4550 = vld [vmem:[%s8 + $0x5b8] sm:$0xff]
        %v4551 = vld [vmem:[%s8 + $0x5c0] sm:$0xff]
        %v4552 = vld [vmem:[%s8 + $0x5c8] sm:$0xff]
        %v4553 = vld [vmem:[%s8 + $0x5d0] sm:$0xff]
        %v4554 = vld [vmem:[%s8 + $0x5d8] sm:$0xff]
        %v4555 = vld [vmem:[%s8 + $0x5e0] sm:$0xff]
        %v4556 = vld [vmem:[%s8 + $0x5e8] sm:$0xff]
        %v4557 = vld [vmem:[%s8 + $0x5f0] sm:$0xff]
        %v4558 = vld [vmem:[%s8 + $0x5f8] sm:$0xff]
        %v4559 = vld [vmem:[%s8 + $0x600] sm:$0xff]
        %v4560 = vld [vmem:[%s8 + $0x608] sm:$0xff]
        %v4561 = vld [vmem:[%s8 + $0x610] sm:$0xff]
        %v4562 = vld [vmem:[%s8 + $0x618] sm:$0xff]
        %v4563 = vld [vmem:[%s8 + $0x620] sm:$0xff]
        %v4564 = vld [vmem:[%s8 + $0x628] sm:$0xff]
        %v4565 = vld [vmem:[%s8 + $0x630] sm:$0xff]
        %v4566 = vld [vmem:[%s8 + $0x638] sm:$0xff]
        %v4567 = vld [vmem:[%s8 + $0x640] sm:$0xff]
        %v4568 = vld [vmem:[%s8 + $0x648] sm:$0xff]
        %v4569 = vld [vmem:[%s8 + $0x650] sm:$0xff]
        %v4570 = vld [vmem:[%s8 + $0x658] sm:$0xff]
        %v4571 = vld [vmem:[%s8 + $0x660] sm:$0xff]
        %v4572 = vld [vmem:[%s8 + $0x668] sm:$0xff]
        %v4573 = vld [vmem:[%s8 + $0x670] sm:$0xff]
        %v4574 = vld [vmem:[%s8 + $0x678] sm:$0xff]
        %v4575 = vld [vmem:[%s8 + $0x680] sm:$0xff]
        %v4576 = vld [vmem:[%s8 + $0x688] sm:$0xff]
        %v4577 = vld [vmem:[%s8 + $0x690] sm:$0xff]
        %v4578 = vld [vmem:[%s8 + $0x698] sm:$0xff]
        %v4579 = vld [vmem:[%s8 + $0x6a0] sm:$0xff]
        %v4580 = vld [vmem:[%s8 + $0x6a8] sm:$0xff]
        %v4581 = vld [vmem:[%s8 + $0x6b0] sm:$0xff]
        %v4582 = vld [vmem:[%s8 + $0x6b8] sm:$0xff]
        %v4583 = vld [vmem:[%s8 + $0x6c0] sm:$0xff]
        %v4584 = vld [vmem:[%s8 + $0x6c8] sm:$0xff]
        %v4585 = vld [vmem:[%s8 + $0x6d0] sm:$0xff]
        %v4586 = vld [vmem:[%s8 + $0x6d8] sm:$0xff]
        %v4587 = vld [vmem:[%s8 + $0x6e0] sm:$0xff]
        %v4588 = vld [vmem:[%s8 + $0x6e8] sm:$0xff]
        %v4589 = vld [vmem:[%s8 + $0x6f0] sm:$0xff]
        %v4590 = vld [vmem:[%s8 + $0x6f8] sm:$0xff]
        %v4591 = vld [vmem:[%s8 + $0x700] sm:$0xff]
        %v4592 = vld [vmem:[%s8 + $0x708] sm:$0xff]
        %v4593 = vld [vmem:[%s8 + $0x710] sm:$0xff]
        %v4594 = vld [vmem:[%s8 + $0x718] sm:$0xff]
        %v4595 = vld [vmem:[%s8 + $0x720] sm:$0xff]
        %v4596 = vld [vmem:[%s8 + $0x728] sm:$0xff]
        %v4597 = vld [vmem:[%s8 + $0x730] sm:$0xff]
        %v4598 = vld [vmem:[%s8 + $0x738] sm:$0xff]
        %v4599 = vld [vmem:[%s8 + $0x740] sm:$0xff]
        %v4600 = vld [vmem:[%s8 + $0x748] sm:$0xff]
        %v4601 = vld [vmem:[%s8 + $0x750] sm:$0xff]
        %v4602 = vld [vmem:[%s8 + $0x758] sm:$0xff]
        %v4603 = vld [vmem:[%s8 + $0x760] sm:$0xff]
        %v4604 = vld [vmem:[%s8 + $0x768] sm:$0xff]
        %v4605 = vld [vmem:[%s8 + $0x770] sm:$0xff]
        %v4606 = vld [vmem:[%s8 + $0x778] sm:$0xff]
        %v4607 = vld [vmem:[%s8 + $0x780] sm:$0xff]
        %v4608 = vld [vmem:[%s8 + $0x788] sm:$0xff]
        %v4609 = vld [vmem:[%s8 + $0x790] sm:$0xff]
        %v4610 = vld [vmem:[%s8 + $0x798] sm:$0xff]
        %v4611 = vld [vmem:[%s8 + $0x7a0] sm:$0xff]
        %v4612 = vld [vmem:[%s8 + $0x7a8] sm:$0xff]
        %v4613 = vld [vmem:[%s8 + $0x7b0] sm:$0xff]
        %v4614 = vld [vmem:[%s8 + $0x7b8] sm:$0xff]
        %v4615 = vld [vmem:[%s8 + $0x7c0] sm:$0xff]
        %v4616 = vld [vmem:[%s8 + $0x7c8] sm:$0xff]
        %v4617 = vld [vmem:[%s8 + $0x7d0] sm:$0xff]
        %v4618 = vld [vmem:[%s8 + $0x7d8] sm:$0xff]
        %v4619 = vld [vmem:[%s8 + $0x7e0] sm:$0xff]
        %v4620 = vld [vmem:[%s8 + $0x7e8] sm:$0xff]
        %v4621 = vld [vmem:[%s8 + $0x7f0] sm:$0xff]
        %v4622 = vld [vmem:[%s8 + $0x7f8] sm:$0xff]
        %v4623 = vmax.f32 %v4141, %v4157
        %v4624 = vrot.slane %v4623, 4
        %v4625 = vmax.f32 %v4623, %v4624
        %v4626 = vrot.slane %v4625, 2
        %v4627 = vmax.f32 %v4625, %v4626
        %v4628 = vrot.slane %v4627, 1
        %v4629 = vmax.f32 %v4627, %v4628
        %v4630 = vmax.f32 %v4142, %v4158
        %v4631 = vrot.slane %v4630, 4
        %v4632 = vmax.f32 %v4630, %v4631
        %v4633 = vrot.slane %v4632, 2
        %v4634 = vmax.f32 %v4632, %v4633
        %v4635 = vrot.slane %v4634, 1
        %v4636 = vmax.f32 %v4634, %v4635
        %v4637 = vmax.f32 %v4143, %v4159
        %v4638 = vrot.slane %v4637, 4
        %v4639 = vmax.f32 %v4637, %v4638
        %v4640 = vrot.slane %v4639, 2
        %v4641 = vmax.f32 %v4639, %v4640
        %v4642 = vrot.slane %v4641, 1
        %v4643 = vmax.f32 %v4641, %v4642
        %v4644 = vmax.f32 %v4144, %v4160
        %v4645 = vrot.slane %v4644, 4
        %v4646 = vmax.f32 %v4644, %v4645
        %v4647 = vrot.slane %v4646, 2
        %v4648 = vmax.f32 %v4646, %v4647
        %v4649 = vrot.slane %v4648, 1
        %v4650 = vmax.f32 %v4648, %v4649
        %v4651 = vmax.f32 %v4145, %v4161
        %v4652 = vrot.slane %v4651, 4
        %v4653 = vmax.f32 %v4651, %v4652
        %v4654 = vrot.slane %v4653, 2
        %v4655 = vmax.f32 %v4653, %v4654
        %v4656 = vrot.slane %v4655, 1
        %v4657 = vmax.f32 %v4655, %v4656
        %v4658 = vmax.f32 %v4146, %v4162
        %v4659 = vrot.slane %v4658, 4
        %v4660 = vmax.f32 %v4658, %v4659
        %v4661 = vrot.slane %v4660, 2
        %v4662 = vmax.f32 %v4660, %v4661
        %v4663 = vrot.slane %v4662, 1
        %v4664 = vmax.f32 %v4662, %v4663
        %v4665 = vmax.f32 %v4147, %v4163
        %v4666 = vrot.slane %v4665, 4
        %v4667 = vmax.f32 %v4665, %v4666
        %v4668 = vrot.slane %v4667, 2
        %v4669 = vmax.f32 %v4667, %v4668
        %v4670 = vrot.slane %v4669, 1
        %v4671 = vmax.f32 %v4669, %v4670
        %v4672 = vmax.f32 %v4148, %v4164
        %v4673 = vrot.slane %v4672, 4
        %v4674 = vmax.f32 %v4672, %v4673
        %v4675 = vrot.slane %v4674, 2
        %v4676 = vmax.f32 %v4674, %v4675
        %v4677 = vrot.slane %v4676, 1
        %v4678 = vmax.f32 %v4676, %v4677
        %v4679 = vmax.f32 %v4149, %v4165
        %v4680 = vrot.slane %v4679, 4
        %v4681 = vmax.f32 %v4679, %v4680
        %v4682 = vrot.slane %v4681, 2
        %v4683 = vmax.f32 %v4681, %v4682
        %v4684 = vrot.slane %v4683, 1
        %v4685 = vmax.f32 %v4683, %v4684
        %v4686 = vmax.f32 %v4150, %v4166
        %v4687 = vrot.slane %v4686, 4
        %v4688 = vmax.f32 %v4686, %v4687
        %v4689 = vrot.slane %v4688, 2
        %v4690 = vmax.f32 %v4688, %v4689
        %v4691 = vrot.slane %v4690, 1
        %v4692 = vmax.f32 %v4690, %v4691
        %v4693 = vmax.f32 %v4151, %v4167
        %v4694 = vrot.slane %v4693, 4
        %v4695 = vmax.f32 %v4693, %v4694
        %v4696 = vrot.slane %v4695, 2
        %v4697 = vmax.f32 %v4695, %v4696
        %v4698 = vrot.slane %v4697, 1
        %v4699 = vmax.f32 %v4697, %v4698
        %v4700 = vmax.f32 %v4152, %v4168
        %v4701 = vrot.slane %v4700, 4
        %v4702 = vmax.f32 %v4700, %v4701
        %v4703 = vrot.slane %v4702, 2
        %v4704 = vmax.f32 %v4702, %v4703
        %v4705 = vrot.slane %v4704, 1
        %v4706 = vmax.f32 %v4704, %v4705
        %v4707 = vmax.f32 %v4153, %v4169
        %v4708 = vrot.slane %v4707, 4
        %v4709 = vmax.f32 %v4707, %v4708
        %v4710 = vrot.slane %v4709, 2
        %v4711 = vmax.f32 %v4709, %v4710
        %v4712 = vrot.slane %v4711, 1
        %v4713 = vmax.f32 %v4711, %v4712
        %v4714 = vmax.f32 %v4154, %v4170
        %v4715 = vrot.slane %v4714, 4
        %v4716 = vmax.f32 %v4714, %v4715
        %v4717 = vrot.slane %v4716, 2
        %v4718 = vmax.f32 %v4716, %v4717
        %v4719 = vrot.slane %v4718, 1
        %v4720 = vmax.f32 %v4718, %v4719
        %v4721 = vmax.f32 %v4155, %v4171
        %v4722 = vrot.slane %v4721, 4
        %v4723 = vmax.f32 %v4721, %v4722
        %v4724 = vrot.slane %v4723, 2
        %v4725 = vmax.f32 %v4723, %v4724
        %v4726 = vrot.slane %v4725, 1
        %v4727 = vmax.f32 %v4725, %v4726
        %v4728 = vmax.f32 %v4156, %v4172
        %v4729 = vrot.slane %v4728, 4
        %v4730 = vmax.f32 %v4728, %v4729
        %v4731 = vrot.slane %v4730, 2
        %v4732 = vmax.f32 %v4730, %v4731
        %v4733 = vrot.slane %v4732, 1
        %v4734 = vmax.f32 %v4732, %v4733
        %v4735 = vsub.f32 %v4141, %v4629
        %v4736 = vsub.f32 %v4142, %v4636
        %v4737 = vsub.f32 %v4143, %v4643
        %v4738 = vsub.f32 %v4144, %v4650
        %v4739 = vsub.f32 %v4145, %v4657
        %v4740 = vsub.f32 %v4146, %v4664
        %v4741 = vsub.f32 %v4147, %v4671
        %v4742 = vsub.f32 %v4148, %v4678
        %v4743 = vsub.f32 %v4149, %v4685
        %v4744 = vsub.f32 %v4150, %v4692
        %v4745 = vsub.f32 %v4151, %v4699
        %v4746 = vsub.f32 %v4152, %v4706
        %v4747 = vsub.f32 %v4153, %v4713
        %v4748 = vsub.f32 %v4154, %v4720
        %v4749 = vsub.f32 %v4155, %v4727
        %v4750 = vsub.f32 %v4156, %v4734
        %v4751 = vsub.f32 %v4157, %v4629
        %v4752 = vsub.f32 %v4158, %v4636
        %v4753 = vsub.f32 %v4159, %v4643
        %v4754 = vsub.f32 %v4160, %v4650
        %v4755 = vsub.f32 %v4161, %v4657
        %v4756 = vsub.f32 %v4162, %v4664
        %v4757 = vsub.f32 %v4163, %v4671
        %v4758 = vsub.f32 %v4164, %v4678
        %v4759 = vsub.f32 %v4165, %v4685
        %v4760 = vsub.f32 %v4166, %v4692
        %v4761 = vsub.f32 %v4167, %v4699
        %v4762 = vsub.f32 %v4168, %v4706
        %v4763 = vsub.f32 %v4169, %v4713
        %v4764 = vsub.f32 %v4170, %v4720
        %v4765 = vsub.f32 %v4171, %v4727
        %v4766 = vsub.f32 %v4172, %v4734
        %v4767 = vmul.f32 %v4735, 1.442695
        %v4768 = vpow.pop %v4767
        %v4769 = vmul.f32 %v4736, 1.442695
        %v4770 = vpow.pop %v4769
        %v4771 = vmul.f32 %v4737, 1.442695
        %v4772 = vpow.pop %v4771
        %v4773 = vmul.f32 %v4738, 1.442695
        %v4774 = vpow.pop %v4773
        %v4775 = vmul.f32 %v4739, 1.442695
        %v4776 = vpow.pop %v4775
        %v4777 = vmul.f32 %v4740, 1.442695
        %v4778 = vpow.pop %v4777
        %v4779 = vmul.f32 %v4741, 1.442695
        %v4780 = vpow.pop %v4779
        %v4781 = vmul.f32 %v4742, 1.442695
        %v4782 = vpow.pop %v4781
        %v4783 = vmul.f32 %v4743, 1.442695
        %v4784 = vpow.pop %v4783
        %v4785 = vmul.f32 %v4744, 1.442695
        %v4786 = vpow.pop %v4785
        %v4787 = vmul.f32 %v4745, 1.442695
        %v4788 = vpow.pop %v4787
        %v4789 = vmul.f32 %v4746, 1.442695
        %v4790 = vpow.pop %v4789
        %v4791 = vmul.f32 %v4747, 1.442695
        %v4792 = vpow.pop %v4791
        %v4793 = vmul.f32 %v4748, 1.442695
        %v4794 = vpow.pop %v4793
        %v4795 = vmul.f32 %v4749, 1.442695
        %v4796 = vpow.pop %v4795
        %v4797 = vmul.f32 %v4750, 1.442695
        %v4798 = vpow.pop %v4797
        %v4799 = vmul.f32 %v4751, 1.442695
        %v4800 = vpow.pop %v4799
        %v4801 = vmul.f32 %v4752, 1.442695
        %v4802 = vpow.pop %v4801
        %v4803 = vmul.f32 %v4753, 1.442695
        %v4804 = vpow.pop %v4803
        %v4805 = vmul.f32 %v4754, 1.442695
        %v4806 = vpow.pop %v4805
        %v4807 = vmul.f32 %v4755, 1.442695
        %v4808 = vpow.pop %v4807
        %v4809 = vmul.f32 %v4756, 1.442695
        %v4810 = vpow.pop %v4809
        %v4811 = vmul.f32 %v4757, 1.442695
        %v4812 = vpow.pop %v4811
        %v4813 = vmul.f32 %v4758, 1.442695
        %v4814 = vpow.pop %v4813
        %v4815 = vmul.f32 %v4759, 1.442695
        %v4816 = vpow.pop %v4815
        %v4817 = vmul.f32 %v4760, 1.442695
        %v4818 = vpow.pop %v4817
        %v4819 = vmul.f32 %v4761, 1.442695
        %v4820 = vpow.pop %v4819
        %v4821 = vmul.f32 %v4762, 1.442695
        %v4822 = vpow.pop %v4821
        %v4823 = vmul.f32 %v4763, 1.442695
        %v4824 = vpow.pop %v4823
        %v4825 = vmul.f32 %v4764, 1.442695
        %v4826 = vpow.pop %v4825
        %v4827 = vmul.f32 %v4765, 1.442695
        %v4828 = vpow.pop %v4827
        %v4829 = vmul.f32 %v4766, 1.442695
        %v4830 = vpow.pop %v4829
        %v4831 = vadd.f32 %v4768, %v4800
        %v4832 = vrot.slane %v4831, 4
        %v4833 = vadd.f32 %v4831, %v4832
        %v4834 = vrot.slane %v4833, 2
        %v4835 = vadd.f32 %v4833, %v4834
        %v4836 = vrot.slane %v4835, 1
        %v4837 = vadd.f32 %v4835, %v4836
        %v4838 = vadd.f32 %v4770, %v4802
        %v4839 = vrot.slane %v4838, 4
        %v4840 = vadd.f32 %v4838, %v4839
        %v4841 = vrot.slane %v4840, 2
        %v4842 = vadd.f32 %v4840, %v4841
        %v4843 = vrot.slane %v4842, 1
        %v4844 = vadd.f32 %v4842, %v4843
        %v4845 = vadd.f32 %v4772, %v4804
        %v4846 = vrot.slane %v4845, 4
        %v4847 = vadd.f32 %v4845, %v4846
        %v4848 = vrot.slane %v4847, 2
        %v4849 = vadd.f32 %v4847, %v4848
        %v4850 = vrot.slane %v4849, 1
        %v4851 = vadd.f32 %v4849, %v4850
        %v4852 = vadd.f32 %v4774, %v4806
        %v4853 = vrot.slane %v4852, 4
        %v4854 = vadd.f32 %v4852, %v4853
        %v4855 = vrot.slane %v4854, 2
        %v4856 = vadd.f32 %v4854, %v4855
        %v4857 = vrot.slane %v4856, 1
        %v4858 = vadd.f32 %v4856, %v4857
        %v4859 = vadd.f32 %v4776, %v4808
        %v4860 = vrot.slane %v4859, 4
        %v4861 = vadd.f32 %v4859, %v4860
        %v4862 = vrot.slane %v4861, 2
        %v4863 = vadd.f32 %v4861, %v4862
        %v4864 = vrot.slane %v4863, 1
        %v4865 = vadd.f32 %v4863, %v4864
        %v4866 = vadd.f32 %v4778, %v4810
        %v4867 = vrot.slane %v4866, 4
        %v4868 = vadd.f32 %v4866, %v4867
        %v4869 = vrot.slane %v4868, 2
        %v4870 = vadd.f32 %v4868, %v4869
        %v4871 = vrot.slane %v4870, 1
        %v4872 = vadd.f32 %v4870, %v4871
        %v4873 = vadd.f32 %v4780, %v4812
        %v4874 = vrot.slane %v4873, 4
        %v4875 = vadd.f32 %v4873, %v4874
        %v4876 = vrot.slane %v4875, 2
        %v4877 = vadd.f32 %v4875, %v4876
        %v4878 = vrot.slane %v4877, 1
        %v4879 = vadd.f32 %v4877, %v4878
        %v4880 = vadd.f32 %v4782, %v4814
        %v4881 = vrot.slane %v4880, 4
        %v4882 = vadd.f32 %v4880, %v4881
        %v4883 = vrot.slane %v4882, 2
        %v4884 = vadd.f32 %v4882, %v4883
        %v4885 = vrot.slane %v4884, 1
        %v4886 = vadd.f32 %v4884, %v4885
        %v4887 = vadd.f32 %v4784, %v4816
        %v4888 = vrot.slane %v4887, 4
        %v4889 = vadd.f32 %v4887, %v4888
        %v4890 = vrot.slane %v4889, 2
        %v4891 = vadd.f32 %v4889, %v4890
        %v4892 = vrot.slane %v4891, 1
        %v4893 = vadd.f32 %v4891, %v4892
        %v4894 = vadd.f32 %v4786, %v4818
        %v4895 = vrot.slane %v4894, 4
        %v4896 = vadd.f32 %v4894, %v4895
        %v4897 = vrot.slane %v4896, 2
        %v4898 = vadd.f32 %v4896, %v4897
        %v4899 = vrot.slane %v4898, 1
        %v4900 = vadd.f32 %v4898, %v4899
        %v4901 = vadd.f32 %v4788, %v4820
        %v4902 = vrot.slane %v4901, 4
        %v4903 = vadd.f32 %v4901, %v4902
        %v4904 = vrot.slane %v4903, 2
        %v4905 = vadd.f32 %v4903, %v4904
        %v4906 = vrot.slane %v4905, 1
        %v4907 = vadd.f32 %v4905, %v4906
        %v4908 = vadd.f32 %v4790, %v4822
        %v4909 = vrot.slane %v4908, 4
        %v4910 = vadd.f32 %v4908, %v4909
        %v4911 = vrot.slane %v4910, 2
        %v4912 = vadd.f32 %v4910, %v4911
        %v4913 = vrot.slane %v4912, 1
        %v4914 = vadd.f32 %v4912, %v4913
        %v4915 = vadd.f32 %v4792, %v4824
        %v4916 = vrot.slane %v4915, 4
        %v4917 = vadd.f32 %v4915, %v4916
        %v4918 = vrot.slane %v4917, 2
        %v4919 = vadd.f32 %v4917, %v4918
        %v4920 = vrot.slane %v4919, 1
        %v4921 = vadd.f32 %v4919, %v4920
        %v4922 = vadd.f32 %v4794, %v4826
        %v4923 = vrot.slane %v4922, 4
        %v4924 = vadd.f32 %v4922, %v4923
        %v4925 = vrot.slane %v4924, 2
        %v4926 = vadd.f32 %v4924, %v4925
        %v4927 = vrot.slane %v4926, 1
        %v4928 = vadd.f32 %v4926, %v4927
        %v4929 = vadd.f32 %v4796, %v4828
        %v4930 = vrot.slane %v4929, 4
        %v4931 = vadd.f32 %v4929, %v4930
        %v4932 = vrot.slane %v4931, 2
        %v4933 = vadd.f32 %v4931, %v4932
        %v4934 = vrot.slane %v4933, 1
        %v4935 = vadd.f32 %v4933, %v4934
        %v4936 = vadd.f32 %v4798, %v4830
        %v4937 = vrot.slane %v4936, 4
        %v4938 = vadd.f32 %v4936, %v4937
        %v4939 = vrot.slane %v4938, 2
        %v4940 = vadd.f32 %v4938, %v4939
        %v4941 = vrot.slane %v4940, 1
        %v4942 = vadd.f32 %v4940, %v4941
        %v4943 = vrcp.pop %v4837
        %v4944 = vrcp.pop %v4844
        %v4945 = vrcp.pop %v4851
        %v4946 = vrcp.pop %v4858
        %v4947 = vrcp.pop %v4865
        %v4948 = vrcp.pop %v4872
        %v4949 = vrcp.pop %v4879
        %v4950 = vrcp.pop %v4886
        %v4951 = vrcp.pop %v4893
        %v4952 = vrcp.pop %v4900
        %v4953 = vrcp.pop %v4907
        %v4954 = vrcp.pop %v4914
        %v4955 = vrcp.pop %v4921
        %v4956 = vrcp.pop %v4928
        %v4957 = vrcp.pop %v4935
        %v4958 = vrcp.pop %v4942
        %v4959 = vmul.f32 %v4768, %v4943
        %v4960 = vmul.f32 %v4770, %v4944
        %v4961 = vmul.f32 %v4772, %v4945
        %v4962 = vmul.f32 %v4774, %v4946
        %v4963 = vmul.f32 %v4776, %v4947
        %v4964 = vmul.f32 %v4778, %v4948
        %v4965 = vmul.f32 %v4780, %v4949
        %v4966 = vmul.f32 %v4782, %v4950
        %v4967 = vmul.f32 %v4784, %v4951
        %v4968 = vmul.f32 %v4786, %v4952
        %v4969 = vmul.f32 %v4788, %v4953
        %v4970 = vmul.f32 %v4790, %v4954
        %v4971 = vmul.f32 %v4792, %v4955
        %v4972 = vmul.f32 %v4794, %v4956
        %v4973 = vmul.f32 %v4796, %v4957
        %v4974 = vmul.f32 %v4798, %v4958
        %v4975 = vmul.f32 %v4800, %v4943
        %v4976 = vmul.f32 %v4802, %v4944
        %v4977 = vmul.f32 %v4804, %v4945
        %v4978 = vmul.f32 %v4806, %v4946
        %v4979 = vmul.f32 %v4808, %v4947
        %v4980 = vmul.f32 %v4810, %v4948
        %v4981 = vmul.f32 %v4812, %v4949
        %v4982 = vmul.f32 %v4814, %v4950
        %v4983 = vmul.f32 %v4816, %v4951
        %v4984 = vmul.f32 %v4818, %v4952
        %v4985 = vmul.f32 %v4820, %v4953
        %v4986 = vmul.f32 %v4822, %v4954
        %v4987 = vmul.f32 %v4824, %v4955
        %v4988 = vmul.f32 %v4826, %v4956
        %v4989 = vmul.f32 %v4828, %v4957
        %v4990 = vmul.f32 %v4830, %v4958
        %v4991 = vpack.c.bf16 %v4975, %v4959
        %v4992 = vpack.c.bf16 %v4976, %v4960
        %v4993 = vpack.c.bf16 %v4977, %v4961
        %v4994 = vpack.c.bf16 %v4978, %v4962
        %v4995 = vpack.c.bf16 %v4979, %v4963
        %v4996 = vpack.c.bf16 %v4980, %v4964
        %v4997 = vpack.c.bf16 %v4981, %v4965
        %v4998 = vpack.c.bf16 %v4982, %v4966
        %v4999 = vpack.c.bf16 %v4983, %v4967
        %v5000 = vpack.c.bf16 %v4984, %v4968
        %v5001 = vpack.c.bf16 %v4985, %v4969
        %v5002 = vpack.c.bf16 %v4986, %v4970
        %v5003 = vpack.c.bf16 %v4987, %v4971
        %v5004 = vpack.c.bf16 %v4988, %v4972
        %v5005 = vpack.c.bf16 %v4989, %v4973
        %v5006 = vpack.c.bf16 %v4990, %v4974
        %v5263 = vunpack.c.l.b16 %v4367
        %v5264 = vunpack.c.h.b16 %v4367
        %v5265 = vunpack.c.l.b16 %v4368
        %v5266 = vunpack.c.h.b16 %v4368
        %v5267 = vunpack.c.l.b16 %v4369
        %v5268 = vunpack.c.h.b16 %v4369
        %v5269 = vunpack.c.l.b16 %v4370
        %v5270 = vunpack.c.h.b16 %v4370
        %v5271 = vunpack.c.l.b16 %v4371
        %v5272 = vunpack.c.h.b16 %v4371
        %v5273 = vunpack.c.l.b16 %v4372
        %v5274 = vunpack.c.h.b16 %v4372
        %v5275 = vunpack.c.l.b16 %v4373
        %v5276 = vunpack.c.h.b16 %v4373
        %v5277 = vunpack.c.l.b16 %v4374
        %v5278 = vunpack.c.h.b16 %v4374
        %v5279 = vunpack.c.l.b16 %v4375
        %v5280 = vunpack.c.h.b16 %v4375
        %v5281 = vunpack.c.l.b16 %v4376
        %v5282 = vunpack.c.h.b16 %v4376
        %v5283 = vunpack.c.l.b16 %v4377
        %v5284 = vunpack.c.h.b16 %v4377
        %v5285 = vunpack.c.l.b16 %v4378
        %v5286 = vunpack.c.h.b16 %v4378
        %v5287 = vunpack.c.l.b16 %v4379
        %v5288 = vunpack.c.h.b16 %v4379
        %v5289 = vunpack.c.l.b16 %v4380
        %v5290 = vunpack.c.h.b16 %v4380
        %v5291 = vunpack.c.l.b16 %v4381
        %v5292 = vunpack.c.h.b16 %v4381
        %v5293 = vunpack.c.l.b16 %v4382
        %v5294 = vunpack.c.h.b16 %v4382
        %v5295 = vunpack.c.l.b16 %v4383
        %v5296 = vunpack.c.h.b16 %v4383
        %v5297 = vunpack.c.l.b16 %v4384
        %v5298 = vunpack.c.h.b16 %v4384
        %v5299 = vunpack.c.l.b16 %v4385
        %v5300 = vunpack.c.h.b16 %v4385
        %v5301 = vunpack.c.l.b16 %v4386
        %v5302 = vunpack.c.h.b16 %v4386
        %v5303 = vunpack.c.l.b16 %v4387
        %v5304 = vunpack.c.h.b16 %v4387
        %v5305 = vunpack.c.l.b16 %v4388
        %v5306 = vunpack.c.h.b16 %v4388
        %v5307 = vunpack.c.l.b16 %v4389
        %v5308 = vunpack.c.h.b16 %v4389
        %v5309 = vunpack.c.l.b16 %v4390
        %v5310 = vunpack.c.h.b16 %v4390
        %v5311 = vunpack.c.l.b16 %v4391
        %v5312 = vunpack.c.h.b16 %v4391
        %v5313 = vunpack.c.l.b16 %v4392
        %v5314 = vunpack.c.h.b16 %v4392
        %v5315 = vunpack.c.l.b16 %v4393
        %v5316 = vunpack.c.h.b16 %v4393
        %v5317 = vunpack.c.l.b16 %v4394
        %v5318 = vunpack.c.h.b16 %v4394
        %v5319 = vunpack.c.l.b16 %v4395
        %v5320 = vunpack.c.h.b16 %v4395
        %v5321 = vunpack.c.l.b16 %v4396
        %v5322 = vunpack.c.h.b16 %v4396
        %v5323 = vunpack.c.l.b16 %v4397
        %v5324 = vunpack.c.h.b16 %v4397
        %v5325 = vunpack.c.l.b16 %v4398
        %v5326 = vunpack.c.h.b16 %v4398
        %v5327 = vunpack.c.l.b16 %v4399
        %v5328 = vunpack.c.h.b16 %v4399
        %v5329 = vunpack.c.l.b16 %v4400
        %v5330 = vunpack.c.h.b16 %v4400
        %v5331 = vunpack.c.l.b16 %v4401
        %v5332 = vunpack.c.h.b16 %v4401
        %v5333 = vunpack.c.l.b16 %v4402
        %v5334 = vunpack.c.h.b16 %v4402
        %v5335 = vunpack.c.l.b16 %v4403
        %v5336 = vunpack.c.h.b16 %v4403
        %v5337 = vunpack.c.l.b16 %v4404
        %v5338 = vunpack.c.h.b16 %v4404
        %v5339 = vunpack.c.l.b16 %v4405
        %v5340 = vunpack.c.h.b16 %v4405
        %v5341 = vunpack.c.l.b16 %v4406
        %v5342 = vunpack.c.h.b16 %v4406
        %v5343 = vunpack.c.l.b16 %v4407
        %v5344 = vunpack.c.h.b16 %v4407
        %v5345 = vunpack.c.l.b16 %v4408
        %v5346 = vunpack.c.h.b16 %v4408
        %v5347 = vunpack.c.l.b16 %v4409
        %v5348 = vunpack.c.h.b16 %v4409
        %v5349 = vunpack.c.l.b16 %v4410
        %v5350 = vunpack.c.h.b16 %v4410
        %v5351 = vunpack.c.l.b16 %v4411
        %v5352 = vunpack.c.h.b16 %v4411
        %v5353 = vunpack.c.l.b16 %v4412
        %v5354 = vunpack.c.h.b16 %v4412
        %v5355 = vunpack.c.l.b16 %v4413
        %v5356 = vunpack.c.h.b16 %v4413
        %v5357 = vunpack.c.l.b16 %v4414
        %v5358 = vunpack.c.h.b16 %v4414
        %v5359 = vunpack.c.l.b16 %v4415
        %v5360 = vunpack.c.h.b16 %v4415
        %v5361 = vunpack.c.l.b16 %v4416
        %v5362 = vunpack.c.h.b16 %v4416
        %v5363 = vunpack.c.l.b16 %v4417
        %v5364 = vunpack.c.h.b16 %v4417
        %v5365 = vunpack.c.l.b16 %v4418
        %v5366 = vunpack.c.h.b16 %v4418
        %v5367 = vunpack.c.l.b16 %v4419
        %v5368 = vunpack.c.h.b16 %v4419
        %v5369 = vunpack.c.l.b16 %v4420
        %v5370 = vunpack.c.h.b16 %v4420
        %v5371 = vunpack.c.l.b16 %v4421
        %v5372 = vunpack.c.h.b16 %v4421
        %v5373 = vunpack.c.l.b16 %v4422
        %v5374 = vunpack.c.h.b16 %v4422
        %v5375 = vunpack.c.l.b16 %v4423
        %v5376 = vunpack.c.h.b16 %v4423
        %v5377 = vunpack.c.l.b16 %v4424
        %v5378 = vunpack.c.h.b16 %v4424
        %v5379 = vunpack.c.l.b16 %v4425
        %v5380 = vunpack.c.h.b16 %v4425
        %v5381 = vunpack.c.l.b16 %v4426
        %v5382 = vunpack.c.h.b16 %v4426
        %v5383 = vunpack.c.l.b16 %v4427
        %v5384 = vunpack.c.h.b16 %v4427
        %v5385 = vunpack.c.l.b16 %v4428
        %v5386 = vunpack.c.h.b16 %v4428
        %v5387 = vunpack.c.l.b16 %v4429
        %v5388 = vunpack.c.h.b16 %v4429
        %v5389 = vunpack.c.l.b16 %v4430
        %v5390 = vunpack.c.h.b16 %v4430
        %v5391 = vunpack.c.l.b16 %v4431
        %v5392 = vunpack.c.h.b16 %v4431
        %v5393 = vunpack.c.l.b16 %v4432
        %v5394 = vunpack.c.h.b16 %v4432
        %v5395 = vunpack.c.l.b16 %v4433
        %v5396 = vunpack.c.h.b16 %v4433
        %v5397 = vunpack.c.l.b16 %v4434
        %v5398 = vunpack.c.h.b16 %v4434
        %v5399 = vunpack.c.l.b16 %v4435
        %v5400 = vunpack.c.h.b16 %v4435
        %v5401 = vunpack.c.l.b16 %v4436
        %v5402 = vunpack.c.h.b16 %v4436
        %v5403 = vunpack.c.l.b16 %v4437
        %v5404 = vunpack.c.h.b16 %v4437
        %v5405 = vunpack.c.l.b16 %v4438
        %v5406 = vunpack.c.h.b16 %v4438
        %v5407 = vunpack.c.l.b16 %v4439
        %v5408 = vunpack.c.h.b16 %v4439
        %v5409 = vunpack.c.l.b16 %v4440
        %v5410 = vunpack.c.h.b16 %v4440
        %v5411 = vunpack.c.l.b16 %v4441
        %v5412 = vunpack.c.h.b16 %v4441
        %v5413 = vunpack.c.l.b16 %v4442
        %v5414 = vunpack.c.h.b16 %v4442
        %v5415 = vunpack.c.l.b16 %v4443
        %v5416 = vunpack.c.h.b16 %v4443
        %v5417 = vunpack.c.l.b16 %v4444
        %v5418 = vunpack.c.h.b16 %v4444
        %v5419 = vunpack.c.l.b16 %v4445
        %v5420 = vunpack.c.h.b16 %v4445
        %v5421 = vunpack.c.l.b16 %v4446
        %v5422 = vunpack.c.h.b16 %v4446
        %v5423 = vunpack.c.l.b16 %v4447
        %v5424 = vunpack.c.h.b16 %v4447
        %v5425 = vunpack.c.l.b16 %v4448
        %v5426 = vunpack.c.h.b16 %v4448
        %v5427 = vunpack.c.l.b16 %v4449
        %v5428 = vunpack.c.h.b16 %v4449
        %v5429 = vunpack.c.l.b16 %v4450
        %v5430 = vunpack.c.h.b16 %v4450
        %v5431 = vunpack.c.l.b16 %v4451
        %v5432 = vunpack.c.h.b16 %v4451
        %v5433 = vunpack.c.l.b16 %v4452
        %v5434 = vunpack.c.h.b16 %v4452
        %v5435 = vunpack.c.l.b16 %v4453
        %v5436 = vunpack.c.h.b16 %v4453
        %v5437 = vunpack.c.l.b16 %v4454
        %v5438 = vunpack.c.h.b16 %v4454
        %v5439 = vunpack.c.l.b16 %v4455
        %v5440 = vunpack.c.h.b16 %v4455
        %v5441 = vunpack.c.l.b16 %v4456
        %v5442 = vunpack.c.h.b16 %v4456
        %v5443 = vunpack.c.l.b16 %v4457
        %v5444 = vunpack.c.h.b16 %v4457
        %v5445 = vunpack.c.l.b16 %v4458
        %v5446 = vunpack.c.h.b16 %v4458
        %v5447 = vunpack.c.l.b16 %v4459
        %v5448 = vunpack.c.h.b16 %v4459
        %v5449 = vunpack.c.l.b16 %v4460
        %v5450 = vunpack.c.h.b16 %v4460
        %v5451 = vunpack.c.l.b16 %v4461
        %v5452 = vunpack.c.h.b16 %v4461
        %v5453 = vunpack.c.l.b16 %v4462
        %v5454 = vunpack.c.h.b16 %v4462
        %v5455 = vunpack.c.l.b16 %v4463
        %v5456 = vunpack.c.h.b16 %v4463
        %v5457 = vunpack.c.l.b16 %v4464
        %v5458 = vunpack.c.h.b16 %v4464
        %v5459 = vunpack.c.l.b16 %v4465
        %v5460 = vunpack.c.h.b16 %v4465
        %v5461 = vunpack.c.l.b16 %v4466
        %v5462 = vunpack.c.h.b16 %v4466
        %v5463 = vunpack.c.l.b16 %v4467
        %v5464 = vunpack.c.h.b16 %v4467
        %v5465 = vunpack.c.l.b16 %v4468
        %v5466 = vunpack.c.h.b16 %v4468
        %v5467 = vunpack.c.l.b16 %v4469
        %v5468 = vunpack.c.h.b16 %v4469
        %v5469 = vunpack.c.l.b16 %v4470
        %v5470 = vunpack.c.h.b16 %v4470
        %v5471 = vunpack.c.l.b16 %v4471
        %v5472 = vunpack.c.h.b16 %v4471
        %v5473 = vunpack.c.l.b16 %v4472
        %v5474 = vunpack.c.h.b16 %v4472
        %v5475 = vunpack.c.l.b16 %v4473
        %v5476 = vunpack.c.h.b16 %v4473
        %v5477 = vunpack.c.l.b16 %v4474
        %v5478 = vunpack.c.h.b16 %v4474
        %v5479 = vunpack.c.l.b16 %v4475
        %v5480 = vunpack.c.h.b16 %v4475
        %v5481 = vunpack.c.l.b16 %v4476
        %v5482 = vunpack.c.h.b16 %v4476
        %v5483 = vunpack.c.l.b16 %v4477
        %v5484 = vunpack.c.h.b16 %v4477
        %v5485 = vunpack.c.l.b16 %v4478
        %v5486 = vunpack.c.h.b16 %v4478
        %v5487 = vunpack.c.l.b16 %v4479
        %v5488 = vunpack.c.h.b16 %v4479
        %v5489 = vunpack.c.l.b16 %v4480
        %v5490 = vunpack.c.h.b16 %v4480
        %v5491 = vunpack.c.l.b16 %v4481
        %v5492 = vunpack.c.h.b16 %v4481
        %v5493 = vunpack.c.l.b16 %v4482
        %v5494 = vunpack.c.h.b16 %v4482
        %v5495 = vunpack.c.l.b16 %v4483
        %v5496 = vunpack.c.h.b16 %v4483
        %v5497 = vunpack.c.l.b16 %v4484
        %v5498 = vunpack.c.h.b16 %v4484
        %v5499 = vunpack.c.l.b16 %v4485
        %v5500 = vunpack.c.h.b16 %v4485
        %v5501 = vunpack.c.l.b16 %v4486
        %v5502 = vunpack.c.h.b16 %v4486
        %v5503 = vunpack.c.l.b16 %v4487
        %v5504 = vunpack.c.h.b16 %v4487
        %v5505 = vunpack.c.l.b16 %v4488
        %v5506 = vunpack.c.h.b16 %v4488
        %v5507 = vunpack.c.l.b16 %v4489
        %v5508 = vunpack.c.h.b16 %v4489
        %v5509 = vunpack.c.l.b16 %v4490
        %v5510 = vunpack.c.h.b16 %v4490
        %v5511 = vunpack.c.l.b16 %v4491
        %v5512 = vunpack.c.h.b16 %v4491
        %v5513 = vunpack.c.l.b16 %v4492
        %v5514 = vunpack.c.h.b16 %v4492
        %v5515 = vunpack.c.l.b16 %v4493
        %v5516 = vunpack.c.h.b16 %v4493
        %v5517 = vunpack.c.l.b16 %v4494
        %v5518 = vunpack.c.h.b16 %v4494
        %v5519 = vunpack.c.l.b16 %v4495
        %v5520 = vunpack.c.h.b16 %v4495
        %v5521 = vunpack.c.l.b16 %v4496
        %v5522 = vunpack.c.h.b16 %v4496
        %v5523 = vunpack.c.l.b16 %v4497
        %v5524 = vunpack.c.h.b16 %v4497
        %v5525 = vunpack.c.l.b16 %v4498
        %v5526 = vunpack.c.h.b16 %v4498
        %v5527 = vunpack.c.l.b16 %v4499
        %v5528 = vunpack.c.h.b16 %v4499
        %v5529 = vunpack.c.l.b16 %v4500
        %v5530 = vunpack.c.h.b16 %v4500
        %v5531 = vunpack.c.l.b16 %v4501
        %v5532 = vunpack.c.h.b16 %v4501
        %v5533 = vunpack.c.l.b16 %v4502
        %v5534 = vunpack.c.h.b16 %v4502
        %v5535 = vunpack.c.l.b16 %v4503
        %v5536 = vunpack.c.h.b16 %v4503
        %v5537 = vunpack.c.l.b16 %v4504
        %v5538 = vunpack.c.h.b16 %v4504
        %v5539 = vunpack.c.l.b16 %v4505
        %v5540 = vunpack.c.h.b16 %v4505
        %v5541 = vunpack.c.l.b16 %v4506
        %v5542 = vunpack.c.h.b16 %v4506
        %v5543 = vunpack.c.l.b16 %v4507
        %v5544 = vunpack.c.h.b16 %v4507
        %v5545 = vunpack.c.l.b16 %v4508
        %v5546 = vunpack.c.h.b16 %v4508
        %v5547 = vunpack.c.l.b16 %v4509
        %v5548 = vunpack.c.h.b16 %v4509
        %v5549 = vunpack.c.l.b16 %v4510
        %v5550 = vunpack.c.h.b16 %v4510
        %v5551 = vunpack.c.l.b16 %v4511
        %v5552 = vunpack.c.h.b16 %v4511
        %v5553 = vunpack.c.l.b16 %v4512
        %v5554 = vunpack.c.h.b16 %v4512
        %v5555 = vunpack.c.l.b16 %v4513
        %v5556 = vunpack.c.h.b16 %v4513
        %v5557 = vunpack.c.l.b16 %v4514
        %v5558 = vunpack.c.h.b16 %v4514
        %v5559 = vunpack.c.l.b16 %v4515
        %v5560 = vunpack.c.h.b16 %v4515
        %v5561 = vunpack.c.l.b16 %v4516
        %v5562 = vunpack.c.h.b16 %v4516
        %v5563 = vunpack.c.l.b16 %v4517
        %v5564 = vunpack.c.h.b16 %v4517
        %v5565 = vunpack.c.l.b16 %v4518
        %v5566 = vunpack.c.h.b16 %v4518
        %v5567 = vunpack.c.l.b16 %v4519
        %v5568 = vunpack.c.h.b16 %v4519
        %v5569 = vunpack.c.l.b16 %v4520
        %v5570 = vunpack.c.h.b16 %v4520
        %v5571 = vunpack.c.l.b16 %v4521
        %v5572 = vunpack.c.h.b16 %v4521
        %v5573 = vunpack.c.l.b16 %v4522
        %v5574 = vunpack.c.h.b16 %v4522
        %v5575 = vunpack.c.l.b16 %v4523
        %v5576 = vunpack.c.h.b16 %v4523
        %v5577 = vunpack.c.l.b16 %v4524
        %v5578 = vunpack.c.h.b16 %v4524
        %v5579 = vunpack.c.l.b16 %v4525
        %v5580 = vunpack.c.h.b16 %v4525
        %v5581 = vunpack.c.l.b16 %v4526
        %v5582 = vunpack.c.h.b16 %v4526
        %v5583 = vunpack.c.l.b16 %v4527
        %v5584 = vunpack.c.h.b16 %v4527
        %v5585 = vunpack.c.l.b16 %v4528
        %v5586 = vunpack.c.h.b16 %v4528
        %v5587 = vunpack.c.l.b16 %v4529
        %v5588 = vunpack.c.h.b16 %v4529
        %v5589 = vunpack.c.l.b16 %v4530
        %v5590 = vunpack.c.h.b16 %v4530
        %v5591 = vunpack.c.l.b16 %v4531
        %v5592 = vunpack.c.h.b16 %v4531
        %v5593 = vunpack.c.l.b16 %v4532
        %v5594 = vunpack.c.h.b16 %v4532
        %v5595 = vunpack.c.l.b16 %v4533
        %v5596 = vunpack.c.h.b16 %v4533
        %v5597 = vunpack.c.l.b16 %v4534
        %v5598 = vunpack.c.h.b16 %v4534
        %v5599 = vunpack.c.l.b16 %v4535
        %v5600 = vunpack.c.h.b16 %v4535
        %v5601 = vunpack.c.l.b16 %v4536
        %v5602 = vunpack.c.h.b16 %v4536
        %v5603 = vunpack.c.l.b16 %v4537
        %v5604 = vunpack.c.h.b16 %v4537
        %v5605 = vunpack.c.l.b16 %v4538
        %v5606 = vunpack.c.h.b16 %v4538
        %v5607 = vunpack.c.l.b16 %v4539
        %v5608 = vunpack.c.h.b16 %v4539
        %v5609 = vunpack.c.l.b16 %v4540
        %v5610 = vunpack.c.h.b16 %v4540
        %v5611 = vunpack.c.l.b16 %v4541
        %v5612 = vunpack.c.h.b16 %v4541
        %v5613 = vunpack.c.l.b16 %v4542
        %v5614 = vunpack.c.h.b16 %v4542
        %v5615 = vunpack.c.l.b16 %v4543
        %v5616 = vunpack.c.h.b16 %v4543
        %v5617 = vunpack.c.l.b16 %v4544
        %v5618 = vunpack.c.h.b16 %v4544
        %v5619 = vunpack.c.l.b16 %v4545
        %v5620 = vunpack.c.h.b16 %v4545
        %v5621 = vunpack.c.l.b16 %v4546
        %v5622 = vunpack.c.h.b16 %v4546
        %v5623 = vunpack.c.l.b16 %v4547
        %v5624 = vunpack.c.h.b16 %v4547
        %v5625 = vunpack.c.l.b16 %v4548
        %v5626 = vunpack.c.h.b16 %v4548
        %v5627 = vunpack.c.l.b16 %v4549
        %v5628 = vunpack.c.h.b16 %v4549
        %v5629 = vunpack.c.l.b16 %v4550
        %v5630 = vunpack.c.h.b16 %v4550
        %v5631 = vunpack.c.l.b16 %v4551
        %v5632 = vunpack.c.h.b16 %v4551
        %v5633 = vunpack.c.l.b16 %v4552
        %v5634 = vunpack.c.h.b16 %v4552
        %v5635 = vunpack.c.l.b16 %v4553
        %v5636 = vunpack.c.h.b16 %v4553
        %v5637 = vunpack.c.l.b16 %v4554
        %v5638 = vunpack.c.h.b16 %v4554
        %v5639 = vunpack.c.l.b16 %v4555
        %v5640 = vunpack.c.h.b16 %v4555
        %v5641 = vunpack.c.l.b16 %v4556
        %v5642 = vunpack.c.h.b16 %v4556
        %v5643 = vunpack.c.l.b16 %v4557
        %v5644 = vunpack.c.h.b16 %v4557
        %v5645 = vunpack.c.l.b16 %v4558
        %v5646 = vunpack.c.h.b16 %v4558
        %v5647 = vunpack.c.l.b16 %v4559
        %v5648 = vunpack.c.h.b16 %v4559
        %v5649 = vunpack.c.l.b16 %v4560
        %v5650 = vunpack.c.h.b16 %v4560
        %v5651 = vunpack.c.l.b16 %v4561
        %v5652 = vunpack.c.h.b16 %v4561
        %v5653 = vunpack.c.l.b16 %v4562
        %v5654 = vunpack.c.h.b16 %v4562
        %v5655 = vunpack.c.l.b16 %v4563
        %v5656 = vunpack.c.h.b16 %v4563
        %v5657 = vunpack.c.l.b16 %v4564
        %v5658 = vunpack.c.h.b16 %v4564
        %v5659 = vunpack.c.l.b16 %v4565
        %v5660 = vunpack.c.h.b16 %v4565
        %v5661 = vunpack.c.l.b16 %v4566
        %v5662 = vunpack.c.h.b16 %v4566
        %v5663 = vunpack.c.l.b16 %v4567
        %v5664 = vunpack.c.h.b16 %v4567
        %v5665 = vunpack.c.l.b16 %v4568
        %v5666 = vunpack.c.h.b16 %v4568
        %v5667 = vunpack.c.l.b16 %v4569
        %v5668 = vunpack.c.h.b16 %v4569
        %v5669 = vunpack.c.l.b16 %v4570
        %v5670 = vunpack.c.h.b16 %v4570
        %v5671 = vunpack.c.l.b16 %v4571
        %v5672 = vunpack.c.h.b16 %v4571
        %v5673 = vunpack.c.l.b16 %v4572
        %v5674 = vunpack.c.h.b16 %v4572
        %v5675 = vunpack.c.l.b16 %v4573
        %v5676 = vunpack.c.h.b16 %v4573
        %v5677 = vunpack.c.l.b16 %v4574
        %v5678 = vunpack.c.h.b16 %v4574
        %v5679 = vunpack.c.l.b16 %v4575
        %v5680 = vunpack.c.h.b16 %v4575
        %v5681 = vunpack.c.l.b16 %v4576
        %v5682 = vunpack.c.h.b16 %v4576
        %v5683 = vunpack.c.l.b16 %v4577
        %v5684 = vunpack.c.h.b16 %v4577
        %v5685 = vunpack.c.l.b16 %v4578
        %v5686 = vunpack.c.h.b16 %v4578
        %v5687 = vunpack.c.l.b16 %v4579
        %v5688 = vunpack.c.h.b16 %v4579
        %v5689 = vunpack.c.l.b16 %v4580
        %v5690 = vunpack.c.h.b16 %v4580
        %v5691 = vunpack.c.l.b16 %v4581
        %v5692 = vunpack.c.h.b16 %v4581
        %v5693 = vunpack.c.l.b16 %v4582
        %v5694 = vunpack.c.h.b16 %v4582
        %v5695 = vunpack.c.l.b16 %v4583
        %v5696 = vunpack.c.h.b16 %v4583
        %v5697 = vunpack.c.l.b16 %v4584
        %v5698 = vunpack.c.h.b16 %v4584
        %v5699 = vunpack.c.l.b16 %v4585
        %v5700 = vunpack.c.h.b16 %v4585
        %v5701 = vunpack.c.l.b16 %v4586
        %v5702 = vunpack.c.h.b16 %v4586
        %v5703 = vunpack.c.l.b16 %v4587
        %v5704 = vunpack.c.h.b16 %v4587
        %v5705 = vunpack.c.l.b16 %v4588
        %v5706 = vunpack.c.h.b16 %v4588
        %v5707 = vunpack.c.l.b16 %v4589
        %v5708 = vunpack.c.h.b16 %v4589
        %v5709 = vunpack.c.l.b16 %v4590
        %v5710 = vunpack.c.h.b16 %v4590
        %v5711 = vunpack.c.l.b16 %v4591
        %v5712 = vunpack.c.h.b16 %v4591
        %v5713 = vunpack.c.l.b16 %v4592
        %v5714 = vunpack.c.h.b16 %v4592
        %v5715 = vunpack.c.l.b16 %v4593
        %v5716 = vunpack.c.h.b16 %v4593
        %v5717 = vunpack.c.l.b16 %v4594
        %v5718 = vunpack.c.h.b16 %v4594
        %v5719 = vunpack.c.l.b16 %v4595
        %v5720 = vunpack.c.h.b16 %v4595
        %v5721 = vunpack.c.l.b16 %v4596
        %v5722 = vunpack.c.h.b16 %v4596
        %v5723 = vunpack.c.l.b16 %v4597
        %v5724 = vunpack.c.h.b16 %v4597
        %v5725 = vunpack.c.l.b16 %v4598
        %v5726 = vunpack.c.h.b16 %v4598
        %v5727 = vunpack.c.l.b16 %v4599
        %v5728 = vunpack.c.h.b16 %v4599
        %v5729 = vunpack.c.l.b16 %v4600
        %v5730 = vunpack.c.h.b16 %v4600
        %v5731 = vunpack.c.l.b16 %v4601
        %v5732 = vunpack.c.h.b16 %v4601
        %v5733 = vunpack.c.l.b16 %v4602
        %v5734 = vunpack.c.h.b16 %v4602
        %v5735 = vunpack.c.l.b16 %v4603
        %v5736 = vunpack.c.h.b16 %v4603
        %v5737 = vunpack.c.l.b16 %v4604
        %v5738 = vunpack.c.h.b16 %v4604
        %v5739 = vunpack.c.l.b16 %v4605
        %v5740 = vunpack.c.h.b16 %v4605
        %v5741 = vunpack.c.l.b16 %v4606
        %v5742 = vunpack.c.h.b16 %v4606
        %v5743 = vunpack.c.l.b16 %v4607
        %v5744 = vunpack.c.h.b16 %v4607
        %v5745 = vunpack.c.l.b16 %v4608
        %v5746 = vunpack.c.h.b16 %v4608
        %v5747 = vunpack.c.l.b16 %v4609
        %v5748 = vunpack.c.h.b16 %v4609
        %v5749 = vunpack.c.l.b16 %v4610
        %v5750 = vunpack.c.h.b16 %v4610
        %v5751 = vunpack.c.l.b16 %v4611
        %v5752 = vunpack.c.h.b16 %v4611
        %v5753 = vunpack.c.l.b16 %v4612
        %v5754 = vunpack.c.h.b16 %v4612
        %v5755 = vunpack.c.l.b16 %v4613
        %v5756 = vunpack.c.h.b16 %v4613
        %v5757 = vunpack.c.l.b16 %v4614
        %v5758 = vunpack.c.h.b16 %v4614
        %v5759 = vunpack.c.l.b16 %v4615
        %v5760 = vunpack.c.h.b16 %v4615
        %v5761 = vunpack.c.l.b16 %v4616
        %v5762 = vunpack.c.h.b16 %v4616
        %v5763 = vunpack.c.l.b16 %v4617
        %v5764 = vunpack.c.h.b16 %v4617
        %v5765 = vunpack.c.l.b16 %v4618
        %v5766 = vunpack.c.h.b16 %v4618
        %v5767 = vunpack.c.l.b16 %v4619
        %v5768 = vunpack.c.h.b16 %v4619
        %v5769 = vunpack.c.l.b16 %v4620
        %v5770 = vunpack.c.h.b16 %v4620
        %v5771 = vunpack.c.l.b16 %v4621
        %v5772 = vunpack.c.h.b16 %v4621
        %v5773 = vunpack.c.l.b16 %v4622
        %v5774 = vunpack.c.h.b16 %v4622
        %v5775 = vpack.c.b16 %v5265, %v5263
        %v5776 = vpack.c.b16 %v5266, %v5264
        %v5777 = vpack.c.b16 %v5269, %v5267
        %v5778 = vpack.c.b16 %v5270, %v5268
        %v5779 = vpack.c.b16 %v5273, %v5271
        %v5780 = vpack.c.b16 %v5274, %v5272
        %v5781 = vpack.c.b16 %v5277, %v5275
        %v5782 = vpack.c.b16 %v5278, %v5276
        %v5783 = vpack.c.b16 %v5281, %v5279
        %v5784 = vpack.c.b16 %v5282, %v5280
        %v5785 = vpack.c.b16 %v5285, %v5283
        %v5786 = vpack.c.b16 %v5286, %v5284
        %v5787 = vpack.c.b16 %v5289, %v5287
        %v5788 = vpack.c.b16 %v5290, %v5288
        %v5789 = vpack.c.b16 %v5293, %v5291
        %v5790 = vpack.c.b16 %v5294, %v5292
        %v5791 = vpack.c.b16 %v5297, %v5295
        %v5792 = vpack.c.b16 %v5298, %v5296
        %v5793 = vpack.c.b16 %v5301, %v5299
        %v5794 = vpack.c.b16 %v5302, %v5300
        %v5795 = vpack.c.b16 %v5305, %v5303
        %v5796 = vpack.c.b16 %v5306, %v5304
        %v5797 = vpack.c.b16 %v5309, %v5307
        %v5798 = vpack.c.b16 %v5310, %v5308
        %v5799 = vpack.c.b16 %v5313, %v5311
        %v5800 = vpack.c.b16 %v5314, %v5312
        %v5801 = vpack.c.b16 %v5317, %v5315
        %v5802 = vpack.c.b16 %v5318, %v5316
        %v5803 = vpack.c.b16 %v5321, %v5319
        %v5804 = vpack.c.b16 %v5322, %v5320
        %v5805 = vpack.c.b16 %v5325, %v5323
        %v5806 = vpack.c.b16 %v5326, %v5324
        %v5807 = vpack.c.b16 %v5329, %v5327
        %v5808 = vpack.c.b16 %v5330, %v5328
        %v5809 = vpack.c.b16 %v5333, %v5331
        %v5810 = vpack.c.b16 %v5334, %v5332
        %v5811 = vpack.c.b16 %v5337, %v5335
        %v5812 = vpack.c.b16 %v5338, %v5336
        %v5813 = vpack.c.b16 %v5341, %v5339
        %v5814 = vpack.c.b16 %v5342, %v5340
        %v5815 = vpack.c.b16 %v5345, %v5343
        %v5816 = vpack.c.b16 %v5346, %v5344
        %v5817 = vpack.c.b16 %v5349, %v5347
        %v5818 = vpack.c.b16 %v5350, %v5348
        %v5819 = vpack.c.b16 %v5353, %v5351
        %v5820 = vpack.c.b16 %v5354, %v5352
        %v5821 = vpack.c.b16 %v5357, %v5355
        %v5822 = vpack.c.b16 %v5358, %v5356
        %v5823 = vpack.c.b16 %v5361, %v5359
        %v5824 = vpack.c.b16 %v5362, %v5360
        %v5825 = vpack.c.b16 %v5365, %v5363
        %v5826 = vpack.c.b16 %v5366, %v5364
        %v5827 = vpack.c.b16 %v5369, %v5367
        %v5828 = vpack.c.b16 %v5370, %v5368
        %v5829 = vpack.c.b16 %v5373, %v5371
        %v5830 = vpack.c.b16 %v5374, %v5372
        %v5831 = vpack.c.b16 %v5377, %v5375
        %v5832 = vpack.c.b16 %v5378, %v5376
        %v5833 = vpack.c.b16 %v5381, %v5379
        %v5834 = vpack.c.b16 %v5382, %v5380
        %v5835 = vpack.c.b16 %v5385, %v5383
        %v5836 = vpack.c.b16 %v5386, %v5384
        %v5837 = vpack.c.b16 %v5389, %v5387
        %v5838 = vpack.c.b16 %v5390, %v5388
        %v5839 = vpack.c.b16 %v5393, %v5391
        %v5840 = vpack.c.b16 %v5394, %v5392
        %v5841 = vpack.c.b16 %v5397, %v5395
        %v5842 = vpack.c.b16 %v5398, %v5396
        %v5843 = vpack.c.b16 %v5401, %v5399
        %v5844 = vpack.c.b16 %v5402, %v5400
        %v5845 = vpack.c.b16 %v5405, %v5403
        %v5846 = vpack.c.b16 %v5406, %v5404
        %v5847 = vpack.c.b16 %v5409, %v5407
        %v5848 = vpack.c.b16 %v5410, %v5408
        %v5849 = vpack.c.b16 %v5413, %v5411
        %v5850 = vpack.c.b16 %v5414, %v5412
        %v5851 = vpack.c.b16 %v5417, %v5415
        %v5852 = vpack.c.b16 %v5418, %v5416
        %v5853 = vpack.c.b16 %v5421, %v5419
        %v5854 = vpack.c.b16 %v5422, %v5420
        %v5855 = vpack.c.b16 %v5425, %v5423
        %v5856 = vpack.c.b16 %v5426, %v5424
        %v5857 = vpack.c.b16 %v5429, %v5427
        %v5858 = vpack.c.b16 %v5430, %v5428
        %v5859 = vpack.c.b16 %v5433, %v5431
        %v5860 = vpack.c.b16 %v5434, %v5432
        %v5861 = vpack.c.b16 %v5437, %v5435
        %v5862 = vpack.c.b16 %v5438, %v5436
        %v5863 = vpack.c.b16 %v5441, %v5439
        %v5864 = vpack.c.b16 %v5442, %v5440
        %v5865 = vpack.c.b16 %v5445, %v5443
        %v5866 = vpack.c.b16 %v5446, %v5444
        %v5867 = vpack.c.b16 %v5449, %v5447
        %v5868 = vpack.c.b16 %v5450, %v5448
        %v5869 = vpack.c.b16 %v5453, %v5451
        %v5870 = vpack.c.b16 %v5454, %v5452
        %v5871 = vpack.c.b16 %v5457, %v5455
        %v5872 = vpack.c.b16 %v5458, %v5456
        %v5873 = vpack.c.b16 %v5461, %v5459
        %v5874 = vpack.c.b16 %v5462, %v5460
        %v5875 = vpack.c.b16 %v5465, %v5463
        %v5876 = vpack.c.b16 %v5466, %v5464
        %v5877 = vpack.c.b16 %v5469, %v5467
        %v5878 = vpack.c.b16 %v5470, %v5468
        %v5879 = vpack.c.b16 %v5473, %v5471
        %v5880 = vpack.c.b16 %v5474, %v5472
        %v5881 = vpack.c.b16 %v5477, %v5475
        %v5882 = vpack.c.b16 %v5478, %v5476
        %v5883 = vpack.c.b16 %v5481, %v5479
        %v5884 = vpack.c.b16 %v5482, %v5480
        %v5885 = vpack.c.b16 %v5485, %v5483
        %v5886 = vpack.c.b16 %v5486, %v5484
        %v5887 = vpack.c.b16 %v5489, %v5487
        %v5888 = vpack.c.b16 %v5490, %v5488
        %v5889 = vpack.c.b16 %v5493, %v5491
        %v5890 = vpack.c.b16 %v5494, %v5492
        %v5891 = vpack.c.b16 %v5497, %v5495
        %v5892 = vpack.c.b16 %v5498, %v5496
        %v5893 = vpack.c.b16 %v5501, %v5499
        %v5894 = vpack.c.b16 %v5502, %v5500
        %v5895 = vpack.c.b16 %v5505, %v5503
        %v5896 = vpack.c.b16 %v5506, %v5504
        %v5897 = vpack.c.b16 %v5509, %v5507
        %v5898 = vpack.c.b16 %v5510, %v5508
        %v5899 = vpack.c.b16 %v5513, %v5511
        %v5900 = vpack.c.b16 %v5514, %v5512
        %v5901 = vpack.c.b16 %v5517, %v5515
        %v5902 = vpack.c.b16 %v5518, %v5516
        %v5903 = vpack.c.b16 %v5521, %v5519
        %v5904 = vpack.c.b16 %v5522, %v5520
        %v5905 = vpack.c.b16 %v5525, %v5523
        %v5906 = vpack.c.b16 %v5526, %v5524
        %v5907 = vpack.c.b16 %v5529, %v5527
        %v5908 = vpack.c.b16 %v5530, %v5528
        %v5909 = vpack.c.b16 %v5533, %v5531
        %v5910 = vpack.c.b16 %v5534, %v5532
        %v5911 = vpack.c.b16 %v5537, %v5535
        %v5912 = vpack.c.b16 %v5538, %v5536
        %v5913 = vpack.c.b16 %v5541, %v5539
        %v5914 = vpack.c.b16 %v5542, %v5540
        %v5915 = vpack.c.b16 %v5545, %v5543
        %v5916 = vpack.c.b16 %v5546, %v5544
        %v5917 = vpack.c.b16 %v5549, %v5547
        %v5918 = vpack.c.b16 %v5550, %v5548
        %v5919 = vpack.c.b16 %v5553, %v5551
        %v5920 = vpack.c.b16 %v5554, %v5552
        %v5921 = vpack.c.b16 %v5557, %v5555
        %v5922 = vpack.c.b16 %v5558, %v5556
        %v5923 = vpack.c.b16 %v5561, %v5559
        %v5924 = vpack.c.b16 %v5562, %v5560
        %v5925 = vpack.c.b16 %v5565, %v5563
        %v5926 = vpack.c.b16 %v5566, %v5564
        %v5927 = vpack.c.b16 %v5569, %v5567
        %v5928 = vpack.c.b16 %v5570, %v5568
        %v5929 = vpack.c.b16 %v5573, %v5571
        %v5930 = vpack.c.b16 %v5574, %v5572
        %v5931 = vpack.c.b16 %v5577, %v5575
        %v5932 = vpack.c.b16 %v5578, %v5576
        %v5933 = vpack.c.b16 %v5581, %v5579
        %v5934 = vpack.c.b16 %v5582, %v5580
        %v5935 = vpack.c.b16 %v5585, %v5583
        %v5936 = vpack.c.b16 %v5586, %v5584
        %v5937 = vpack.c.b16 %v5589, %v5587
        %v5938 = vpack.c.b16 %v5590, %v5588
        %v5939 = vpack.c.b16 %v5593, %v5591
        %v5940 = vpack.c.b16 %v5594, %v5592
        %v5941 = vpack.c.b16 %v5597, %v5595
        %v5942 = vpack.c.b16 %v5598, %v5596
        %v5943 = vpack.c.b16 %v5601, %v5599
        %v5944 = vpack.c.b16 %v5602, %v5600
        %v5945 = vpack.c.b16 %v5605, %v5603
        %v5946 = vpack.c.b16 %v5606, %v5604
        %v5947 = vpack.c.b16 %v5609, %v5607
        %v5948 = vpack.c.b16 %v5610, %v5608
        %v5949 = vpack.c.b16 %v5613, %v5611
        %v5950 = vpack.c.b16 %v5614, %v5612
        %v5951 = vpack.c.b16 %v5617, %v5615
        %v5952 = vpack.c.b16 %v5618, %v5616
        %v5953 = vpack.c.b16 %v5621, %v5619
        %v5954 = vpack.c.b16 %v5622, %v5620
        %v5955 = vpack.c.b16 %v5625, %v5623
        %v5956 = vpack.c.b16 %v5626, %v5624
        %v5957 = vpack.c.b16 %v5629, %v5627
        %v5958 = vpack.c.b16 %v5630, %v5628
        %v5959 = vpack.c.b16 %v5633, %v5631
        %v5960 = vpack.c.b16 %v5634, %v5632
        %v5961 = vpack.c.b16 %v5637, %v5635
        %v5962 = vpack.c.b16 %v5638, %v5636
        %v5963 = vpack.c.b16 %v5641, %v5639
        %v5964 = vpack.c.b16 %v5642, %v5640
        %v5965 = vpack.c.b16 %v5645, %v5643
        %v5966 = vpack.c.b16 %v5646, %v5644
        %v5967 = vpack.c.b16 %v5649, %v5647
        %v5968 = vpack.c.b16 %v5650, %v5648
        %v5969 = vpack.c.b16 %v5653, %v5651
        %v5970 = vpack.c.b16 %v5654, %v5652
        %v5971 = vpack.c.b16 %v5657, %v5655
        %v5972 = vpack.c.b16 %v5658, %v5656
        %v5973 = vpack.c.b16 %v5661, %v5659
        %v5974 = vpack.c.b16 %v5662, %v5660
        %v5975 = vpack.c.b16 %v5665, %v5663
        %v5976 = vpack.c.b16 %v5666, %v5664
        %v5977 = vpack.c.b16 %v5669, %v5667
        %v5978 = vpack.c.b16 %v5670, %v5668
        %v5979 = vpack.c.b16 %v5673, %v5671
        %v5980 = vpack.c.b16 %v5674, %v5672
        %v5981 = vpack.c.b16 %v5677, %v5675
        %v5982 = vpack.c.b16 %v5678, %v5676
        %v5983 = vpack.c.b16 %v5681, %v5679
        %v5984 = vpack.c.b16 %v5682, %v5680
        %v5985 = vpack.c.b16 %v5685, %v5683
        %v5986 = vpack.c.b16 %v5686, %v5684
        %v5987 = vpack.c.b16 %v5689, %v5687
        %v5988 = vpack.c.b16 %v5690, %v5688
        %v5989 = vpack.c.b16 %v5693, %v5691
        %v5990 = vpack.c.b16 %v5694, %v5692
        %v5991 = vpack.c.b16 %v5697, %v5695
        %v5992 = vpack.c.b16 %v5698, %v5696
        %v5993 = vpack.c.b16 %v5701, %v5699
        %v5994 = vpack.c.b16 %v5702, %v5700
        %v5995 = vpack.c.b16 %v5705, %v5703
        %v5996 = vpack.c.b16 %v5706, %v5704
        %v5997 = vpack.c.b16 %v5709, %v5707
        %v5998 = vpack.c.b16 %v5710, %v5708
        %v5999 = vpack.c.b16 %v5713, %v5711
        %v6000 = vpack.c.b16 %v5714, %v5712
        %v6001 = vpack.c.b16 %v5717, %v5715
        %v6002 = vpack.c.b16 %v5718, %v5716
        %v6003 = vpack.c.b16 %v5721, %v5719
        %v6004 = vpack.c.b16 %v5722, %v5720
        %v6005 = vpack.c.b16 %v5725, %v5723
        %v6006 = vpack.c.b16 %v5726, %v5724
        %v6007 = vpack.c.b16 %v5729, %v5727
        %v6008 = vpack.c.b16 %v5730, %v5728
        %v6009 = vpack.c.b16 %v5733, %v5731
        %v6010 = vpack.c.b16 %v5734, %v5732
        %v6011 = vpack.c.b16 %v5737, %v5735
        %v6012 = vpack.c.b16 %v5738, %v5736
        %v6013 = vpack.c.b16 %v5741, %v5739
        %v6014 = vpack.c.b16 %v5742, %v5740
        %v6015 = vpack.c.b16 %v5745, %v5743
        %v6016 = vpack.c.b16 %v5746, %v5744
        %v6017 = vpack.c.b16 %v5749, %v5747
        %v6018 = vpack.c.b16 %v5750, %v5748
        %v6019 = vpack.c.b16 %v5753, %v5751
        %v6020 = vpack.c.b16 %v5754, %v5752
        %v6021 = vpack.c.b16 %v5757, %v5755
        %v6022 = vpack.c.b16 %v5758, %v5756
        %v6023 = vpack.c.b16 %v5761, %v5759
        %v6024 = vpack.c.b16 %v5762, %v5760
        %v6025 = vpack.c.b16 %v5765, %v5763
        %v6026 = vpack.c.b16 %v5766, %v5764
        %v6027 = vpack.c.b16 %v5769, %v5767
        %v6028 = vpack.c.b16 %v5770, %v5768
        %v6029 = vpack.c.b16 %v5773, %v5771
        %v6030 = vpack.c.b16 %v5774, %v5772
        %6287 = vmatpush.bf16.msra.mxu0 %v5789
        %6288 = vmatpush.bf16.msra.mxu0 %v5787
        %6289 = vmatpush.bf16.msra.mxu0 %v5785
        %6290 = vmatpush.bf16.msra.mxu0 %v5783
        %6291 = vmatpush.bf16.msra.mxu0 %v5781
        %6292 = vmatpush.bf16.msra.mxu0 %v5779
        %6293 = vmatpush.bf16.msra.mxu0 %v5777
        %6294 = vmatpush.bf16.msra.mxu0 %v5775
        %6295 = vmatmul.bf16.gmra.mxu0 %v4991
        %v6296 = vpop.f32.mrf.mxu0
        %v6297 = vadd.f32 0.0, %v6296
        %v6298 = vpop.f32.mrf.mxu0
        %v6299 = vadd.f32 0.0, %v6298
        %6300 = vdwg.mxu0
        %6301 = vmatpush.bf16.msra.mxu0 %v5805
        %6302 = vmatpush.bf16.msra.mxu0 %v5803
        %6303 = vmatpush.bf16.msra.mxu0 %v5801
        %6304 = vmatpush.bf16.msra.mxu0 %v5799
        %6305 = vmatpush.bf16.msra.mxu0 %v5797
        %6306 = vmatpush.bf16.msra.mxu0 %v5795
        %6307 = vmatpush.bf16.msra.mxu0 %v5793
        %6308 = vmatpush.bf16.msra.mxu0 %v5791
        %6309 = vmatmul.bf16.gmra.mxu0 %v4992
        %v6310 = vpop.f32.mrf.mxu0
        %v6311 = vadd.f32 %v6297, %v6310
        %v6312 = vpop.f32.mrf.mxu0
        %v6313 = vadd.f32 %v6299, %v6312
        %6314 = vdwg.mxu0
        %6315 = vmatpush.bf16.msra.mxu0 %v5821
        %6316 = vmatpush.bf16.msra.mxu0 %v5819
        %6317 = vmatpush.bf16.msra.mxu0 %v5817
        %6318 = vmatpush.bf16.msra.mxu0 %v5815
        %6319 = vmatpush.bf16.msra.mxu0 %v5813
        %6320 = vmatpush.bf16.msra.mxu0 %v5811
        %6321 = vmatpush.bf16.msra.mxu0 %v5809
        %6322 = vmatpush.bf16.msra.mxu0 %v5807
        %6323 = vmatmul.bf16.gmra.mxu0 %v4993
        %v6324 = vpop.f32.mrf.mxu0
        %v6325 = vadd.f32 %v6311, %v6324
        %v6326 = vpop.f32.mrf.mxu0
        %v6327 = vadd.f32 %v6313, %v6326
        %6328 = vdwg.mxu0
        %6329 = vmatpush.bf16.msra.mxu0 %v5837
        %6330 = vmatpush.bf16.msra.mxu0 %v5835
        %6331 = vmatpush.bf16.msra.mxu0 %v5833
        %6332 = vmatpush.bf16.msra.mxu0 %v5831
        %6333 = vmatpush.bf16.msra.mxu0 %v5829
        %6334 = vmatpush.bf16.msra.mxu0 %v5827
        %6335 = vmatpush.bf16.msra.mxu0 %v5825
        %6336 = vmatpush.bf16.msra.mxu0 %v5823
        %6337 = vmatmul.bf16.gmra.mxu0 %v4994
        %v6338 = vpop.f32.mrf.mxu0
        %v6339 = vadd.f32 %v6325, %v6338
        %v6340 = vpop.f32.mrf.mxu0
        %v6341 = vadd.f32 %v6327, %v6340
        %6342 = vdwg.mxu0
        %6343 = vmatpush.bf16.msra.mxu0 %v5853
        %6344 = vmatpush.bf16.msra.mxu0 %v5851
        %6345 = vmatpush.bf16.msra.mxu0 %v5849
        %6346 = vmatpush.bf16.msra.mxu0 %v5847
        %6347 = vmatpush.bf16.msra.mxu0 %v5845
        %6348 = vmatpush.bf16.msra.mxu0 %v5843
        %6349 = vmatpush.bf16.msra.mxu0 %v5841
        %6350 = vmatpush.bf16.msra.mxu0 %v5839
        %6351 = vmatmul.bf16.gmra.mxu0 %v4995
        %v6352 = vpop.f32.mrf.mxu0
        %v6353 = vadd.f32 %v6339, %v6352
        %v6354 = vpop.f32.mrf.mxu0
        %v6355 = vadd.f32 %v6341, %v6354
        %6356 = vdwg.mxu0
        %6357 = vmatpush.bf16.msra.mxu0 %v5869
        %6358 = vmatpush.bf16.msra.mxu0 %v5867
        %6359 = vmatpush.bf16.msra.mxu0 %v5865
        %6360 = vmatpush.bf16.msra.mxu0 %v5863
        %6361 = vmatpush.bf16.msra.mxu0 %v5861
        %6362 = vmatpush.bf16.msra.mxu0 %v5859
        %6363 = vmatpush.bf16.msra.mxu0 %v5857
        %6364 = vmatpush.bf16.msra.mxu0 %v5855
        %6365 = vmatmul.bf16.gmra.mxu0 %v4996
        %v6366 = vpop.f32.mrf.mxu0
        %v6367 = vadd.f32 %v6353, %v6366
        %v6368 = vpop.f32.mrf.mxu0
        %v6369 = vadd.f32 %v6355, %v6368
        %6370 = vdwg.mxu0
        %6371 = vmatpush.bf16.msra.mxu0 %v5885
        %6372 = vmatpush.bf16.msra.mxu0 %v5883
        %6373 = vmatpush.bf16.msra.mxu0 %v5881
        %6374 = vmatpush.bf16.msra.mxu0 %v5879
        %6375 = vmatpush.bf16.msra.mxu0 %v5877
        %6376 = vmatpush.bf16.msra.mxu0 %v5875
        %6377 = vmatpush.bf16.msra.mxu0 %v5873
        %6378 = vmatpush.bf16.msra.mxu0 %v5871
        %6379 = vmatmul.bf16.gmra.mxu0 %v4997
        %v6380 = vpop.f32.mrf.mxu0
        %v6381 = vadd.f32 %v6367, %v6380
        %v6382 = vpop.f32.mrf.mxu0
        %v6383 = vadd.f32 %v6369, %v6382
        %6384 = vdwg.mxu0
        %6385 = vmatpush.bf16.msra.mxu0 %v5901
        %6386 = vmatpush.bf16.msra.mxu0 %v5899
        %6387 = vmatpush.bf16.msra.mxu0 %v5897
        %6388 = vmatpush.bf16.msra.mxu0 %v5895
        %6389 = vmatpush.bf16.msra.mxu0 %v5893
        %6390 = vmatpush.bf16.msra.mxu0 %v5891
        %6391 = vmatpush.bf16.msra.mxu0 %v5889
        %6392 = vmatpush.bf16.msra.mxu0 %v5887
        %6393 = vmatmul.bf16.gmra.mxu0 %v4998
        %v6394 = vpop.f32.mrf.mxu0
        %v6395 = vadd.f32 %v6381, %v6394
        %v6396 = vpop.f32.mrf.mxu0
        %v6397 = vadd.f32 %v6383, %v6396
        %6398 = vdwg.mxu0
        %6399 = vmatpush.bf16.msra.mxu0 %v5917
        %6400 = vmatpush.bf16.msra.mxu0 %v5915
        %6401 = vmatpush.bf16.msra.mxu0 %v5913
        %6402 = vmatpush.bf16.msra.mxu0 %v5911
        %6403 = vmatpush.bf16.msra.mxu0 %v5909
        %6404 = vmatpush.bf16.msra.mxu0 %v5907
        %6405 = vmatpush.bf16.msra.mxu0 %v5905
        %6406 = vmatpush.bf16.msra.mxu0 %v5903
        %6407 = vmatmul.bf16.gmra.mxu0 %v4999
        %v6408 = vpop.f32.mrf.mxu0
        %v6409 = vadd.f32 %v6395, %v6408
        %v6410 = vpop.f32.mrf.mxu0
        %v6411 = vadd.f32 %v6397, %v6410
        %6412 = vdwg.mxu0
        %6413 = vmatpush.bf16.msra.mxu0 %v5933
        %6414 = vmatpush.bf16.msra.mxu0 %v5931
        %6415 = vmatpush.bf16.msra.mxu0 %v5929
        %6416 = vmatpush.bf16.msra.mxu0 %v5927
        %6417 = vmatpush.bf16.msra.mxu0 %v5925
        %6418 = vmatpush.bf16.msra.mxu0 %v5923
        %6419 = vmatpush.bf16.msra.mxu0 %v5921
        %6420 = vmatpush.bf16.msra.mxu0 %v5919
        %6421 = vmatmul.bf16.gmra.mxu0 %v5000
        %v6422 = vpop.f32.mrf.mxu0
        %v6423 = vadd.f32 %v6409, %v6422
        %v6424 = vpop.f32.mrf.mxu0
        %v6425 = vadd.f32 %v6411, %v6424
        %6426 = vdwg.mxu0
        %6427 = vmatpush.bf16.msra.mxu0 %v5949
        %6428 = vmatpush.bf16.msra.mxu0 %v5947
        %6429 = vmatpush.bf16.msra.mxu0 %v5945
        %6430 = vmatpush.bf16.msra.mxu0 %v5943
        %6431 = vmatpush.bf16.msra.mxu0 %v5941
        %6432 = vmatpush.bf16.msra.mxu0 %v5939
        %6433 = vmatpush.bf16.msra.mxu0 %v5937
        %6434 = vmatpush.bf16.msra.mxu0 %v5935
        %6435 = vmatmul.bf16.gmra.mxu0 %v5001
        %v6436 = vpop.f32.mrf.mxu0
        %v6437 = vadd.f32 %v6423, %v6436
        %v6438 = vpop.f32.mrf.mxu0
        %v6439 = vadd.f32 %v6425, %v6438
        %6440 = vdwg.mxu0
        %6441 = vmatpush.bf16.msra.mxu0 %v5965
        %6442 = vmatpush.bf16.msra.mxu0 %v5963
        %6443 = vmatpush.bf16.msra.mxu0 %v5961
        %6444 = vmatpush.bf16.msra.mxu0 %v5959
        %6445 = vmatpush.bf16.msra.mxu0 %v5957
        %6446 = vmatpush.bf16.msra.mxu0 %v5955
        %6447 = vmatpush.bf16.msra.mxu0 %v5953
        %6448 = vmatpush.bf16.msra.mxu0 %v5951
        %6449 = vmatmul.bf16.gmra.mxu0 %v5002
        %v6450 = vpop.f32.mrf.mxu0
        %v6451 = vadd.f32 %v6437, %v6450
        %v6452 = vpop.f32.mrf.mxu0
        %v6453 = vadd.f32 %v6439, %v6452
        %6454 = vdwg.mxu0
        %6455 = vmatpush.bf16.msra.mxu0 %v5981
        %6456 = vmatpush.bf16.msra.mxu0 %v5979
        %6457 = vmatpush.bf16.msra.mxu0 %v5977
        %6458 = vmatpush.bf16.msra.mxu0 %v5975
        %6459 = vmatpush.bf16.msra.mxu0 %v5973
        %6460 = vmatpush.bf16.msra.mxu0 %v5971
        %6461 = vmatpush.bf16.msra.mxu0 %v5969
        %6462 = vmatpush.bf16.msra.mxu0 %v5967
        %6463 = vmatmul.bf16.gmra.mxu0 %v5003
        %v6464 = vpop.f32.mrf.mxu0
        %v6465 = vadd.f32 %v6451, %v6464
        %v6466 = vpop.f32.mrf.mxu0
        %v6467 = vadd.f32 %v6453, %v6466
        %6468 = vdwg.mxu0
        %6469 = vmatpush.bf16.msra.mxu0 %v5997
        %6470 = vmatpush.bf16.msra.mxu0 %v5995
        %6471 = vmatpush.bf16.msra.mxu0 %v5993
        %6472 = vmatpush.bf16.msra.mxu0 %v5991
        %6473 = vmatpush.bf16.msra.mxu0 %v5989
        %6474 = vmatpush.bf16.msra.mxu0 %v5987
        %6475 = vmatpush.bf16.msra.mxu0 %v5985
        %6476 = vmatpush.bf16.msra.mxu0 %v5983
        %6477 = vmatmul.bf16.gmra.mxu0 %v5004
        %v6478 = vpop.f32.mrf.mxu0
        %v6479 = vadd.f32 %v6465, %v6478
        %v6480 = vpop.f32.mrf.mxu0
        %v6481 = vadd.f32 %v6467, %v6480
        %6482 = vdwg.mxu0
        %6483 = vmatpush.bf16.msra.mxu0 %v6013
        %6484 = vmatpush.bf16.msra.mxu0 %v6011
        %6485 = vmatpush.bf16.msra.mxu0 %v6009
        %6486 = vmatpush.bf16.msra.mxu0 %v6007
        %6487 = vmatpush.bf16.msra.mxu0 %v6005
        %6488 = vmatpush.bf16.msra.mxu0 %v6003
        %6489 = vmatpush.bf16.msra.mxu0 %v6001
        %6490 = vmatpush.bf16.msra.mxu0 %v5999
        %6491 = vmatmul.bf16.gmra.mxu0 %v5005
        %v6492 = vpop.f32.mrf.mxu0
        %v6493 = vadd.f32 %v6479, %v6492
        %v6494 = vpop.f32.mrf.mxu0
        %v6495 = vadd.f32 %v6481, %v6494
        %6496 = vdwg.mxu0
        %6497 = vmatpush.bf16.msra.mxu0 %v6029
        %6498 = vmatpush.bf16.msra.mxu0 %v6027
        %6499 = vmatpush.bf16.msra.mxu0 %v6025
        %6500 = vmatpush.bf16.msra.mxu0 %v6023
        %6501 = vmatpush.bf16.msra.mxu0 %v6021
        %6502 = vmatpush.bf16.msra.mxu0 %v6019
        %6503 = vmatpush.bf16.msra.mxu0 %v6017
        %6504 = vmatpush.bf16.msra.mxu0 %v6015
        %6505 = vmatmul.bf16.gmra.mxu0 %v5006
        %v6506 = vpop.f32.mrf.mxu0
        %v6507 = vadd.f32 %v6493, %v6506
        %v6508 = vpop.f32.mrf.mxu0
        %v6509 = vadd.f32 %v6495, %v6508
        %6510 = vdwg.mxu0
        %6511 = vmatpush.bf16.msra.mxu0 %v5790
        %6512 = vmatpush.bf16.msra.mxu0 %v5788
        %6513 = vmatpush.bf16.msra.mxu0 %v5786
        %6514 = vmatpush.bf16.msra.mxu0 %v5784
        %6515 = vmatpush.bf16.msra.mxu0 %v5782
        %6516 = vmatpush.bf16.msra.mxu0 %v5780
        %6517 = vmatpush.bf16.msra.mxu0 %v5778
        %6518 = vmatpush.bf16.msra.mxu0 %v5776
        %6519 = vmatmul.bf16.gmra.mxu0 %v4991
        %v6520 = vpop.f32.mrf.mxu0
        %v6521 = vadd.f32 0.0, %v6520
        %v6522 = vpop.f32.mrf.mxu0
        %v6523 = vadd.f32 0.0, %v6522
        %6524 = vdwg.mxu0
        %6525 = vmatpush.bf16.msra.mxu0 %v5806
        %6526 = vmatpush.bf16.msra.mxu0 %v5804
        %6527 = vmatpush.bf16.msra.mxu0 %v5802
        %6528 = vmatpush.bf16.msra.mxu0 %v5800
        %6529 = vmatpush.bf16.msra.mxu0 %v5798
        %6530 = vmatpush.bf16.msra.mxu0 %v5796
        %6531 = vmatpush.bf16.msra.mxu0 %v5794
        %6532 = vmatpush.bf16.msra.mxu0 %v5792
        %6533 = vmatmul.bf16.gmra.mxu0 %v4992
        %v6534 = vpop.f32.mrf.mxu0
        %v6535 = vadd.f32 %v6521, %v6534
        %v6536 = vpop.f32.mrf.mxu0
        %v6537 = vadd.f32 %v6523, %v6536
        %6538 = vdwg.mxu0
        %6539 = vmatpush.bf16.msra.mxu0 %v5822
        %6540 = vmatpush.bf16.msra.mxu0 %v5820
        %6541 = vmatpush.bf16.msra.mxu0 %v5818
        %6542 = vmatpush.bf16.msra.mxu0 %v5816
        %6543 = vmatpush.bf16.msra.mxu0 %v5814
        %6544 = vmatpush.bf16.msra.mxu0 %v5812
        %6545 = vmatpush.bf16.msra.mxu0 %v5810
        %6546 = vmatpush.bf16.msra.mxu0 %v5808
        %6547 = vmatmul.bf16.gmra.mxu0 %v4993
        %v6548 = vpop.f32.mrf.mxu0
        %v6549 = vadd.f32 %v6535, %v6548
        %v6550 = vpop.f32.mrf.mxu0
        %v6551 = vadd.f32 %v6537, %v6550
        %6552 = vdwg.mxu0
        %6553 = vmatpush.bf16.msra.mxu0 %v5838
        %6554 = vmatpush.bf16.msra.mxu0 %v5836
        %6555 = vmatpush.bf16.msra.mxu0 %v5834
        %6556 = vmatpush.bf16.msra.mxu0 %v5832
        %6557 = vmatpush.bf16.msra.mxu0 %v5830
        %6558 = vmatpush.bf16.msra.mxu0 %v5828
        %6559 = vmatpush.bf16.msra.mxu0 %v5826
        %6560 = vmatpush.bf16.msra.mxu0 %v5824
        %6561 = vmatmul.bf16.gmra.mxu0 %v4994
        %v6562 = vpop.f32.mrf.mxu0
        %v6563 = vadd.f32 %v6549, %v6562
        %v6564 = vpop.f32.mrf.mxu0
        %v6565 = vadd.f32 %v6551, %v6564
        %6566 = vdwg.mxu0
        %6567 = vmatpush.bf16.msra.mxu0 %v5854
        %6568 = vmatpush.bf16.msra.mxu0 %v5852
        %6569 = vmatpush.bf16.msra.mxu0 %v5850
        %6570 = vmatpush.bf16.msra.mxu0 %v5848
        %6571 = vmatpush.bf16.msra.mxu0 %v5846
        %6572 = vmatpush.bf16.msra.mxu0 %v5844
        %6573 = vmatpush.bf16.msra.mxu0 %v5842
        %6574 = vmatpush.bf16.msra.mxu0 %v5840
        %6575 = vmatmul.bf16.gmra.mxu0 %v4995
        %v6576 = vpop.f32.mrf.mxu0
        %v6577 = vadd.f32 %v6563, %v6576
        %v6578 = vpop.f32.mrf.mxu0
        %v6579 = vadd.f32 %v6565, %v6578
        %6580 = vdwg.mxu0
        %6581 = vmatpush.bf16.msra.mxu0 %v5870
        %6582 = vmatpush.bf16.msra.mxu0 %v5868
        %6583 = vmatpush.bf16.msra.mxu0 %v5866
        %6584 = vmatpush.bf16.msra.mxu0 %v5864
        %6585 = vmatpush.bf16.msra.mxu0 %v5862
        %6586 = vmatpush.bf16.msra.mxu0 %v5860
        %6587 = vmatpush.bf16.msra.mxu0 %v5858
        %6588 = vmatpush.bf16.msra.mxu0 %v5856
        %6589 = vmatmul.bf16.gmra.mxu0 %v4996
        %v6590 = vpop.f32.mrf.mxu0
        %v6591 = vadd.f32 %v6577, %v6590
        %v6592 = vpop.f32.mrf.mxu0
        %v6593 = vadd.f32 %v6579, %v6592
        %6594 = vdwg.mxu0
        %6595 = vmatpush.bf16.msra.mxu0 %v5886
        %6596 = vmatpush.bf16.msra.mxu0 %v5884
        %6597 = vmatpush.bf16.msra.mxu0 %v5882
        %6598 = vmatpush.bf16.msra.mxu0 %v5880
        %6599 = vmatpush.bf16.msra.mxu0 %v5878
        %6600 = vmatpush.bf16.msra.mxu0 %v5876
        %6601 = vmatpush.bf16.msra.mxu0 %v5874
        %6602 = vmatpush.bf16.msra.mxu0 %v5872
        %6603 = vmatmul.bf16.gmra.mxu0 %v4997
        %v6604 = vpop.f32.mrf.mxu0
        %v6605 = vadd.f32 %v6591, %v6604
        %v6606 = vpop.f32.mrf.mxu0
        %v6607 = vadd.f32 %v6593, %v6606
        %6608 = vdwg.mxu0
        %6609 = vmatpush.bf16.msra.mxu0 %v5902
        %6610 = vmatpush.bf16.msra.mxu0 %v5900
        %6611 = vmatpush.bf16.msra.mxu0 %v5898
        %6612 = vmatpush.bf16.msra.mxu0 %v5896
        %6613 = vmatpush.bf16.msra.mxu0 %v5894
        %6614 = vmatpush.bf16.msra.mxu0 %v5892
        %6615 = vmatpush.bf16.msra.mxu0 %v5890
        %6616 = vmatpush.bf16.msra.mxu0 %v5888
        %6617 = vmatmul.bf16.gmra.mxu0 %v4998
        %v6618 = vpop.f32.mrf.mxu0
        %v6619 = vadd.f32 %v6605, %v6618
        %v6620 = vpop.f32.mrf.mxu0
        %v6621 = vadd.f32 %v6607, %v6620
        %6622 = vdwg.mxu0
        %6623 = vmatpush.bf16.msra.mxu0 %v5918
        %6624 = vmatpush.bf16.msra.mxu0 %v5916
        %6625 = vmatpush.bf16.msra.mxu0 %v5914
        %6626 = vmatpush.bf16.msra.mxu0 %v5912
        %6627 = vmatpush.bf16.msra.mxu0 %v5910
        %6628 = vmatpush.bf16.msra.mxu0 %v5908
        %6629 = vmatpush.bf16.msra.mxu0 %v5906
        %6630 = vmatpush.bf16.msra.mxu0 %v5904
        %6631 = vmatmul.bf16.gmra.mxu0 %v4999
        %v6632 = vpop.f32.mrf.mxu0
        %v6633 = vadd.f32 %v6619, %v6632
        %v6634 = vpop.f32.mrf.mxu0
        %v6635 = vadd.f32 %v6621, %v6634
        %6636 = vdwg.mxu0
        %6637 = vmatpush.bf16.msra.mxu0 %v5934
        %6638 = vmatpush.bf16.msra.mxu0 %v5932
        %6639 = vmatpush.bf16.msra.mxu0 %v5930
        %6640 = vmatpush.bf16.msra.mxu0 %v5928
        %6641 = vmatpush.bf16.msra.mxu0 %v5926
        %6642 = vmatpush.bf16.msra.mxu0 %v5924
        %6643 = vmatpush.bf16.msra.mxu0 %v5922
        %6644 = vmatpush.bf16.msra.mxu0 %v5920
        %6645 = vmatmul.bf16.gmra.mxu0 %v5000
        %v6646 = vpop.f32.mrf.mxu0
        %v6647 = vadd.f32 %v6633, %v6646
        %v6648 = vpop.f32.mrf.mxu0
        %v6649 = vadd.f32 %v6635, %v6648
        %6650 = vdwg.mxu0
        %6651 = vmatpush.bf16.msra.mxu0 %v5950
        %6652 = vmatpush.bf16.msra.mxu0 %v5948
        %6653 = vmatpush.bf16.msra.mxu0 %v5946
        %6654 = vmatpush.bf16.msra.mxu0 %v5944
        %6655 = vmatpush.bf16.msra.mxu0 %v5942
        %6656 = vmatpush.bf16.msra.mxu0 %v5940
        %6657 = vmatpush.bf16.msra.mxu0 %v5938
        %6658 = vmatpush.bf16.msra.mxu0 %v5936
        %6659 = vmatmul.bf16.gmra.mxu0 %v5001
        %v6660 = vpop.f32.mrf.mxu0
        %v6661 = vadd.f32 %v6647, %v6660
        %v6662 = vpop.f32.mrf.mxu0
        %v6663 = vadd.f32 %v6649, %v6662
        %6664 = vdwg.mxu0
        %6665 = vmatpush.bf16.msra.mxu0 %v5966
        %6666 = vmatpush.bf16.msra.mxu0 %v5964
        %6667 = vmatpush.bf16.msra.mxu0 %v5962
        %6668 = vmatpush.bf16.msra.mxu0 %v5960
        %6669 = vmatpush.bf16.msra.mxu0 %v5958
        %6670 = vmatpush.bf16.msra.mxu0 %v5956
        %6671 = vmatpush.bf16.msra.mxu0 %v5954
        %6672 = vmatpush.bf16.msra.mxu0 %v5952
        %6673 = vmatmul.bf16.gmra.mxu0 %v5002
        %v6674 = vpop.f32.mrf.mxu0
        %v6675 = vadd.f32 %v6661, %v6674
        %v6676 = vpop.f32.mrf.mxu0
        %v6677 = vadd.f32 %v6663, %v6676
        %6678 = vdwg.mxu0
        %6679 = vmatpush.bf16.msra.mxu0 %v5982
        %6680 = vmatpush.bf16.msra.mxu0 %v5980
        %6681 = vmatpush.bf16.msra.mxu0 %v5978
        %6682 = vmatpush.bf16.msra.mxu0 %v5976
        %6683 = vmatpush.bf16.msra.mxu0 %v5974
        %6684 = vmatpush.bf16.msra.mxu0 %v5972
        %6685 = vmatpush.bf16.msra.mxu0 %v5970
        %6686 = vmatpush.bf16.msra.mxu0 %v5968
        %6687 = vmatmul.bf16.gmra.mxu0 %v5003
        %v6688 = vpop.f32.mrf.mxu0
        %v6689 = vadd.f32 %v6675, %v6688
        %v6690 = vpop.f32.mrf.mxu0
        %v6691 = vadd.f32 %v6677, %v6690
        %6692 = vdwg.mxu0
        %6693 = vmatpush.bf16.msra.mxu0 %v5998
        %6694 = vmatpush.bf16.msra.mxu0 %v5996
        %6695 = vmatpush.bf16.msra.mxu0 %v5994
        %6696 = vmatpush.bf16.msra.mxu0 %v5992
        %6697 = vmatpush.bf16.msra.mxu0 %v5990
        %6698 = vmatpush.bf16.msra.mxu0 %v5988
        %6699 = vmatpush.bf16.msra.mxu0 %v5986
        %6700 = vmatpush.bf16.msra.mxu0 %v5984
        %6701 = vmatmul.bf16.gmra.mxu0 %v5004
        %v6702 = vpop.f32.mrf.mxu0
        %v6703 = vadd.f32 %v6689, %v6702
        %v6704 = vpop.f32.mrf.mxu0
        %v6705 = vadd.f32 %v6691, %v6704
        %6706 = vdwg.mxu0
        %6707 = vmatpush.bf16.msra.mxu0 %v6014
        %6708 = vmatpush.bf16.msra.mxu0 %v6012
        %6709 = vmatpush.bf16.msra.mxu0 %v6010
        %6710 = vmatpush.bf16.msra.mxu0 %v6008
        %6711 = vmatpush.bf16.msra.mxu0 %v6006
        %6712 = vmatpush.bf16.msra.mxu0 %v6004
        %6713 = vmatpush.bf16.msra.mxu0 %v6002
        %6714 = vmatpush.bf16.msra.mxu0 %v6000
        %6715 = vmatmul.bf16.gmra.mxu0 %v5005
        %v6716 = vpop.f32.mrf.mxu0
        %v6717 = vadd.f32 %v6703, %v6716
        %v6718 = vpop.f32.mrf.mxu0
        %v6719 = vadd.f32 %v6705, %v6718
        %6720 = vdwg.mxu0
        %6721 = vmatpush.bf16.msra.mxu0 %v6030
        %6722 = vmatpush.bf16.msra.mxu0 %v6028
        %6723 = vmatpush.bf16.msra.mxu0 %v6026
        %6724 = vmatpush.bf16.msra.mxu0 %v6024
        %6725 = vmatpush.bf16.msra.mxu0 %v6022
        %6726 = vmatpush.bf16.msra.mxu0 %v6020
        %6727 = vmatpush.bf16.msra.mxu0 %v6018
        %6728 = vmatpush.bf16.msra.mxu0 %v6016
        %6729 = vmatmul.bf16.gmra.mxu0 %v5006
        %v6730 = vpop.f32.mrf.mxu0
        %v6731 = vadd.f32 %v6717, %v6730
        %v6732 = vpop.f32.mrf.mxu0
        %v6733 = vadd.f32 %v6719, %v6732
        %6734 = vdwg.mxu0
        %v6735 = vmul.f32 %v4328, %v6507
        %v6736 = vmul.f32 %v4330, %v6509
        %v6737 = vmul.f32 %v4333, %v6507
        %v6738 = vmul.f32 %v4335, %v6509
        %v6739 = vmul.f32 %v4338, %v6507
        %v6740 = vmul.f32 %v4340, %v6509
        %v6741 = vmul.f32 %v4343, %v6507
        %v6742 = vmul.f32 %v4345, %v6509
        %v6743 = vadd.f32 %v6735, %v6736
        %v6744 = vrot.slane %v6743, 4
        %v6745 = vadd.f32 %v6743, %v6744
        %v6746 = vrot.slane %v6745, 2
        %v6747 = vadd.f32 %v6745, %v6746
        %v6748 = vrot.slane %v6747, 1
        %v6749 = vadd.f32 %v6747, %v6748
        %v6750 = vadd.f32 %v6737, %v6738
        %v6751 = vrot.slane %v6750, 4
        %v6752 = vadd.f32 %v6750, %v6751
        %v6753 = vrot.slane %v6752, 2
        %v6754 = vadd.f32 %v6752, %v6753
        %v6755 = vrot.slane %v6754, 1
        %v6756 = vadd.f32 %v6754, %v6755
        %v6757 = vadd.f32 %v6739, %v6740
        %v6758 = vrot.slane %v6757, 4
        %v6759 = vadd.f32 %v6757, %v6758
        %v6760 = vrot.slane %v6759, 2
        %v6761 = vadd.f32 %v6759, %v6760
        %v6762 = vrot.slane %v6761, 1
        %v6763 = vadd.f32 %v6761, %v6762
        %v6764 = vadd.f32 %v6741, %v6742
        %v6765 = vrot.slane %v6764, 4
        %v6766 = vadd.f32 %v6764, %v6765
        %v6767 = vrot.slane %v6766, 2
        %v6768 = vadd.f32 %v6766, %v6767
        %v6769 = vrot.slane %v6768, 1
        %v6770 = vadd.f32 %v6768, %v6769
        %v6771 = vadd.f32 %v6749, 0.0
        %v6772 = vadd.f32 %v6756, 0.0
        %v6773 = vadd.f32 %v6763, 0.0
        %v6774 = vadd.f32 %v6770, 0.0
        %v6775 = vmul.f32 %v4328, %v6731
        %v6776 = vmul.f32 %v4330, %v6733
        %v6777 = vmul.f32 %v4333, %v6731
        %v6778 = vmul.f32 %v4335, %v6733
        %v6779 = vmul.f32 %v4338, %v6731
        %v6780 = vmul.f32 %v4340, %v6733
        %v6781 = vmul.f32 %v4343, %v6731
        %v6782 = vmul.f32 %v4345, %v6733
        %v6783 = vadd.f32 %v6775, %v6776
        %v6784 = vrot.slane %v6783, 4
        %v6785 = vadd.f32 %v6783, %v6784
        %v6786 = vrot.slane %v6785, 2
        %v6787 = vadd.f32 %v6785, %v6786
        %v6788 = vrot.slane %v6787, 1
        %v6789 = vadd.f32 %v6787, %v6788
        %v6790 = vadd.f32 %v6777, %v6778
        %v6791 = vrot.slane %v6790, 4
        %v6792 = vadd.f32 %v6790, %v6791
        %v6793 = vrot.slane %v6792, 2
        %v6794 = vadd.f32 %v6792, %v6793
        %v6795 = vrot.slane %v6794, 1
        %v6796 = vadd.f32 %v6794, %v6795
        %v6797 = vadd.f32 %v6779, %v6780
        %v6798 = vrot.slane %v6797, 4
        %v6799 = vadd.f32 %v6797, %v6798
        %v6800 = vrot.slane %v6799, 2
        %v6801 = vadd.f32 %v6799, %v6800
        %v6802 = vrot.slane %v6801, 1
        %v6803 = vadd.f32 %v6801, %v6802
        %v6804 = vadd.f32 %v6781, %v6782
        %v6805 = vrot.slane %v6804, 4
        %v6806 = vadd.f32 %v6804, %v6805
        %v6807 = vrot.slane %v6806, 2
        %v6808 = vadd.f32 %v6806, %v6807
        %v6809 = vrot.slane %v6808, 1
        %v6810 = vadd.f32 %v6808, %v6809
        %v6811 = vadd.f32 %v6789, 0.0
        %v6812 = vadd.f32 %v6796, 0.0
        %v6813 = vadd.f32 %v6803, 0.0
        %v6814 = vadd.f32 %v6810, 0.0
        %v6815 = vmax.f32 %v4173, %v4189
        %v6816 = vrot.slane %v6815, 4
        %v6817 = vmax.f32 %v6815, %v6816
        %v6818 = vrot.slane %v6817, 2
        %v6819 = vmax.f32 %v6817, %v6818
        %v6820 = vrot.slane %v6819, 1
        %v6821 = vmax.f32 %v6819, %v6820
        %v6822 = vmax.f32 %v4174, %v4190
        %v6823 = vrot.slane %v6822, 4
        %v6824 = vmax.f32 %v6822, %v6823
        %v6825 = vrot.slane %v6824, 2
        %v6826 = vmax.f32 %v6824, %v6825
        %v6827 = vrot.slane %v6826, 1
        %v6828 = vmax.f32 %v6826, %v6827
        %v6829 = vmax.f32 %v4175, %v4191
        %v6830 = vrot.slane %v6829, 4
        %v6831 = vmax.f32 %v6829, %v6830
        %v6832 = vrot.slane %v6831, 2
        %v6833 = vmax.f32 %v6831, %v6832
        %v6834 = vrot.slane %v6833, 1
        %v6835 = vmax.f32 %v6833, %v6834
        %v6836 = vmax.f32 %v4176, %v4192
        %v6837 = vrot.slane %v6836, 4
        %v6838 = vmax.f32 %v6836, %v6837
        %v6839 = vrot.slane %v6838, 2
        %v6840 = vmax.f32 %v6838, %v6839
        %v6841 = vrot.slane %v6840, 1
        %v6842 = vmax.f32 %v6840, %v6841
        %v6843 = vmax.f32 %v4177, %v4193
        %v6844 = vrot.slane %v6843, 4
        %v6845 = vmax.f32 %v6843, %v6844
        %v6846 = vrot.slane %v6845, 2
        %v6847 = vmax.f32 %v6845, %v6846
        %v6848 = vrot.slane %v6847, 1
        %v6849 = vmax.f32 %v6847, %v6848
        %v6850 = vmax.f32 %v4178, %v4194
        %v6851 = vrot.slane %v6850, 4
        %v6852 = vmax.f32 %v6850, %v6851
        %v6853 = vrot.slane %v6852, 2
        %v6854 = vmax.f32 %v6852, %v6853
        %v6855 = vrot.slane %v6854, 1
        %v6856 = vmax.f32 %v6854, %v6855
        %v6857 = vmax.f32 %v4179, %v4195
        %v6858 = vrot.slane %v6857, 4
        %v6859 = vmax.f32 %v6857, %v6858
        %v6860 = vrot.slane %v6859, 2
        %v6861 = vmax.f32 %v6859, %v6860
        %v6862 = vrot.slane %v6861, 1
        %v6863 = vmax.f32 %v6861, %v6862
        %v6864 = vmax.f32 %v4180, %v4196
        %v6865 = vrot.slane %v6864, 4
        %v6866 = vmax.f32 %v6864, %v6865
        %v6867 = vrot.slane %v6866, 2
        %v6868 = vmax.f32 %v6866, %v6867
        %v6869 = vrot.slane %v6868, 1
        %v6870 = vmax.f32 %v6868, %v6869
        %v6871 = vmax.f32 %v4181, %v4197
        %v6872 = vrot.slane %v6871, 4
        %v6873 = vmax.f32 %v6871, %v6872
        %v6874 = vrot.slane %v6873, 2
        %v6875 = vmax.f32 %v6873, %v6874
        %v6876 = vrot.slane %v6875, 1
        %v6877 = vmax.f32 %v6875, %v6876
        %v6878 = vmax.f32 %v4182, %v4198
        %v6879 = vrot.slane %v6878, 4
        %v6880 = vmax.f32 %v6878, %v6879
        %v6881 = vrot.slane %v6880, 2
        %v6882 = vmax.f32 %v6880, %v6881
        %v6883 = vrot.slane %v6882, 1
        %v6884 = vmax.f32 %v6882, %v6883
        %v6885 = vmax.f32 %v4183, %v4199
        %v6886 = vrot.slane %v6885, 4
        %v6887 = vmax.f32 %v6885, %v6886
        %v6888 = vrot.slane %v6887, 2
        %v6889 = vmax.f32 %v6887, %v6888
        %v6890 = vrot.slane %v6889, 1
        %v6891 = vmax.f32 %v6889, %v6890
        %v6892 = vmax.f32 %v4184, %v4200
        %v6893 = vrot.slane %v6892, 4
        %v6894 = vmax.f32 %v6892, %v6893
        %v6895 = vrot.slane %v6894, 2
        %v6896 = vmax.f32 %v6894, %v6895
        %v6897 = vrot.slane %v6896, 1
        %v6898 = vmax.f32 %v6896, %v6897
        %v6899 = vmax.f32 %v4185, %v4201
        %v6900 = vrot.slane %v6899, 4
        %v6901 = vmax.f32 %v6899, %v6900
        %v6902 = vrot.slane %v6901, 2
        %v6903 = vmax.f32 %v6901, %v6902
        %v6904 = vrot.slane %v6903, 1
        %v6905 = vmax.f32 %v6903, %v6904
        %v6906 = vmax.f32 %v4186, %v4202
        %v6907 = vrot.slane %v6906, 4
        %v6908 = vmax.f32 %v6906, %v6907
        %v6909 = vrot.slane %v6908, 2
        %v6910 = vmax.f32 %v6908, %v6909
        %v6911 = vrot.slane %v6910, 1
        %v6912 = vmax.f32 %v6910, %v6911
        %v6913 = vmax.f32 %v4187, %v4203
        %v6914 = vrot.slane %v6913, 4
        %v6915 = vmax.f32 %v6913, %v6914
        %v6916 = vrot.slane %v6915, 2
        %v6917 = vmax.f32 %v6915, %v6916
        %v6918 = vrot.slane %v6917, 1
        %v6919 = vmax.f32 %v6917, %v6918
        %v6920 = vmax.f32 %v4188, %v4204
        %v6921 = vrot.slane %v6920, 4
        %v6922 = vmax.f32 %v6920, %v6921
        %v6923 = vrot.slane %v6922, 2
        %v6924 = vmax.f32 %v6922, %v6923
        %v6925 = vrot.slane %v6924, 1
        %v6926 = vmax.f32 %v6924, %v6925
        %v6927 = vsub.f32 %v4173, %v6821
        %v6928 = vsub.f32 %v4174, %v6828
        %v6929 = vsub.f32 %v4175, %v6835
        %v6930 = vsub.f32 %v4176, %v6842
        %v6931 = vsub.f32 %v4177, %v6849
        %v6932 = vsub.f32 %v4178, %v6856
        %v6933 = vsub.f32 %v4179, %v6863
        %v6934 = vsub.f32 %v4180, %v6870
        %v6935 = vsub.f32 %v4181, %v6877
        %v6936 = vsub.f32 %v4182, %v6884
        %v6937 = vsub.f32 %v4183, %v6891
        %v6938 = vsub.f32 %v4184, %v6898
        %v6939 = vsub.f32 %v4185, %v6905
        %v6940 = vsub.f32 %v4186, %v6912
        %v6941 = vsub.f32 %v4187, %v6919
        %v6942 = vsub.f32 %v4188, %v6926
        %v6943 = vsub.f32 %v4189, %v6821
        %v6944 = vsub.f32 %v4190, %v6828
        %v6945 = vsub.f32 %v4191, %v6835
        %v6946 = vsub.f32 %v4192, %v6842
        %v6947 = vsub.f32 %v4193, %v6849
        %v6948 = vsub.f32 %v4194, %v6856
        %v6949 = vsub.f32 %v4195, %v6863
        %v6950 = vsub.f32 %v4196, %v6870
        %v6951 = vsub.f32 %v4197, %v6877
        %v6952 = vsub.f32 %v4198, %v6884
        %v6953 = vsub.f32 %v4199, %v6891
        %v6954 = vsub.f32 %v4200, %v6898
        %v6955 = vsub.f32 %v4201, %v6905
        %v6956 = vsub.f32 %v4202, %v6912
        %v6957 = vsub.f32 %v4203, %v6919
        %v6958 = vsub.f32 %v4204, %v6926
        %v6959 = vmul.f32 %v6927, 1.442695
        %v6960 = vpow.pop %v6959
        %v6961 = vmul.f32 %v6928, 1.442695
        %v6962 = vpow.pop %v6961
        %v6963 = vmul.f32 %v6929, 1.442695
        %v6964 = vpow.pop %v6963
        %v6965 = vmul.f32 %v6930, 1.442695
        %v6966 = vpow.pop %v6965
        %v6967 = vmul.f32 %v6931, 1.442695
        %v6968 = vpow.pop %v6967
        %v6969 = vmul.f32 %v6932, 1.442695
        %v6970 = vpow.pop %v6969
        %v6971 = vmul.f32 %v6933, 1.442695
        %v6972 = vpow.pop %v6971
        %v6973 = vmul.f32 %v6934, 1.442695
        %v6974 = vpow.pop %v6973
        %v6975 = vmul.f32 %v6935, 1.442695
        %v6976 = vpow.pop %v6975
        %v6977 = vmul.f32 %v6936, 1.442695
        %v6978 = vpow.pop %v6977
        %v6979 = vmul.f32 %v6937, 1.442695
        %v6980 = vpow.pop %v6979
        %v6981 = vmul.f32 %v6938, 1.442695
        %v6982 = vpow.pop %v6981
        %v6983 = vmul.f32 %v6939, 1.442695
        %v6984 = vpow.pop %v6983
        %v6985 = vmul.f32 %v6940, 1.442695
        %v6986 = vpow.pop %v6985
        %v6987 = vmul.f32 %v6941, 1.442695
        %v6988 = vpow.pop %v6987
        %v6989 = vmul.f32 %v6942, 1.442695
        %v6990 = vpow.pop %v6989
        %v6991 = vmul.f32 %v6943, 1.442695
        %v6992 = vpow.pop %v6991
        %v6993 = vmul.f32 %v6944, 1.442695
        %v6994 = vpow.pop %v6993
        %v6995 = vmul.f32 %v6945, 1.442695
        %v6996 = vpow.pop %v6995
        %v6997 = vmul.f32 %v6946, 1.442695
        %v6998 = vpow.pop %v6997
        %v6999 = vmul.f32 %v6947, 1.442695
        %v7000 = vpow.pop %v6999
        %v7001 = vmul.f32 %v6948, 1.442695
        %v7002 = vpow.pop %v7001
        %v7003 = vmul.f32 %v6949, 1.442695
        %v7004 = vpow.pop %v7003
        %v7005 = vmul.f32 %v6950, 1.442695
        %v7006 = vpow.pop %v7005
        %v7007 = vmul.f32 %v6951, 1.442695
        %v7008 = vpow.pop %v7007
        %v7009 = vmul.f32 %v6952, 1.442695
        %v7010 = vpow.pop %v7009
        %v7011 = vmul.f32 %v6953, 1.442695
        %v7012 = vpow.pop %v7011
        %v7013 = vmul.f32 %v6954, 1.442695
        %v7014 = vpow.pop %v7013
        %v7015 = vmul.f32 %v6955, 1.442695
        %v7016 = vpow.pop %v7015
        %v7017 = vmul.f32 %v6956, 1.442695
        %v7018 = vpow.pop %v7017
        %v7019 = vmul.f32 %v6957, 1.442695
        %v7020 = vpow.pop %v7019
        %v7021 = vmul.f32 %v6958, 1.442695
        %v7022 = vpow.pop %v7021
        %v7023 = vadd.f32 %v6960, %v6992
        %v7024 = vrot.slane %v7023, 4
        %v7025 = vadd.f32 %v7023, %v7024
        %v7026 = vrot.slane %v7025, 2
        %v7027 = vadd.f32 %v7025, %v7026
        %v7028 = vrot.slane %v7027, 1
        %v7029 = vadd.f32 %v7027, %v7028
        %v7030 = vadd.f32 %v6962, %v6994
        %v7031 = vrot.slane %v7030, 4
        %v7032 = vadd.f32 %v7030, %v7031
        %v7033 = vrot.slane %v7032, 2
        %v7034 = vadd.f32 %v7032, %v7033
        %v7035 = vrot.slane %v7034, 1
        %v7036 = vadd.f32 %v7034, %v7035
        %v7037 = vadd.f32 %v6964, %v6996
        %v7038 = vrot.slane %v7037, 4
        %v7039 = vadd.f32 %v7037, %v7038
        %v7040 = vrot.slane %v7039, 2
        %v7041 = vadd.f32 %v7039, %v7040
        %v7042 = vrot.slane %v7041, 1
        %v7043 = vadd.f32 %v7041, %v7042
        %v7044 = vadd.f32 %v6966, %v6998
        %v7045 = vrot.slane %v7044, 4
        %v7046 = vadd.f32 %v7044, %v7045
        %v7047 = vrot.slane %v7046, 2
        %v7048 = vadd.f32 %v7046, %v7047
        %v7049 = vrot.slane %v7048, 1
        %v7050 = vadd.f32 %v7048, %v7049
        %v7051 = vadd.f32 %v6968, %v7000
        %v7052 = vrot.slane %v7051, 4
        %v7053 = vadd.f32 %v7051, %v7052
        %v7054 = vrot.slane %v7053, 2
        %v7055 = vadd.f32 %v7053, %v7054
        %v7056 = vrot.slane %v7055, 1
        %v7057 = vadd.f32 %v7055, %v7056
        %v7058 = vadd.f32 %v6970, %v7002
        %v7059 = vrot.slane %v7058, 4
        %v7060 = vadd.f32 %v7058, %v7059
        %v7061 = vrot.slane %v7060, 2
        %v7062 = vadd.f32 %v7060, %v7061
        %v7063 = vrot.slane %v7062, 1
        %v7064 = vadd.f32 %v7062, %v7063
        %v7065 = vadd.f32 %v6972, %v7004
        %v7066 = vrot.slane %v7065, 4
        %v7067 = vadd.f32 %v7065, %v7066
        %v7068 = vrot.slane %v7067, 2
        %v7069 = vadd.f32 %v7067, %v7068
        %v7070 = vrot.slane %v7069, 1
        %v7071 = vadd.f32 %v7069, %v7070
        %v7072 = vadd.f32 %v6974, %v7006
        %v7073 = vrot.slane %v7072, 4
        %v7074 = vadd.f32 %v7072, %v7073
        %v7075 = vrot.slane %v7074, 2
        %v7076 = vadd.f32 %v7074, %v7075
        %v7077 = vrot.slane %v7076, 1
        %v7078 = vadd.f32 %v7076, %v7077
        %v7079 = vadd.f32 %v6976, %v7008
        %v7080 = vrot.slane %v7079, 4
        %v7081 = vadd.f32 %v7079, %v7080
        %v7082 = vrot.slane %v7081, 2
        %v7083 = vadd.f32 %v7081, %v7082
        %v7084 = vrot.slane %v7083, 1
        %v7085 = vadd.f32 %v7083, %v7084
        %v7086 = vadd.f32 %v6978, %v7010
        %v7087 = vrot.slane %v7086, 4
        %v7088 = vadd.f32 %v7086, %v7087
        %v7089 = vrot.slane %v7088, 2
        %v7090 = vadd.f32 %v7088, %v7089
        %v7091 = vrot.slane %v7090, 1
        %v7092 = vadd.f32 %v7090, %v7091
        %v7093 = vadd.f32 %v6980, %v7012
        %v7094 = vrot.slane %v7093, 4
        %v7095 = vadd.f32 %v7093, %v7094
        %v7096 = vrot.slane %v7095, 2
        %v7097 = vadd.f32 %v7095, %v7096
        %v7098 = vrot.slane %v7097, 1
        %v7099 = vadd.f32 %v7097, %v7098
        %v7100 = vadd.f32 %v6982, %v7014
        %v7101 = vrot.slane %v7100, 4
        %v7102 = vadd.f32 %v7100, %v7101
        %v7103 = vrot.slane %v7102, 2
        %v7104 = vadd.f32 %v7102, %v7103
        %v7105 = vrot.slane %v7104, 1
        %v7106 = vadd.f32 %v7104, %v7105
        %v7107 = vadd.f32 %v6984, %v7016
        %v7108 = vrot.slane %v7107, 4
        %v7109 = vadd.f32 %v7107, %v7108
        %v7110 = vrot.slane %v7109, 2
        %v7111 = vadd.f32 %v7109, %v7110
        %v7112 = vrot.slane %v7111, 1
        %v7113 = vadd.f32 %v7111, %v7112
        %v7114 = vadd.f32 %v6986, %v7018
        %v7115 = vrot.slane %v7114, 4
        %v7116 = vadd.f32 %v7114, %v7115
        %v7117 = vrot.slane %v7116, 2
        %v7118 = vadd.f32 %v7116, %v7117
        %v7119 = vrot.slane %v7118, 1
        %v7120 = vadd.f32 %v7118, %v7119
        %v7121 = vadd.f32 %v6988, %v7020
        %v7122 = vrot.slane %v7121, 4
        %v7123 = vadd.f32 %v7121, %v7122
        %v7124 = vrot.slane %v7123, 2
        %v7125 = vadd.f32 %v7123, %v7124
        %v7126 = vrot.slane %v7125, 1
        %v7127 = vadd.f32 %v7125, %v7126
        %v7128 = vadd.f32 %v6990, %v7022
        %v7129 = vrot.slane %v7128, 4
        %v7130 = vadd.f32 %v7128, %v7129
        %v7131 = vrot.slane %v7130, 2
        %v7132 = vadd.f32 %v7130, %v7131
        %v7133 = vrot.slane %v7132, 1
        %v7134 = vadd.f32 %v7132, %v7133
        %v7135 = vrcp.pop %v7029
        %v7136 = vrcp.pop %v7036
        %v7137 = vrcp.pop %v7043
        %v7138 = vrcp.pop %v7050
        %v7139 = vrcp.pop %v7057
        %v7140 = vrcp.pop %v7064
        %v7141 = vrcp.pop %v7071
        %v7142 = vrcp.pop %v7078
        %v7143 = vrcp.pop %v7085
        %v7144 = vrcp.pop %v7092
        %v7145 = vrcp.pop %v7099
        %v7146 = vrcp.pop %v7106
        %v7147 = vrcp.pop %v7113
        %v7148 = vrcp.pop %v7120
        %v7149 = vrcp.pop %v7127
        %v7150 = vrcp.pop %v7134
        %v7151 = vmul.f32 %v6960, %v7135
        %v7152 = vmul.f32 %v6962, %v7136
        %v7153 = vmul.f32 %v6964, %v7137
        %v7154 = vmul.f32 %v6966, %v7138
        %v7155 = vmul.f32 %v6968, %v7139
        %v7156 = vmul.f32 %v6970, %v7140
        %v7157 = vmul.f32 %v6972, %v7141
        %v7158 = vmul.f32 %v6974, %v7142
        %v7159 = vmul.f32 %v6976, %v7143
        %v7160 = vmul.f32 %v6978, %v7144
        %v7161 = vmul.f32 %v6980, %v7145
        %v7162 = vmul.f32 %v6982, %v7146
        %v7163 = vmul.f32 %v6984, %v7147
        %v7164 = vmul.f32 %v6986, %v7148
        %v7165 = vmul.f32 %v6988, %v7149
        %v7166 = vmul.f32 %v6990, %v7150
        %v7167 = vmul.f32 %v6992, %v7135
        %v7168 = vmul.f32 %v6994, %v7136
        %v7169 = vmul.f32 %v6996, %v7137
        %v7170 = vmul.f32 %v6998, %v7138
        %v7171 = vmul.f32 %v7000, %v7139
        %v7172 = vmul.f32 %v7002, %v7140
        %v7173 = vmul.f32 %v7004, %v7141
        %v7174 = vmul.f32 %v7006, %v7142
        %v7175 = vmul.f32 %v7008, %v7143
        %v7176 = vmul.f32 %v7010, %v7144
        %v7177 = vmul.f32 %v7012, %v7145
        %v7178 = vmul.f32 %v7014, %v7146
        %v7179 = vmul.f32 %v7016, %v7147
        %v7180 = vmul.f32 %v7018, %v7148
        %v7181 = vmul.f32 %v7020, %v7149
        %v7182 = vmul.f32 %v7022, %v7150
        %v7183 = vpack.c.bf16 %v7167, %v7151
        %v7184 = vpack.c.bf16 %v7168, %v7152
        %v7185 = vpack.c.bf16 %v7169, %v7153
        %v7186 = vpack.c.bf16 %v7170, %v7154
        %v7187 = vpack.c.bf16 %v7171, %v7155
        %v7188 = vpack.c.bf16 %v7172, %v7156
        %v7189 = vpack.c.bf16 %v7173, %v7157
        %v7190 = vpack.c.bf16 %v7174, %v7158
        %v7191 = vpack.c.bf16 %v7175, %v7159
        %v7192 = vpack.c.bf16 %v7176, %v7160
        %v7193 = vpack.c.bf16 %v7177, %v7161
        %v7194 = vpack.c.bf16 %v7178, %v7162
        %v7195 = vpack.c.bf16 %v7179, %v7163
        %v7196 = vpack.c.bf16 %v7180, %v7164
        %v7197 = vpack.c.bf16 %v7181, %v7165
        %v7198 = vpack.c.bf16 %v7182, %v7166
        %7199 = vmatpush.bf16.msra.mxu0 %v5789
        %7200 = vmatpush.bf16.msra.mxu0 %v5787
        %7201 = vmatpush.bf16.msra.mxu0 %v5785
        %7202 = vmatpush.bf16.msra.mxu0 %v5783
        %7203 = vmatpush.bf16.msra.mxu0 %v5781
        %7204 = vmatpush.bf16.msra.mxu0 %v5779
        %7205 = vmatpush.bf16.msra.mxu0 %v5777
        %7206 = vmatpush.bf16.msra.mxu0 %v5775
        %7207 = vmatmul.bf16.gmra.mxu0 %v7183
        %v7208 = vpop.f32.mrf.mxu0
        %v7209 = vadd.f32 0.0, %v7208
        %v7210 = vpop.f32.mrf.mxu0
        %v7211 = vadd.f32 0.0, %v7210
        %7212 = vdwg.mxu0
        %7213 = vmatpush.bf16.msra.mxu0 %v5805
        %7214 = vmatpush.bf16.msra.mxu0 %v5803
        %7215 = vmatpush.bf16.msra.mxu0 %v5801
        %7216 = vmatpush.bf16.msra.mxu0 %v5799
        %7217 = vmatpush.bf16.msra.mxu0 %v5797
        %7218 = vmatpush.bf16.msra.mxu0 %v5795
        %7219 = vmatpush.bf16.msra.mxu0 %v5793
        %7220 = vmatpush.bf16.msra.mxu0 %v5791
        %7221 = vmatmul.bf16.gmra.mxu0 %v7184
        %v7222 = vpop.f32.mrf.mxu0
        %v7223 = vadd.f32 %v7209, %v7222
        %v7224 = vpop.f32.mrf.mxu0
        %v7225 = vadd.f32 %v7211, %v7224
        %7226 = vdwg.mxu0
        %7227 = vmatpush.bf16.msra.mxu0 %v5821
        %7228 = vmatpush.bf16.msra.mxu0 %v5819
        %7229 = vmatpush.bf16.msra.mxu0 %v5817
        %7230 = vmatpush.bf16.msra.mxu0 %v5815
        %7231 = vmatpush.bf16.msra.mxu0 %v5813
        %7232 = vmatpush.bf16.msra.mxu0 %v5811
        %7233 = vmatpush.bf16.msra.mxu0 %v5809
        %7234 = vmatpush.bf16.msra.mxu0 %v5807
        %7235 = vmatmul.bf16.gmra.mxu0 %v7185
        %v7236 = vpop.f32.mrf.mxu0
        %v7237 = vadd.f32 %v7223, %v7236
        %v7238 = vpop.f32.mrf.mxu0
        %v7239 = vadd.f32 %v7225, %v7238
        %7240 = vdwg.mxu0
        %7241 = vmatpush.bf16.msra.mxu0 %v5837
        %7242 = vmatpush.bf16.msra.mxu0 %v5835
        %7243 = vmatpush.bf16.msra.mxu0 %v5833
        %7244 = vmatpush.bf16.msra.mxu0 %v5831
        %7245 = vmatpush.bf16.msra.mxu0 %v5829
        %7246 = vmatpush.bf16.msra.mxu0 %v5827
        %7247 = vmatpush.bf16.msra.mxu0 %v5825
        %7248 = vmatpush.bf16.msra.mxu0 %v5823
        %7249 = vmatmul.bf16.gmra.mxu0 %v7186
        %v7250 = vpop.f32.mrf.mxu0
        %v7251 = vadd.f32 %v7237, %v7250
        %v7252 = vpop.f32.mrf.mxu0
        %v7253 = vadd.f32 %v7239, %v7252
        %7254 = vdwg.mxu0
        %7255 = vmatpush.bf16.msra.mxu0 %v5853
        %7256 = vmatpush.bf16.msra.mxu0 %v5851
        %7257 = vmatpush.bf16.msra.mxu0 %v5849
        %7258 = vmatpush.bf16.msra.mxu0 %v5847
        %7259 = vmatpush.bf16.msra.mxu0 %v5845
        %7260 = vmatpush.bf16.msra.mxu0 %v5843
        %7261 = vmatpush.bf16.msra.mxu0 %v5841
        %7262 = vmatpush.bf16.msra.mxu0 %v5839
        %7263 = vmatmul.bf16.gmra.mxu0 %v7187
        %v7264 = vpop.f32.mrf.mxu0
        %v7265 = vadd.f32 %v7251, %v7264
        %v7266 = vpop.f32.mrf.mxu0
        %v7267 = vadd.f32 %v7253, %v7266
        %7268 = vdwg.mxu0
        %7269 = vmatpush.bf16.msra.mxu0 %v5869
        %7270 = vmatpush.bf16.msra.mxu0 %v5867
        %7271 = vmatpush.bf16.msra.mxu0 %v5865
        %7272 = vmatpush.bf16.msra.mxu0 %v5863
        %7273 = vmatpush.bf16.msra.mxu0 %v5861
        %7274 = vmatpush.bf16.msra.mxu0 %v5859
        %7275 = vmatpush.bf16.msra.mxu0 %v5857
        %7276 = vmatpush.bf16.msra.mxu0 %v5855
        %7277 = vmatmul.bf16.gmra.mxu0 %v7188
        %v7278 = vpop.f32.mrf.mxu0
        %v7279 = vadd.f32 %v7265, %v7278
        %v7280 = vpop.f32.mrf.mxu0
        %v7281 = vadd.f32 %v7267, %v7280
        %7282 = vdwg.mxu0
        %7283 = vmatpush.bf16.msra.mxu0 %v5885
        %7284 = vmatpush.bf16.msra.mxu0 %v5883
        %7285 = vmatpush.bf16.msra.mxu0 %v5881
        %7286 = vmatpush.bf16.msra.mxu0 %v5879
        %7287 = vmatpush.bf16.msra.mxu0 %v5877
        %7288 = vmatpush.bf16.msra.mxu0 %v5875
        %7289 = vmatpush.bf16.msra.mxu0 %v5873
        %7290 = vmatpush.bf16.msra.mxu0 %v5871
        %7291 = vmatmul.bf16.gmra.mxu0 %v7189
        %v7292 = vpop.f32.mrf.mxu0
        %v7293 = vadd.f32 %v7279, %v7292
        %v7294 = vpop.f32.mrf.mxu0
        %v7295 = vadd.f32 %v7281, %v7294
        %7296 = vdwg.mxu0
        %7297 = vmatpush.bf16.msra.mxu0 %v5901
        %7298 = vmatpush.bf16.msra.mxu0 %v5899
        %7299 = vmatpush.bf16.msra.mxu0 %v5897
        %7300 = vmatpush.bf16.msra.mxu0 %v5895
        %7301 = vmatpush.bf16.msra.mxu0 %v5893
        %7302 = vmatpush.bf16.msra.mxu0 %v5891
        %7303 = vmatpush.bf16.msra.mxu0 %v5889
        %7304 = vmatpush.bf16.msra.mxu0 %v5887
        %7305 = vmatmul.bf16.gmra.mxu0 %v7190
        %v7306 = vpop.f32.mrf.mxu0
        %v7307 = vadd.f32 %v7293, %v7306
        %v7308 = vpop.f32.mrf.mxu0
        %v7309 = vadd.f32 %v7295, %v7308
        %7310 = vdwg.mxu0
        %7311 = vmatpush.bf16.msra.mxu0 %v5917
        %7312 = vmatpush.bf16.msra.mxu0 %v5915
        %7313 = vmatpush.bf16.msra.mxu0 %v5913
        %7314 = vmatpush.bf16.msra.mxu0 %v5911
        %7315 = vmatpush.bf16.msra.mxu0 %v5909
        %7316 = vmatpush.bf16.msra.mxu0 %v5907
        %7317 = vmatpush.bf16.msra.mxu0 %v5905
        %7318 = vmatpush.bf16.msra.mxu0 %v5903
        %7319 = vmatmul.bf16.gmra.mxu0 %v7191
        %v7320 = vpop.f32.mrf.mxu0
        %v7321 = vadd.f32 %v7307, %v7320
        %v7322 = vpop.f32.mrf.mxu0
        %v7323 = vadd.f32 %v7309, %v7322
        %7324 = vdwg.mxu0
        %7325 = vmatpush.bf16.msra.mxu0 %v5933
        %7326 = vmatpush.bf16.msra.mxu0 %v5931
        %7327 = vmatpush.bf16.msra.mxu0 %v5929
        %7328 = vmatpush.bf16.msra.mxu0 %v5927
        %7329 = vmatpush.bf16.msra.mxu0 %v5925
        %7330 = vmatpush.bf16.msra.mxu0 %v5923
        %7331 = vmatpush.bf16.msra.mxu0 %v5921
        %7332 = vmatpush.bf16.msra.mxu0 %v5919
        %7333 = vmatmul.bf16.gmra.mxu0 %v7192
        %v7334 = vpop.f32.mrf.mxu0
        %v7335 = vadd.f32 %v7321, %v7334
        %v7336 = vpop.f32.mrf.mxu0
        %v7337 = vadd.f32 %v7323, %v7336
        %7338 = vdwg.mxu0
        %7339 = vmatpush.bf16.msra.mxu0 %v5949
        %7340 = vmatpush.bf16.msra.mxu0 %v5947
        %7341 = vmatpush.bf16.msra.mxu0 %v5945
        %7342 = vmatpush.bf16.msra.mxu0 %v5943
        %7343 = vmatpush.bf16.msra.mxu0 %v5941
        %7344 = vmatpush.bf16.msra.mxu0 %v5939
        %7345 = vmatpush.bf16.msra.mxu0 %v5937
        %7346 = vmatpush.bf16.msra.mxu0 %v5935
        %7347 = vmatmul.bf16.gmra.mxu0 %v7193
        %v7348 = vpop.f32.mrf.mxu0
        %v7349 = vadd.f32 %v7335, %v7348
        %v7350 = vpop.f32.mrf.mxu0
        %v7351 = vadd.f32 %v7337, %v7350
        %7352 = vdwg.mxu0
        %7353 = vmatpush.bf16.msra.mxu0 %v5965
        %7354 = vmatpush.bf16.msra.mxu0 %v5963
        %7355 = vmatpush.bf16.msra.mxu0 %v5961
        %7356 = vmatpush.bf16.msra.mxu0 %v5959
        %7357 = vmatpush.bf16.msra.mxu0 %v5957
        %7358 = vmatpush.bf16.msra.mxu0 %v5955
        %7359 = vmatpush.bf16.msra.mxu0 %v5953
        %7360 = vmatpush.bf16.msra.mxu0 %v5951
        %7361 = vmatmul.bf16.gmra.mxu0 %v7194
        %v7362 = vpop.f32.mrf.mxu0
        %v7363 = vadd.f32 %v7349, %v7362
        %v7364 = vpop.f32.mrf.mxu0
        %v7365 = vadd.f32 %v7351, %v7364
        %7366 = vdwg.mxu0
        %7367 = vmatpush.bf16.msra.mxu0 %v5981
        %7368 = vmatpush.bf16.msra.mxu0 %v5979
        %7369 = vmatpush.bf16.msra.mxu0 %v5977
        %7370 = vmatpush.bf16.msra.mxu0 %v5975
        %7371 = vmatpush.bf16.msra.mxu0 %v5973
        %7372 = vmatpush.bf16.msra.mxu0 %v5971
        %7373 = vmatpush.bf16.msra.mxu0 %v5969
        %7374 = vmatpush.bf16.msra.mxu0 %v5967
        %7375 = vmatmul.bf16.gmra.mxu0 %v7195
        %v7376 = vpop.f32.mrf.mxu0
        %v7377 = vadd.f32 %v7363, %v7376
        %v7378 = vpop.f32.mrf.mxu0
        %v7379 = vadd.f32 %v7365, %v7378
        %7380 = vdwg.mxu0
        %7381 = vmatpush.bf16.msra.mxu0 %v5997
        %7382 = vmatpush.bf16.msra.mxu0 %v5995
        %7383 = vmatpush.bf16.msra.mxu0 %v5993
        %7384 = vmatpush.bf16.msra.mxu0 %v5991
        %7385 = vmatpush.bf16.msra.mxu0 %v5989
        %7386 = vmatpush.bf16.msra.mxu0 %v5987
        %7387 = vmatpush.bf16.msra.mxu0 %v5985
        %7388 = vmatpush.bf16.msra.mxu0 %v5983
        %7389 = vmatmul.bf16.gmra.mxu0 %v7196
        %v7390 = vpop.f32.mrf.mxu0
        %v7391 = vadd.f32 %v7377, %v7390
        %v7392 = vpop.f32.mrf.mxu0
        %v7393 = vadd.f32 %v7379, %v7392
        %7394 = vdwg.mxu0
        %7395 = vmatpush.bf16.msra.mxu0 %v6013
        %7396 = vmatpush.bf16.msra.mxu0 %v6011
        %7397 = vmatpush.bf16.msra.mxu0 %v6009
        %7398 = vmatpush.bf16.msra.mxu0 %v6007
        %7399 = vmatpush.bf16.msra.mxu0 %v6005
        %7400 = vmatpush.bf16.msra.mxu0 %v6003
        %7401 = vmatpush.bf16.msra.mxu0 %v6001
        %7402 = vmatpush.bf16.msra.mxu0 %v5999
        %7403 = vmatmul.bf16.gmra.mxu0 %v7197
        %v7404 = vpop.f32.mrf.mxu0
        %v7405 = vadd.f32 %v7391, %v7404
        %v7406 = vpop.f32.mrf.mxu0
        %v7407 = vadd.f32 %v7393, %v7406
        %7408 = vdwg.mxu0
        %7409 = vmatpush.bf16.msra.mxu0 %v6029
        %7410 = vmatpush.bf16.msra.mxu0 %v6027
        %7411 = vmatpush.bf16.msra.mxu0 %v6025
        %7412 = vmatpush.bf16.msra.mxu0 %v6023
        %7413 = vmatpush.bf16.msra.mxu0 %v6021
        %7414 = vmatpush.bf16.msra.mxu0 %v6019
        %7415 = vmatpush.bf16.msra.mxu0 %v6017
        %7416 = vmatpush.bf16.msra.mxu0 %v6015
        %7417 = vmatmul.bf16.gmra.mxu0 %v7198
        %v7418 = vpop.f32.mrf.mxu0
        %v7419 = vadd.f32 %v7405, %v7418
        %v7420 = vpop.f32.mrf.mxu0
        %v7421 = vadd.f32 %v7407, %v7420
        %7422 = vdwg.mxu0
        %7423 = vmatpush.bf16.msra.mxu0 %v5790
        %7424 = vmatpush.bf16.msra.mxu0 %v5788
        %7425 = vmatpush.bf16.msra.mxu0 %v5786
        %7426 = vmatpush.bf16.msra.mxu0 %v5784
        %7427 = vmatpush.bf16.msra.mxu0 %v5782
        %7428 = vmatpush.bf16.msra.mxu0 %v5780
        %7429 = vmatpush.bf16.msra.mxu0 %v5778
        %7430 = vmatpush.bf16.msra.mxu0 %v5776
        %7431 = vmatmul.bf16.gmra.mxu0 %v7183
        %v7432 = vpop.f32.mrf.mxu0
        %v7433 = vadd.f32 0.0, %v7432
        %v7434 = vpop.f32.mrf.mxu0
        %v7435 = vadd.f32 0.0, %v7434
        %7436 = vdwg.mxu0
        %7437 = vmatpush.bf16.msra.mxu0 %v5806
        %7438 = vmatpush.bf16.msra.mxu0 %v5804
        %7439 = vmatpush.bf16.msra.mxu0 %v5802
        %7440 = vmatpush.bf16.msra.mxu0 %v5800
        %7441 = vmatpush.bf16.msra.mxu0 %v5798
        %7442 = vmatpush.bf16.msra.mxu0 %v5796
        %7443 = vmatpush.bf16.msra.mxu0 %v5794
        %7444 = vmatpush.bf16.msra.mxu0 %v5792
        %7445 = vmatmul.bf16.gmra.mxu0 %v7184
        %v7446 = vpop.f32.mrf.mxu0
        %v7447 = vadd.f32 %v7433, %v7446
        %v7448 = vpop.f32.mrf.mxu0
        %v7449 = vadd.f32 %v7435, %v7448
        %7450 = vdwg.mxu0
        %7451 = vmatpush.bf16.msra.mxu0 %v5822
        %7452 = vmatpush.bf16.msra.mxu0 %v5820
        %7453 = vmatpush.bf16.msra.mxu0 %v5818
        %7454 = vmatpush.bf16.msra.mxu0 %v5816
        %7455 = vmatpush.bf16.msra.mxu0 %v5814
        %7456 = vmatpush.bf16.msra.mxu0 %v5812
        %7457 = vmatpush.bf16.msra.mxu0 %v5810
        %7458 = vmatpush.bf16.msra.mxu0 %v5808
        %7459 = vmatmul.bf16.gmra.mxu0 %v7185
        %v7460 = vpop.f32.mrf.mxu0
        %v7461 = vadd.f32 %v7447, %v7460
        %v7462 = vpop.f32.mrf.mxu0
        %v7463 = vadd.f32 %v7449, %v7462
        %7464 = vdwg.mxu0
        %7465 = vmatpush.bf16.msra.mxu0 %v5838
        %7466 = vmatpush.bf16.msra.mxu0 %v5836
        %7467 = vmatpush.bf16.msra.mxu0 %v5834
        %7468 = vmatpush.bf16.msra.mxu0 %v5832
        %7469 = vmatpush.bf16.msra.mxu0 %v5830
        %7470 = vmatpush.bf16.msra.mxu0 %v5828
        %7471 = vmatpush.bf16.msra.mxu0 %v5826
        %7472 = vmatpush.bf16.msra.mxu0 %v5824
        %7473 = vmatmul.bf16.gmra.mxu0 %v7186
        %v7474 = vpop.f32.mrf.mxu0
        %v7475 = vadd.f32 %v7461, %v7474
        %v7476 = vpop.f32.mrf.mxu0
        %v7477 = vadd.f32 %v7463, %v7476
        %7478 = vdwg.mxu0
        %7479 = vmatpush.bf16.msra.mxu0 %v5854
        %7480 = vmatpush.bf16.msra.mxu0 %v5852
        %7481 = vmatpush.bf16.msra.mxu0 %v5850
        %7482 = vmatpush.bf16.msra.mxu0 %v5848
        %7483 = vmatpush.bf16.msra.mxu0 %v5846
        %7484 = vmatpush.bf16.msra.mxu0 %v5844
        %7485 = vmatpush.bf16.msra.mxu0 %v5842
        %7486 = vmatpush.bf16.msra.mxu0 %v5840
        %7487 = vmatmul.bf16.gmra.mxu0 %v7187
        %v7488 = vpop.f32.mrf.mxu0
        %v7489 = vadd.f32 %v7475, %v7488
        %v7490 = vpop.f32.mrf.mxu0
        %v7491 = vadd.f32 %v7477, %v7490
        %7492 = vdwg.mxu0
        %7493 = vmatpush.bf16.msra.mxu0 %v5870
        %7494 = vmatpush.bf16.msra.mxu0 %v5868
        %7495 = vmatpush.bf16.msra.mxu0 %v5866
        %7496 = vmatpush.bf16.msra.mxu0 %v5864
        %7497 = vmatpush.bf16.msra.mxu0 %v5862
        %7498 = vmatpush.bf16.msra.mxu0 %v5860
        %7499 = vmatpush.bf16.msra.mxu0 %v5858
        %7500 = vmatpush.bf16.msra.mxu0 %v5856
        %7501 = vmatmul.bf16.gmra.mxu0 %v7188
        %v7502 = vpop.f32.mrf.mxu0
        %v7503 = vadd.f32 %v7489, %v7502
        %v7504 = vpop.f32.mrf.mxu0
        %v7505 = vadd.f32 %v7491, %v7504
        %7506 = vdwg.mxu0
        %7507 = vmatpush.bf16.msra.mxu0 %v5886
        %7508 = vmatpush.bf16.msra.mxu0 %v5884
        %7509 = vmatpush.bf16.msra.mxu0 %v5882
        %7510 = vmatpush.bf16.msra.mxu0 %v5880
        %7511 = vmatpush.bf16.msra.mxu0 %v5878
        %7512 = vmatpush.bf16.msra.mxu0 %v5876
        %7513 = vmatpush.bf16.msra.mxu0 %v5874
        %7514 = vmatpush.bf16.msra.mxu0 %v5872
        %7515 = vmatmul.bf16.gmra.mxu0 %v7189
        %v7516 = vpop.f32.mrf.mxu0
        %v7517 = vadd.f32 %v7503, %v7516
        %v7518 = vpop.f32.mrf.mxu0
        %v7519 = vadd.f32 %v7505, %v7518
        %7520 = vdwg.mxu0
        %7521 = vmatpush.bf16.msra.mxu0 %v5902
        %7522 = vmatpush.bf16.msra.mxu0 %v5900
        %7523 = vmatpush.bf16.msra.mxu0 %v5898
        %7524 = vmatpush.bf16.msra.mxu0 %v5896
        %7525 = vmatpush.bf16.msra.mxu0 %v5894
        %7526 = vmatpush.bf16.msra.mxu0 %v5892
        %7527 = vmatpush.bf16.msra.mxu0 %v5890
        %7528 = vmatpush.bf16.msra.mxu0 %v5888
        %7529 = vmatmul.bf16.gmra.mxu0 %v7190
        %v7530 = vpop.f32.mrf.mxu0
        %v7531 = vadd.f32 %v7517, %v7530
        %v7532 = vpop.f32.mrf.mxu0
        %v7533 = vadd.f32 %v7519, %v7532
        %7534 = vdwg.mxu0
        %7535 = vmatpush.bf16.msra.mxu0 %v5918
        %7536 = vmatpush.bf16.msra.mxu0 %v5916
        %7537 = vmatpush.bf16.msra.mxu0 %v5914
        %7538 = vmatpush.bf16.msra.mxu0 %v5912
        %7539 = vmatpush.bf16.msra.mxu0 %v5910
        %7540 = vmatpush.bf16.msra.mxu0 %v5908
        %7541 = vmatpush.bf16.msra.mxu0 %v5906
        %7542 = vmatpush.bf16.msra.mxu0 %v5904
        %7543 = vmatmul.bf16.gmra.mxu0 %v7191
        %v7544 = vpop.f32.mrf.mxu0
        %v7545 = vadd.f32 %v7531, %v7544
        %v7546 = vpop.f32.mrf.mxu0
        %v7547 = vadd.f32 %v7533, %v7546
        %7548 = vdwg.mxu0
        %7549 = vmatpush.bf16.msra.mxu0 %v5934
        %7550 = vmatpush.bf16.msra.mxu0 %v5932
        %7551 = vmatpush.bf16.msra.mxu0 %v5930
        %7552 = vmatpush.bf16.msra.mxu0 %v5928
        %7553 = vmatpush.bf16.msra.mxu0 %v5926
        %7554 = vmatpush.bf16.msra.mxu0 %v5924
        %7555 = vmatpush.bf16.msra.mxu0 %v5922
        %7556 = vmatpush.bf16.msra.mxu0 %v5920
        %7557 = vmatmul.bf16.gmra.mxu0 %v7192
        %v7558 = vpop.f32.mrf.mxu0
        %v7559 = vadd.f32 %v7545, %v7558
        %v7560 = vpop.f32.mrf.mxu0
        %v7561 = vadd.f32 %v7547, %v7560
        %7562 = vdwg.mxu0
        %7563 = vmatpush.bf16.msra.mxu0 %v5950
        %7564 = vmatpush.bf16.msra.mxu0 %v5948
        %7565 = vmatpush.bf16.msra.mxu0 %v5946
        %7566 = vmatpush.bf16.msra.mxu0 %v5944
        %7567 = vmatpush.bf16.msra.mxu0 %v5942
        %7568 = vmatpush.bf16.msra.mxu0 %v5940
        %7569 = vmatpush.bf16.msra.mxu0 %v5938
        %7570 = vmatpush.bf16.msra.mxu0 %v5936
        %7571 = vmatmul.bf16.gmra.mxu0 %v7193
        %v7572 = vpop.f32.mrf.mxu0
        %v7573 = vadd.f32 %v7559, %v7572
        %v7574 = vpop.f32.mrf.mxu0
        %v7575 = vadd.f32 %v7561, %v7574
        %7576 = vdwg.mxu0
        %7577 = vmatpush.bf16.msra.mxu0 %v5966
        %7578 = vmatpush.bf16.msra.mxu0 %v5964
        %7579 = vmatpush.bf16.msra.mxu0 %v5962
        %7580 = vmatpush.bf16.msra.mxu0 %v5960
        %7581 = vmatpush.bf16.msra.mxu0 %v5958
        %7582 = vmatpush.bf16.msra.mxu0 %v5956
        %7583 = vmatpush.bf16.msra.mxu0 %v5954
        %7584 = vmatpush.bf16.msra.mxu0 %v5952
        %7585 = vmatmul.bf16.gmra.mxu0 %v7194
        %v7586 = vpop.f32.mrf.mxu0
        %v7587 = vadd.f32 %v7573, %v7586
        %v7588 = vpop.f32.mrf.mxu0
        %v7589 = vadd.f32 %v7575, %v7588
        %7590 = vdwg.mxu0
        %7591 = vmatpush.bf16.msra.mxu0 %v5982
        %7592 = vmatpush.bf16.msra.mxu0 %v5980
        %7593 = vmatpush.bf16.msra.mxu0 %v5978
        %7594 = vmatpush.bf16.msra.mxu0 %v5976
        %7595 = vmatpush.bf16.msra.mxu0 %v5974
        %7596 = vmatpush.bf16.msra.mxu0 %v5972
        %7597 = vmatpush.bf16.msra.mxu0 %v5970
        %7598 = vmatpush.bf16.msra.mxu0 %v5968
        %7599 = vmatmul.bf16.gmra.mxu0 %v7195
        %v7600 = vpop.f32.mrf.mxu0
        %v7601 = vadd.f32 %v7587, %v7600
        %v7602 = vpop.f32.mrf.mxu0
        %v7603 = vadd.f32 %v7589, %v7602
        %7604 = vdwg.mxu0
        %7605 = vmatpush.bf16.msra.mxu0 %v5998
        %7606 = vmatpush.bf16.msra.mxu0 %v5996
        %7607 = vmatpush.bf16.msra.mxu0 %v5994
        %7608 = vmatpush.bf16.msra.mxu0 %v5992
        %7609 = vmatpush.bf16.msra.mxu0 %v5990
        %7610 = vmatpush.bf16.msra.mxu0 %v5988
        %7611 = vmatpush.bf16.msra.mxu0 %v5986
        %7612 = vmatpush.bf16.msra.mxu0 %v5984
        %7613 = vmatmul.bf16.gmra.mxu0 %v7196
        %v7614 = vpop.f32.mrf.mxu0
        %v7615 = vadd.f32 %v7601, %v7614
        %v7616 = vpop.f32.mrf.mxu0
        %v7617 = vadd.f32 %v7603, %v7616
        %7618 = vdwg.mxu0
        %7619 = vmatpush.bf16.msra.mxu0 %v6014
        %7620 = vmatpush.bf16.msra.mxu0 %v6012
        %7621 = vmatpush.bf16.msra.mxu0 %v6010
        %7622 = vmatpush.bf16.msra.mxu0 %v6008
        %7623 = vmatpush.bf16.msra.mxu0 %v6006
        %7624 = vmatpush.bf16.msra.mxu0 %v6004
        %7625 = vmatpush.bf16.msra.mxu0 %v6002
        %7626 = vmatpush.bf16.msra.mxu0 %v6000
        %7627 = vmatmul.bf16.gmra.mxu0 %v7197
        %v7628 = vpop.f32.mrf.mxu0
        %v7629 = vadd.f32 %v7615, %v7628
        %v7630 = vpop.f32.mrf.mxu0
        %v7631 = vadd.f32 %v7617, %v7630
        %7632 = vdwg.mxu0
        %7633 = vmatpush.bf16.msra.mxu0 %v6030
        %7634 = vmatpush.bf16.msra.mxu0 %v6028
        %7635 = vmatpush.bf16.msra.mxu0 %v6026
        %7636 = vmatpush.bf16.msra.mxu0 %v6024
        %7637 = vmatpush.bf16.msra.mxu0 %v6022
        %7638 = vmatpush.bf16.msra.mxu0 %v6020
        %7639 = vmatpush.bf16.msra.mxu0 %v6018
        %7640 = vmatpush.bf16.msra.mxu0 %v6016
        %7641 = vmatmul.bf16.gmra.mxu0 %v7198
        %v7642 = vpop.f32.mrf.mxu0
        %v7643 = vadd.f32 %v7629, %v7642
        %v7644 = vpop.f32.mrf.mxu0
        %v7645 = vadd.f32 %v7631, %v7644
        %7646 = vdwg.mxu0
        %v7647 = vmul.f32 %v4348, %v7419
        %v7648 = vmul.f32 %v4350, %v7421
        %v7649 = vmul.f32 %v4353, %v7419
        %v7650 = vmul.f32 %v4355, %v7421
        %v7651 = vmul.f32 %v4358, %v7419
        %v7652 = vmul.f32 %v4360, %v7421
        %v7653 = vmul.f32 %v4363, %v7419
        %v7654 = vmul.f32 %v4365, %v7421
        %v7655 = vadd.f32 %v7647, %v7648
        %v7656 = vrot.slane %v7655, 4
        %v7657 = vadd.f32 %v7655, %v7656
        %v7658 = vrot.slane %v7657, 2
        %v7659 = vadd.f32 %v7657, %v7658
        %v7660 = vrot.slane %v7659, 1
        %v7661 = vadd.f32 %v7659, %v7660
        %v7662 = vadd.f32 %v7649, %v7650
        %v7663 = vrot.slane %v7662, 4
        %v7664 = vadd.f32 %v7662, %v7663
        %v7665 = vrot.slane %v7664, 2
        %v7666 = vadd.f32 %v7664, %v7665
        %v7667 = vrot.slane %v7666, 1
        %v7668 = vadd.f32 %v7666, %v7667
        %v7669 = vadd.f32 %v7651, %v7652
        %v7670 = vrot.slane %v7669, 4
        %v7671 = vadd.f32 %v7669, %v7670
        %v7672 = vrot.slane %v7671, 2
        %v7673 = vadd.f32 %v7671, %v7672
        %v7674 = vrot.slane %v7673, 1
        %v7675 = vadd.f32 %v7673, %v7674
        %v7676 = vadd.f32 %v7653, %v7654
        %v7677 = vrot.slane %v7676, 4
        %v7678 = vadd.f32 %v7676, %v7677
        %v7679 = vrot.slane %v7678, 2
        %v7680 = vadd.f32 %v7678, %v7679
        %v7681 = vrot.slane %v7680, 1
        %v7682 = vadd.f32 %v7680, %v7681
        %v7683 = vadd.f32 %v6771, %v7661
        %v7684 = vadd.f32 %v6772, %v7668
        %v7685 = vadd.f32 %v6773, %v7675
        %v7686 = vadd.f32 %v6774, %v7682
        %v7687 = vmul.f32 %v4348, %v7643
        %v7688 = vmul.f32 %v4350, %v7645
        %v7689 = vmul.f32 %v4353, %v7643
        %v7690 = vmul.f32 %v4355, %v7645
        %v7691 = vmul.f32 %v4358, %v7643
        %v7692 = vmul.f32 %v4360, %v7645
        %v7693 = vmul.f32 %v4363, %v7643
        %v7694 = vmul.f32 %v4365, %v7645
        %v7695 = vadd.f32 %v7687, %v7688
        %v7696 = vrot.slane %v7695, 4
        %v7697 = vadd.f32 %v7695, %v7696
        %v7698 = vrot.slane %v7697, 2
        %v7699 = vadd.f32 %v7697, %v7698
        %v7700 = vrot.slane %v7699, 1
        %v7701 = vadd.f32 %v7699, %v7700
        %v7702 = vadd.f32 %v7689, %v7690
        %v7703 = vrot.slane %v7702, 4
        %v7704 = vadd.f32 %v7702, %v7703
        %v7705 = vrot.slane %v7704, 2
        %v7706 = vadd.f32 %v7704, %v7705
        %v7707 = vrot.slane %v7706, 1
        %v7708 = vadd.f32 %v7706, %v7707
        %v7709 = vadd.f32 %v7691, %v7692
        %v7710 = vrot.slane %v7709, 4
        %v7711 = vadd.f32 %v7709, %v7710
        %v7712 = vrot.slane %v7711, 2
        %v7713 = vadd.f32 %v7711, %v7712
        %v7714 = vrot.slane %v7713, 1
        %v7715 = vadd.f32 %v7713, %v7714
        %v7716 = vadd.f32 %v7693, %v7694
        %v7717 = vrot.slane %v7716, 4
        %v7718 = vadd.f32 %v7716, %v7717
        %v7719 = vrot.slane %v7718, 2
        %v7720 = vadd.f32 %v7718, %v7719
        %v7721 = vrot.slane %v7720, 1
        %v7722 = vadd.f32 %v7720, %v7721
        %v7723 = vadd.f32 %v6811, %v7701
        %v7724 = vadd.f32 %v6812, %v7708
        %v7725 = vadd.f32 %v6813, %v7715
        %v7726 = vadd.f32 %v6814, %v7722
        %vm7731 = vcmask 1041409
        %v7732 = vsel %vm7731, %v7684, %v7683
        %vm7733 = vcmask 1042434
        %v7734 = vsel %vm7733, %v7685, %v7732
        %vm7735 = vcmask 1043459
        %v7736 = vsel %vm7735, %v7686, %v7734
        %vm7742 = vcmask 1045509
        %v7743 = vsel %vm7742, %v7724, %v7723
        %vm7744 = vcmask 1046534
        %v7745 = vsel %vm7744, %v7725, %v7743
        %vm7746 = vcmask 1047559
        %v7747 = vsel %vm7746, %v7726, %v7745
        %v7749 = vsel %vm3788, %v7736, %v7747
        %v7750 = vld [vmem:[%s9] sm:$0xf]
        %v7751 = vpack.c.bf16 %v7749, %v7749
        %v7752 = vmul.f32 %v621, 16.0
        %7754 = vset.pattern.permute.xlu0 0
        %7755 = vperm.xlu0 %7754, %v7752
        %v7756 = vpop.permute.xlu0 %7755
        %v7759 = vsel %vm3781, %v7750, 0
        %v7762 = vsel %vm3788, %v7751, 0
        %7764 = vmatpush.bf16.msra.mxu0 0
        %7765 = vmatpush.bf16.msra.mxu0 0
        %7766 = vmatpush.bf16.msra.mxu0 0
        %7767 = vmatpush.bf16.msra.mxu0 0
        %7768 = vmatpush.bf16.msra.mxu0 0
        %7769 = vmatpush.bf16.msra.mxu0 0
        %7770 = vmatpush.bf16.msra.mxu0 0
        %7771 = vmatpush.bf16.msra.mxu0 %v7762
        %7772 = vmatmul.bf16.gmra.mxu0 %v7759
        %v7773 = vpop.f32.mrf.mxu0
        %v7774 = vadd.f32 %v7756, %v7773
        %v7775 = vpop.f32.mrf.mxu0
        %7776 = vdwg.mxu0
        %7777 = vst [vmem:[%s574] sm:$0xff] %v7774
        %p7778 = scmp.lt.s32.totalorder %s22, 1
        %s7779 = scalar_select %p7778, %s22, 1
        %s7780 = smul.addr %s7779, 8
        %s7781 = scalar_lea.vmem %s11, %s7780
        // Predicated region
        $region129: #{self_attn_2d_pallas.1} parent=119 // pred_check
          %p7782 = pneg %p281
        $region130: #{self_attn_2d_pallas.1} parent=119 // pred_check_branch
          %7784 = sbr.rel (%p7782) target = $region132
        $region131: #{self_attn_2d_pallas.1} parent=119 // pred_region
          _
        $region132: #{self_attn_2d_pallas.1} parent=119 // pred_fallthru
          _
      $region120: #{self_attn_2d_pallas.1} parent=5 // pred_fallthru
        _
      %p7785 = scmp.le.s32.totalorder 2, %s17
      // Predicated region
      $region133: #{self_attn_2d_pallas.1} parent=5 // pred_check
        %p7786 = pneg %p7785
      $region134: #{self_attn_2d_pallas.1} parent=5 // pred_check_branch
        %7788 = sbr.rel (%p7786) target = $region136
      $region135: #{self_attn_2d_pallas.1} parent=5 // pred_region
        %s7789 = ssub.s32 %s17, 2
        // Predicated region
        $region137: #{self_attn_2d_pallas.1} parent=135 // pred_check
          %p7790 = pneg %p287
        $region138: #{self_attn_2d_pallas.1} parent=135 // pred_check_branch
          %7792 = sbr.rel (%p7790) target = $region140
        $region139: #{self_attn_2d_pallas.1} parent=135 // pred_region
          %p7793 = scmp.lt.s32.totalorder %s23, 1
          %s7794 = scalar_select %p7793, %s23, 1
          %s7795 = smul.addr %s7794, 8
          %s7796 = scalar_lea.vmem %s11, %s7795
        $region140: #{self_attn_2d_pallas.1} parent=135 // pred_fallthru
          _
      $region136: #{self_attn_2d_pallas.1} parent=5 // pred_fallthru
        _
    $region6: #{self_attn_2d_pallas.1} parent=1 // loop_footer
      %s21 = sadd.s32 1, %s17
    $region7: #{self_attn_2d_pallas.1} parent=1 // loop_footer_branch
      %16 = sbr.rel target = $region3
    $region8: #{self_attn_2d_pallas.1} parent=1 // loop_exit
      _

</llo_original>
